<compile_context>
chip_gen: v7x
topology: tpu7x:2x2x1
jax: 0.10.0
libtpu: 0.0.40
codegen_flags: <defaults>
</compile_context>

<pallas_src>
import functools

import jax
import jax.numpy as jnp
from jax.experimental import pallas as pl
from jax.experimental.pallas import tpu as pltpu

LANE = 128
_VMEM_LIMIT = 32 * 1024 * 1024    # explicit scoped-VMEM limit (safe on v5e/v6e/v7x)
_VMEM_BUDGET = 24 * 1024 * 1024   # what the tile chooser sizes against (headroom)


def _round_up(x, m):
    return (x + m - 1) // m * m


def _choose_tile_m(M, K, Cpad, budget=_VMEM_BUDGET):
    """Largest M tile (multiple of 8) whose double-buffered working set fits."""
    cap = max(8, _round_up(M, 8))
    tile = 8
    for cand in (1024, 512, 256, 128, 64, 32, 16, 8):
        need = (2 * cand * K * 2          # bf16 patch tile, double buffered
                + 2 * cand * Cpad * 4     # f32 output tile, double buffered
                + 2 * K * Cpad * 2        # bf16 weight tile, double buffered
                + 4 * 2 * Cpad * 4)       # stats / per-channel vectors
        if need <= budget:
            tile = cand
            break
    return min(tile, cap)


def _compiler_params(n_grid_dims):
    return pltpu.CompilerParams(
        dimension_semantics=("parallel",) * n_grid_dims,
        vmem_limit_bytes=_VMEM_LIMIT,
    )


# ----------------------------------------------------------------------------
# Pallas kernels (all see 2-D lane-dense blocks)
# ----------------------------------------------------------------------------
def _matmul_stats_kernel(p_ref, w_ref, y_ref, s_ref):
    # p_ref: (TM, K) bf16   w_ref: (K, C) bf16   y_ref: (TM, C) f32
    # s_ref: (1, 2, C) f32  -> per-tile [sum, sum_sq] over rows
    y = jnp.dot(p_ref[...], w_ref[...], preferred_element_type=jnp.float32)
    y_ref[...] = y
    ssum = jnp.sum(y, axis=0, keepdims=True)        # (1, C)
    ssq = jnp.sum(y * y, axis=0, keepdims=True)     # (1, C)
    s_ref[...] = jnp.concatenate([ssum, ssq], axis=0)[None]


def _scale_shift_relu_kernel(y_ref, scale_ref, shift_ref, o_ref):
    # y_ref: (TM, C) f32   scale/shift: (1, C) f32   o_ref: (TM, C) bf16
    y = y_ref[...] * scale_ref[...] + shift_ref[...]
    o_ref[...] = jnp.maximum(y, 0.0).astype(o_ref.dtype)


def _matmul_bias_tanh_kernel(p_ref, w_ref, b_ref, o_ref):
    # p_ref: (TM, K) bf16   w_ref: (K, C) bf16   b_ref: (1, C) f32
    y = jnp.dot(p_ref[...], w_ref[...], preferred_element_type=jnp.float32)
    o_ref[...] = jnp.tanh(y + b_ref[...]).astype(o_ref.dtype)


# ----------------------------------------------------------------------------
# pallas_call wrappers (B = number of sub-pixel branches; 1 for the first layer)
# ----------------------------------------------------------------------------
def _batched_matmul_stats(patches, wmats):
    # patches: (B, M, K) bf16   wmats: (B, K, Cpad) bf16
    B, M, K = patches.shape
    Cpad = wmats.shape[2]
    tile_m = _choose_tile_m(M, K, Cpad)
    m_pad = _round_up(M, tile_m)
    num_tiles = m_pad // tile_m
    if m_pad != M:
        patches = jnp.pad(patches, ((0, 0), (0, m_pad - M), (0, 0)))

    cost = pl.CostEstimate(
        flops=2 * B * m_pad * K * Cpad,
        transcendentals=0,
        bytes_accessed=B * (m_pad * K * 2 + K * Cpad * 2 + m_pad * Cpad * 4),
    )
    y, partial = pl.pallas_call(
        _matmul_stats_kernel,
        out_shape=(
            jax.ShapeDtypeStruct((B, m_pad, Cpad), jnp.float32),
            jax.ShapeDtypeStruct((B, num_tiles, 2, Cpad), jnp.float32),
        ),
        grid_spec=pltpu.PrefetchScalarGridSpec(
            num_scalar_prefetch=0,
            grid=(B, num_tiles),
            in_specs=[
                pl.BlockSpec((None, tile_m, K), lambda b, i: (b, i, 0)),
                pl.BlockSpec((None, K, Cpad), lambda b, i: (b, 0, 0)),
            ],
            out_specs=(
                pl.BlockSpec((None, tile_m, Cpad), lambda b, i: (b, i, 0)),
                pl.BlockSpec((None, 1, 2, Cpad), lambda b, i: (b, i, 0, 0)),
            ),
        ),
        compiler_params=_compiler_params(2),
        cost_estimate=cost,
    )(patches, wmats)
    return y, partial, tile_m, m_pad


def fused_deconv_bn_relu(patches, wmats, gamma, beta, eps=1e-5):
    """patches (B,M,K) bf16, wmats (B,K,Cpad) bf16 -> BN(batch stats)+ReLU, (B,M,Cpad) bf16."""
    B, M, _ = patches.shape
    Cpad = wmats.shape[2]
    y, partial, tile_m, m_pad = _batched_matmul_stats(patches, wmats)
    num_tiles = m_pad // tile_m

    # Batch statistics over all B*M true rows (padding rows contribute exact 0).
    rows_total = B * M
    sums = jnp.sum(partial, axis=(0, 1))                  # (2, Cpad)
    mean = sums[0] / rows_total
    var = jnp.maximum(sums[1] / rows_total - mean * mean, 0.0)   # biased batch var
    scale = gamma[0] * jax.lax.rsqrt(var + eps)
    shift = beta[0] - mean * scale
    scale = scale.reshape(1, Cpad).astype(jnp.float32)
    shift = shift.reshape(1, Cpad).astype(jnp.float32)

    out = pl.pallas_call(
        _scale_shift_relu_kernel,
        out_shape=jax.ShapeDtypeStruct((B, m_pad, Cpad), jnp.bfloat16),
        grid_spec=pltpu.PrefetchScalarGridSpec(
            num_scalar_prefetch=0,
            grid=(B, num_tiles),
            in_specs=[
                pl.BlockSpec((None, tile_m, Cpad), lambda b, i: (b, i, 0)),
                pl.BlockSpec((1, Cpad), lambda b, i: (0, 0)),
                pl.BlockSpec((1, Cpad), lambda b, i: (0, 0)),
            ],
            out_specs=pl.BlockSpec((None, tile_m, Cpad), lambda b, i: (b, i, 0)),
        ),
        compiler_params=_compiler_params(2),
    )(y, scale, shift)
    return out[:, :M]


def fused_deconv_bias_tanh(patches, wmats, bias):
    """Final layer: matmul + bias + tanh, tiled over (branch, M). Returns (B,M,Cpad) f32."""
    B, M, K = patches.shape
    Cpad = wmats.shape[2]
    tile_m = _choose_tile_m(M, K, Cpad)
    m_pad = _round_up(M, tile_m)
    num_tiles = m_pad // tile_m
    if m_pad != M:
        patches = jnp.pad(patches, ((0, 0), (0, m_pad - M), (0, 0)))

    cost = pl.CostEstimate(
        flops=2 * B * m_pad * K * Cpad,
        transcendentals=B * m_pad * Cpad,
        bytes_accessed=B * (m_pad * K * 2 + K * Cpad * 2 + m_pad * Cpad * 4),
    )
    out = pl.pallas_call(
        _matmul_bias_tanh_kernel,
        out_shape=jax.ShapeDtypeStruct((B, m_pad, Cpad), jnp.float32),
        grid_spec=pltpu.PrefetchScalarGridSpec(
            num_scalar_prefetch=0,
            grid=(B, num_tiles),
            in_specs=[
                pl.BlockSpec((None, tile_m, K), lambda b, i: (b, i, 0)),
                pl.BlockSpec((None, K, Cpad), lambda b, i: (b, 0, 0)),
                pl.BlockSpec((1, Cpad), lambda b, i: (0, 0)),
            ],
            out_specs=pl.BlockSpec((None, tile_m, Cpad), lambda b, i: (b, i, 0)),
        ),
        compiler_params=_compiler_params(2),
        cost_estimate=cost,
    )(patches, wmats, bias)
    return out[:, :M]


# ----------------------------------------------------------------------------
# Plain-JAX glue: patch extraction / sub-pixel interleave (pure layout work)
# ----------------------------------------------------------------------------
def _im2col_deconv_nhwc(x_nhwc, k, stride, padding):
    """Generic ConvTranspose2d == zero-insert + flip(kernel) + im2col (layer 1 only)."""
    N, H, W, C = x_nhwc.shape
    if stride > 1:
        Hd = (H - 1) * stride + 1
        Wd = (W - 1) * stride + 1
        xz = jnp.zeros((N, Hd, Wd, C), x_nhwc.dtype)
        xz = xz.at[:, ::stride, ::stride, :].set(x_nhwc)
    else:
        xz, Hd, Wd = x_nhwc, H, W
    pad = k - 1 - padding
    xp = jnp.pad(xz, ((0, 0), (pad, pad), (pad, pad), (0, 0)))
    Hout = Hd + 2 * pad - k + 1
    Wout = Wd + 2 * pad - k + 1
    cols = [
        xp[:, kh:kh + Hout, kw:kw + Wout, :]
        for kh in range(k)
        for kw in range(k)
    ]
    patches = jnp.concatenate(cols, axis=-1)            # (N, Hout, Wout, k*k*C)
    patches = patches.reshape(N * Hout * Wout, k * k * C)
    return patches, Hout, Wout


def _subpixel_patches(x_nhwc):
    """Sub-pixel patches for a (k=4, s=2, p=1) ConvTranspose2d.

    Output branch b = 2*ph + pw computes out[:, 2h+ph, 2w+pw, :]; each branch
    only needs a 2x2-tap window of the original input -> K = 4*C (no zeros).
    """
    N, H, W, C = x_nhwc.shape
    xp = jnp.pad(x_nhwc, ((0, 0), (1, 1), (1, 1), (0, 0)))
    branches = []
    for ph in (0, 1):
        for pw in (0, 1):
            cols = [xp[:, ph + dh:ph + dh + H, pw + dw:pw + dw + W, :]
                    for dh in (0, 1) for dw in (0, 1)]
            branches.append(
                jnp.concatenate(cols, axis=-1).reshape(N * H * W, 4 * C))
    return jnp.stack(branches, axis=0), H, W            # (4, N*H*W, 4*C)


def _interleave_subpixel(y, N, H, W, C):
    """y: (4, N*H*W, C), branch b = 2*ph+pw -> out[n, 2h+ph, 2w+pw, c]."""
    y = y.reshape(2, 2, N, H, W, C)
    y = y.transpose(2, 3, 0, 4, 1, 5)                    # (N, H, 2, W, 2, C)
    return y.reshape(N, 2 * H, 2 * W, C)


# ----------------------------------------------------------------------------
# Generator parameters + forward
# ----------------------------------------------------------------------------
def init_generator_params(key, latent_dim, img_channels, feature_g):
    specs = [
        (latent_dim, feature_g * 16, 1, 0),   # (Cin, Cout, stride, padding)
        (feature_g * 16, feature_g * 8, 2, 1),
        (feature_g * 8, feature_g * 4, 2, 1),
        (feature_g * 4, feature_g * 2, 2, 1),
        (feature_g * 2, img_channels, 2, 1),
    ]
    params = []
    for cin, cout, stride, padding in specs:
        key, kw, kb = jax.random.split(key, 3)
        w = 0.05 * jax.random.normal(kw, (cin, cout, 4, 4), jnp.float32)
        b = 0.05 * jax.random.normal(kb, (cout,), jnp.float32)
        gamma = jnp.ones((cout,), jnp.float32)
        beta = jnp.zeros((cout,), jnp.float32)
        params.append(dict(w=w, b=b, gamma=gamma, beta=beta,
                           stride=stride, padding=padding))
    return params


def prepare_generator_params(raw_params, latent_dim):
    """Precompute flipped, patch-ordered, lane-padded bf16 weight matrices."""
    prepared = []
    cin_carried = latent_dim          # channels actually carried between layers
    for p in raw_params:
        w = p["w"]                                   # (Cin, Cout, k, k)
        cin, cout, k, _ = w.shape
        cpad = _round_up(cout, LANE)
        if cin_carried > cin:                        # previous layer was lane-padded
            w = jnp.pad(w, ((0, cin_carried - cin), (0, 0), (0, 0), (0, 0)))
        w_flip = w[:, :, ::-1, ::-1]                 # spatial flip, (Cinp, Cout, k, k)
        if p["stride"] == 1:
            # Generic im2col weight: rows ordered (kh, kw, ci).
            wmat = w_flip.transpose(2, 3, 0, 1).reshape(k * k * cin_carried, cout)
            wmat = wmat[None]                        # (1, K, Cout)
        else:
            assert k == 4 and p["stride"] == 2 and p["padding"] == 1
            branches = []
            for ph in (0, 1):
                for pw in (0, 1):
                    # taps[dh, dw] = flipped-kernel tap (ph+2dh, pw+2dw); rows (dh, dw, ci).
                    taps = jnp.stack(
                        [jnp.stack([w_flip[:, :, ph + 2 * dh, pw + 2 * dw]
                                    for dw in (0, 1)], axis=0)
                         for dh in (0, 1)], axis=0)          # (2, 2, Cinp, Cout)
                    branches.append(taps.reshape(4 * cin_carried, cout))
            wmat = jnp.stack(branches, axis=0)               # (4, 4*Cinp, Cout)
        wmat = jnp.pad(wmat, ((0, 0), (0, 0), (0, cpad - cout))).astype(jnp.bfloat16)
        bias = jnp.pad(p["b"], (0, cpad - cout)).reshape(1, cpad)
        gamma = jnp.pad(p["gamma"], (0, cpad - cout)).reshape(1, cpad)
        beta = jnp.pad(p["beta"], (0, cpad - cout)).reshape(1, cpad)
        prepared.append(dict(wmat=wmat, bias=bias, gamma=gamma, beta=beta,
                             k=k, stride=p["stride"], padding=p["padding"],
                             cout=cout, cpad=cpad))
        cin_carried = cpad
    return prepared


def generator_forward(prepared, x_nchw):
    N = x_nchw.shape[0]
    h = x_nchw.transpose(0, 2, 3, 1).astype(jnp.bfloat16)     # NHWC bf16
    n_layers = len(prepared)
    for i, p in enumerate(prepared):
        if p["stride"] == 1:
            patches2d, Hout, Wout = _im2col_deconv_nhwc(
                h, p["k"], p["stride"], p["padding"])
            patches = patches2d[None]                          # (1, M, K)
        else:
            patches, Hin, Win = _subpixel_patches(h)           # (4, N*Hin*Win, 4*C)
            Hout, Wout = 2 * Hin, 2 * Win

        if i < n_layers - 1:
            # ConvTranspose2d bias is dropped: it is exactly canceled by the
            # BatchNorm mean subtraction (training-mode batch statistics).
            y = fused_deconv_bn_relu(patches, p["wmat"], p["gamma"], p["beta"])
        else:
            y = fused_deconv_bias_tanh(patches, p["wmat"], p["bias"])

        if p["stride"] == 1:
            h = y[0].reshape(N, Hout, Wout, p["cpad"])
        else:
            h = _interleave_subpixel(y, N, Hout // 2, Wout // 2, p["cpad"])

        if i == n_layers - 1:
            out = h[..., :p["cout"]]
            return out.transpose(0, 3, 1, 2).astype(jnp.float32)   # back to NCHW
    return h


# ----------------------------------------------------------------------------
# Pure-JAX f32 reference (XLA only) for numerical validation
# ----------------------------------------------------------------------------
def reference_forward(raw_params, x_nchw, eps=1e-5):
    h = x_nchw.transpose(0, 2, 3, 1)                  # NHWC f32
    n_layers = len(raw_params)
    for i, p in enumerate(raw_params):
        w = p["w"]                                    # (Cin, Cout, k, k)
        k = w.shape[2]
        stride, padding = p["stride"], p["padding"]
        w_hwio = w[:, :, ::-1, ::-1].transpose(2, 3, 0, 1)   # flipped, HWIO
        pad = k - 1 - padding
        y = jax.lax.conv_general_dilated(
            h, w_hwio, window_strides=(1, 1),
            padding=[(pad, pad), (pad, pad)],
            lhs_dilation=(stride, stride),
            dimension_numbers=("NHWC", "HWIO", "NHWC"))
        y = y + p["b"].reshape(1, 1, 1, -1)
        if i < n_layers - 1:
            mean = jnp.mean(y, axis=(0, 1, 2), keepdims=True)
            var = jnp.var(y, axis=(0, 1, 2), keepdims=True)
            y = (y - mean) * jax.lax.rsqrt(var + eps)
            y = y * p["gamma"].reshape(1, 1, 1, -1) + p["beta"].reshape(1, 1, 1, -1)
            h = jnp.maximum(y, 0.0)
        else:
            h = jnp.tanh(y)
    return h.transpose(0, 3, 1, 2)


if __name__ == "__main__":
    latent_dim, img_channels, feature_g = 16, 3, 4
    batch = 2

    key = jax.random.PRNGKey(0)
    key, kx = jax.random.split(key)
    x = jax.random.normal(kx, (batch, latent_dim, 1, 1), jnp.float32)

    raw_params = init_generator_params(key, latent_dim, img_channels, feature_g)
    prepared = prepare_generator_params(raw_params, latent_dim)

    fwd = jax.jit(functools.partial(generator_forward, prepared))
    out = jax.block_until_ready(fwd(x))

    # 1x1 -> 4 -> 8 -> 16 -> 32 -> 64
    assert out.shape == (batch, img_channels, 64, 64), out.shape
    assert bool(jnp.all(jnp.isfinite(out)))
    assert bool(jnp.all(jnp.abs(out) <= 1.0 + 1e-6))  # tanh range

    # Numerical check against the pure-XLA f32 reference (bf16 MXU tolerance).
    ref = jax.block_until_ready(reference_forward(raw_params, x))
    max_err = float(jnp.max(jnp.abs(out - ref)))
    assert max_err < 0.1, max_err

    print("KERNEL_OK")
</pallas_src>

<mosaic_0001>
module attributes {stable_mosaic.version = 11 : i64} {
  func.func @_matmul_stats_kernel(%arg0: i32, %arg1: i32, %arg2: memref<1x32x256xbf16, #tpu.memory_space<vmem>>, %arg3: memref<1x256x128xbf16, #tpu.memory_space<vmem>>, %arg4: memref<1x32x128xf32, #tpu.memory_space<vmem>>, %arg5: memref<1x1x2x128xf32, #tpu.memory_space<vmem>>) attributes {dimension_semantics = [#tpu.dimension_semantics<parallel>, #tpu.dimension_semantics<parallel>], iteration_bounds = array<i64: 1, 1>, scalar_prefetch = 0 : i64, scratch_operands = 0 : i64, tpu.core_type = #tpu.core_type<tc>, window_params = [{transform_indices = @transform_0, window_bounds = array<i64: 1, 32, 256>}, {transform_indices = @transform_1, window_bounds = array<i64: 1, 256, 128>}, {transform_indices = @transform_2, window_bounds = array<i64: 1, 32, 128>}, {transform_indices = @transform_3, window_bounds = array<i64: 1, 1, 2, 128>}]} {
    %c0 = arith.constant 0 : index
    %c0_0 = arith.constant 0 : index
    %c0_1 = arith.constant 0 : index
    %0 = vector.load %arg2[%c0, %c0_0, %c0_1] : memref<1x32x256xbf16, #tpu.memory_space<vmem>>, vector<1x32x256xbf16>
    %1 = vector.shape_cast %0 : vector<1x32x256xbf16> to vector<32x256xbf16>
    %c0_2 = arith.constant 0 : index
    %c0_3 = arith.constant 0 : index
    %c0_4 = arith.constant 0 : index
    %2 = vector.load %arg3[%c0_2, %c0_3, %c0_4] : memref<1x256x128xbf16, #tpu.memory_space<vmem>>, vector<1x256x128xbf16>
    %3 = vector.shape_cast %2 : vector<1x256x128xbf16> to vector<256x128xbf16>
    %cst = arith.constant dense<0.000000e+00> : vector<32x128xf32>
    %4 = tpu.matmul %1, %3, %cst {dimension_numbers = #tpu.dot_dimension_numbers<[1], [0], [0], [1], [0, 0, 1, 1], [], []>} : vector<32x256xbf16>, vector<256x128xbf16>, vector<32x128xf32> -> vector<32x128xf32>
    %c0_5 = arith.constant 0 : index
    %c0_6 = arith.constant 0 : index
    %c0_7 = arith.constant 0 : index
    %5 = vector.load %arg4[%c0_5, %c0_6, %c0_7] : memref<1x32x128xf32, #tpu.memory_space<vmem>>, vector<1x32x128xf32>
    %6 = vector.shape_cast %5 : vector<1x32x128xf32> to vector<32x128xf32>
    %7 = vector.shape_cast %4 : vector<32x128xf32> to vector<1x32x128xf32>
    tpu.vector_store %arg4[%c0_5, %c0_6, %c0_7], %7 {strides = array<i32>} : memref<1x32x128xf32, #tpu.memory_space<vmem>>, vector<1x32x128xf32>,
    %cst_8 = arith.constant dense<0.000000e+00> : vector<128xf32>
    %8 = vector.multi_reduction <add>, %4, %cst_8 [0] : vector<32x128xf32> to vector<128xf32>
    %9 = vector.shape_cast %8 : vector<128xf32> to vector<1x128xf32>
    %10 = arith.mulf %4, %4 : vector<32x128xf32>
    %cst_9 = arith.constant dense<0.000000e+00> : vector<128xf32>
    %11 = vector.multi_reduction <add>, %10, %cst_9 [0] : vector<32x128xf32> to vector<128xf32>
    %12 = vector.shape_cast %11 : vector<128xf32> to vector<1x128xf32>
    %13 = tpu.concatenate %9, %12 in 0 : vector<1x128xf32>, vector<1x128xf32> -> vector<2x128xf32>
    %14 = vector.shape_cast %13 : vector<2x128xf32> to vector<1x2x128xf32>
    %c0_10 = arith.constant 0 : index
    %c0_11 = arith.constant 0 : index
    %c0_12 = arith.constant 0 : index
    %c0_13 = arith.constant 0 : index
    %15 = vector.load %arg5[%c0_10, %c0_11, %c0_12, %c0_13] : memref<1x1x2x128xf32, #tpu.memory_space<vmem>>, vector<1x1x2x128xf32>
    %16 = vector.shape_cast %15 : vector<1x1x2x128xf32> to vector<1x2x128xf32>
    %17 = vector.shape_cast %14 : vector<1x2x128xf32> to vector<1x1x2x128xf32>
    tpu.vector_store %arg5[%c0_10, %c0_11, %c0_12, %c0_13], %17 {strides = array<i32>} : memref<1x1x2x128xf32, #tpu.memory_space<vmem>>, vector<1x1x2x128xf32>,
    return
  }
  func.func @transform_0(%arg0: i32, %arg1: i32) -> (i32, i32, i32) {
    %c0_i32 = arith.constant 0 : i32
    %c0_i32_0 = arith.constant 0 : i32
    return %arg0, %arg1, %c0_i32 : i32, i32, i32
  }
  func.func @transform_1(%arg0: i32, %arg1: i32) -> (i32, i32, i32) {
    %c0_i32 = arith.constant 0 : i32
    %c0_i32_0 = arith.constant 0 : i32
    %c0_i32_1 = arith.constant 0 : i32
    return %arg0, %c0_i32, %c0_i32_0 : i32, i32, i32
  }
  func.func @transform_2(%arg0: i32, %arg1: i32) -> (i32, i32, i32) {
    %c0_i32 = arith.constant 0 : i32
    %c0_i32_0 = arith.constant 0 : i32
    return %arg0, %arg1, %c0_i32 : i32, i32, i32
  }
  func.func @transform_3(%arg0: i32, %arg1: i32) -> (i32, i32, i32, i32) {
    %c0_i32 = arith.constant 0 : i32
    %c0_i32_0 = arith.constant 0 : i32
    %c0_i32_1 = arith.constant 0 : i32
    return %arg0, %arg1, %c0_i32, %c0_i32_0 : i32, i32, i32, i32
  }
}

module attributes {stable_mosaic.version = 11 : i64} {
  func.func @_scale_shift_relu_kernel(%arg0: i32, %arg1: i32, %arg2: memref<1x32x128xf32, #tpu.memory_space<vmem>>, %arg3: memref<1x128xf32, #tpu.memory_space<vmem>>, %arg4: memref<1x128xf32, #tpu.memory_space<vmem>>, %arg5: memref<1x32x128xbf16, #tpu.memory_space<vmem>>) attributes {dimension_semantics = [#tpu.dimension_semantics<parallel>, #tpu.dimension_semantics<parallel>], iteration_bounds = array<i64: 1, 1>, scalar_prefetch = 0 : i64, scratch_operands = 0 : i64, tpu.core_type = #tpu.core_type<tc>, window_params = [{transform_indices = @transform_0, window_bounds = array<i64: 1, 32, 128>}, {pipeline_mode = #tpu.pipeline_mode<synchronous>, transform_indices = @transform_1, window_bounds = array<i64: 1, 128>}, {pipeline_mode = #tpu.pipeline_mode<synchronous>, transform_indices = @transform_2, window_bounds = array<i64: 1, 128>}, {transform_indices = @transform_3, window_bounds = array<i64: 1, 32, 128>}]} {
    %c0 = arith.constant 0 : index
    %c0_0 = arith.constant 0 : index
    %c0_1 = arith.constant 0 : index
    %0 = vector.load %arg2[%c0, %c0_0, %c0_1] : memref<1x32x128xf32, #tpu.memory_space<vmem>>, vector<1x32x128xf32>
    %1 = vector.shape_cast %0 : vector<1x32x128xf32> to vector<32x128xf32>
    %c0_2 = arith.constant 0 : index
    %c0_3 = arith.constant 0 : index
    %2 = vector.load %arg3[%c0_2, %c0_3] : memref<1x128xf32, #tpu.memory_space<vmem>>, vector<1x128xf32>
    %3 = vector.broadcast %2 : vector<1x128xf32> to vector<32x128xf32>
    %4 = arith.mulf %1, %3 : vector<32x128xf32>
    %c0_4 = arith.constant 0 : index
    %c0_5 = arith.constant 0 : index
    %5 = vector.load %arg4[%c0_4, %c0_5] : memref<1x128xf32, #tpu.memory_space<vmem>>, vector<1x128xf32>
    %6 = vector.broadcast %5 : vector<1x128xf32> to vector<32x128xf32>
    %7 = arith.addf %4, %6 : vector<32x128xf32>
    %cst = arith.constant 0.000000e+00 : f32
    %8 = vector.broadcast %cst : f32 to vector<32x128xf32>
    %9 = arith.maximumf %7, %8 : vector<32x128xf32>
    %10 = arith.truncf %9 : vector<32x128xf32> to vector<32x128xbf16>
    %c0_6 = arith.constant 0 : index
    %c0_7 = arith.constant 0 : index
    %c0_8 = arith.constant 0 : index
    %11 = vector.load %arg5[%c0_6, %c0_7, %c0_8] : memref<1x32x128xbf16, #tpu.memory_space<vmem>>, vector<1x32x128xbf16>
    %12 = vector.shape_cast %11 : vector<1x32x128xbf16> to vector<32x128xbf16>
    %13 = vector.shape_cast %10 : vector<32x128xbf16> to vector<1x32x128xbf16>
    tpu.vector_store %arg5[%c0_6, %c0_7, %c0_8], %13 {strides = array<i32>} : memref<1x32x128xbf16, #tpu.memory_space<vmem>>, vector<1x32x128xbf16>,
    return
  }
  func.func @transform_0(%arg0: i32, %arg1: i32) -> (i32, i32, i32) {
    %c0_i32 = arith.constant 0 : i32
    %c0_i32_0 = arith.constant 0 : i32
    return %arg0, %arg1, %c0_i32 : i32, i32, i32
  }
  func.func @transform_1(%arg0: i32, %arg1: i32) -> (i32, i32) {
    %c0_i32 = arith.constant 0 : i32
    %c0_i32_0 = arith.constant 0 : i32
    %c0_i32_1 = arith.constant 0 : i32
    return %c0_i32, %c0_i32_0 : i32, i32
  }
  func.func @transform_2(%arg0: i32, %arg1: i32) -> (i32, i32) {
    %c0_i32 = arith.constant 0 : i32
    %c0_i32_0 = arith.constant 0 : i32
    %c0_i32_1 = arith.constant 0 : i32
    return %c0_i32, %c0_i32_0 : i32, i32
  }
  func.func @transform_3(%arg0: i32, %arg1: i32) -> (i32, i32, i32) {
    %c0_i32 = arith.constant 0 : i32
    %c0_i32_0 = arith.constant 0 : i32
    return %arg0, %arg1, %c0_i32 : i32, i32, i32
  }
}

module attributes {stable_mosaic.version = 11 : i64} {
  func.func @_matmul_stats_kernel(%arg0: i32, %arg1: i32, %arg2: memref<1x32x512xbf16, #tpu.memory_space<vmem>>, %arg3: memref<1x512x128xbf16, #tpu.memory_space<vmem>>, %arg4: memref<1x32x128xf32, #tpu.memory_space<vmem>>, %arg5: memref<1x1x2x128xf32, #tpu.memory_space<vmem>>) attributes {dimension_semantics = [#tpu.dimension_semantics<parallel>, #tpu.dimension_semantics<parallel>], iteration_bounds = array<i64: 4, 1>, scalar_prefetch = 0 : i64, scratch_operands = 0 : i64, tpu.core_type = #tpu.core_type<tc>, window_params = [{transform_indices = @transform_0, window_bounds = array<i64: 1, 32, 512>}, {transform_indices = @transform_1, window_bounds = array<i64: 1, 512, 128>}, {transform_indices = @transform_2, window_bounds = array<i64: 1, 32, 128>}, {transform_indices = @transform_3, window_bounds = array<i64: 1, 1, 2, 128>}]} {
    %c0 = arith.constant 0 : index
    %c0_0 = arith.constant 0 : index
    %c0_1 = arith.constant 0 : index
    %0 = vector.load %arg2[%c0, %c0_0, %c0_1] : memref<1x32x512xbf16, #tpu.memory_space<vmem>>, vector<1x32x512xbf16>
    %1 = vector.shape_cast %0 : vector<1x32x512xbf16> to vector<32x512xbf16>
    %c0_2 = arith.constant 0 : index
    %c0_3 = arith.constant 0 : index
    %c0_4 = arith.constant 0 : index
    %2 = vector.load %arg3[%c0_2, %c0_3, %c0_4] : memref<1x512x128xbf16, #tpu.memory_space<vmem>>, vector<1x512x128xbf16>
    %3 = vector.shape_cast %2 : vector<1x512x128xbf16> to vector<512x128xbf16>
    %cst = arith.constant dense<0.000000e+00> : vector<32x128xf32>
    %4 = tpu.matmul %1, %3, %cst {dimension_numbers = #tpu.dot_dimension_numbers<[1], [0], [0], [1], [0, 0, 1, 1], [], []>} : vector<32x512xbf16>, vector<512x128xbf16>, vector<32x128xf32> -> vector<32x128xf32>
    %c0_5 = arith.constant 0 : index
    %c0_6 = arith.constant 0 : index
    %c0_7 = arith.constant 0 : index
    %5 = vector.load %arg4[%c0_5, %c0_6, %c0_7] : memref<1x32x128xf32, #tpu.memory_space<vmem>>, vector<1x32x128xf32>
    %6 = vector.shape_cast %5 : vector<1x32x128xf32> to vector<32x128xf32>
    %7 = vector.shape_cast %4 : vector<32x128xf32> to vector<1x32x128xf32>
    tpu.vector_store %arg4[%c0_5, %c0_6, %c0_7], %7 {strides = array<i32>} : memref<1x32x128xf32, #tpu.memory_space<vmem>>, vector<1x32x128xf32>,
    %cst_8 = arith.constant dense<0.000000e+00> : vector<128xf32>
    %8 = vector.multi_reduction <add>, %4, %cst_8 [0] : vector<32x128xf32> to vector<128xf32>
    %9 = vector.shape_cast %8 : vector<128xf32> to vector<1x128xf32>
    %10 = arith.mulf %4, %4 : vector<32x128xf32>
    %cst_9 = arith.constant dense<0.000000e+00> : vector<128xf32>
    %11 = vector.multi_reduction <add>, %10, %cst_9 [0] : vector<32x128xf32> to vector<128xf32>
    %12 = vector.shape_cast %11 : vector<128xf32> to vector<1x128xf32>
    %13 = tpu.concatenate %9, %12 in 0 : vector<1x128xf32>, vector<1x128xf32> -> vector<2x128xf32>
    %14 = vector.shape_cast %13 : vector<2x128xf32> to vector<1x2x128xf32>
    %c0_10 = arith.constant 0 : index
    %c0_11 = arith.constant 0 : index
    %c0_12 = arith.constant 0 : index
    %c0_13 = arith.constant 0 : index
    %15 = vector.load %arg5[%c0_10, %c0_11, %c0_12, %c0_13] : memref<1x1x2x128xf32, #tpu.memory_space<vmem>>, vector<1x1x2x128xf32>
    %16 = vector.shape_cast %15 : vector<1x1x2x128xf32> to vector<1x2x128xf32>
    %17 = vector.shape_cast %14 : vector<1x2x128xf32> to vector<1x1x2x128xf32>
    tpu.vector_store %arg5[%c0_10, %c0_11, %c0_12, %c0_13], %17 {strides = array<i32>} : memref<1x1x2x128xf32, #tpu.memory_space<vmem>>, vector<1x1x2x128xf32>,
    return
  }
  func.func @transform_0(%arg0: i32, %arg1: i32) -> (i32, i32, i32) {
    %c0_i32 = arith.constant 0 : i32
    %c0_i32_0 = arith.constant 0 : i32
    return %arg0, %arg1, %c0_i32 : i32, i32, i32
  }
  func.func @transform_1(%arg0: i32, %arg1: i32) -> (i32, i32, i32) {
    %c0_i32 = arith.constant 0 : i32
    %c0_i32_0 = arith.constant 0 : i32
    %c0_i32_1 = arith.constant 0 : i32
    return %arg0, %c0_i32, %c0_i32_0 : i32, i32, i32
  }
  func.func @transform_2(%arg0: i32, %arg1: i32) -> (i32, i32, i32) {
    %c0_i32 = arith.constant 0 : i32
    %c0_i32_0 = arith.constant 0 : i32
    return %arg0, %arg1, %c0_i32 : i32, i32, i32
  }
  func.func @transform_3(%arg0: i32, %arg1: i32) -> (i32, i32, i32, i32) {
    %c0_i32 = arith.constant 0 : i32
    %c0_i32_0 = arith.constant 0 : i32
    %c0_i32_1 = arith.constant 0 : i32
    return %arg0, %arg1, %c0_i32, %c0_i32_0 : i32, i32, i32, i32
  }
}

module attributes {stable_mosaic.version = 11 : i64} {
  func.func @_scale_shift_relu_kernel(%arg0: i32, %arg1: i32, %arg2: memref<1x32x128xf32, #tpu.memory_space<vmem>>, %arg3: memref<1x128xf32, #tpu.memory_space<vmem>>, %arg4: memref<1x128xf32, #tpu.memory_space<vmem>>, %arg5: memref<1x32x128xbf16, #tpu.memory_space<vmem>>) attributes {dimension_semantics = [#tpu.dimension_semantics<parallel>, #tpu.dimension_semantics<parallel>], iteration_bounds = array<i64: 4, 1>, scalar_prefetch = 0 : i64, scratch_operands = 0 : i64, tpu.core_type = #tpu.core_type<tc>, window_params = [{transform_indices = @transform_0, window_bounds = array<i64: 1, 32, 128>}, {pipeline_mode = #tpu.pipeline_mode<synchronous>, transform_indices = @transform_1, window_bounds = array<i64: 1, 128>}, {pipeline_mode = #tpu.pipeline_mode<synchronous>, transform_indices = @transform_2, window_bounds = array<i64: 1, 128>}, {transform_indices = @transform_3, window_bounds = array<i64: 1, 32, 128>}]} {
    %c0 = arith.constant 0 : index
    %c0_0 = arith.constant 0 : index
    %c0_1 = arith.constant 0 : index
    %0 = vector.load %arg2[%c0, %c0_0, %c0_1] : memref<1x32x128xf32, #tpu.memory_space<vmem>>, vector<1x32x128xf32>
    %1 = vector.shape_cast %0 : vector<1x32x128xf32> to vector<32x128xf32>
    %c0_2 = arith.constant 0 : index
    %c0_3 = arith.constant 0 : index
    %2 = vector.load %arg3[%c0_2, %c0_3] : memref<1x128xf32, #tpu.memory_space<vmem>>, vector<1x128xf32>
    %3 = vector.broadcast %2 : vector<1x128xf32> to vector<32x128xf32>
    %4 = arith.mulf %1, %3 : vector<32x128xf32>
    %c0_4 = arith.constant 0 : index
    %c0_5 = arith.constant 0 : index
    %5 = vector.load %arg4[%c0_4, %c0_5] : memref<1x128xf32, #tpu.memory_space<vmem>>, vector<1x128xf32>
    %6 = vector.broadcast %5 : vector<1x128xf32> to vector<32x128xf32>
    %7 = arith.addf %4, %6 : vector<32x128xf32>
    %cst = arith.constant 0.000000e+00 : f32
    %8 = vector.broadcast %cst : f32 to vector<32x128xf32>
    %9 = arith.maximumf %7, %8 : vector<32x128xf32>
    %10 = arith.truncf %9 : vector<32x128xf32> to vector<32x128xbf16>
    %c0_6 = arith.constant 0 : index
    %c0_7 = arith.constant 0 : index
    %c0_8 = arith.constant 0 : index
    %11 = vector.load %arg5[%c0_6, %c0_7, %c0_8] : memref<1x32x128xbf16, #tpu.memory_space<vmem>>, vector<1x32x128xbf16>
    %12 = vector.shape_cast %11 : vector<1x32x128xbf16> to vector<32x128xbf16>
    %13 = vector.shape_cast %10 : vector<32x128xbf16> to vector<1x32x128xbf16>
    tpu.vector_store %arg5[%c0_6, %c0_7, %c0_8], %13 {strides = array<i32>} : memref<1x32x128xbf16, #tpu.memory_space<vmem>>, vector<1x32x128xbf16>,
    return
  }
  func.func @transform_0(%arg0: i32, %arg1: i32) -> (i32, i32, i32) {
    %c0_i32 = arith.constant 0 : i32
    %c0_i32_0 = arith.constant 0 : i32
    return %arg0, %arg1, %c0_i32 : i32, i32, i32
  }
  func.func @transform_1(%arg0: i32, %arg1: i32) -> (i32, i32) {
    %c0_i32 = arith.constant 0 : i32
    %c0_i32_0 = arith.constant 0 : i32
    %c0_i32_1 = arith.constant 0 : i32
    return %c0_i32, %c0_i32_0 : i32, i32
  }
  func.func @transform_2(%arg0: i32, %arg1: i32) -> (i32, i32) {
    %c0_i32 = arith.constant 0 : i32
    %c0_i32_0 = arith.constant 0 : i32
    %c0_i32_1 = arith.constant 0 : i32
    return %c0_i32, %c0_i32_0 : i32, i32
  }
  func.func @transform_3(%arg0: i32, %arg1: i32) -> (i32, i32, i32) {
    %c0_i32 = arith.constant 0 : i32
    %c0_i32_0 = arith.constant 0 : i32
    return %arg0, %arg1, %c0_i32 : i32, i32, i32
  }
}

module attributes {stable_mosaic.version = 11 : i64} {
  func.func @_matmul_stats_kernel(%arg0: i32, %arg1: i32, %arg2: memref<1x128x512xbf16, #tpu.memory_space<vmem>>, %arg3: memref<1x512x128xbf16, #tpu.memory_space<vmem>>, %arg4: memref<1x128x128xf32, #tpu.memory_space<vmem>>, %arg5: memref<1x1x2x128xf32, #tpu.memory_space<vmem>>) attributes {dimension_semantics = [#tpu.dimension_semantics<parallel>, #tpu.dimension_semantics<parallel>], iteration_bounds = array<i64: 4, 1>, scalar_prefetch = 0 : i64, scratch_operands = 0 : i64, tpu.core_type = #tpu.core_type<tc>, window_params = [{transform_indices = @transform_0, window_bounds = array<i64: 1, 128, 512>}, {transform_indices = @transform_1, window_bounds = array<i64: 1, 512, 128>}, {transform_indices = @transform_2, window_bounds = array<i64: 1, 128, 128>}, {transform_indices = @transform_3, window_bounds = array<i64: 1, 1, 2, 128>}]} {
    %c0 = arith.constant 0 : index
    %c0_0 = arith.constant 0 : index
    %c0_1 = arith.constant 0 : index
    %0 = vector.load %arg2[%c0, %c0_0, %c0_1] : memref<1x128x512xbf16, #tpu.memory_space<vmem>>, vector<1x128x512xbf16>
    %1 = vector.shape_cast %0 : vector<1x128x512xbf16> to vector<128x512xbf16>
    %c0_2 = arith.constant 0 : index
    %c0_3 = arith.constant 0 : index
    %c0_4 = arith.constant 0 : index
    %2 = vector.load %arg3[%c0_2, %c0_3, %c0_4] : memref<1x512x128xbf16, #tpu.memory_space<vmem>>, vector<1x512x128xbf16>
    %3 = vector.shape_cast %2 : vector<1x512x128xbf16> to vector<512x128xbf16>
    %cst = arith.constant dense<0.000000e+00> : vector<128x128xf32>
    %4 = tpu.matmul %1, %3, %cst {dimension_numbers = #tpu.dot_dimension_numbers<[1], [0], [0], [1], [0, 0, 1, 1], [], []>} : vector<128x512xbf16>, vector<512x128xbf16>, vector<128x128xf32> -> vector<128x128xf32>
    %c0_5 = arith.constant 0 : index
    %c0_6 = arith.constant 0 : index
    %c0_7 = arith.constant 0 : index
    %5 = vector.load %arg4[%c0_5, %c0_6, %c0_7] : memref<1x128x128xf32, #tpu.memory_space<vmem>>, vector<1x128x128xf32>
    %6 = vector.shape_cast %5 : vector<1x128x128xf32> to vector<128x128xf32>
    %7 = vector.shape_cast %4 : vector<128x128xf32> to vector<1x128x128xf32>
    tpu.vector_store %arg4[%c0_5, %c0_6, %c0_7], %7 {strides = array<i32>} : memref<1x128x128xf32, #tpu.memory_space<vmem>>, vector<1x128x128xf32>,
    %cst_8 = arith.constant dense<0.000000e+00> : vector<128xf32>
    %8 = vector.multi_reduction <add>, %4, %cst_8 [0] : vector<128x128xf32> to vector<128xf32>
    %9 = vector.shape_cast %8 : vector<128xf32> to vector<1x128xf32>
    %10 = arith.mulf %4, %4 : vector<128x128xf32>
    %cst_9 = arith.constant dense<0.000000e+00> : vector<128xf32>
    %11 = vector.multi_reduction <add>, %10, %cst_9 [0] : vector<128x128xf32> to vector<128xf32>
    %12 = vector.shape_cast %11 : vector<128xf32> to vector<1x128xf32>
    %13 = tpu.concatenate %9, %12 in 0 : vector<1x128xf32>, vector<1x128xf32> -> vector<2x128xf32>
    %14 = vector.shape_cast %13 : vector<2x128xf32> to vector<1x2x128xf32>
    %c0_10 = arith.constant 0 : index
    %c0_11 = arith.constant 0 : index
    %c0_12 = arith.constant 0 : index
    %c0_13 = arith.constant 0 : index
    %15 = vector.load %arg5[%c0_10, %c0_11, %c0_12, %c0_13] : memref<1x1x2x128xf32, #tpu.memory_space<vmem>>, vector<1x1x2x128xf32>
    %16 = vector.shape_cast %15 : vector<1x1x2x128xf32> to vector<1x2x128xf32>
    %17 = vector.shape_cast %14 : vector<1x2x128xf32> to vector<1x1x2x128xf32>
    tpu.vector_store %arg5[%c0_10, %c0_11, %c0_12, %c0_13], %17 {strides = array<i32>} : memref<1x1x2x128xf32, #tpu.memory_space<vmem>>, vector<1x1x2x128xf32>,
    return
  }
  func.func @transform_0(%arg0: i32, %arg1: i32) -> (i32, i32, i32) {
    %c0_i32 = arith.constant 0 : i32
    %c0_i32_0 = arith.constant 0 : i32
    return %arg0, %arg1, %c0_i32 : i32, i32, i32
  }
  func.func @transform_1(%arg0: i32, %arg1: i32) -> (i32, i32, i32) {
    %c0_i32 = arith.constant 0 : i32
    %c0_i32_0 = arith.constant 0 : i32
    %c0_i32_1 = arith.constant 0 : i32
    return %arg0, %c0_i32, %c0_i32_0 : i32, i32, i32
  }
  func.func @transform_2(%arg0: i32, %arg1: i32) -> (i32, i32, i32) {
    %c0_i32 = arith.constant 0 : i32
    %c0_i32_0 = arith.constant 0 : i32
    return %arg0, %arg1, %c0_i32 : i32, i32, i32
  }
  func.func @transform_3(%arg0: i32, %arg1: i32) -> (i32, i32, i32, i32) {
    %c0_i32 = arith.constant 0 : i32
    %c0_i32_0 = arith.constant 0 : i32
    %c0_i32_1 = arith.constant 0 : i32
    return %arg0, %arg1, %c0_i32, %c0_i32_0 : i32, i32, i32, i32
  }
}

module attributes {stable_mosaic.version = 11 : i64} {
  func.func @_scale_shift_relu_kernel(%arg0: i32, %arg1: i32, %arg2: memref<1x128x128xf32, #tpu.memory_space<vmem>>, %arg3: memref<1x128xf32, #tpu.memory_space<vmem>>, %arg4: memref<1x128xf32, #tpu.memory_space<vmem>>, %arg5: memref<1x128x128xbf16, #tpu.memory_space<vmem>>) attributes {dimension_semantics = [#tpu.dimension_semantics<parallel>, #tpu.dimension_semantics<parallel>], iteration_bounds = array<i64: 4, 1>, scalar_prefetch = 0 : i64, scratch_operands = 0 : i64, tpu.core_type = #tpu.core_type<tc>, window_params = [{transform_indices = @transform_0, window_bounds = array<i64: 1, 128, 128>}, {pipeline_mode = #tpu.pipeline_mode<synchronous>, transform_indices = @transform_1, window_bounds = array<i64: 1, 128>}, {pipeline_mode = #tpu.pipeline_mode<synchronous>, transform_indices = @transform_2, window_bounds = array<i64: 1, 128>}, {transform_indices = @transform_3, window_bounds = array<i64: 1, 128, 128>}]} {
    %c0 = arith.constant 0 : index
    %c0_0 = arith.constant 0 : index
    %c0_1 = arith.constant 0 : index
    %0 = vector.load %arg2[%c0, %c0_0, %c0_1] : memref<1x128x128xf32, #tpu.memory_space<vmem>>, vector<1x128x128xf32>
    %1 = vector.shape_cast %0 : vector<1x128x128xf32> to vector<128x128xf32>
    %c0_2 = arith.constant 0 : index
    %c0_3 = arith.constant 0 : index
    %2 = vector.load %arg3[%c0_2, %c0_3] : memref<1x128xf32, #tpu.memory_space<vmem>>, vector<1x128xf32>
    %3 = vector.broadcast %2 : vector<1x128xf32> to vector<128x128xf32>
    %4 = arith.mulf %1, %3 : vector<128x128xf32>
    %c0_4 = arith.constant 0 : index
    %c0_5 = arith.constant 0 : index
    %5 = vector.load %arg4[%c0_4, %c0_5] : memref<1x128xf32, #tpu.memory_space<vmem>>, vector<1x128xf32>
    %6 = vector.broadcast %5 : vector<1x128xf32> to vector<128x128xf32>
    %7 = arith.addf %4, %6 : vector<128x128xf32>
    %cst = arith.constant 0.000000e+00 : f32
    %8 = vector.broadcast %cst : f32 to vector<128x128xf32>
    %9 = arith.maximumf %7, %8 : vector<128x128xf32>
    %10 = arith.truncf %9 : vector<128x128xf32> to vector<128x128xbf16>
    %c0_6 = arith.constant 0 : index
    %c0_7 = arith.constant 0 : index
    %c0_8 = arith.constant 0 : index
    %11 = vector.load %arg5[%c0_6, %c0_7, %c0_8] : memref<1x128x128xbf16, #tpu.memory_space<vmem>>, vector<1x128x128xbf16>
    %12 = vector.shape_cast %11 : vector<1x128x128xbf16> to vector<128x128xbf16>
    %13 = vector.shape_cast %10 : vector<128x128xbf16> to vector<1x128x128xbf16>
    tpu.vector_store %arg5[%c0_6, %c0_7, %c0_8], %13 {strides = array<i32>} : memref<1x128x128xbf16, #tpu.memory_space<vmem>>, vector<1x128x128xbf16>,
    return
  }
  func.func @transform_0(%arg0: i32, %arg1: i32) -> (i32, i32, i32) {
    %c0_i32 = arith.constant 0 : i32
    %c0_i32_0 = arith.constant 0 : i32
    return %arg0, %arg1, %c0_i32 : i32, i32, i32
  }
  func.func @transform_1(%arg0: i32, %arg1: i32) -> (i32, i32) {
    %c0_i32 = arith.constant 0 : i32
    %c0_i32_0 = arith.constant 0 : i32
    %c0_i32_1 = arith.constant 0 : i32
    return %c0_i32, %c0_i32_0 : i32, i32
  }
  func.func @transform_2(%arg0: i32, %arg1: i32) -> (i32, i32) {
    %c0_i32 = arith.constant 0 : i32
    %c0_i32_0 = arith.constant 0 : i32
    %c0_i32_1 = arith.constant 0 : i32
    return %c0_i32, %c0_i32_0 : i32, i32
  }
  func.func @transform_3(%arg0: i32, %arg1: i32) -> (i32, i32, i32) {
    %c0_i32 = arith.constant 0 : i32
    %c0_i32_0 = arith.constant 0 : i32
    return %arg0, %arg1, %c0_i32 : i32, i32, i32
  }
}

module attributes {stable_mosaic.version = 11 : i64} {
  func.func @_matmul_stats_kernel(%arg0: i32, %arg1: i32, %arg2: memref<1x512x512xbf16, #tpu.memory_space<vmem>>, %arg3: memref<1x512x128xbf16, #tpu.memory_space<vmem>>, %arg4: memref<1x512x128xf32, #tpu.memory_space<vmem>>, %arg5: memref<1x1x2x128xf32, #tpu.memory_space<vmem>>) attributes {dimension_semantics = [#tpu.dimension_semantics<parallel>, #tpu.dimension_semantics<parallel>], iteration_bounds = array<i64: 4, 1>, scalar_prefetch = 0 : i64, scratch_operands = 0 : i64, tpu.core_type = #tpu.core_type<tc>, window_params = [{transform_indices = @transform_0, window_bounds = array<i64: 1, 512, 512>}, {transform_indices = @transform_1, window_bounds = array<i64: 1, 512, 128>}, {transform_indices = @transform_2, window_bounds = array<i64: 1, 512, 128>}, {transform_indices = @transform_3, window_bounds = array<i64: 1, 1, 2, 128>}]} {
    %c0 = arith.constant 0 : index
    %c0_0 = arith.constant 0 : index
    %c0_1 = arith.constant 0 : index
    %0 = vector.load %arg2[%c0, %c0_0, %c0_1] : memref<1x512x512xbf16, #tpu.memory_space<vmem>>, vector<1x512x512xbf16>
    %1 = vector.shape_cast %0 : vector<1x512x512xbf16> to vector<512x512xbf16>
    %c0_2 = arith.constant 0 : index
    %c0_3 = arith.constant 0 : index
    %c0_4 = arith.constant 0 : index
    %2 = vector.load %arg3[%c0_2, %c0_3, %c0_4] : memref<1x512x128xbf16, #tpu.memory_space<vmem>>, vector<1x512x128xbf16>
    %3 = vector.shape_cast %2 : vector<1x512x128xbf16> to vector<512x128xbf16>
    %cst = arith.constant dense<0.000000e+00> : vector<512x128xf32>
    %4 = tpu.matmul %1, %3, %cst {dimension_numbers = #tpu.dot_dimension_numbers<[1], [0], [0], [1], [0, 0, 1, 1], [], []>} : vector<512x512xbf16>, vector<512x128xbf16>, vector<512x128xf32> -> vector<512x128xf32>
    %c0_5 = arith.constant 0 : index
    %c0_6 = arith.constant 0 : index
    %c0_7 = arith.constant 0 : index
    %5 = vector.load %arg4[%c0_5, %c0_6, %c0_7] : memref<1x512x128xf32, #tpu.memory_space<vmem>>, vector<1x512x128xf32>
    %6 = vector.shape_cast %5 : vector<1x512x128xf32> to vector<512x128xf32>
    %7 = vector.shape_cast %4 : vector<512x128xf32> to vector<1x512x128xf32>
    tpu.vector_store %arg4[%c0_5, %c0_6, %c0_7], %7 {strides = array<i32>} : memref<1x512x128xf32, #tpu.memory_space<vmem>>, vector<1x512x128xf32>,
    %cst_8 = arith.constant dense<0.000000e+00> : vector<128xf32>
    %8 = vector.multi_reduction <add>, %4, %cst_8 [0] : vector<512x128xf32> to vector<128xf32>
    %9 = vector.shape_cast %8 : vector<128xf32> to vector<1x128xf32>
    %10 = arith.mulf %4, %4 : vector<512x128xf32>
    %cst_9 = arith.constant dense<0.000000e+00> : vector<128xf32>
    %11 = vector.multi_reduction <add>, %10, %cst_9 [0] : vector<512x128xf32> to vector<128xf32>
    %12 = vector.shape_cast %11 : vector<128xf32> to vector<1x128xf32>
    %13 = tpu.concatenate %9, %12 in 0 : vector<1x128xf32>, vector<1x128xf32> -> vector<2x128xf32>
    %14 = vector.shape_cast %13 : vector<2x128xf32> to vector<1x2x128xf32>
    %c0_10 = arith.constant 0 : index
    %c0_11 = arith.constant 0 : index
    %c0_12 = arith.constant 0 : index
    %c0_13 = arith.constant 0 : index
    %15 = vector.load %arg5[%c0_10, %c0_11, %c0_12, %c0_13] : memref<1x1x2x128xf32, #tpu.memory_space<vmem>>, vector<1x1x2x128xf32>
    %16 = vector.shape_cast %15 : vector<1x1x2x128xf32> to vector<1x2x128xf32>
    %17 = vector.shape_cast %14 : vector<1x2x128xf32> to vector<1x1x2x128xf32>
    tpu.vector_store %arg5[%c0_10, %c0_11, %c0_12, %c0_13], %17 {strides = array<i32>} : memref<1x1x2x128xf32, #tpu.memory_space<vmem>>, vector<1x1x2x128xf32>,
    return
  }
  func.func @transform_0(%arg0: i32, %arg1: i32) -> (i32, i32, i32) {
    %c0_i32 = arith.constant 0 : i32
    %c0_i32_0 = arith.constant 0 : i32
    return %arg0, %arg1, %c0_i32 : i32, i32, i32
  }
  func.func @transform_1(%arg0: i32, %arg1: i32) -> (i32, i32, i32) {
    %c0_i32 = arith.constant 0 : i32
    %c0_i32_0 = arith.constant 0 : i32
    %c0_i32_1 = arith.constant 0 : i32
    return %arg0, %c0_i32, %c0_i32_0 : i32, i32, i32
  }
  func.func @transform_2(%arg0: i32, %arg1: i32) -> (i32, i32, i32) {
    %c0_i32 = arith.constant 0 : i32
    %c0_i32_0 = arith.constant 0 : i32
    return %arg0, %arg1, %c0_i32 : i32, i32, i32
  }
  func.func @transform_3(%arg0: i32, %arg1: i32) -> (i32, i32, i32, i32) {
    %c0_i32 = arith.constant 0 : i32
    %c0_i32_0 = arith.constant 0 : i32
    %c0_i32_1 = arith.constant 0 : i32
    return %arg0, %arg1, %c0_i32, %c0_i32_0 : i32, i32, i32, i32
  }
}

module attributes {stable_mosaic.version = 11 : i64} {
  func.func @_scale_shift_relu_kernel(%arg0: i32, %arg1: i32, %arg2: memref<1x512x128xf32, #tpu.memory_space<vmem>>, %arg3: memref<1x128xf32, #tpu.memory_space<vmem>>, %arg4: memref<1x128xf32, #tpu.memory_space<vmem>>, %arg5: memref<1x512x128xbf16, #tpu.memory_space<vmem>>) attributes {dimension_semantics = [#tpu.dimension_semantics<parallel>, #tpu.dimension_semantics<parallel>], iteration_bounds = array<i64: 4, 1>, scalar_prefetch = 0 : i64, scratch_operands = 0 : i64, tpu.core_type = #tpu.core_type<tc>, window_params = [{transform_indices = @transform_0, window_bounds = array<i64: 1, 512, 128>}, {pipeline_mode = #tpu.pipeline_mode<synchronous>, transform_indices = @transform_1, window_bounds = array<i64: 1, 128>}, {pipeline_mode = #tpu.pipeline_mode<synchronous>, transform_indices = @transform_2, window_bounds = array<i64: 1, 128>}, {transform_indices = @transform_3, window_bounds = array<i64: 1, 512, 128>}]} {
    %c0 = arith.constant 0 : index
    %c0_0 = arith.constant 0 : index
    %c0_1 = arith.constant 0 : index
    %0 = vector.load %arg2[%c0, %c0_0, %c0_1] : memref<1x512x128xf32, #tpu.memory_space<vmem>>, vector<1x512x128xf32>
    %1 = vector.shape_cast %0 : vector<1x512x128xf32> to vector<512x128xf32>
    %c0_2 = arith.constant 0 : index
    %c0_3 = arith.constant 0 : index
    %2 = vector.load %arg3[%c0_2, %c0_3] : memref<1x128xf32, #tpu.memory_space<vmem>>, vector<1x128xf32>
    %3 = vector.broadcast %2 : vector<1x128xf32> to vector<512x128xf32>
    %4 = arith.mulf %1, %3 : vector<512x128xf32>
    %c0_4 = arith.constant 0 : index
    %c0_5 = arith.constant 0 : index
    %5 = vector.load %arg4[%c0_4, %c0_5] : memref<1x128xf32, #tpu.memory_space<vmem>>, vector<1x128xf32>
    %6 = vector.broadcast %5 : vector<1x128xf32> to vector<512x128xf32>
    %7 = arith.addf %4, %6 : vector<512x128xf32>
    %cst = arith.constant 0.000000e+00 : f32
    %8 = vector.broadcast %cst : f32 to vector<512x128xf32>
    %9 = arith.maximumf %7, %8 : vector<512x128xf32>
    %10 = arith.truncf %9 : vector<512x128xf32> to vector<512x128xbf16>
    %c0_6 = arith.constant 0 : index
    %c0_7 = arith.constant 0 : index
    %c0_8 = arith.constant 0 : index
    %11 = vector.load %arg5[%c0_6, %c0_7, %c0_8] : memref<1x512x128xbf16, #tpu.memory_space<vmem>>, vector<1x512x128xbf16>
    %12 = vector.shape_cast %11 : vector<1x512x128xbf16> to vector<512x128xbf16>
    %13 = vector.shape_cast %10 : vector<512x128xbf16> to vector<1x512x128xbf16>
    tpu.vector_store %arg5[%c0_6, %c0_7, %c0_8], %13 {strides = array<i32>} : memref<1x512x128xbf16, #tpu.memory_space<vmem>>, vector<1x512x128xbf16>,
    return
  }
  func.func @transform_0(%arg0: i32, %arg1: i32) -> (i32, i32, i32) {
    %c0_i32 = arith.constant 0 : i32
    %c0_i32_0 = arith.constant 0 : i32
    return %arg0, %arg1, %c0_i32 : i32, i32, i32
  }
  func.func @transform_1(%arg0: i32, %arg1: i32) -> (i32, i32) {
    %c0_i32 = arith.constant 0 : i32
    %c0_i32_0 = arith.constant 0 : i32
    %c0_i32_1 = arith.constant 0 : i32
    return %c0_i32, %c0_i32_0 : i32, i32
  }
  func.func @transform_2(%arg0: i32, %arg1: i32) -> (i32, i32) {
    %c0_i32 = arith.constant 0 : i32
    %c0_i32_0 = arith.constant 0 : i32
    %c0_i32_1 = arith.constant 0 : i32
    return %c0_i32, %c0_i32_0 : i32, i32
  }
  func.func @transform_3(%arg0: i32, %arg1: i32) -> (i32, i32, i32) {
    %c0_i32 = arith.constant 0 : i32
    %c0_i32_0 = arith.constant 0 : i32
    return %arg0, %arg1, %c0_i32 : i32, i32, i32
  }
}

module attributes {stable_mosaic.version = 11 : i64} {
  func.func @_matmul_bias_tanh_kernel(%arg0: i32, %arg1: i32, %arg2: memref<1x1024x512xbf16, #tpu.memory_space<vmem>>, %arg3: memref<1x512x128xbf16, #tpu.memory_space<vmem>>, %arg4: memref<1x128xf32, #tpu.memory_space<vmem>>, %arg5: memref<1x1024x128xf32, #tpu.memory_space<vmem>>) attributes {dimension_semantics = [#tpu.dimension_semantics<parallel>, #tpu.dimension_semantics<parallel>], iteration_bounds = array<i64: 4, 2>, scalar_prefetch = 0 : i64, scratch_operands = 0 : i64, tpu.core_type = #tpu.core_type<tc>, window_params = [{transform_indices = @transform_0, window_bounds = array<i64: 1, 1024, 512>}, {transform_indices = @transform_1, window_bounds = array<i64: 1, 512, 128>}, {pipeline_mode = #tpu.pipeline_mode<synchronous>, transform_indices = @transform_2, window_bounds = array<i64: 1, 128>}, {transform_indices = @transform_3, window_bounds = array<i64: 1, 1024, 128>}]} {
    %c0 = arith.constant 0 : index
    %c0_0 = arith.constant 0 : index
    %c0_1 = arith.constant 0 : index
    %0 = vector.load %arg2[%c0, %c0_0, %c0_1] : memref<1x1024x512xbf16, #tpu.memory_space<vmem>>, vector<1x1024x512xbf16>
    %1 = vector.shape_cast %0 : vector<1x1024x512xbf16> to vector<1024x512xbf16>
    %c0_2 = arith.constant 0 : index
    %c0_3 = arith.constant 0 : index
    %c0_4 = arith.constant 0 : index
    %2 = vector.load %arg3[%c0_2, %c0_3, %c0_4] : memref<1x512x128xbf16, #tpu.memory_space<vmem>>, vector<1x512x128xbf16>
    %3 = vector.shape_cast %2 : vector<1x512x128xbf16> to vector<512x128xbf16>
    %cst = arith.constant dense<0.000000e+00> : vector<1024x128xf32>
    %4 = tpu.matmul %1, %3, %cst {dimension_numbers = #tpu.dot_dimension_numbers<[1], [0], [0], [1], [0, 0, 1, 1], [], []>} : vector<1024x512xbf16>, vector<512x128xbf16>, vector<1024x128xf32> -> vector<1024x128xf32>
    %c0_5 = arith.constant 0 : index
    %c0_6 = arith.constant 0 : index
    %5 = vector.load %arg4[%c0_5, %c0_6] : memref<1x128xf32, #tpu.memory_space<vmem>>, vector<1x128xf32>
    %6 = vector.broadcast %5 : vector<1x128xf32> to vector<1024x128xf32>
    %7 = arith.addf %4, %6 : vector<1024x128xf32>
    %8 = math.tanh %7 : vector<1024x128xf32>
    %c0_7 = arith.constant 0 : index
    %c0_8 = arith.constant 0 : index
    %c0_9 = arith.constant 0 : index
    %9 = vector.load %arg5[%c0_7, %c0_8, %c0_9] : memref<1x1024x128xf32, #tpu.memory_space<vmem>>, vector<1x1024x128xf32>
    %10 = vector.shape_cast %9 : vector<1x1024x128xf32> to vector<1024x128xf32>
    %11 = vector.shape_cast %8 : vector<1024x128xf32> to vector<1x1024x128xf32>
    tpu.vector_store %arg5[%c0_7, %c0_8, %c0_9], %11 {strides = array<i32>} : memref<1x1024x128xf32, #tpu.memory_space<vmem>>, vector<1x1024x128xf32>,
    return
  }
  func.func @transform_0(%arg0: i32, %arg1: i32) -> (i32, i32, i32) {
    %c0_i32 = arith.constant 0 : i32
    %c0_i32_0 = arith.constant 0 : i32
    return %arg0, %arg1, %c0_i32 : i32, i32, i32
  }
  func.func @transform_1(%arg0: i32, %arg1: i32) -> (i32, i32, i32) {
    %c0_i32 = arith.constant 0 : i32
    %c0_i32_0 = arith.constant 0 : i32
    %c0_i32_1 = arith.constant 0 : i32
    return %arg0, %c0_i32, %c0_i32_0 : i32, i32, i32
  }
  func.func @transform_2(%arg0: i32, %arg1: i32) -> (i32, i32) {
    %c0_i32 = arith.constant 0 : i32
    %c0_i32_0 = arith.constant 0 : i32
    %c0_i32_1 = arith.constant 0 : i32
    return %c0_i32, %c0_i32_0 : i32, i32
  }
  func.func @transform_3(%arg0: i32, %arg1: i32) -> (i32, i32, i32) {
    %c0_i32 = arith.constant 0 : i32
    %c0_i32_0 = arith.constant 0 : i32
    return %arg0, %arg1, %c0_i32 : i32, i32, i32
  }
}

</mosaic_0001>

<llo_original>
// kernel: generator_forward.10
$region0: #{generator_forward.10}
  #allocation0 [shape = 'u32[]', space=smem, size = 0x4, offset = 0x4, fixed_abs, tag = 'smem constant byte address 0x4 - core index']
  #allocation1 [shape = 'u32[144,128]{1,0:T(1,128)}', space=vmem, size = 0x12000, scoped, tag = 'internal scratch']
  %s0 = inlined_call_operand.vmem [shape: f32[1,32,128], index: 0, kind: input, shape index: {}]
  %s1 = inlined_call_operand.vmem [shape: f32[1,128], index: 1, kind: input, shape index: {}]
  %s2 = inlined_call_operand.vmem [shape: f32[1,128], index: 2, kind: input, shape index: {}]
  %s3 = inlined_call_operand.vmem [shape: bf16[1,32,128], index: 3, kind: output, shape index: {}]
  %s4 = sld [smem:[#allocation0]]
  $region22: #{generator_forward.10} parent=0
    _
  %s6 = ssub.s32 1, %s4
  %s7 = scalar_select 0, %s6, %s4
  // Predicated region
  $region2: #{generator_forward.10} parent=0 // pred_check
    _
  $region3: #{generator_forward.10} parent=0 // pred_check_branch
    %9 = sbr.rel (0) target = $region5
  $region4: #{generator_forward.10} parent=0 // pred_region
    _
  $region5: #{generator_forward.10} parent=0 // pred_fallthru
    _
  // Predicated region
  $region6: #{generator_forward.10} parent=0 // pred_check
    _
  $region7: #{generator_forward.10} parent=0 // pred_check_branch
    %11 = sbr.rel (0) target = $region9
  $region8: #{generator_forward.10} parent=0 // pred_region
    _
  $region9: #{generator_forward.10} parent=0 // pred_fallthru
    _
  // Predicated region
  $region10: #{generator_forward.10} parent=0 // pred_check
    _
  $region11: #{generator_forward.10} parent=0 // pred_check_branch
    %13 = sbr.rel (0) target = $region13
  $region12: #{generator_forward.10} parent=0 // pred_region
    _
  $region13: #{generator_forward.10} parent=0 // pred_fallthru
    _
  %v14 = vld [vmem:[%s0] sm:$0xff]
  %v15 = vld [vmem:[%s0 + $0x8] sm:$0xff]
  %v16 = vld [vmem:[%s0 + $0x10] sm:$0xff]
  %v17 = vld [vmem:[%s0 + $0x18] sm:$0xff]
  %v18 = vld [vmem:[%s1] sm:$0x1]
  %v20 = vlaneseq
  %v21 = vshrl.u32 %v20, 7
  %v22 = vsub.s32 0, %v21
  %v23 = vrot.slane %v18, %v22
  %v25 = vmul.f32 %v14, %v23
  %v26 = vmul.f32 %v15, %v23
  %v27 = vmul.f32 %v16, %v23
  %v28 = vmul.f32 %v17, %v23
  %v29 = vld [vmem:[%s2] sm:$0x1]
  %v31 = vlaneseq
  %v32 = vshrl.u32 %v31, 7
  %v33 = vsub.s32 0, %v32
  %v34 = vrot.slane %v29, %v33
  %v36 = vadd.f32 %v25, %v34
  %v37 = vadd.f32 %v26, %v34
  %v38 = vadd.f32 %v27, %v34
  %v39 = vadd.f32 %v28, %v34
  %v40 = vmax.f32 %v36, 0.0
  %v41 = vmax.f32 %v37, 0.0
  %v42 = vmax.f32 %v38, 0.0
  %v43 = vmax.f32 %v39, 0.0
  %v44 = vpack.c.bf16 %v41, %v40
  %v45 = vpack.c.bf16 %v43, %v42
  %v48 = vunpack.c.l.b16 %v44
  %v49 = vunpack.c.h.b16 %v44
  %v50 = vunpack.c.l.b16 %v45
  %v51 = vunpack.c.h.b16 %v45
  %v52 = vpack.c.b16 %v48, %v48
  %v53 = vpack.c.b16 %v49, %v49
  %v54 = vpack.c.b16 %v50, %v50
  %v55 = vpack.c.b16 %v51, %v51
  %60 = vst [vmem:[%s3] sm:$0xf] %v52
  %61 = vst [vmem:[%s3 + $0x4] sm:$0xf] %v53
  %62 = vst [vmem:[%s3 + $0x8] sm:$0xf] %v54
  %63 = vst [vmem:[%s3 + $0xc] sm:$0xf] %v55
  // Predicated region
  $region14: #{generator_forward.10} parent=0 // pred_check
    _
  $region15: #{generator_forward.10} parent=0 // pred_check_branch
    %65 = sbr.rel (0) target = $region17
  $region16: #{generator_forward.10} parent=0 // pred_region
    _
  $region17: #{generator_forward.10} parent=0 // pred_fallthru
    _
  // Predicated region
  $region18: #{generator_forward.10} parent=0 // pred_check
    _
  $region19: #{generator_forward.10} parent=0 // pred_check_branch
    %67 = sbr.rel (0) target = $region21
  $region20: #{generator_forward.10} parent=0 // pred_region
    _
  $region21: #{generator_forward.10} parent=0 // pred_fallthru
    _

// kernel: generator_forward.9
$region0: #{generator_forward.9}
  #allocation0 [shape = 'u32[]', space=smem, size = 0x4, offset = 0x4, fixed_abs, tag = 'smem constant byte address 0x4 - core index']
  #allocation1 [shape = 'u32[144,128]{1,0:T(1,128)}', space=vmem, size = 0x12000, scoped, tag = 'internal scratch']
  %s0 = inlined_call_operand.vmem [shape: bf16[1,32,256], index: 0, kind: input, shape index: {}]
  %s1 = inlined_call_operand.hbm [shape: bf16[1,256,128], index: 1, kind: input, shape index: {}]
  %s2 = inlined_call_operand.vmem [shape: f32[1,32,128], index: 2, kind: output, shape index: {0}]
  %s3 = inlined_call_operand.vmem [shape: f32[1,1,2,128], index: 3, kind: output, shape index: {1}]
  %4 = xla_tuple %s2, %s3
  %s5 = sld [smem:[#allocation0]]
  $region30: #{generator_forward.9} parent=0
    _
  %s7 = ssub.s32 1, %s5
  %s8 = scalar_select 0, %s7, %s5
  $region1: #{generator_forward.9} parent=0
    #allocation2 [shape = 'u8[65536]{0}', space=vmem, size = 0x10000, scoped, tag = 'input window, operand 1, single buffered']
    #allocation3 [shape = 's32[1]{0}', space=sflag, size = 0x4, scoped, tag = 'scoped memory for generator_forward.9']
    %9 = vsyncpa [#allocation3], 0
    // Predicated region
    $region2: #{generator_forward.9} parent=1 // pred_check
      _
    $region3: #{generator_forward.9} parent=1 // pred_check_branch
      %11 = sbr.rel (0) target = $region5
    $region4: #{generator_forward.9} parent=1 // pred_region
      _
    $region5: #{generator_forward.9} parent=1 // pred_fallthru
      _
    // Predicated region
    $region6: #{generator_forward.9} parent=1 // pred_check
      _
    $region7: #{generator_forward.9} parent=1 // pred_check_branch
      %13 = sbr.rel (0) target = $region9
    $region8: #{generator_forward.9} parent=1 // pred_region
      %s15 = ssub.s32 2048, 2048
      %16 = vsyncadd [#allocation3], %s15
      %s17 = sshll.u32 [#allocation2], 4
      %s18 = int_to_ptr.vmem [resolvable:$true] %s17
      %23 = dma.hbm_to_vmem [thread:$0]  %s1, 2048, %s18, [#allocation3], 64, 64, 4
    $region9: #{generator_forward.9} parent=1 // pred_fallthru
      _
    // Predicated region
    $region10: #{generator_forward.9} parent=1 // pred_check
      _
    $region11: #{generator_forward.9} parent=1 // pred_check_branch
      %25 = sbr.rel (0) target = $region13
    $region12: #{generator_forward.9} parent=1 // pred_region
      %26 = dma.done [#allocation3], 2048
    $region13: #{generator_forward.9} parent=1 // pred_fallthru
      _
    %v28 = vld [vmem:[%s0] sm:$0xff]
    %v29 = vld [vmem:[%s0 + $0x8] sm:$0xff]
    %v30 = vld [vmem:[%s0 + $0x10] sm:$0xff]
    %v31 = vld [vmem:[%s0 + $0x18] sm:$0xff]
    %v32 = vld [vmem:[#allocation2] sm:$0xf]
    %v33 = vld [vmem:[#allocation2 + $0x4] sm:$0xf]
    %v34 = vld [vmem:[#allocation2 + $0x8] sm:$0xf]
    %v35 = vld [vmem:[#allocation2 + $0xc] sm:$0xf]
    %v36 = vld [vmem:[#allocation2 + $0x10] sm:$0xf]
    %v37 = vld [vmem:[#allocation2 + $0x14] sm:$0xf]
    %v38 = vld [vmem:[#allocation2 + $0x18] sm:$0xf]
    %v39 = vld [vmem:[#allocation2 + $0x1c] sm:$0xf]
    %v40 = vld [vmem:[#allocation2 + $0x20] sm:$0xf]
    %v41 = vld [vmem:[#allocation2 + $0x24] sm:$0xf]
    %v42 = vld [vmem:[#allocation2 + $0x28] sm:$0xf]
    %v43 = vld [vmem:[#allocation2 + $0x2c] sm:$0xf]
    %v44 = vld [vmem:[#allocation2 + $0x30] sm:$0xf]
    %v45 = vld [vmem:[#allocation2 + $0x34] sm:$0xf]
    %v46 = vld [vmem:[#allocation2 + $0x38] sm:$0xf]
    %v47 = vld [vmem:[#allocation2 + $0x3c] sm:$0xf]
    %v48 = vld [vmem:[#allocation2 + $0x40] sm:$0xf]
    %v49 = vld [vmem:[#allocation2 + $0x44] sm:$0xf]
    %v50 = vld [vmem:[#allocation2 + $0x48] sm:$0xf]
    %v51 = vld [vmem:[#allocation2 + $0x4c] sm:$0xf]
    %v52 = vld [vmem:[#allocation2 + $0x50] sm:$0xf]
    %v53 = vld [vmem:[#allocation2 + $0x54] sm:$0xf]
    %v54 = vld [vmem:[#allocation2 + $0x58] sm:$0xf]
    %v55 = vld [vmem:[#allocation2 + $0x5c] sm:$0xf]
    %v56 = vld [vmem:[#allocation2 + $0x60] sm:$0xf]
    %v57 = vld [vmem:[#allocation2 + $0x64] sm:$0xf]
    %v58 = vld [vmem:[#allocation2 + $0x68] sm:$0xf]
    %v59 = vld [vmem:[#allocation2 + $0x6c] sm:$0xf]
    %v60 = vld [vmem:[#allocation2 + $0x70] sm:$0xf]
    %v61 = vld [vmem:[#allocation2 + $0x74] sm:$0xf]
    %v62 = vld [vmem:[#allocation2 + $0x78] sm:$0xf]
    %v63 = vld [vmem:[#allocation2 + $0x7c] sm:$0xf]
    %v68 = vunpack.c.l.b16 %v28
    %v69 = vunpack.c.h.b16 %v28
    %v70 = vunpack.c.l.b16 %v29
    %v71 = vunpack.c.h.b16 %v29
    %v72 = vunpack.c.l.b16 %v30
    %v73 = vunpack.c.h.b16 %v30
    %v74 = vunpack.c.l.b16 %v31
    %v75 = vunpack.c.h.b16 %v31
    %v76 = vpack.c.b16 %v70, %v68
    %v77 = vpack.c.b16 %v71, %v69
    %v78 = vpack.c.b16 %v74, %v72
    %v79 = vpack.c.b16 %v75, %v73
    %v116 = vunpack.c.l.b16 %v32
    %v117 = vunpack.c.l.b16 %v33
    %v118 = vunpack.c.l.b16 %v34
    %v119 = vunpack.c.l.b16 %v35
    %v120 = vunpack.c.l.b16 %v36
    %v121 = vunpack.c.l.b16 %v37
    %v122 = vunpack.c.l.b16 %v38
    %v123 = vunpack.c.l.b16 %v39
    %v124 = vunpack.c.l.b16 %v40
    %v125 = vunpack.c.l.b16 %v41
    %v126 = vunpack.c.l.b16 %v42
    %v127 = vunpack.c.l.b16 %v43
    %v128 = vunpack.c.l.b16 %v44
    %v129 = vunpack.c.l.b16 %v45
    %v130 = vunpack.c.l.b16 %v46
    %v131 = vunpack.c.l.b16 %v47
    %v132 = vunpack.c.l.b16 %v48
    %v133 = vunpack.c.l.b16 %v49
    %v134 = vunpack.c.l.b16 %v50
    %v135 = vunpack.c.l.b16 %v51
    %v136 = vunpack.c.l.b16 %v52
    %v137 = vunpack.c.l.b16 %v53
    %v138 = vunpack.c.l.b16 %v54
    %v139 = vunpack.c.l.b16 %v55
    %v140 = vunpack.c.l.b16 %v56
    %v141 = vunpack.c.l.b16 %v57
    %v142 = vunpack.c.l.b16 %v58
    %v143 = vunpack.c.l.b16 %v59
    %v144 = vunpack.c.l.b16 %v60
    %v145 = vunpack.c.l.b16 %v61
    %v146 = vunpack.c.l.b16 %v62
    %v147 = vunpack.c.l.b16 %v63
    %v148 = vpack.c.b16 %v117, %v116
    %v149 = vpack.c.b16 %v119, %v118
    %v150 = vpack.c.b16 %v121, %v120
    %v151 = vpack.c.b16 %v123, %v122
    %v152 = vpack.c.b16 %v125, %v124
    %v153 = vpack.c.b16 %v127, %v126
    %v154 = vpack.c.b16 %v129, %v128
    %v155 = vpack.c.b16 %v131, %v130
    %v156 = vpack.c.b16 %v133, %v132
    %v157 = vpack.c.b16 %v135, %v134
    %v158 = vpack.c.b16 %v137, %v136
    %v159 = vpack.c.b16 %v139, %v138
    %v160 = vpack.c.b16 %v141, %v140
    %v161 = vpack.c.b16 %v143, %v142
    %v162 = vpack.c.b16 %v145, %v144
    %v163 = vpack.c.b16 %v147, %v146
    %180 = vmatprep.subr.bf16.mxu0 0
    %181 = vmatpush1.bf16.msra.mxu0 %v148
    %182 = vmatprep.subr.bf16.mxu0 0
    %183 = vmatpush1.bf16.msra.mxu0 %v149
    %184 = vmatprep.subr.bf16.mxu0 0
    %185 = vmatpush1.bf16.msra.mxu0 %v150
    %186 = vmatprep.subr.bf16.mxu0 0
    %187 = vmatpush1.bf16.msra.mxu0 %v151
    %188 = vmatprep.subr.bf16.mxu0 0
    %189 = vmatpush1.bf16.msra.mxu0 %v152
    %190 = vmatprep.subr.bf16.mxu0 0
    %191 = vmatpush1.bf16.msra.mxu0 %v153
    %192 = vmatprep.subr.bf16.mxu0 0
    %193 = vmatpush1.bf16.msra.mxu0 %v154
    %194 = vmatprep.subr.bf16.mxu0 0
    %195 = vmatpush1.bf16.msra.mxu0 %v155
    %196 = vmatprep.subr.bf16.mxu0 0
    %197 = vmatpush1.bf16.msra.mxu0 %v156
    %198 = vmatprep.subr.bf16.mxu0 0
    %199 = vmatpush1.bf16.msra.mxu0 %v157
    %200 = vmatprep.subr.bf16.mxu0 0
    %201 = vmatpush1.bf16.msra.mxu0 %v158
    %202 = vmatprep.subr.bf16.mxu0 0
    %203 = vmatpush1.bf16.msra.mxu0 %v159
    %204 = vmatprep.subr.bf16.mxu0 0
    %205 = vmatpush1.bf16.msra.mxu0 %v160
    %206 = vmatprep.subr.bf16.mxu0 0
    %207 = vmatpush1.bf16.msra.mxu0 %v161
    %208 = vmatprep.subr.bf16.mxu0 0
    %209 = vmatpush1.bf16.msra.mxu0 %v162
    %210 = vmatprep.subr.bf16.mxu0 0
    %211 = vmatpush1.bf16.msra.mxu0 %v163
    %212 = vmatprep.mubr.bf16.mxu0 %v77
    %213 = vmatmul.mubr.bf16.gmra.mrb[0].mxu0 %v76
    %v214 = vpop.f32.mrb[0].mxu0
    %v215 = vadd.f32 0.0, %v214
    %v216 = vpop.f32.mrb[0].mxu0
    %v217 = vpop.f32.mrb[0].mxu0
    %v218 = vadd.f32 0.0, %v217
    %v219 = vpop.f32.mrb[0].mxu0
    %220 = vmatprep.mubr.bf16.mxu0 %v79
    %221 = vmatmul.mubr.bf16.gmra.mrb[0].mxu0 %v78
    %v222 = vpop.f32.mrb[0].mxu0
    %v223 = vadd.f32 0.0, %v222
    %v224 = vpop.f32.mrb[0].mxu0
    %v225 = vpop.f32.mrb[0].mxu0
    %v226 = vadd.f32 0.0, %v225
    %v227 = vpop.f32.mrb[0].mxu0
    %228 = vdwg.mxu0
    %229 = vst [vmem:[%s2] sm:$0xff] %v215
    %230 = vst [vmem:[%s2 + $0x8] sm:$0xff] %v218
    %231 = vst [vmem:[%s2 + $0x10] sm:$0xff] %v223
    %232 = vst [vmem:[%s2 + $0x18] sm:$0xff] %v226
    %v233 = vadd.f32 %v215, %v218
    %v234 = vadd.f32 %v233, %v223
    %v235 = vadd.f32 %v234, %v226
    %v236 = vrot.slane %v235, 4
    %v237 = vadd.f32 %v235, %v236
    %v238 = vrot.slane %v237, 2
    %v239 = vadd.f32 %v237, %v238
    %v240 = vrot.slane %v239, 1
    %v241 = vadd.f32 %v239, %v240
    %v242 = vmul.f32 %v215, %v215
    %v243 = vmul.f32 %v218, %v218
    %v244 = vmul.f32 %v223, %v223
    %v245 = vmul.f32 %v226, %v226
    %v246 = vadd.f32 %v242, %v243
    %v247 = vadd.f32 %v246, %v244
    %v248 = vadd.f32 %v247, %v245
    %v249 = vrot.slane %v248, 4
    %v250 = vadd.f32 %v248, %v249
    %v251 = vrot.slane %v250, 2
    %v252 = vadd.f32 %v250, %v251
    %v253 = vrot.slane %v252, 1
    %v254 = vadd.f32 %v252, %v253
    %vm255 = vcmask 1040384
    %v256 = vsel %vm255, %v241, %v254
    %257 = vst [vmem:[%s3] sm:$0x3] %v256
    // Predicated region
    $region14: #{generator_forward.9} parent=1 // pred_check
      _
    $region15: #{generator_forward.9} parent=1 // pred_check_branch
      %259 = sbr.rel (0) target = $region17
    $region16: #{generator_forward.9} parent=1 // pred_region
      _
    $region17: #{generator_forward.9} parent=1 // pred_fallthru
      _
    // Predicated region
    $region18: #{generator_forward.9} parent=1 // pred_check
      _
    $region19: #{generator_forward.9} parent=1 // pred_check_branch
      %261 = sbr.rel (0) target = $region21
    $region20: #{generator_forward.9} parent=1 // pred_region
      _
    $region21: #{generator_forward.9} parent=1 // pred_fallthru
      _
    // Predicated region
    $region22: #{generator_forward.9} parent=1 // pred_check
      _
    $region23: #{generator_forward.9} parent=1 // pred_check_branch
      %263 = sbr.rel (0) target = $region25
    $region24: #{generator_forward.9} parent=1 // pred_region
      _
    $region25: #{generator_forward.9} parent=1 // pred_fallthru
      _
    // Predicated region
    $region26: #{generator_forward.9} parent=1 // pred_check
      _
    $region27: #{generator_forward.9} parent=1 // pred_check_branch
      %265 = sbr.rel (0) target = $region29
    $region28: #{generator_forward.9} parent=1 // pred_region
      _
    $region29: #{generator_forward.9} parent=1 // pred_fallthru
      _
    %266 = vsyncpa [#allocation3], 1

// kernel: generator_forward.11
$region0: #{generator_forward.11}
  #allocation0 [shape = 'u32[]', space=smem, size = 0x4, offset = 0x4, fixed_abs, tag = 'smem constant byte address 0x4 - core index']
  #allocation1 [shape = 'u32[144,128]{1,0:T(1,128)}', space=vmem, size = 0x12000, scoped, tag = 'internal scratch']
  %s0 = inlined_call_operand.vmem [shape: bf16[4,32,512], index: 0, kind: input, shape index: {}]
  %s1 = inlined_call_operand.hbm [shape: bf16[4,512,128], index: 1, kind: input, shape index: {}]
  %s2 = inlined_call_operand.vmem [shape: f32[4,32,128], index: 2, kind: output, shape index: {0}]
  %s3 = inlined_call_operand.vmem [shape: f32[4,1,2,128], index: 3, kind: output, shape index: {1}]
  %4 = xla_tuple %s2, %s3
  %s5 = sld [smem:[#allocation0]]
  $region53: #{generator_forward.11} parent=0
    _
  %s7 = ssub.s32 1, %s5
  %s8 = scalar_select 0, %s7, %s5
  $region1: #{generator_forward.11} parent=0
    #allocation2 [shape = 'u8[262144]{0}', space=vmem, size = 0x40000, scoped, tag = 'input window, operand 1']
    #allocation3 [shape = 's32[2]{0}', space=sflag, size = 0x8, scoped, tag = 'scoped memory for generator_forward.11']
    %9 = vsyncpa [#allocation3], 0
    %s10 = scalar_lea.sflag [#allocation3], 1
    %11 = vsyncpa %s10, 0
    loop: start=0, step=1, limit=6
    $region2: #{generator_forward.11} parent=1 // loop_pre_header
      _
    $region3: #{generator_forward.11} parent=1 // loop_header
      %s13 = sphi 0, %s17
      %p14 = scmp.ge.s32.totalorder %s13, 6
      %s20 = sphi 0, %s32
      %s21 = sphi 0, %s28
      %s22 = sphi 0, %s20
      %s23 = sphi 0, %s21
      %s24 = sphi 0, %s22
      %s25 = sphi 0, %s23
      %s37 = sphi 0, %s39
      %s40 = sphi 0, %s37
      %s41 = sphi 0, %s40
      %s57 = sphi 0, %s41
      %s63 = sphi 0, %s65
      %s66 = sphi 0, %s63
      %s67 = sphi 0, %s66
      %s83 = sphi 0, %s67
      %s91 = sphi 0, %s93
      %s94 = sphi 0, %s91
      %s95 = sphi 0, %s94
      %s111 = sphi 0, %s95
      %s119 = sphi 0, %s121
      %s122 = sphi 0, %s119
      %s123 = sphi 0, %s122
      %s139 = sphi 0, %s123
    $region4: #{generator_forward.11} parent=1 // loop_header_branch
      %16 = sbr.rel (%p14) target = $region8
    $region5: #{generator_forward.11} parent=1 // loop_body
      %s18 = ssub.s32 %s13, 1
      %s19 = ssub.s32 %s13, 2
      %s26 = sadd.s32 1, %s21
      %p27 = scmp.ge.s32.totalorder %s26, 1
      %s28 = scalar_select %p27, 0, %s26
      %s29 = sadd.s32 1, %s20
      %s30 = scalar_select %p27, %s29, %s20
      %p31 = scmp.ge.s32.totalorder %s30, 4
      %s32 = scalar_select %p31, 0, %s30
      %s33 = ssub.s32 %s20, %s32
      %s34 = ssub.s32 %s21, %s28
      %s35 = sor.u32 %s33, %s34
      %p36 = scmp.eq.s32.totalorder %s35, 0
      %s38 = sadd.s32 %s37, 1
      %s39 = scalar_select %p36, %s37, %s38
      %p42 = pneg %p36
      %p43 = scmp.eq.s32.totalorder %s13, 3
      %p44 = por %p42, %p43
      %p45 = scmp.ne.s32.totalorder %s37, %s40
      %p46 = scmp.eq.s32.totalorder %s13, 0
      %p47 = por %p45, %p46
      %p48 = scmp.ne.s32.totalorder %s37, %s40
      %p49 = scmp.eq.s32.totalorder %s18, 3
      %p50 = por %p48, %p49
      %p51 = scmp.ne.s32.totalorder %s40, %s41
      %p52 = scmp.eq.s32.totalorder %s18, 0
      %p53 = por %p51, %p52
      %p54 = scmp.ne.s32.totalorder %s40, %s41
      %p55 = scmp.eq.s32.totalorder %s19, 3
      %p56 = por %p54, %p55
      %p58 = scmp.ne.s32.totalorder %s41, %s57
      %p59 = scmp.eq.s32.totalorder %s19, 0
      %p60 = por %p58, %p59
      %s61 = ssub.s32 %s20, %s32
      %p62 = scmp.eq.s32.totalorder %s61, 0
      %s64 = sadd.s32 %s63, 1
      %s65 = scalar_select %p62, %s63, %s64
      %p68 = pneg %p62
      %p69 = scmp.eq.s32.totalorder %s13, 3
      %p70 = por %p68, %p69
      %p71 = scmp.ne.s32.totalorder %s63, %s66
      %p72 = scmp.eq.s32.totalorder %s13, 0
      %p73 = por %p71, %p72
      %p74 = scmp.ne.s32.totalorder %s63, %s66
      %p75 = scmp.eq.s32.totalorder %s18, 3
      %p76 = por %p74, %p75
      %p77 = scmp.ne.s32.totalorder %s66, %s67
      %p78 = scmp.eq.s32.totalorder %s18, 0
      %p79 = por %p77, %p78
      %p80 = scmp.ne.s32.totalorder %s66, %s67
      %p81 = scmp.eq.s32.totalorder %s19, 3
      %p82 = por %p80, %p81
      %p84 = scmp.ne.s32.totalorder %s67, %s83
      %p85 = scmp.eq.s32.totalorder %s19, 0
      %p86 = por %p84, %p85
      %s87 = ssub.s32 %s20, %s32
      %s88 = ssub.s32 %s21, %s28
      %s89 = sor.u32 %s87, %s88
      %p90 = scmp.eq.s32.totalorder %s89, 0
      %s92 = sadd.s32 %s91, 1
      %s93 = scalar_select %p90, %s91, %s92
      %p96 = pneg %p90
      %p97 = scmp.eq.s32.totalorder %s13, 3
      %p98 = por %p96, %p97
      %p99 = scmp.ne.s32.totalorder %s91, %s94
      %p100 = scmp.eq.s32.totalorder %s13, 0
      %p101 = por %p99, %p100
      %p102 = scmp.ne.s32.totalorder %s91, %s94
      %p103 = scmp.eq.s32.totalorder %s18, 3
      %p104 = por %p102, %p103
      %p105 = scmp.ne.s32.totalorder %s94, %s95
      %p106 = scmp.eq.s32.totalorder %s18, 0
      %p107 = por %p105, %p106
      %p108 = scmp.ne.s32.totalorder %s94, %s95
      %p109 = scmp.eq.s32.totalorder %s19, 3
      %p110 = por %p108, %p109
      %p112 = scmp.ne.s32.totalorder %s95, %s111
      %p113 = scmp.eq.s32.totalorder %s19, 0
      %p114 = por %p112, %p113
      %s115 = ssub.s32 %s20, %s32
      %s116 = ssub.s32 %s21, %s28
      %s117 = sor.u32 %s115, %s116
      %p118 = scmp.eq.s32.totalorder %s117, 0
      %s120 = sadd.s32 %s119, 1
      %s121 = scalar_select %p118, %s119, %s120
      %p124 = pneg %p118
      %p125 = scmp.eq.s32.totalorder %s13, 3
      %p126 = por %p124, %p125
      %p127 = scmp.ne.s32.totalorder %s119, %s122
      %p128 = scmp.eq.s32.totalorder %s13, 0
      %p129 = por %p127, %p128
      %p130 = scmp.ne.s32.totalorder %s119, %s122
      %p131 = scmp.eq.s32.totalorder %s18, 3
      %p132 = por %p130, %p131
      %p133 = scmp.ne.s32.totalorder %s122, %s123
      %p134 = scmp.eq.s32.totalorder %s18, 0
      %p135 = por %p133, %p134
      %p136 = scmp.ne.s32.totalorder %s122, %s123
      %p137 = scmp.eq.s32.totalorder %s19, 3
      %p138 = por %p136, %p137
      %p140 = scmp.ne.s32.totalorder %s123, %s139
      %p141 = scmp.eq.s32.totalorder %s19, 0
      %p142 = por %p140, %p141
      %p143 = scmp.le.s32.totalorder 1, %s13
      %p144 = scmp.lt.s32.totalorder %s13, 5
      %p145 = pnand %p143, %p144
      %p146 = pneg %p145
      // Predicated region
      $region9: #{generator_forward.11} parent=5 // pred_check
        _
      $region10: #{generator_forward.11} parent=5 // pred_check_branch
        %148 = sbr.rel (%p145) target = $region12
      $region11: #{generator_forward.11} parent=5 // pred_region
        %s149 = ssub.s32 %s13, 1
      $region12: #{generator_forward.11} parent=5 // pred_fallthru
        _
      %p150 = scmp.lt.s32.totalorder %s13, 4
      // Predicated region
      $region13: #{generator_forward.11} parent=5 // pred_check
        %p151 = pneg %p150
      $region14: #{generator_forward.11} parent=5 // pred_check_branch
        %153 = sbr.rel (%p151) target = $region16
      $region15: #{generator_forward.11} parent=5 // pred_region
        // Predicated region
        $region17: #{generator_forward.11} parent=15 // pred_check
          %p154 = pneg %p47
        $region18: #{generator_forward.11} parent=15 // pred_check_branch
          %156 = sbr.rel (%p154) target = $region20
        $region19: #{generator_forward.11} parent=15 // pred_region
          %s157 = smul.u32 4, %s21
          %p158 = scmp.lt.s32.totalorder %s20, 3
          %s159 = scalar_select %p158, %s20, 3
          %p160 = scmp.lt.s32.totalorder %s157, 3
          %s161 = scalar_select %p160, %s157, 3
          %s162 = smul.addr %s161, 4
          %s163 = smul.addr %s159, 16
          %s164 = sadd.s32 %s162, %s163
          %s165 = smul.addr %s164, 4
          %s166 = scalar_lea.vmem %s0, %s165
          %s167 = smul.u32 4, %s21
        $region20: #{generator_forward.11} parent=15 // pred_fallthru
          _
        // Predicated region
        $region21: #{generator_forward.11} parent=15 // pred_check
          %p168 = pneg %p73
        $region22: #{generator_forward.11} parent=15 // pred_check_branch
          %170 = sbr.rel (%p168) target = $region24
        $region23: #{generator_forward.11} parent=15 // pred_region
          %s171 = sand.u32 %s63, 1
          %s172 = scalar_lea.sflag [#allocation3], %s171
          %s173 = sand.u32 %s63, 1
          %s174 = smul.addr %s173, 256
          %s175 = scalar_lea.vmem [#allocation2], %s174
          %s177 = ssub.s32 4096, 4096
          %178 = vsyncadd %s172, %s177
          %s179 = smul.addr %s20, 64
          %s180 = smul.addr %s179, 64
          %s181 = scalar_lea.hbm %s1, %s180
          %s182 = sshll.u32 %s175, 4
          %s183 = int_to_ptr.vmem [resolvable:$true] %s182
          %188 = dma.hbm_to_vmem [thread:$0]  %s181, 4096, %s183, %s172, 64, 64, 4
        $region24: #{generator_forward.11} parent=15 // pred_fallthru
          _
      $region16: #{generator_forward.11} parent=5 // pred_fallthru
        _
      %p189 = scmp.le.s32.totalorder 1, %s13
      %p190 = scmp.lt.s32.totalorder %s13, 5
      %p191 = pnand %p189, %p190
      %p192 = pneg %p191
      // Predicated region
      $region25: #{generator_forward.11} parent=5 // pred_check
        _
      $region26: #{generator_forward.11} parent=5 // pred_check_branch
        %194 = sbr.rel (%p191) target = $region28
      $region27: #{generator_forward.11} parent=5 // pred_region
        %s195 = ssub.s32 %s13, 1
        %s196 = sand.u32 %s66, 1
        %s197 = scalar_lea.sflag [#allocation3], %s196
        %s198 = sand.u32 %s66, 1
        %s199 = smul.addr %s198, 256
        %s200 = scalar_lea.vmem [#allocation2], %s199
        // Predicated region
        $region29: #{generator_forward.11} parent=27 // pred_check
          %p201 = pneg %p79
        $region30: #{generator_forward.11} parent=27 // pred_check_branch
          %203 = sbr.rel (%p201) target = $region32
        $region31: #{generator_forward.11} parent=27 // pred_region
          %204 = dma.done %s197, 4096
        $region32: #{generator_forward.11} parent=27 // pred_fallthru
          _
        %s205 = smul.u32 4, %s23
        %p206 = scmp.lt.s32.totalorder %s22, 3
        %s207 = scalar_select %p206, %s22, 3
        %p208 = scmp.lt.s32.totalorder %s205, 3
        %s209 = scalar_select %p208, %s205, 3
        %s210 = smul.addr %s209, 4
        %s211 = smul.addr %s207, 16
        %s212 = sadd.s32 %s210, %s211
        %s213 = smul.addr %s212, 4
        %s214 = scalar_lea.vmem %s0, %s213
        %p215 = pneg %p53
        %p216 = pneg %p50
        %s217 = sand.u32 %s66, 1
        %s218 = scalar_lea.sflag [#allocation3], %s217
        %s219 = sand.u32 %s66, 1
        %s220 = smul.addr %s219, 256
        %s221 = scalar_lea.vmem [#allocation2], %s220
        %p222 = pneg %p79
        %p223 = pneg %p76
        %p224 = pneg %p107
        %p225 = pneg %p104
        %s226 = smul.u32 4, %s23
        %p227 = scmp.lt.s32.totalorder %s22, 3
        %s228 = scalar_select %p227, %s22, 3
        %p229 = scmp.lt.s32.totalorder %s226, 3
        %s230 = scalar_select %p229, %s226, 3
        %s231 = smul.addr %s228, 4
        %s232 = sadd.s32 %s230, %s231
        %s233 = smul.addr %s232, 8
        %s234 = scalar_lea.vmem %s2, %s233
        %p235 = pneg %p135
        %p236 = pneg %p132
        %p237 = scmp.lt.s32.totalorder %s22, 3
        %s238 = scalar_select %p237, %s22, 3
        %p239 = scmp.lt.s32.totalorder %s23, 0
        %s240 = scalar_select %p239, %s23, 0
        %s241 = sadd.s32 %s240, %s238
        %s242 = smul.addr %s241, 2
        %s243 = scalar_lea.vmem %s3, %s242
        %s244 = smul.u32 4, %s23
        %p245 = scmp.lt.s32.totalorder %s22, 3
        %s246 = scalar_select %p245, %s22, 3
        %p247 = scmp.lt.s32.totalorder %s244, 3
        %s248 = scalar_select %p247, %s244, 3
        %s249 = smul.addr %s248, 4
        %s250 = smul.addr %s246, 16
        %s251 = sadd.s32 %s249, %s250
        %s252 = smul.addr %s251, 4
        %s253 = scalar_lea.vmem %s0, %s252
        %s254 = smul.u32 4, %s23
        %s255 = smul.u32 4, %s23
        %p256 = scmp.lt.s32.totalorder %s22, 3
        %s257 = scalar_select %p256, %s22, 3
        %p258 = scmp.lt.s32.totalorder %s255, 3
        %s259 = scalar_select %p258, %s255, 3
        %s260 = smul.addr %s257, 4
        %s261 = sadd.s32 %s259, %s260
        %s262 = smul.addr %s261, 8
        %s263 = scalar_lea.vmem %s2, %s262
        %s264 = smul.u32 4, %s23
        %p265 = scmp.lt.s32.totalorder %s22, 3
        %s266 = scalar_select %p265, %s22, 3
        %p267 = scmp.lt.s32.totalorder %s23, 0
        %s268 = scalar_select %p267, %s23, 0
        %s269 = sadd.s32 %s268, %s266
        %s270 = smul.addr %s269, 2
        %s271 = scalar_lea.vmem %s3, %s270
        %v273 = vld [vmem:[%s253] sm:$0xff]
        %v274 = vld [vmem:[%s253 + $0x8] sm:$0xff]
        %v275 = vld [vmem:[%s253 + $0x10] sm:$0xff]
        %v276 = vld [vmem:[%s253 + $0x18] sm:$0xff]
        %v277 = vld [vmem:[%s253 + $0x20] sm:$0xff]
        %v278 = vld [vmem:[%s253 + $0x28] sm:$0xff]
        %v279 = vld [vmem:[%s253 + $0x30] sm:$0xff]
        %v280 = vld [vmem:[%s253 + $0x38] sm:$0xff]
        %v281 = vld [vmem:[%s200] sm:$0xf]
        %v282 = vld [vmem:[%s200 + $0x4] sm:$0xf]
        %v283 = vld [vmem:[%s200 + $0x8] sm:$0xf]
        %v284 = vld [vmem:[%s200 + $0xc] sm:$0xf]
        %v285 = vld [vmem:[%s200 + $0x10] sm:$0xf]
        %v286 = vld [vmem:[%s200 + $0x14] sm:$0xf]
        %v287 = vld [vmem:[%s200 + $0x18] sm:$0xf]
        %v288 = vld [vmem:[%s200 + $0x1c] sm:$0xf]
        %v289 = vld [vmem:[%s200 + $0x20] sm:$0xf]
        %v290 = vld [vmem:[%s200 + $0x24] sm:$0xf]
        %v291 = vld [vmem:[%s200 + $0x28] sm:$0xf]
        %v292 = vld [vmem:[%s200 + $0x2c] sm:$0xf]
        %v293 = vld [vmem:[%s200 + $0x30] sm:$0xf]
        %v294 = vld [vmem:[%s200 + $0x34] sm:$0xf]
        %v295 = vld [vmem:[%s200 + $0x38] sm:$0xf]
        %v296 = vld [vmem:[%s200 + $0x3c] sm:$0xf]
        %v297 = vld [vmem:[%s200 + $0x40] sm:$0xf]
        %v298 = vld [vmem:[%s200 + $0x44] sm:$0xf]
        %v299 = vld [vmem:[%s200 + $0x48] sm:$0xf]
        %v300 = vld [vmem:[%s200 + $0x4c] sm:$0xf]
        %v301 = vld [vmem:[%s200 + $0x50] sm:$0xf]
        %v302 = vld [vmem:[%s200 + $0x54] sm:$0xf]
        %v303 = vld [vmem:[%s200 + $0x58] sm:$0xf]
        %v304 = vld [vmem:[%s200 + $0x5c] sm:$0xf]
        %v305 = vld [vmem:[%s200 + $0x60] sm:$0xf]
        %v306 = vld [vmem:[%s200 + $0x64] sm:$0xf]
        %v307 = vld [vmem:[%s200 + $0x68] sm:$0xf]
        %v308 = vld [vmem:[%s200 + $0x6c] sm:$0xf]
        %v309 = vld [vmem:[%s200 + $0x70] sm:$0xf]
        %v310 = vld [vmem:[%s200 + $0x74] sm:$0xf]
        %v311 = vld [vmem:[%s200 + $0x78] sm:$0xf]
        %v312 = vld [vmem:[%s200 + $0x7c] sm:$0xf]
        %v313 = vld [vmem:[%s200 + $0x80] sm:$0xf]
        %v314 = vld [vmem:[%s200 + $0x84] sm:$0xf]
        %v315 = vld [vmem:[%s200 + $0x88] sm:$0xf]
        %v316 = vld [vmem:[%s200 + $0x8c] sm:$0xf]
        %v317 = vld [vmem:[%s200 + $0x90] sm:$0xf]
        %v318 = vld [vmem:[%s200 + $0x94] sm:$0xf]
        %v319 = vld [vmem:[%s200 + $0x98] sm:$0xf]
        %v320 = vld [vmem:[%s200 + $0x9c] sm:$0xf]
        %v321 = vld [vmem:[%s200 + $0xa0] sm:$0xf]
        %v322 = vld [vmem:[%s200 + $0xa4] sm:$0xf]
        %v323 = vld [vmem:[%s200 + $0xa8] sm:$0xf]
        %v324 = vld [vmem:[%s200 + $0xac] sm:$0xf]
        %v325 = vld [vmem:[%s200 + $0xb0] sm:$0xf]
        %v326 = vld [vmem:[%s200 + $0xb4] sm:$0xf]
        %v327 = vld [vmem:[%s200 + $0xb8] sm:$0xf]
        %v328 = vld [vmem:[%s200 + $0xbc] sm:$0xf]
        %v329 = vld [vmem:[%s200 + $0xc0] sm:$0xf]
        %v330 = vld [vmem:[%s200 + $0xc4] sm:$0xf]
        %v331 = vld [vmem:[%s200 + $0xc8] sm:$0xf]
        %v332 = vld [vmem:[%s200 + $0xcc] sm:$0xf]
        %v333 = vld [vmem:[%s200 + $0xd0] sm:$0xf]
        %v334 = vld [vmem:[%s200 + $0xd4] sm:$0xf]
        %v335 = vld [vmem:[%s200 + $0xd8] sm:$0xf]
        %v336 = vld [vmem:[%s200 + $0xdc] sm:$0xf]
        %v337 = vld [vmem:[%s200 + $0xe0] sm:$0xf]
        %v338 = vld [vmem:[%s200 + $0xe4] sm:$0xf]
        %v339 = vld [vmem:[%s200 + $0xe8] sm:$0xf]
        %v340 = vld [vmem:[%s200 + $0xec] sm:$0xf]
        %v341 = vld [vmem:[%s200 + $0xf0] sm:$0xf]
        %v342 = vld [vmem:[%s200 + $0xf4] sm:$0xf]
        %v343 = vld [vmem:[%s200 + $0xf8] sm:$0xf]
        %v344 = vld [vmem:[%s200 + $0xfc] sm:$0xf]
        %v353 = vunpack.c.l.b16 %v273
        %v354 = vunpack.c.h.b16 %v273
        %v355 = vunpack.c.l.b16 %v274
        %v356 = vunpack.c.h.b16 %v274
        %v357 = vunpack.c.l.b16 %v275
        %v358 = vunpack.c.h.b16 %v275
        %v359 = vunpack.c.l.b16 %v276
        %v360 = vunpack.c.h.b16 %v276
        %v361 = vunpack.c.l.b16 %v277
        %v362 = vunpack.c.h.b16 %v277
        %v363 = vunpack.c.l.b16 %v278
        %v364 = vunpack.c.h.b16 %v278
        %v365 = vunpack.c.l.b16 %v279
        %v366 = vunpack.c.h.b16 %v279
        %v367 = vunpack.c.l.b16 %v280
        %v368 = vunpack.c.h.b16 %v280
        %v369 = vpack.c.b16 %v357, %v353
        %v370 = vpack.c.b16 %v358, %v354
        %v371 = vpack.c.b16 %v359, %v355
        %v372 = vpack.c.b16 %v360, %v356
        %v373 = vpack.c.b16 %v365, %v361
        %v374 = vpack.c.b16 %v366, %v362
        %v375 = vpack.c.b16 %v367, %v363
        %v376 = vpack.c.b16 %v368, %v364
        %v449 = vunpack.c.l.b16 %v281
        %v450 = vunpack.c.l.b16 %v282
        %v451 = vunpack.c.l.b16 %v283
        %v452 = vunpack.c.l.b16 %v284
        %v453 = vunpack.c.l.b16 %v285
        %v454 = vunpack.c.l.b16 %v286
        %v455 = vunpack.c.l.b16 %v287
        %v456 = vunpack.c.l.b16 %v288
        %v457 = vunpack.c.l.b16 %v289
        %v458 = vunpack.c.l.b16 %v290
        %v459 = vunpack.c.l.b16 %v291
        %v460 = vunpack.c.l.b16 %v292
        %v461 = vunpack.c.l.b16 %v293
        %v462 = vunpack.c.l.b16 %v294
        %v463 = vunpack.c.l.b16 %v295
        %v464 = vunpack.c.l.b16 %v296
        %v465 = vunpack.c.l.b16 %v297
        %v466 = vunpack.c.l.b16 %v298
        %v467 = vunpack.c.l.b16 %v299
        %v468 = vunpack.c.l.b16 %v300
        %v469 = vunpack.c.l.b16 %v301
        %v470 = vunpack.c.l.b16 %v302
        %v471 = vunpack.c.l.b16 %v303
        %v472 = vunpack.c.l.b16 %v304
        %v473 = vunpack.c.l.b16 %v305
        %v474 = vunpack.c.l.b16 %v306
        %v475 = vunpack.c.l.b16 %v307
        %v476 = vunpack.c.l.b16 %v308
        %v477 = vunpack.c.l.b16 %v309
        %v478 = vunpack.c.l.b16 %v310
        %v479 = vunpack.c.l.b16 %v311
        %v480 = vunpack.c.l.b16 %v312
        %v481 = vunpack.c.l.b16 %v313
        %v482 = vunpack.c.l.b16 %v314
        %v483 = vunpack.c.l.b16 %v315
        %v484 = vunpack.c.l.b16 %v316
        %v485 = vunpack.c.l.b16 %v317
        %v486 = vunpack.c.l.b16 %v318
        %v487 = vunpack.c.l.b16 %v319
        %v488 = vunpack.c.l.b16 %v320
        %v489 = vunpack.c.l.b16 %v321
        %v490 = vunpack.c.l.b16 %v322
        %v491 = vunpack.c.l.b16 %v323
        %v492 = vunpack.c.l.b16 %v324
        %v493 = vunpack.c.l.b16 %v325
        %v494 = vunpack.c.l.b16 %v326
        %v495 = vunpack.c.l.b16 %v327
        %v496 = vunpack.c.l.b16 %v328
        %v497 = vunpack.c.l.b16 %v329
        %v498 = vunpack.c.l.b16 %v330
        %v499 = vunpack.c.l.b16 %v331
        %v500 = vunpack.c.l.b16 %v332
        %v501 = vunpack.c.l.b16 %v333
        %v502 = vunpack.c.l.b16 %v334
        %v503 = vunpack.c.l.b16 %v335
        %v504 = vunpack.c.l.b16 %v336
        %v505 = vunpack.c.l.b16 %v337
        %v506 = vunpack.c.l.b16 %v338
        %v507 = vunpack.c.l.b16 %v339
        %v508 = vunpack.c.l.b16 %v340
        %v509 = vunpack.c.l.b16 %v341
        %v510 = vunpack.c.l.b16 %v342
        %v511 = vunpack.c.l.b16 %v343
        %v512 = vunpack.c.l.b16 %v344
        %v513 = vpack.c.b16 %v450, %v449
        %v514 = vpack.c.b16 %v452, %v451
        %v515 = vpack.c.b16 %v454, %v453
        %v516 = vpack.c.b16 %v456, %v455
        %v517 = vpack.c.b16 %v458, %v457
        %v518 = vpack.c.b16 %v460, %v459
        %v519 = vpack.c.b16 %v462, %v461
        %v520 = vpack.c.b16 %v464, %v463
        %v521 = vpack.c.b16 %v466, %v465
        %v522 = vpack.c.b16 %v468, %v467
        %v523 = vpack.c.b16 %v470, %v469
        %v524 = vpack.c.b16 %v472, %v471
        %v525 = vpack.c.b16 %v474, %v473
        %v526 = vpack.c.b16 %v476, %v475
        %v527 = vpack.c.b16 %v478, %v477
        %v528 = vpack.c.b16 %v480, %v479
        %v529 = vpack.c.b16 %v482, %v481
        %v530 = vpack.c.b16 %v484, %v483
        %v531 = vpack.c.b16 %v486, %v485
        %v532 = vpack.c.b16 %v488, %v487
        %v533 = vpack.c.b16 %v490, %v489
        %v534 = vpack.c.b16 %v492, %v491
        %v535 = vpack.c.b16 %v494, %v493
        %v536 = vpack.c.b16 %v496, %v495
        %v537 = vpack.c.b16 %v498, %v497
        %v538 = vpack.c.b16 %v500, %v499
        %v539 = vpack.c.b16 %v502, %v501
        %v540 = vpack.c.b16 %v504, %v503
        %v541 = vpack.c.b16 %v506, %v505
        %v542 = vpack.c.b16 %v508, %v507
        %v543 = vpack.c.b16 %v510, %v509
        %v544 = vpack.c.b16 %v512, %v511
        %577 = vmatprep.subr.bf16.mxu0 0
        %578 = vmatpush1.bf16.msra.mxu0 %v513
        %579 = vmatprep.subr.bf16.mxu0 0
        %580 = vmatpush1.bf16.msra.mxu0 %v514
        %581 = vmatprep.subr.bf16.mxu0 0
        %582 = vmatpush1.bf16.msra.mxu0 %v515
        %583 = vmatprep.subr.bf16.mxu0 0
        %584 = vmatpush1.bf16.msra.mxu0 %v516
        %585 = vmatprep.subr.bf16.mxu0 0
        %586 = vmatpush1.bf16.msra.mxu0 %v517
        %587 = vmatprep.subr.bf16.mxu0 0
        %588 = vmatpush1.bf16.msra.mxu0 %v518
        %589 = vmatprep.subr.bf16.mxu0 0
        %590 = vmatpush1.bf16.msra.mxu0 %v519
        %591 = vmatprep.subr.bf16.mxu0 0
        %592 = vmatpush1.bf16.msra.mxu0 %v520
        %593 = vmatprep.subr.bf16.mxu0 0
        %594 = vmatpush1.bf16.msra.mxu0 %v521
        %595 = vmatprep.subr.bf16.mxu0 0
        %596 = vmatpush1.bf16.msra.mxu0 %v522
        %597 = vmatprep.subr.bf16.mxu0 0
        %598 = vmatpush1.bf16.msra.mxu0 %v523
        %599 = vmatprep.subr.bf16.mxu0 0
        %600 = vmatpush1.bf16.msra.mxu0 %v524
        %601 = vmatprep.subr.bf16.mxu0 0
        %602 = vmatpush1.bf16.msra.mxu0 %v525
        %603 = vmatprep.subr.bf16.mxu0 0
        %604 = vmatpush1.bf16.msra.mxu0 %v526
        %605 = vmatprep.subr.bf16.mxu0 0
        %606 = vmatpush1.bf16.msra.mxu0 %v527
        %607 = vmatprep.subr.bf16.mxu0 0
        %608 = vmatpush1.bf16.msra.mxu0 %v528
        %609 = vmatprep.mubr.bf16.mxu0 %v370
        %610 = vmatmul.mubr.bf16.gmra.mrb[0].mxu0 %v369
        %v611 = vpop.f32.mrb[0].mxu0
        %v612 = vadd.f32 0.0, %v611
        %v613 = vpop.f32.mrb[0].mxu0
        %v614 = vpop.f32.mrb[0].mxu0
        %v615 = vadd.f32 0.0, %v614
        %v616 = vpop.f32.mrb[0].mxu0
        %617 = vmatprep.mubr.bf16.mxu0 %v374
        %618 = vmatmul.mubr.bf16.gmra.mrb[0].mxu0 %v373
        %v619 = vpop.f32.mrb[0].mxu0
        %v620 = vadd.f32 0.0, %v619
        %v621 = vpop.f32.mrb[0].mxu0
        %v622 = vpop.f32.mrb[0].mxu0
        %v623 = vadd.f32 0.0, %v622
        %v624 = vpop.f32.mrb[0].mxu0
        %625 = vdwg.mxu0
        %626 = vmatprep.subr.bf16.mxu0 0
        %627 = vmatpush1.bf16.msra.mxu0 %v529
        %628 = vmatprep.subr.bf16.mxu0 0
        %629 = vmatpush1.bf16.msra.mxu0 %v530
        %630 = vmatprep.subr.bf16.mxu0 0
        %631 = vmatpush1.bf16.msra.mxu0 %v531
        %632 = vmatprep.subr.bf16.mxu0 0
        %633 = vmatpush1.bf16.msra.mxu0 %v532
        %634 = vmatprep.subr.bf16.mxu0 0
        %635 = vmatpush1.bf16.msra.mxu0 %v533
        %636 = vmatprep.subr.bf16.mxu0 0
        %637 = vmatpush1.bf16.msra.mxu0 %v534
        %638 = vmatprep.subr.bf16.mxu0 0
        %639 = vmatpush1.bf16.msra.mxu0 %v535
        %640 = vmatprep.subr.bf16.mxu0 0
        %641 = vmatpush1.bf16.msra.mxu0 %v536
        %642 = vmatprep.subr.bf16.mxu0 0
        %643 = vmatpush1.bf16.msra.mxu0 %v537
        %644 = vmatprep.subr.bf16.mxu0 0
        %645 = vmatpush1.bf16.msra.mxu0 %v538
        %646 = vmatprep.subr.bf16.mxu0 0
        %647 = vmatpush1.bf16.msra.mxu0 %v539
        %648 = vmatprep.subr.bf16.mxu0 0
        %649 = vmatpush1.bf16.msra.mxu0 %v540
        %650 = vmatprep.subr.bf16.mxu0 0
        %651 = vmatpush1.bf16.msra.mxu0 %v541
        %652 = vmatprep.subr.bf16.mxu0 0
        %653 = vmatpush1.bf16.msra.mxu0 %v542
        %654 = vmatprep.subr.bf16.mxu0 0
        %655 = vmatpush1.bf16.msra.mxu0 %v543
        %656 = vmatprep.subr.bf16.mxu0 0
        %657 = vmatpush1.bf16.msra.mxu0 %v544
        %658 = vmatprep.mubr.bf16.mxu0 %v372
        %659 = vmatmul.mubr.bf16.gmra.mrb[0].mxu0 %v371
        %v660 = vpop.f32.mrb[0].mxu0
        %v661 = vadd.f32 %v612, %v660
        %v662 = vpop.f32.mrb[0].mxu0
        %v663 = vpop.f32.mrb[0].mxu0
        %v664 = vadd.f32 %v615, %v663
        %v665 = vpop.f32.mrb[0].mxu0
        %666 = vmatprep.mubr.bf16.mxu0 %v376
        %667 = vmatmul.mubr.bf16.gmra.mrb[0].mxu0 %v375
        %v668 = vpop.f32.mrb[0].mxu0
        %v669 = vadd.f32 %v620, %v668
        %v670 = vpop.f32.mrb[0].mxu0
        %v671 = vpop.f32.mrb[0].mxu0
        %v672 = vadd.f32 %v623, %v671
        %v673 = vpop.f32.mrb[0].mxu0
        %674 = vdwg.mxu0
        %675 = vst [vmem:[%s263] sm:$0xff] %v661
        %676 = vst [vmem:[%s263 + $0x8] sm:$0xff] %v664
        %677 = vst [vmem:[%s263 + $0x10] sm:$0xff] %v669
        %678 = vst [vmem:[%s263 + $0x18] sm:$0xff] %v672
        %v679 = vadd.f32 %v661, %v664
        %v680 = vadd.f32 %v679, %v669
        %v681 = vadd.f32 %v680, %v672
        %v682 = vrot.slane %v681, 4
        %v683 = vadd.f32 %v681, %v682
        %v684 = vrot.slane %v683, 2
        %v685 = vadd.f32 %v683, %v684
        %v686 = vrot.slane %v685, 1
        %v687 = vadd.f32 %v685, %v686
        %v688 = vmul.f32 %v661, %v661
        %v689 = vmul.f32 %v664, %v664
        %v690 = vmul.f32 %v669, %v669
        %v691 = vmul.f32 %v672, %v672
        %v692 = vadd.f32 %v688, %v689
        %v693 = vadd.f32 %v692, %v690
        %v694 = vadd.f32 %v693, %v691
        %v695 = vrot.slane %v694, 4
        %v696 = vadd.f32 %v694, %v695
        %v697 = vrot.slane %v696, 2
        %v698 = vadd.f32 %v696, %v697
        %v699 = vrot.slane %v698, 1
        %v700 = vadd.f32 %v698, %v699
        %vm701 = vcmask 1040384
        %v702 = vsel %vm701, %v687, %v700
        %703 = vst [vmem:[%s271] sm:$0x3] %v702
        %s704 = smul.u32 4, %s23
        %p705 = scmp.lt.s32.totalorder %s22, 3
        %s706 = scalar_select %p705, %s22, 3
        %p707 = scmp.lt.s32.totalorder %s704, 3
        %s708 = scalar_select %p707, %s704, 3
        %s709 = smul.addr %s706, 4
        %s710 = sadd.s32 %s708, %s709
        %s711 = smul.addr %s710, 8
        %s712 = scalar_lea.vmem %s2, %s711
        %p713 = scmp.lt.s32.totalorder %s22, 3
        %s714 = scalar_select %p713, %s22, 3
        %p715 = scmp.lt.s32.totalorder %s23, 0
        %s716 = scalar_select %p715, %s23, 0
        %s717 = sadd.s32 %s716, %s714
        %s718 = smul.addr %s717, 2
        %s719 = scalar_lea.vmem %s3, %s718
        // Predicated region
        $region33: #{generator_forward.11} parent=27 // pred_check
          %p720 = pneg %p104
        $region34: #{generator_forward.11} parent=27 // pred_check_branch
          %722 = sbr.rel (%p720) target = $region36
        $region35: #{generator_forward.11} parent=27 // pred_region
          %s723 = smul.u32 4, %s23
        $region36: #{generator_forward.11} parent=27 // pred_fallthru
          _
        // Predicated region
        $region37: #{generator_forward.11} parent=27 // pred_check
          %p724 = pneg %p132
        $region38: #{generator_forward.11} parent=27 // pred_check_branch
          %726 = sbr.rel (%p724) target = $region40
        $region39: #{generator_forward.11} parent=27 // pred_region
          _
        $region40: #{generator_forward.11} parent=27 // pred_fallthru
          _
      $region28: #{generator_forward.11} parent=5 // pred_fallthru
        _
      %p727 = scmp.le.s32.totalorder 2, %s13
      // Predicated region
      $region41: #{generator_forward.11} parent=5 // pred_check
        %p728 = pneg %p727
      $region42: #{generator_forward.11} parent=5 // pred_check_branch
        %730 = sbr.rel (%p728) target = $region44
      $region43: #{generator_forward.11} parent=5 // pred_region
        %s731 = ssub.s32 %s13, 2
        // Predicated region
        $region45: #{generator_forward.11} parent=43 // pred_check
          %p732 = pneg %p110
        $region46: #{generator_forward.11} parent=43 // pred_check_branch
          %734 = sbr.rel (%p732) target = $region48
        $region47: #{generator_forward.11} parent=43 // pred_region
          %s735 = smul.u32 4, %s25
          %p736 = scmp.lt.s32.totalorder %s24, 3
          %s737 = scalar_select %p736, %s24, 3
          %p738 = scmp.lt.s32.totalorder %s735, 3
          %s739 = scalar_select %p738, %s735, 3
          %s740 = smul.addr %s737, 4
          %s741 = sadd.s32 %s739, %s740
          %s742 = smul.addr %s741, 8
          %s743 = scalar_lea.vmem %s2, %s742
        $region48: #{generator_forward.11} parent=43 // pred_fallthru
          _
        // Predicated region
        $region49: #{generator_forward.11} parent=43 // pred_check
          %p744 = pneg %p138
        $region50: #{generator_forward.11} parent=43 // pred_check_branch
          %746 = sbr.rel (%p744) target = $region52
        $region51: #{generator_forward.11} parent=43 // pred_region
          %p747 = scmp.lt.s32.totalorder %s24, 3
          %s748 = scalar_select %p747, %s24, 3
          %p749 = scmp.lt.s32.totalorder %s25, 0
          %s750 = scalar_select %p749, %s25, 0
          %s751 = sadd.s32 %s750, %s748
          %s752 = smul.addr %s751, 2
          %s753 = scalar_lea.vmem %s3, %s752
        $region52: #{generator_forward.11} parent=43 // pred_fallthru
          _
      $region44: #{generator_forward.11} parent=5 // pred_fallthru
        _
    $region6: #{generator_forward.11} parent=1 // loop_footer
      %s17 = sadd.s32 1, %s13
    $region7: #{generator_forward.11} parent=1 // loop_footer_branch
      %12 = sbr.rel target = $region3
    $region8: #{generator_forward.11} parent=1 // loop_exit
      _
    %754 = vsyncpa [#allocation3], 1
    %s755 = scalar_lea.sflag [#allocation3], 1
    %756 = vsyncpa %s755, 1

// kernel: generator_forward.12
$region0: #{generator_forward.12}
  #allocation0 [shape = 'u32[]', space=smem, size = 0x4, offset = 0x4, fixed_abs, tag = 'smem constant byte address 0x4 - core index']
  #allocation1 [shape = 'u32[144,128]{1,0:T(1,128)}', space=vmem, size = 0x12000, scoped, tag = 'internal scratch']
  %s0 = inlined_call_operand.vmem [shape: f32[4,32,128], index: 0, kind: input, shape index: {}]
  %s1 = inlined_call_operand.vmem [shape: f32[1,128], index: 1, kind: input, shape index: {}]
  %s2 = inlined_call_operand.vmem [shape: f32[1,128], index: 2, kind: input, shape index: {}]
  %s3 = inlined_call_operand.vmem [shape: bf16[4,32,128], index: 3, kind: output, shape index: {}]
  %s4 = sld [smem:[#allocation0]]
  $region45: #{generator_forward.12} parent=0
    _
  %s6 = ssub.s32 1, %s4
  %s7 = scalar_select 0, %s6, %s4
  loop: start=0, step=1, limit=6
  $region2: #{generator_forward.12} parent=0 // loop_pre_header
    _
  $region3: #{generator_forward.12} parent=0 // loop_header
    %s9 = sphi 0, %s13
    %p10 = scmp.ge.s32.totalorder %s9, 6
    %s16 = sphi 0, %s28
    %s17 = sphi 0, %s24
    %s18 = sphi 0, %s16
    %s19 = sphi 0, %s17
    %s20 = sphi 0, %s18
    %s21 = sphi 0, %s19
    %s33 = sphi 0, %s35
    %s36 = sphi 0, %s33
    %s37 = sphi 0, %s36
    %s53 = sphi 0, %s37
    %s57 = sphi 0, %s57
    %s59 = sphi 0, %s57
    %s60 = sphi 0, %s59
    %s74 = sphi 0, %s60
    %s78 = sphi 0, %s78
    %s80 = sphi 0, %s78
    %s81 = sphi 0, %s80
    %s95 = sphi 0, %s81
    %s103 = sphi 0, %s105
    %s106 = sphi 0, %s103
    %s107 = sphi 0, %s106
    %s123 = sphi 0, %s107
  $region4: #{generator_forward.12} parent=0 // loop_header_branch
    %12 = sbr.rel (%p10) target = $region8
  $region5: #{generator_forward.12} parent=0 // loop_body
    %s14 = ssub.s32 %s9, 1
    %s15 = ssub.s32 %s9, 2
    %s22 = sadd.s32 1, %s17
    %p23 = scmp.ge.s32.totalorder %s22, 1
    %s24 = scalar_select %p23, 0, %s22
    %s25 = sadd.s32 1, %s16
    %s26 = scalar_select %p23, %s25, %s16
    %p27 = scmp.ge.s32.totalorder %s26, 4
    %s28 = scalar_select %p27, 0, %s26
    %s29 = ssub.s32 %s16, %s28
    %s30 = ssub.s32 %s17, %s24
    %s31 = sor.u32 %s29, %s30
    %p32 = scmp.eq.s32.totalorder %s31, 0
    %s34 = sadd.s32 %s33, 1
    %s35 = scalar_select %p32, %s33, %s34
    %p38 = pneg %p32
    %p39 = scmp.eq.s32.totalorder %s9, 3
    %p40 = por %p38, %p39
    %p41 = scmp.ne.s32.totalorder %s33, %s36
    %p42 = scmp.eq.s32.totalorder %s9, 0
    %p43 = por %p41, %p42
    %p44 = scmp.ne.s32.totalorder %s33, %s36
    %p45 = scmp.eq.s32.totalorder %s14, 3
    %p46 = por %p44, %p45
    %p47 = scmp.ne.s32.totalorder %s36, %s37
    %p48 = scmp.eq.s32.totalorder %s14, 0
    %p49 = por %p47, %p48
    %p50 = scmp.ne.s32.totalorder %s36, %s37
    %p51 = scmp.eq.s32.totalorder %s15, 3
    %p52 = por %p50, %p51
    %p54 = scmp.ne.s32.totalorder %s37, %s53
    %p55 = scmp.eq.s32.totalorder %s15, 0
    %p56 = por %p54, %p55
    %s58 = sadd.s32 %s57, 1
    %p61 = scmp.eq.s32.totalorder %s9, 3
    %p62 = scmp.ne.s32.totalorder %s57, %s59
    %p63 = scmp.eq.s32.totalorder %s9, 0
    %p64 = por %p62, %p63
    %p65 = scmp.ne.s32.totalorder %s57, %s59
    %p66 = scmp.eq.s32.totalorder %s14, 3
    %p67 = por %p65, %p66
    %p68 = scmp.ne.s32.totalorder %s59, %s60
    %p69 = scmp.eq.s32.totalorder %s14, 0
    %p70 = por %p68, %p69
    %p71 = scmp.ne.s32.totalorder %s59, %s60
    %p72 = scmp.eq.s32.totalorder %s15, 3
    %p73 = por %p71, %p72
    %p75 = scmp.ne.s32.totalorder %s60, %s74
    %p76 = scmp.eq.s32.totalorder %s15, 0
    %p77 = por %p75, %p76
    %s79 = sadd.s32 %s78, 1
    %p82 = scmp.eq.s32.totalorder %s9, 3
    %p83 = scmp.ne.s32.totalorder %s78, %s80
    %p84 = scmp.eq.s32.totalorder %s9, 0
    %p85 = por %p83, %p84
    %p86 = scmp.ne.s32.totalorder %s78, %s80
    %p87 = scmp.eq.s32.totalorder %s14, 3
    %p88 = por %p86, %p87
    %p89 = scmp.ne.s32.totalorder %s80, %s81
    %p90 = scmp.eq.s32.totalorder %s14, 0
    %p91 = por %p89, %p90
    %p92 = scmp.ne.s32.totalorder %s80, %s81
    %p93 = scmp.eq.s32.totalorder %s15, 3
    %p94 = por %p92, %p93
    %p96 = scmp.ne.s32.totalorder %s81, %s95
    %p97 = scmp.eq.s32.totalorder %s15, 0
    %p98 = por %p96, %p97
    %s99 = ssub.s32 %s16, %s28
    %s100 = ssub.s32 %s17, %s24
    %s101 = sor.u32 %s99, %s100
    %p102 = scmp.eq.s32.totalorder %s101, 0
    %s104 = sadd.s32 %s103, 1
    %s105 = scalar_select %p102, %s103, %s104
    %p108 = pneg %p102
    %p109 = scmp.eq.s32.totalorder %s9, 3
    %p110 = por %p108, %p109
    %p111 = scmp.ne.s32.totalorder %s103, %s106
    %p112 = scmp.eq.s32.totalorder %s9, 0
    %p113 = por %p111, %p112
    %p114 = scmp.ne.s32.totalorder %s103, %s106
    %p115 = scmp.eq.s32.totalorder %s14, 3
    %p116 = por %p114, %p115
    %p117 = scmp.ne.s32.totalorder %s106, %s107
    %p118 = scmp.eq.s32.totalorder %s14, 0
    %p119 = por %p117, %p118
    %p120 = scmp.ne.s32.totalorder %s106, %s107
    %p121 = scmp.eq.s32.totalorder %s15, 3
    %p122 = por %p120, %p121
    %p124 = scmp.ne.s32.totalorder %s107, %s123
    %p125 = scmp.eq.s32.totalorder %s15, 0
    %p126 = por %p124, %p125
    %p127 = scmp.le.s32.totalorder 1, %s9
    %p128 = scmp.lt.s32.totalorder %s9, 5
    %p129 = pnand %p127, %p128
    %p130 = pneg %p129
    // Predicated region
    $region9: #{generator_forward.12} parent=5 // pred_check
      _
    $region10: #{generator_forward.12} parent=5 // pred_check_branch
      %132 = sbr.rel (%p129) target = $region12
    $region11: #{generator_forward.12} parent=5 // pred_region
      %s133 = ssub.s32 %s9, 1
      // Predicated region
      $region13: #{generator_forward.12} parent=11 // pred_check
        %p134 = pneg %p70
      $region14: #{generator_forward.12} parent=11 // pred_check_branch
        %136 = sbr.rel (%p134) target = $region16
      $region15: #{generator_forward.12} parent=11 // pred_region
        _
      $region16: #{generator_forward.12} parent=11 // pred_fallthru
        _
      // Predicated region
      $region17: #{generator_forward.12} parent=11 // pred_check
        %p137 = pneg %p91
      $region18: #{generator_forward.12} parent=11 // pred_check_branch
        %139 = sbr.rel (%p137) target = $region20
      $region19: #{generator_forward.12} parent=11 // pred_region
        _
      $region20: #{generator_forward.12} parent=11 // pred_fallthru
        _
    $region12: #{generator_forward.12} parent=5 // pred_fallthru
      _
    %p140 = scmp.lt.s32.totalorder %s9, 4
    // Predicated region
    $region21: #{generator_forward.12} parent=5 // pred_check
      %p141 = pneg %p140
    $region22: #{generator_forward.12} parent=5 // pred_check_branch
      %143 = sbr.rel (%p141) target = $region24
    $region23: #{generator_forward.12} parent=5 // pred_region
      // Predicated region
      $region25: #{generator_forward.12} parent=23 // pred_check
        %p144 = pneg %p43
      $region26: #{generator_forward.12} parent=23 // pred_check_branch
        %146 = sbr.rel (%p144) target = $region28
      $region27: #{generator_forward.12} parent=23 // pred_region
        %s147 = smul.u32 4, %s17
        %p148 = scmp.lt.s32.totalorder %s16, 3
        %s149 = scalar_select %p148, %s16, 3
        %p150 = scmp.lt.s32.totalorder %s147, 3
        %s151 = scalar_select %p150, %s147, 3
        %s152 = smul.addr %s149, 4
        %s153 = sadd.s32 %s151, %s152
        %s154 = smul.addr %s153, 8
        %s155 = scalar_lea.vmem %s0, %s154
        %s156 = smul.u32 4, %s17
      $region28: #{generator_forward.12} parent=23 // pred_fallthru
        _
    $region24: #{generator_forward.12} parent=5 // pred_fallthru
      _
    %p157 = scmp.le.s32.totalorder 1, %s9
    %p158 = scmp.lt.s32.totalorder %s9, 5
    %p159 = pnand %p157, %p158
    %p160 = pneg %p159
    // Predicated region
    $region29: #{generator_forward.12} parent=5 // pred_check
      _
    $region30: #{generator_forward.12} parent=5 // pred_check_branch
      %162 = sbr.rel (%p159) target = $region32
    $region31: #{generator_forward.12} parent=5 // pred_region
      %s163 = ssub.s32 %s9, 1
      %s164 = smul.u32 4, %s19
      %p165 = scmp.lt.s32.totalorder %s18, 3
      %s166 = scalar_select %p165, %s18, 3
      %p167 = scmp.lt.s32.totalorder %s164, 3
      %s168 = scalar_select %p167, %s164, 3
      %s169 = smul.addr %s166, 4
      %s170 = sadd.s32 %s168, %s169
      %s171 = smul.addr %s170, 8
      %s172 = scalar_lea.vmem %s0, %s171
      %p173 = pneg %p49
      %p174 = pneg %p46
      %p175 = pneg %p70
      %p176 = pneg %p67
      %p177 = pneg %p91
      %p178 = pneg %p88
      %p179 = pneg %p119
      %p180 = pneg %p116
      %s181 = smul.u32 4, %s19
      %p182 = scmp.lt.s32.totalorder %s18, 3
      %s183 = scalar_select %p182, %s18, 3
      %p184 = scmp.lt.s32.totalorder %s181, 3
      %s185 = scalar_select %p184, %s181, 3
      %s186 = smul.addr %s183, 4
      %s187 = sadd.s32 %s185, %s186
      %s188 = smul.addr %s187, 4
      %s189 = scalar_lea.vmem %s3, %s188
      %s190 = smul.u32 4, %s19
      %p191 = scmp.lt.s32.totalorder %s18, 3
      %s192 = scalar_select %p191, %s18, 3
      %p193 = scmp.lt.s32.totalorder %s190, 3
      %s194 = scalar_select %p193, %s190, 3
      %s195 = smul.addr %s192, 4
      %s196 = sadd.s32 %s194, %s195
      %s197 = smul.addr %s196, 8
      %s198 = scalar_lea.vmem %s0, %s197
      %s199 = smul.u32 4, %s19
      %s200 = smul.u32 4, %s19
      %p201 = scmp.lt.s32.totalorder %s18, 3
      %s202 = scalar_select %p201, %s18, 3
      %p203 = scmp.lt.s32.totalorder %s200, 3
      %s204 = scalar_select %p203, %s200, 3
      %s205 = smul.addr %s202, 4
      %s206 = sadd.s32 %s204, %s205
      %s207 = smul.addr %s206, 4
      %s208 = scalar_lea.vmem %s3, %s207
      %s209 = smul.u32 4, %s19
      %v210 = vld [vmem:[%s198] sm:$0xff]
      %v211 = vld [vmem:[%s198 + $0x8] sm:$0xff]
      %v212 = vld [vmem:[%s198 + $0x10] sm:$0xff]
      %v213 = vld [vmem:[%s198 + $0x18] sm:$0xff]
      %v214 = vld [vmem:[%s1] sm:$0x1]
      %v216 = vlaneseq
      %v217 = vshrl.u32 %v216, 7
      %v218 = vsub.s32 0, %v217
      %v219 = vrot.slane %v214, %v218
      %v221 = vmul.f32 %v210, %v219
      %v222 = vmul.f32 %v211, %v219
      %v223 = vmul.f32 %v212, %v219
      %v224 = vmul.f32 %v213, %v219
      %v225 = vld [vmem:[%s2] sm:$0x1]
      %v227 = vlaneseq
      %v228 = vshrl.u32 %v227, 7
      %v229 = vsub.s32 0, %v228
      %v230 = vrot.slane %v225, %v229
      %v232 = vadd.f32 %v221, %v230
      %v233 = vadd.f32 %v222, %v230
      %v234 = vadd.f32 %v223, %v230
      %v235 = vadd.f32 %v224, %v230
      %v236 = vmax.f32 %v232, 0.0
      %v237 = vmax.f32 %v233, 0.0
      %v238 = vmax.f32 %v234, 0.0
      %v239 = vmax.f32 %v235, 0.0
      %v240 = vpack.c.bf16 %v237, %v236
      %v241 = vpack.c.bf16 %v239, %v238
      %v244 = vunpack.c.l.b16 %v240
      %v245 = vunpack.c.h.b16 %v240
      %v246 = vunpack.c.l.b16 %v241
      %v247 = vunpack.c.h.b16 %v241
      %v248 = vpack.c.b16 %v244, %v244
      %v249 = vpack.c.b16 %v245, %v245
      %v250 = vpack.c.b16 %v246, %v246
      %v251 = vpack.c.b16 %v247, %v247
      %256 = vst [vmem:[%s208] sm:$0xf] %v248
      %257 = vst [vmem:[%s208 + $0x4] sm:$0xf] %v249
      %258 = vst [vmem:[%s208 + $0x8] sm:$0xf] %v250
      %259 = vst [vmem:[%s208 + $0xc] sm:$0xf] %v251
      %s260 = smul.u32 4, %s19
      %p261 = scmp.lt.s32.totalorder %s18, 3
      %s262 = scalar_select %p261, %s18, 3
      %p263 = scmp.lt.s32.totalorder %s260, 3
      %s264 = scalar_select %p263, %s260, 3
      %s265 = smul.addr %s262, 4
      %s266 = sadd.s32 %s264, %s265
      %s267 = smul.addr %s266, 4
      %s268 = scalar_lea.vmem %s3, %s267
      // Predicated region
      $region33: #{generator_forward.12} parent=31 // pred_check
        %p269 = pneg %p116
      $region34: #{generator_forward.12} parent=31 // pred_check_branch
        %271 = sbr.rel (%p269) target = $region36
      $region35: #{generator_forward.12} parent=31 // pred_region
        %s272 = smul.u32 4, %s19
      $region36: #{generator_forward.12} parent=31 // pred_fallthru
        _
    $region32: #{generator_forward.12} parent=5 // pred_fallthru
      _
    %p273 = scmp.le.s32.totalorder 2, %s9
    // Predicated region
    $region37: #{generator_forward.12} parent=5 // pred_check
      %p274 = pneg %p273
    $region38: #{generator_forward.12} parent=5 // pred_check_branch
      %276 = sbr.rel (%p274) target = $region40
    $region39: #{generator_forward.12} parent=5 // pred_region
      %s277 = ssub.s32 %s9, 2
      // Predicated region
      $region41: #{generator_forward.12} parent=39 // pred_check
        %p278 = pneg %p122
      $region42: #{generator_forward.12} parent=39 // pred_check_branch
        %280 = sbr.rel (%p278) target = $region44
      $region43: #{generator_forward.12} parent=39 // pred_region
        %s281 = smul.u32 4, %s21
        %p282 = scmp.lt.s32.totalorder %s20, 3
        %s283 = scalar_select %p282, %s20, 3
        %p284 = scmp.lt.s32.totalorder %s281, 3
        %s285 = scalar_select %p284, %s281, 3
        %s286 = smul.addr %s283, 4
        %s287 = sadd.s32 %s285, %s286
        %s288 = smul.addr %s287, 4
        %s289 = scalar_lea.vmem %s3, %s288
      $region44: #{generator_forward.12} parent=39 // pred_fallthru
        _
    $region40: #{generator_forward.12} parent=5 // pred_fallthru
      _
  $region6: #{generator_forward.12} parent=0 // loop_footer
    %s13 = sadd.s32 1, %s9
  $region7: #{generator_forward.12} parent=0 // loop_footer_branch
    %8 = sbr.rel target = $region3
  $region8: #{generator_forward.12} parent=0 // loop_exit
    _

// kernel: generator_forward.14
$region0: #{generator_forward.14}
  #allocation0 [shape = 'u32[]', space=smem, size = 0x4, offset = 0x4, fixed_abs, tag = 'smem constant byte address 0x4 - core index']
  #allocation1 [shape = 'u32[144,128]{1,0:T(1,128)}', space=vmem, size = 0x12000, scoped, tag = 'internal scratch']
  %s0 = inlined_call_operand.vmem [shape: f32[4,128,128], index: 0, kind: input, shape index: {}]
  %s1 = inlined_call_operand.vmem [shape: f32[1,128], index: 1, kind: input, shape index: {}]
  %s2 = inlined_call_operand.vmem [shape: f32[1,128], index: 2, kind: input, shape index: {}]
  %s3 = inlined_call_operand.vmem [shape: bf16[4,128,128], index: 3, kind: output, shape index: {}]
  %s4 = sld [smem:[#allocation0]]
  $region45: #{generator_forward.14} parent=0
    _
  %s6 = ssub.s32 1, %s4
  %s7 = scalar_select 0, %s6, %s4
  loop: start=0, step=1, limit=6
  $region2: #{generator_forward.14} parent=0 // loop_pre_header
    _
  $region3: #{generator_forward.14} parent=0 // loop_header
    %s9 = sphi 0, %s13
    %p10 = scmp.ge.s32.totalorder %s9, 6
    %s16 = sphi 0, %s28
    %s17 = sphi 0, %s24
    %s18 = sphi 0, %s16
    %s19 = sphi 0, %s17
    %s20 = sphi 0, %s18
    %s21 = sphi 0, %s19
    %s33 = sphi 0, %s35
    %s36 = sphi 0, %s33
    %s37 = sphi 0, %s36
    %s53 = sphi 0, %s37
    %s57 = sphi 0, %s57
    %s59 = sphi 0, %s57
    %s60 = sphi 0, %s59
    %s74 = sphi 0, %s60
    %s78 = sphi 0, %s78
    %s80 = sphi 0, %s78
    %s81 = sphi 0, %s80
    %s95 = sphi 0, %s81
    %s103 = sphi 0, %s105
    %s106 = sphi 0, %s103
    %s107 = sphi 0, %s106
    %s123 = sphi 0, %s107
  $region4: #{generator_forward.14} parent=0 // loop_header_branch
    %12 = sbr.rel (%p10) target = $region8
  $region5: #{generator_forward.14} parent=0 // loop_body
    %s14 = ssub.s32 %s9, 1
    %s15 = ssub.s32 %s9, 2
    %s22 = sadd.s32 1, %s17
    %p23 = scmp.ge.s32.totalorder %s22, 1
    %s24 = scalar_select %p23, 0, %s22
    %s25 = sadd.s32 1, %s16
    %s26 = scalar_select %p23, %s25, %s16
    %p27 = scmp.ge.s32.totalorder %s26, 4
    %s28 = scalar_select %p27, 0, %s26
    %s29 = ssub.s32 %s16, %s28
    %s30 = ssub.s32 %s17, %s24
    %s31 = sor.u32 %s29, %s30
    %p32 = scmp.eq.s32.totalorder %s31, 0
    %s34 = sadd.s32 %s33, 1
    %s35 = scalar_select %p32, %s33, %s34
    %p38 = pneg %p32
    %p39 = scmp.eq.s32.totalorder %s9, 3
    %p40 = por %p38, %p39
    %p41 = scmp.ne.s32.totalorder %s33, %s36
    %p42 = scmp.eq.s32.totalorder %s9, 0
    %p43 = por %p41, %p42
    %p44 = scmp.ne.s32.totalorder %s33, %s36
    %p45 = scmp.eq.s32.totalorder %s14, 3
    %p46 = por %p44, %p45
    %p47 = scmp.ne.s32.totalorder %s36, %s37
    %p48 = scmp.eq.s32.totalorder %s14, 0
    %p49 = por %p47, %p48
    %p50 = scmp.ne.s32.totalorder %s36, %s37
    %p51 = scmp.eq.s32.totalorder %s15, 3
    %p52 = por %p50, %p51
    %p54 = scmp.ne.s32.totalorder %s37, %s53
    %p55 = scmp.eq.s32.totalorder %s15, 0
    %p56 = por %p54, %p55
    %s58 = sadd.s32 %s57, 1
    %p61 = scmp.eq.s32.totalorder %s9, 3
    %p62 = scmp.ne.s32.totalorder %s57, %s59
    %p63 = scmp.eq.s32.totalorder %s9, 0
    %p64 = por %p62, %p63
    %p65 = scmp.ne.s32.totalorder %s57, %s59
    %p66 = scmp.eq.s32.totalorder %s14, 3
    %p67 = por %p65, %p66
    %p68 = scmp.ne.s32.totalorder %s59, %s60
    %p69 = scmp.eq.s32.totalorder %s14, 0
    %p70 = por %p68, %p69
    %p71 = scmp.ne.s32.totalorder %s59, %s60
    %p72 = scmp.eq.s32.totalorder %s15, 3
    %p73 = por %p71, %p72
    %p75 = scmp.ne.s32.totalorder %s60, %s74
    %p76 = scmp.eq.s32.totalorder %s15, 0
    %p77 = por %p75, %p76
    %s79 = sadd.s32 %s78, 1
    %p82 = scmp.eq.s32.totalorder %s9, 3
    %p83 = scmp.ne.s32.totalorder %s78, %s80
    %p84 = scmp.eq.s32.totalorder %s9, 0
    %p85 = por %p83, %p84
    %p86 = scmp.ne.s32.totalorder %s78, %s80
    %p87 = scmp.eq.s32.totalorder %s14, 3
    %p88 = por %p86, %p87
    %p89 = scmp.ne.s32.totalorder %s80, %s81
    %p90 = scmp.eq.s32.totalorder %s14, 0
    %p91 = por %p89, %p90
    %p92 = scmp.ne.s32.totalorder %s80, %s81
    %p93 = scmp.eq.s32.totalorder %s15, 3
    %p94 = por %p92, %p93
    %p96 = scmp.ne.s32.totalorder %s81, %s95
    %p97 = scmp.eq.s32.totalorder %s15, 0
    %p98 = por %p96, %p97
    %s99 = ssub.s32 %s16, %s28
    %s100 = ssub.s32 %s17, %s24
    %s101 = sor.u32 %s99, %s100
    %p102 = scmp.eq.s32.totalorder %s101, 0
    %s104 = sadd.s32 %s103, 1
    %s105 = scalar_select %p102, %s103, %s104
    %p108 = pneg %p102
    %p109 = scmp.eq.s32.totalorder %s9, 3
    %p110 = por %p108, %p109
    %p111 = scmp.ne.s32.totalorder %s103, %s106
    %p112 = scmp.eq.s32.totalorder %s9, 0
    %p113 = por %p111, %p112
    %p114 = scmp.ne.s32.totalorder %s103, %s106
    %p115 = scmp.eq.s32.totalorder %s14, 3
    %p116 = por %p114, %p115
    %p117 = scmp.ne.s32.totalorder %s106, %s107
    %p118 = scmp.eq.s32.totalorder %s14, 0
    %p119 = por %p117, %p118
    %p120 = scmp.ne.s32.totalorder %s106, %s107
    %p121 = scmp.eq.s32.totalorder %s15, 3
    %p122 = por %p120, %p121
    %p124 = scmp.ne.s32.totalorder %s107, %s123
    %p125 = scmp.eq.s32.totalorder %s15, 0
    %p126 = por %p124, %p125
    %p127 = scmp.le.s32.totalorder 1, %s9
    %p128 = scmp.lt.s32.totalorder %s9, 5
    %p129 = pnand %p127, %p128
    %p130 = pneg %p129
    // Predicated region
    $region9: #{generator_forward.14} parent=5 // pred_check
      _
    $region10: #{generator_forward.14} parent=5 // pred_check_branch
      %132 = sbr.rel (%p129) target = $region12
    $region11: #{generator_forward.14} parent=5 // pred_region
      %s133 = ssub.s32 %s9, 1
      // Predicated region
      $region13: #{generator_forward.14} parent=11 // pred_check
        %p134 = pneg %p70
      $region14: #{generator_forward.14} parent=11 // pred_check_branch
        %136 = sbr.rel (%p134) target = $region16
      $region15: #{generator_forward.14} parent=11 // pred_region
        _
      $region16: #{generator_forward.14} parent=11 // pred_fallthru
        _
      // Predicated region
      $region17: #{generator_forward.14} parent=11 // pred_check
        %p137 = pneg %p91
      $region18: #{generator_forward.14} parent=11 // pred_check_branch
        %139 = sbr.rel (%p137) target = $region20
      $region19: #{generator_forward.14} parent=11 // pred_region
        _
      $region20: #{generator_forward.14} parent=11 // pred_fallthru
        _
    $region12: #{generator_forward.14} parent=5 // pred_fallthru
      _
    %p140 = scmp.lt.s32.totalorder %s9, 4
    // Predicated region
    $region21: #{generator_forward.14} parent=5 // pred_check
      %p141 = pneg %p140
    $region22: #{generator_forward.14} parent=5 // pred_check_branch
      %143 = sbr.rel (%p141) target = $region24
    $region23: #{generator_forward.14} parent=5 // pred_region
      // Predicated region
      $region25: #{generator_forward.14} parent=23 // pred_check
        %p144 = pneg %p43
      $region26: #{generator_forward.14} parent=23 // pred_check_branch
        %146 = sbr.rel (%p144) target = $region28
      $region27: #{generator_forward.14} parent=23 // pred_region
        %s147 = smul.u32 16, %s17
        %p148 = scmp.lt.s32.totalorder %s16, 3
        %s149 = scalar_select %p148, %s16, 3
        %p150 = scmp.lt.s32.totalorder %s147, 15
        %s151 = scalar_select %p150, %s147, 15
        %s152 = smul.addr %s149, 16
        %s153 = sadd.s32 %s151, %s152
        %s154 = smul.addr %s153, 8
        %s155 = scalar_lea.vmem %s0, %s154
        %s156 = smul.u32 16, %s17
      $region28: #{generator_forward.14} parent=23 // pred_fallthru
        _
    $region24: #{generator_forward.14} parent=5 // pred_fallthru
      _
    %p157 = scmp.le.s32.totalorder 1, %s9
    %p158 = scmp.lt.s32.totalorder %s9, 5
    %p159 = pnand %p157, %p158
    %p160 = pneg %p159
    // Predicated region
    $region29: #{generator_forward.14} parent=5 // pred_check
      _
    $region30: #{generator_forward.14} parent=5 // pred_check_branch
      %162 = sbr.rel (%p159) target = $region32
    $region31: #{generator_forward.14} parent=5 // pred_region
      %s163 = ssub.s32 %s9, 1
      %s164 = smul.u32 16, %s19
      %p165 = scmp.lt.s32.totalorder %s18, 3
      %s166 = scalar_select %p165, %s18, 3
      %p167 = scmp.lt.s32.totalorder %s164, 15
      %s168 = scalar_select %p167, %s164, 15
      %s169 = smul.addr %s166, 16
      %s170 = sadd.s32 %s168, %s169
      %s171 = smul.addr %s170, 8
      %s172 = scalar_lea.vmem %s0, %s171
      %p173 = pneg %p49
      %p174 = pneg %p46
      %p175 = pneg %p70
      %p176 = pneg %p67
      %p177 = pneg %p91
      %p178 = pneg %p88
      %p179 = pneg %p119
      %p180 = pneg %p116
      %s181 = smul.u32 16, %s19
      %p182 = scmp.lt.s32.totalorder %s18, 3
      %s183 = scalar_select %p182, %s18, 3
      %p184 = scmp.lt.s32.totalorder %s181, 15
      %s185 = scalar_select %p184, %s181, 15
      %s186 = smul.addr %s183, 16
      %s187 = sadd.s32 %s185, %s186
      %s188 = smul.addr %s187, 4
      %s189 = scalar_lea.vmem %s3, %s188
      %s190 = smul.u32 16, %s19
      %p191 = scmp.lt.s32.totalorder %s18, 3
      %s192 = scalar_select %p191, %s18, 3
      %p193 = scmp.lt.s32.totalorder %s190, 15
      %s194 = scalar_select %p193, %s190, 15
      %s195 = smul.addr %s192, 16
      %s196 = sadd.s32 %s194, %s195
      %s197 = smul.addr %s196, 8
      %s198 = scalar_lea.vmem %s0, %s197
      %s199 = smul.u32 16, %s19
      %s200 = smul.u32 16, %s19
      %p201 = scmp.lt.s32.totalorder %s18, 3
      %s202 = scalar_select %p201, %s18, 3
      %p203 = scmp.lt.s32.totalorder %s200, 15
      %s204 = scalar_select %p203, %s200, 15
      %s205 = smul.addr %s202, 16
      %s206 = sadd.s32 %s204, %s205
      %s207 = smul.addr %s206, 4
      %s208 = scalar_lea.vmem %s3, %s207
      %s209 = smul.u32 16, %s19
      %v210 = vld [vmem:[%s198] sm:$0xff]
      %v211 = vld [vmem:[%s198 + $0x8] sm:$0xff]
      %v212 = vld [vmem:[%s198 + $0x10] sm:$0xff]
      %v213 = vld [vmem:[%s198 + $0x18] sm:$0xff]
      %v214 = vld [vmem:[%s198 + $0x20] sm:$0xff]
      %v215 = vld [vmem:[%s198 + $0x28] sm:$0xff]
      %v216 = vld [vmem:[%s198 + $0x30] sm:$0xff]
      %v217 = vld [vmem:[%s198 + $0x38] sm:$0xff]
      %v218 = vld [vmem:[%s198 + $0x40] sm:$0xff]
      %v219 = vld [vmem:[%s198 + $0x48] sm:$0xff]
      %v220 = vld [vmem:[%s198 + $0x50] sm:$0xff]
      %v221 = vld [vmem:[%s198 + $0x58] sm:$0xff]
      %v222 = vld [vmem:[%s198 + $0x60] sm:$0xff]
      %v223 = vld [vmem:[%s198 + $0x68] sm:$0xff]
      %v224 = vld [vmem:[%s198 + $0x70] sm:$0xff]
      %v225 = vld [vmem:[%s198 + $0x78] sm:$0xff]
      %v226 = vld [vmem:[%s1] sm:$0x1]
      %v228 = vlaneseq
      %v229 = vshrl.u32 %v228, 7
      %v230 = vsub.s32 0, %v229
      %v231 = vrot.slane %v226, %v230
      %v233 = vmul.f32 %v210, %v231
      %v234 = vmul.f32 %v211, %v231
      %v235 = vmul.f32 %v212, %v231
      %v236 = vmul.f32 %v213, %v231
      %v237 = vmul.f32 %v214, %v231
      %v238 = vmul.f32 %v215, %v231
      %v239 = vmul.f32 %v216, %v231
      %v240 = vmul.f32 %v217, %v231
      %v241 = vmul.f32 %v218, %v231
      %v242 = vmul.f32 %v219, %v231
      %v243 = vmul.f32 %v220, %v231
      %v244 = vmul.f32 %v221, %v231
      %v245 = vmul.f32 %v222, %v231
      %v246 = vmul.f32 %v223, %v231
      %v247 = vmul.f32 %v224, %v231
      %v248 = vmul.f32 %v225, %v231
      %v249 = vld [vmem:[%s2] sm:$0x1]
      %v251 = vlaneseq
      %v252 = vshrl.u32 %v251, 7
      %v253 = vsub.s32 0, %v252
      %v254 = vrot.slane %v249, %v253
      %v256 = vadd.f32 %v233, %v254
      %v257 = vadd.f32 %v234, %v254
      %v258 = vadd.f32 %v235, %v254
      %v259 = vadd.f32 %v236, %v254
      %v260 = vadd.f32 %v237, %v254
      %v261 = vadd.f32 %v238, %v254
      %v262 = vadd.f32 %v239, %v254
      %v263 = vadd.f32 %v240, %v254
      %v264 = vadd.f32 %v241, %v254
      %v265 = vadd.f32 %v242, %v254
      %v266 = vadd.f32 %v243, %v254
      %v267 = vadd.f32 %v244, %v254
      %v268 = vadd.f32 %v245, %v254
      %v269 = vadd.f32 %v246, %v254
      %v270 = vadd.f32 %v247, %v254
      %v271 = vadd.f32 %v248, %v254
      %v272 = vmax.f32 %v256, 0.0
      %v273 = vmax.f32 %v257, 0.0
      %v274 = vmax.f32 %v258, 0.0
      %v275 = vmax.f32 %v259, 0.0
      %v276 = vmax.f32 %v260, 0.0
      %v277 = vmax.f32 %v261, 0.0
      %v278 = vmax.f32 %v262, 0.0
      %v279 = vmax.f32 %v263, 0.0
      %v280 = vmax.f32 %v264, 0.0
      %v281 = vmax.f32 %v265, 0.0
      %v282 = vmax.f32 %v266, 0.0
      %v283 = vmax.f32 %v267, 0.0
      %v284 = vmax.f32 %v268, 0.0
      %v285 = vmax.f32 %v269, 0.0
      %v286 = vmax.f32 %v270, 0.0
      %v287 = vmax.f32 %v271, 0.0
      %v288 = vpack.c.bf16 %v273, %v272
      %v289 = vpack.c.bf16 %v275, %v274
      %v290 = vpack.c.bf16 %v277, %v276
      %v291 = vpack.c.bf16 %v279, %v278
      %v292 = vpack.c.bf16 %v281, %v280
      %v293 = vpack.c.bf16 %v283, %v282
      %v294 = vpack.c.bf16 %v285, %v284
      %v295 = vpack.c.bf16 %v287, %v286
      %v304 = vunpack.c.l.b16 %v288
      %v305 = vunpack.c.h.b16 %v288
      %v306 = vunpack.c.l.b16 %v289
      %v307 = vunpack.c.h.b16 %v289
      %v308 = vunpack.c.l.b16 %v290
      %v309 = vunpack.c.h.b16 %v290
      %v310 = vunpack.c.l.b16 %v291
      %v311 = vunpack.c.h.b16 %v291
      %v312 = vunpack.c.l.b16 %v292
      %v313 = vunpack.c.h.b16 %v292
      %v314 = vunpack.c.l.b16 %v293
      %v315 = vunpack.c.h.b16 %v293
      %v316 = vunpack.c.l.b16 %v294
      %v317 = vunpack.c.h.b16 %v294
      %v318 = vunpack.c.l.b16 %v295
      %v319 = vunpack.c.h.b16 %v295
      %v320 = vpack.c.b16 %v304, %v304
      %v321 = vpack.c.b16 %v305, %v305
      %v322 = vpack.c.b16 %v306, %v306
      %v323 = vpack.c.b16 %v307, %v307
      %v324 = vpack.c.b16 %v308, %v308
      %v325 = vpack.c.b16 %v309, %v309
      %v326 = vpack.c.b16 %v310, %v310
      %v327 = vpack.c.b16 %v311, %v311
      %v328 = vpack.c.b16 %v312, %v312
      %v329 = vpack.c.b16 %v313, %v313
      %v330 = vpack.c.b16 %v314, %v314
      %v331 = vpack.c.b16 %v315, %v315
      %v332 = vpack.c.b16 %v316, %v316
      %v333 = vpack.c.b16 %v317, %v317
      %v334 = vpack.c.b16 %v318, %v318
      %v335 = vpack.c.b16 %v319, %v319
      %352 = vst [vmem:[%s208] sm:$0xf] %v320
      %353 = vst [vmem:[%s208 + $0x4] sm:$0xf] %v321
      %354 = vst [vmem:[%s208 + $0x8] sm:$0xf] %v322
      %355 = vst [vmem:[%s208 + $0xc] sm:$0xf] %v323
      %356 = vst [vmem:[%s208 + $0x10] sm:$0xf] %v324
      %357 = vst [vmem:[%s208 + $0x14] sm:$0xf] %v325
      %358 = vst [vmem:[%s208 + $0x18] sm:$0xf] %v326
      %359 = vst [vmem:[%s208 + $0x1c] sm:$0xf] %v327
      %360 = vst [vmem:[%s208 + $0x20] sm:$0xf] %v328
      %361 = vst [vmem:[%s208 + $0x24] sm:$0xf] %v329
      %362 = vst [vmem:[%s208 + $0x28] sm:$0xf] %v330
      %363 = vst [vmem:[%s208 + $0x2c] sm:$0xf] %v331
      %364 = vst [vmem:[%s208 + $0x30] sm:$0xf] %v332
      %365 = vst [vmem:[%s208 + $0x34] sm:$0xf] %v333
      %366 = vst [vmem:[%s208 + $0x38] sm:$0xf] %v334
      %367 = vst [vmem:[%s208 + $0x3c] sm:$0xf] %v335
      %s368 = smul.u32 16, %s19
      %p369 = scmp.lt.s32.totalorder %s18, 3
      %s370 = scalar_select %p369, %s18, 3
      %p371 = scmp.lt.s32.totalorder %s368, 15
      %s372 = scalar_select %p371, %s368, 15
      %s373 = smul.addr %s370, 16
      %s374 = sadd.s32 %s372, %s373
      %s375 = smul.addr %s374, 4
      %s376 = scalar_lea.vmem %s3, %s375
      // Predicated region
      $region33: #{generator_forward.14} parent=31 // pred_check
        %p377 = pneg %p116
      $region34: #{generator_forward.14} parent=31 // pred_check_branch
        %379 = sbr.rel (%p377) target = $region36
      $region35: #{generator_forward.14} parent=31 // pred_region
        %s380 = smul.u32 16, %s19
      $region36: #{generator_forward.14} parent=31 // pred_fallthru
        _
    $region32: #{generator_forward.14} parent=5 // pred_fallthru
      _
    %p381 = scmp.le.s32.totalorder 2, %s9
    // Predicated region
    $region37: #{generator_forward.14} parent=5 // pred_check
      %p382 = pneg %p381
    $region38: #{generator_forward.14} parent=5 // pred_check_branch
      %384 = sbr.rel (%p382) target = $region40
    $region39: #{generator_forward.14} parent=5 // pred_region
      %s385 = ssub.s32 %s9, 2
      // Predicated region
      $region41: #{generator_forward.14} parent=39 // pred_check
        %p386 = pneg %p122
      $region42: #{generator_forward.14} parent=39 // pred_check_branch
        %388 = sbr.rel (%p386) target = $region44
      $region43: #{generator_forward.14} parent=39 // pred_region
        %s389 = smul.u32 16, %s21
        %p390 = scmp.lt.s32.totalorder %s20, 3
        %s391 = scalar_select %p390, %s20, 3
        %p392 = scmp.lt.s32.totalorder %s389, 15
        %s393 = scalar_select %p392, %s389, 15
        %s394 = smul.addr %s391, 16
        %s395 = sadd.s32 %s393, %s394
        %s396 = smul.addr %s395, 4
        %s397 = scalar_lea.vmem %s3, %s396
      $region44: #{generator_forward.14} parent=39 // pred_fallthru
        _
    $region40: #{generator_forward.14} parent=5 // pred_fallthru
      _
  $region6: #{generator_forward.14} parent=0 // loop_footer
    %s13 = sadd.s32 1, %s9
  $region7: #{generator_forward.14} parent=0 // loop_footer_branch
    %8 = sbr.rel target = $region3
  $region8: #{generator_forward.14} parent=0 // loop_exit
    _

// kernel: generator_forward.13
$region0: #{generator_forward.13}
  #allocation0 [shape = 'u32[]', space=smem, size = 0x4, offset = 0x4, fixed_abs, tag = 'smem constant byte address 0x4 - core index']
  #allocation1 [shape = 'u32[144,128]{1,0:T(1,128)}', space=vmem, size = 0x12000, scoped, tag = 'internal scratch']
  %s0 = inlined_call_operand.vmem [shape: bf16[4,128,512], index: 0, kind: input, shape index: {}]
  %s1 = inlined_call_operand.hbm [shape: bf16[4,512,128], index: 1, kind: input, shape index: {}]
  %s2 = inlined_call_operand.vmem [shape: f32[4,128,128], index: 2, kind: output, shape index: {0}]
  %s3 = inlined_call_operand.vmem [shape: f32[4,1,2,128], index: 3, kind: output, shape index: {1}]
  %4 = xla_tuple %s2, %s3
  %s5 = sld [smem:[#allocation0]]
  $region53: #{generator_forward.13} parent=0
    _
  %s7 = ssub.s32 1, %s5
  %s8 = scalar_select 0, %s7, %s5
  $region1: #{generator_forward.13} parent=0
    #allocation2 [shape = 'u8[262144]{0}', space=vmem, size = 0x40000, scoped, tag = 'input window, operand 1']
    #allocation3 [shape = 's32[2]{0}', space=sflag, size = 0x8, scoped, tag = 'scoped memory for generator_forward.13']
    %9 = vsyncpa [#allocation3], 0
    %s10 = scalar_lea.sflag [#allocation3], 1
    %11 = vsyncpa %s10, 0
    loop: start=0, step=1, limit=6
    $region2: #{generator_forward.13} parent=1 // loop_pre_header
      _
    $region3: #{generator_forward.13} parent=1 // loop_header
      %s13 = sphi 0, %s17
      %p14 = scmp.ge.s32.totalorder %s13, 6
      %s20 = sphi 0, %s32
      %s21 = sphi 0, %s28
      %s22 = sphi 0, %s20
      %s23 = sphi 0, %s21
      %s24 = sphi 0, %s22
      %s25 = sphi 0, %s23
      %s37 = sphi 0, %s39
      %s40 = sphi 0, %s37
      %s41 = sphi 0, %s40
      %s57 = sphi 0, %s41
      %s63 = sphi 0, %s65
      %s66 = sphi 0, %s63
      %s67 = sphi 0, %s66
      %s83 = sphi 0, %s67
      %s91 = sphi 0, %s93
      %s94 = sphi 0, %s91
      %s95 = sphi 0, %s94
      %s111 = sphi 0, %s95
      %s119 = sphi 0, %s121
      %s122 = sphi 0, %s119
      %s123 = sphi 0, %s122
      %s139 = sphi 0, %s123
    $region4: #{generator_forward.13} parent=1 // loop_header_branch
      %16 = sbr.rel (%p14) target = $region8
    $region5: #{generator_forward.13} parent=1 // loop_body
      %s18 = ssub.s32 %s13, 1
      %s19 = ssub.s32 %s13, 2
      %s26 = sadd.s32 1, %s21
      %p27 = scmp.ge.s32.totalorder %s26, 1
      %s28 = scalar_select %p27, 0, %s26
      %s29 = sadd.s32 1, %s20
      %s30 = scalar_select %p27, %s29, %s20
      %p31 = scmp.ge.s32.totalorder %s30, 4
      %s32 = scalar_select %p31, 0, %s30
      %s33 = ssub.s32 %s20, %s32
      %s34 = ssub.s32 %s21, %s28
      %s35 = sor.u32 %s33, %s34
      %p36 = scmp.eq.s32.totalorder %s35, 0
      %s38 = sadd.s32 %s37, 1
      %s39 = scalar_select %p36, %s37, %s38
      %p42 = pneg %p36
      %p43 = scmp.eq.s32.totalorder %s13, 3
      %p44 = por %p42, %p43
      %p45 = scmp.ne.s32.totalorder %s37, %s40
      %p46 = scmp.eq.s32.totalorder %s13, 0
      %p47 = por %p45, %p46
      %p48 = scmp.ne.s32.totalorder %s37, %s40
      %p49 = scmp.eq.s32.totalorder %s18, 3
      %p50 = por %p48, %p49
      %p51 = scmp.ne.s32.totalorder %s40, %s41
      %p52 = scmp.eq.s32.totalorder %s18, 0
      %p53 = por %p51, %p52
      %p54 = scmp.ne.s32.totalorder %s40, %s41
      %p55 = scmp.eq.s32.totalorder %s19, 3
      %p56 = por %p54, %p55
      %p58 = scmp.ne.s32.totalorder %s41, %s57
      %p59 = scmp.eq.s32.totalorder %s19, 0
      %p60 = por %p58, %p59
      %s61 = ssub.s32 %s20, %s32
      %p62 = scmp.eq.s32.totalorder %s61, 0
      %s64 = sadd.s32 %s63, 1
      %s65 = scalar_select %p62, %s63, %s64
      %p68 = pneg %p62
      %p69 = scmp.eq.s32.totalorder %s13, 3
      %p70 = por %p68, %p69
      %p71 = scmp.ne.s32.totalorder %s63, %s66
      %p72 = scmp.eq.s32.totalorder %s13, 0
      %p73 = por %p71, %p72
      %p74 = scmp.ne.s32.totalorder %s63, %s66
      %p75 = scmp.eq.s32.totalorder %s18, 3
      %p76 = por %p74, %p75
      %p77 = scmp.ne.s32.totalorder %s66, %s67
      %p78 = scmp.eq.s32.totalorder %s18, 0
      %p79 = por %p77, %p78
      %p80 = scmp.ne.s32.totalorder %s66, %s67
      %p81 = scmp.eq.s32.totalorder %s19, 3
      %p82 = por %p80, %p81
      %p84 = scmp.ne.s32.totalorder %s67, %s83
      %p85 = scmp.eq.s32.totalorder %s19, 0
      %p86 = por %p84, %p85
      %s87 = ssub.s32 %s20, %s32
      %s88 = ssub.s32 %s21, %s28
      %s89 = sor.u32 %s87, %s88
      %p90 = scmp.eq.s32.totalorder %s89, 0
      %s92 = sadd.s32 %s91, 1
      %s93 = scalar_select %p90, %s91, %s92
      %p96 = pneg %p90
      %p97 = scmp.eq.s32.totalorder %s13, 3
      %p98 = por %p96, %p97
      %p99 = scmp.ne.s32.totalorder %s91, %s94
      %p100 = scmp.eq.s32.totalorder %s13, 0
      %p101 = por %p99, %p100
      %p102 = scmp.ne.s32.totalorder %s91, %s94
      %p103 = scmp.eq.s32.totalorder %s18, 3
      %p104 = por %p102, %p103
      %p105 = scmp.ne.s32.totalorder %s94, %s95
      %p106 = scmp.eq.s32.totalorder %s18, 0
      %p107 = por %p105, %p106
      %p108 = scmp.ne.s32.totalorder %s94, %s95
      %p109 = scmp.eq.s32.totalorder %s19, 3
      %p110 = por %p108, %p109
      %p112 = scmp.ne.s32.totalorder %s95, %s111
      %p113 = scmp.eq.s32.totalorder %s19, 0
      %p114 = por %p112, %p113
      %s115 = ssub.s32 %s20, %s32
      %s116 = ssub.s32 %s21, %s28
      %s117 = sor.u32 %s115, %s116
      %p118 = scmp.eq.s32.totalorder %s117, 0
      %s120 = sadd.s32 %s119, 1
      %s121 = scalar_select %p118, %s119, %s120
      %p124 = pneg %p118
      %p125 = scmp.eq.s32.totalorder %s13, 3
      %p126 = por %p124, %p125
      %p127 = scmp.ne.s32.totalorder %s119, %s122
      %p128 = scmp.eq.s32.totalorder %s13, 0
      %p129 = por %p127, %p128
      %p130 = scmp.ne.s32.totalorder %s119, %s122
      %p131 = scmp.eq.s32.totalorder %s18, 3
      %p132 = por %p130, %p131
      %p133 = scmp.ne.s32.totalorder %s122, %s123
      %p134 = scmp.eq.s32.totalorder %s18, 0
      %p135 = por %p133, %p134
      %p136 = scmp.ne.s32.totalorder %s122, %s123
      %p137 = scmp.eq.s32.totalorder %s19, 3
      %p138 = por %p136, %p137
      %p140 = scmp.ne.s32.totalorder %s123, %s139
      %p141 = scmp.eq.s32.totalorder %s19, 0
      %p142 = por %p140, %p141
      %p143 = scmp.le.s32.totalorder 1, %s13
      %p144 = scmp.lt.s32.totalorder %s13, 5
      %p145 = pnand %p143, %p144
      %p146 = pneg %p145
      // Predicated region
      $region9: #{generator_forward.13} parent=5 // pred_check
        _
      $region10: #{generator_forward.13} parent=5 // pred_check_branch
        %148 = sbr.rel (%p145) target = $region12
      $region11: #{generator_forward.13} parent=5 // pred_region
        %s149 = ssub.s32 %s13, 1
      $region12: #{generator_forward.13} parent=5 // pred_fallthru
        _
      %p150 = scmp.lt.s32.totalorder %s13, 4
      // Predicated region
      $region13: #{generator_forward.13} parent=5 // pred_check
        %p151 = pneg %p150
      $region14: #{generator_forward.13} parent=5 // pred_check_branch
        %153 = sbr.rel (%p151) target = $region16
      $region15: #{generator_forward.13} parent=5 // pred_region
        // Predicated region
        $region17: #{generator_forward.13} parent=15 // pred_check
          %p154 = pneg %p47
        $region18: #{generator_forward.13} parent=15 // pred_check_branch
          %156 = sbr.rel (%p154) target = $region20
        $region19: #{generator_forward.13} parent=15 // pred_region
          %s157 = smul.u32 16, %s21
          %p158 = scmp.lt.s32.totalorder %s20, 3
          %s159 = scalar_select %p158, %s20, 3
          %p160 = scmp.lt.s32.totalorder %s157, 15
          %s161 = scalar_select %p160, %s157, 15
          %s162 = smul.addr %s161, 4
          %s163 = smul.addr %s159, 64
          %s164 = sadd.s32 %s162, %s163
          %s165 = smul.addr %s164, 4
          %s166 = scalar_lea.vmem %s0, %s165
          %s167 = smul.u32 16, %s21
        $region20: #{generator_forward.13} parent=15 // pred_fallthru
          _
        // Predicated region
        $region21: #{generator_forward.13} parent=15 // pred_check
          %p168 = pneg %p73
        $region22: #{generator_forward.13} parent=15 // pred_check_branch
          %170 = sbr.rel (%p168) target = $region24
        $region23: #{generator_forward.13} parent=15 // pred_region
          %s171 = sand.u32 %s63, 1
          %s172 = scalar_lea.sflag [#allocation3], %s171
          %s173 = sand.u32 %s63, 1
          %s174 = smul.addr %s173, 256
          %s175 = scalar_lea.vmem [#allocation2], %s174
          %s177 = ssub.s32 4096, 4096
          %178 = vsyncadd %s172, %s177
          %s179 = smul.addr %s20, 64
          %s180 = smul.addr %s179, 64
          %s181 = scalar_lea.hbm %s1, %s180
          %s182 = sshll.u32 %s175, 4
          %s183 = int_to_ptr.vmem [resolvable:$true] %s182
          %188 = dma.hbm_to_vmem [thread:$0]  %s181, 4096, %s183, %s172, 64, 64, 4
        $region24: #{generator_forward.13} parent=15 // pred_fallthru
          _
      $region16: #{generator_forward.13} parent=5 // pred_fallthru
        _
      %p189 = scmp.le.s32.totalorder 1, %s13
      %p190 = scmp.lt.s32.totalorder %s13, 5
      %p191 = pnand %p189, %p190
      %p192 = pneg %p191
      // Predicated region
      $region25: #{generator_forward.13} parent=5 // pred_check
        _
      $region26: #{generator_forward.13} parent=5 // pred_check_branch
        %194 = sbr.rel (%p191) target = $region28
      $region27: #{generator_forward.13} parent=5 // pred_region
        %s195 = ssub.s32 %s13, 1
        %s196 = sand.u32 %s66, 1
        %s197 = scalar_lea.sflag [#allocation3], %s196
        %s198 = sand.u32 %s66, 1
        %s199 = smul.addr %s198, 256
        %s200 = scalar_lea.vmem [#allocation2], %s199
        // Predicated region
        $region29: #{generator_forward.13} parent=27 // pred_check
          %p201 = pneg %p79
        $region30: #{generator_forward.13} parent=27 // pred_check_branch
          %203 = sbr.rel (%p201) target = $region32
        $region31: #{generator_forward.13} parent=27 // pred_region
          %204 = dma.done %s197, 4096
        $region32: #{generator_forward.13} parent=27 // pred_fallthru
          _
        %s205 = smul.u32 16, %s23
        %p206 = scmp.lt.s32.totalorder %s22, 3
        %s207 = scalar_select %p206, %s22, 3
        %p208 = scmp.lt.s32.totalorder %s205, 15
        %s209 = scalar_select %p208, %s205, 15
        %s210 = smul.addr %s209, 4
        %s211 = smul.addr %s207, 64
        %s212 = sadd.s32 %s210, %s211
        %s213 = smul.addr %s212, 4
        %s214 = scalar_lea.vmem %s0, %s213
        %p215 = pneg %p53
        %p216 = pneg %p50
        %s217 = sand.u32 %s66, 1
        %s218 = scalar_lea.sflag [#allocation3], %s217
        %s219 = sand.u32 %s66, 1
        %s220 = smul.addr %s219, 256
        %s221 = scalar_lea.vmem [#allocation2], %s220
        %p222 = pneg %p79
        %p223 = pneg %p76
        %p224 = pneg %p107
        %p225 = pneg %p104
        %s226 = smul.u32 16, %s23
        %p227 = scmp.lt.s32.totalorder %s22, 3
        %s228 = scalar_select %p227, %s22, 3
        %p229 = scmp.lt.s32.totalorder %s226, 15
        %s230 = scalar_select %p229, %s226, 15
        %s231 = smul.addr %s228, 16
        %s232 = sadd.s32 %s230, %s231
        %s233 = smul.addr %s232, 8
        %s234 = scalar_lea.vmem %s2, %s233
        %p235 = pneg %p135
        %p236 = pneg %p132
        %p237 = scmp.lt.s32.totalorder %s22, 3
        %s238 = scalar_select %p237, %s22, 3
        %p239 = scmp.lt.s32.totalorder %s23, 0
        %s240 = scalar_select %p239, %s23, 0
        %s241 = sadd.s32 %s240, %s238
        %s242 = smul.addr %s241, 2
        %s243 = scalar_lea.vmem %s3, %s242
        %s244 = smul.u32 16, %s23
        %p245 = scmp.lt.s32.totalorder %s22, 3
        %s246 = scalar_select %p245, %s22, 3
        %p247 = scmp.lt.s32.totalorder %s244, 15
        %s248 = scalar_select %p247, %s244, 15
        %s249 = smul.addr %s248, 4
        %s250 = smul.addr %s246, 64
        %s251 = sadd.s32 %s249, %s250
        %s252 = smul.addr %s251, 4
        %s253 = scalar_lea.vmem %s0, %s252
        %s254 = smul.u32 16, %s23
        %s255 = smul.u32 16, %s23
        %p256 = scmp.lt.s32.totalorder %s22, 3
        %s257 = scalar_select %p256, %s22, 3
        %p258 = scmp.lt.s32.totalorder %s255, 15
        %s259 = scalar_select %p258, %s255, 15
        %s260 = smul.addr %s257, 16
        %s261 = sadd.s32 %s259, %s260
        %s262 = smul.addr %s261, 8
        %s263 = scalar_lea.vmem %s2, %s262
        %s264 = smul.u32 16, %s23
        %p265 = scmp.lt.s32.totalorder %s22, 3
        %s266 = scalar_select %p265, %s22, 3
        %p267 = scmp.lt.s32.totalorder %s23, 0
        %s268 = scalar_select %p267, %s23, 0
        %s269 = sadd.s32 %s268, %s266
        %s270 = smul.addr %s269, 2
        %s271 = scalar_lea.vmem %s3, %s270
        %v273 = vld [vmem:[%s253] sm:$0xff]
        %v274 = vld [vmem:[%s253 + $0x8] sm:$0xff]
        %v275 = vld [vmem:[%s253 + $0x10] sm:$0xff]
        %v276 = vld [vmem:[%s253 + $0x18] sm:$0xff]
        %v277 = vld [vmem:[%s253 + $0x20] sm:$0xff]
        %v278 = vld [vmem:[%s253 + $0x28] sm:$0xff]
        %v279 = vld [vmem:[%s253 + $0x30] sm:$0xff]
        %v280 = vld [vmem:[%s253 + $0x38] sm:$0xff]
        %v281 = vld [vmem:[%s253 + $0x40] sm:$0xff]
        %v282 = vld [vmem:[%s253 + $0x48] sm:$0xff]
        %v283 = vld [vmem:[%s253 + $0x50] sm:$0xff]
        %v284 = vld [vmem:[%s253 + $0x58] sm:$0xff]
        %v285 = vld [vmem:[%s253 + $0x60] sm:$0xff]
        %v286 = vld [vmem:[%s253 + $0x68] sm:$0xff]
        %v287 = vld [vmem:[%s253 + $0x70] sm:$0xff]
        %v288 = vld [vmem:[%s253 + $0x78] sm:$0xff]
        %v289 = vld [vmem:[%s253 + $0x80] sm:$0xff]
        %v290 = vld [vmem:[%s253 + $0x88] sm:$0xff]
        %v291 = vld [vmem:[%s253 + $0x90] sm:$0xff]
        %v292 = vld [vmem:[%s253 + $0x98] sm:$0xff]
        %v293 = vld [vmem:[%s253 + $0xa0] sm:$0xff]
        %v294 = vld [vmem:[%s253 + $0xa8] sm:$0xff]
        %v295 = vld [vmem:[%s253 + $0xb0] sm:$0xff]
        %v296 = vld [vmem:[%s253 + $0xb8] sm:$0xff]
        %v297 = vld [vmem:[%s253 + $0xc0] sm:$0xff]
        %v298 = vld [vmem:[%s253 + $0xc8] sm:$0xff]
        %v299 = vld [vmem:[%s253 + $0xd0] sm:$0xff]
        %v300 = vld [vmem:[%s253 + $0xd8] sm:$0xff]
        %v301 = vld [vmem:[%s253 + $0xe0] sm:$0xff]
        %v302 = vld [vmem:[%s253 + $0xe8] sm:$0xff]
        %v303 = vld [vmem:[%s253 + $0xf0] sm:$0xff]
        %v304 = vld [vmem:[%s253 + $0xf8] sm:$0xff]
        %v305 = vld [vmem:[%s200] sm:$0xf]
        %v306 = vld [vmem:[%s200 + $0x4] sm:$0xf]
        %v307 = vld [vmem:[%s200 + $0x8] sm:$0xf]
        %v308 = vld [vmem:[%s200 + $0xc] sm:$0xf]
        %v309 = vld [vmem:[%s200 + $0x10] sm:$0xf]
        %v310 = vld [vmem:[%s200 + $0x14] sm:$0xf]
        %v311 = vld [vmem:[%s200 + $0x18] sm:$0xf]
        %v312 = vld [vmem:[%s200 + $0x1c] sm:$0xf]
        %v313 = vld [vmem:[%s200 + $0x20] sm:$0xf]
        %v314 = vld [vmem:[%s200 + $0x24] sm:$0xf]
        %v315 = vld [vmem:[%s200 + $0x28] sm:$0xf]
        %v316 = vld [vmem:[%s200 + $0x2c] sm:$0xf]
        %v317 = vld [vmem:[%s200 + $0x30] sm:$0xf]
        %v318 = vld [vmem:[%s200 + $0x34] sm:$0xf]
        %v319 = vld [vmem:[%s200 + $0x38] sm:$0xf]
        %v320 = vld [vmem:[%s200 + $0x3c] sm:$0xf]
        %v321 = vld [vmem:[%s200 + $0x40] sm:$0xf]
        %v322 = vld [vmem:[%s200 + $0x44] sm:$0xf]
        %v323 = vld [vmem:[%s200 + $0x48] sm:$0xf]
        %v324 = vld [vmem:[%s200 + $0x4c] sm:$0xf]
        %v325 = vld [vmem:[%s200 + $0x50] sm:$0xf]
        %v326 = vld [vmem:[%s200 + $0x54] sm:$0xf]
        %v327 = vld [vmem:[%s200 + $0x58] sm:$0xf]
        %v328 = vld [vmem:[%s200 + $0x5c] sm:$0xf]
        %v329 = vld [vmem:[%s200 + $0x60] sm:$0xf]
        %v330 = vld [vmem:[%s200 + $0x64] sm:$0xf]
        %v331 = vld [vmem:[%s200 + $0x68] sm:$0xf]
        %v332 = vld [vmem:[%s200 + $0x6c] sm:$0xf]
        %v333 = vld [vmem:[%s200 + $0x70] sm:$0xf]
        %v334 = vld [vmem:[%s200 + $0x74] sm:$0xf]
        %v335 = vld [vmem:[%s200 + $0x78] sm:$0xf]
        %v336 = vld [vmem:[%s200 + $0x7c] sm:$0xf]
        %v337 = vld [vmem:[%s200 + $0x80] sm:$0xf]
        %v338 = vld [vmem:[%s200 + $0x84] sm:$0xf]
        %v339 = vld [vmem:[%s200 + $0x88] sm:$0xf]
        %v340 = vld [vmem:[%s200 + $0x8c] sm:$0xf]
        %v341 = vld [vmem:[%s200 + $0x90] sm:$0xf]
        %v342 = vld [vmem:[%s200 + $0x94] sm:$0xf]
        %v343 = vld [vmem:[%s200 + $0x98] sm:$0xf]
        %v344 = vld [vmem:[%s200 + $0x9c] sm:$0xf]
        %v345 = vld [vmem:[%s200 + $0xa0] sm:$0xf]
        %v346 = vld [vmem:[%s200 + $0xa4] sm:$0xf]
        %v347 = vld [vmem:[%s200 + $0xa8] sm:$0xf]
        %v348 = vld [vmem:[%s200 + $0xac] sm:$0xf]
        %v349 = vld [vmem:[%s200 + $0xb0] sm:$0xf]
        %v350 = vld [vmem:[%s200 + $0xb4] sm:$0xf]
        %v351 = vld [vmem:[%s200 + $0xb8] sm:$0xf]
        %v352 = vld [vmem:[%s200 + $0xbc] sm:$0xf]
        %v353 = vld [vmem:[%s200 + $0xc0] sm:$0xf]
        %v354 = vld [vmem:[%s200 + $0xc4] sm:$0xf]
        %v355 = vld [vmem:[%s200 + $0xc8] sm:$0xf]
        %v356 = vld [vmem:[%s200 + $0xcc] sm:$0xf]
        %v357 = vld [vmem:[%s200 + $0xd0] sm:$0xf]
        %v358 = vld [vmem:[%s200 + $0xd4] sm:$0xf]
        %v359 = vld [vmem:[%s200 + $0xd8] sm:$0xf]
        %v360 = vld [vmem:[%s200 + $0xdc] sm:$0xf]
        %v361 = vld [vmem:[%s200 + $0xe0] sm:$0xf]
        %v362 = vld [vmem:[%s200 + $0xe4] sm:$0xf]
        %v363 = vld [vmem:[%s200 + $0xe8] sm:$0xf]
        %v364 = vld [vmem:[%s200 + $0xec] sm:$0xf]
        %v365 = vld [vmem:[%s200 + $0xf0] sm:$0xf]
        %v366 = vld [vmem:[%s200 + $0xf4] sm:$0xf]
        %v367 = vld [vmem:[%s200 + $0xf8] sm:$0xf]
        %v368 = vld [vmem:[%s200 + $0xfc] sm:$0xf]
        %v401 = vunpack.c.l.b16 %v273
        %v402 = vunpack.c.h.b16 %v273
        %v403 = vunpack.c.l.b16 %v274
        %v404 = vunpack.c.h.b16 %v274
        %v405 = vunpack.c.l.b16 %v275
        %v406 = vunpack.c.h.b16 %v275
        %v407 = vunpack.c.l.b16 %v276
        %v408 = vunpack.c.h.b16 %v276
        %v409 = vunpack.c.l.b16 %v277
        %v410 = vunpack.c.h.b16 %v277
        %v411 = vunpack.c.l.b16 %v278
        %v412 = vunpack.c.h.b16 %v278
        %v413 = vunpack.c.l.b16 %v279
        %v414 = vunpack.c.h.b16 %v279
        %v415 = vunpack.c.l.b16 %v280
        %v416 = vunpack.c.h.b16 %v280
        %v417 = vunpack.c.l.b16 %v281
        %v418 = vunpack.c.h.b16 %v281
        %v419 = vunpack.c.l.b16 %v282
        %v420 = vunpack.c.h.b16 %v282
        %v421 = vunpack.c.l.b16 %v283
        %v422 = vunpack.c.h.b16 %v283
        %v423 = vunpack.c.l.b16 %v284
        %v424 = vunpack.c.h.b16 %v284
        %v425 = vunpack.c.l.b16 %v285
        %v426 = vunpack.c.h.b16 %v285
        %v427 = vunpack.c.l.b16 %v286
        %v428 = vunpack.c.h.b16 %v286
        %v429 = vunpack.c.l.b16 %v287
        %v430 = vunpack.c.h.b16 %v287
        %v431 = vunpack.c.l.b16 %v288
        %v432 = vunpack.c.h.b16 %v288
        %v433 = vunpack.c.l.b16 %v289
        %v434 = vunpack.c.h.b16 %v289
        %v435 = vunpack.c.l.b16 %v290
        %v436 = vunpack.c.h.b16 %v290
        %v437 = vunpack.c.l.b16 %v291
        %v438 = vunpack.c.h.b16 %v291
        %v439 = vunpack.c.l.b16 %v292
        %v440 = vunpack.c.h.b16 %v292
        %v441 = vunpack.c.l.b16 %v293
        %v442 = vunpack.c.h.b16 %v293
        %v443 = vunpack.c.l.b16 %v294
        %v444 = vunpack.c.h.b16 %v294
        %v445 = vunpack.c.l.b16 %v295
        %v446 = vunpack.c.h.b16 %v295
        %v447 = vunpack.c.l.b16 %v296
        %v448 = vunpack.c.h.b16 %v296
        %v449 = vunpack.c.l.b16 %v297
        %v450 = vunpack.c.h.b16 %v297
        %v451 = vunpack.c.l.b16 %v298
        %v452 = vunpack.c.h.b16 %v298
        %v453 = vunpack.c.l.b16 %v299
        %v454 = vunpack.c.h.b16 %v299
        %v455 = vunpack.c.l.b16 %v300
        %v456 = vunpack.c.h.b16 %v300
        %v457 = vunpack.c.l.b16 %v301
        %v458 = vunpack.c.h.b16 %v301
        %v459 = vunpack.c.l.b16 %v302
        %v460 = vunpack.c.h.b16 %v302
        %v461 = vunpack.c.l.b16 %v303
        %v462 = vunpack.c.h.b16 %v303
        %v463 = vunpack.c.l.b16 %v304
        %v464 = vunpack.c.h.b16 %v304
        %v465 = vpack.c.b16 %v405, %v401
        %v466 = vpack.c.b16 %v406, %v402
        %v467 = vpack.c.b16 %v407, %v403
        %v468 = vpack.c.b16 %v408, %v404
        %v469 = vpack.c.b16 %v413, %v409
        %v470 = vpack.c.b16 %v414, %v410
        %v471 = vpack.c.b16 %v415, %v411
        %v472 = vpack.c.b16 %v416, %v412
        %v473 = vpack.c.b16 %v421, %v417
        %v474 = vpack.c.b16 %v422, %v418
        %v475 = vpack.c.b16 %v423, %v419
        %v476 = vpack.c.b16 %v424, %v420
        %v477 = vpack.c.b16 %v429, %v425
        %v478 = vpack.c.b16 %v430, %v426
        %v479 = vpack.c.b16 %v431, %v427
        %v480 = vpack.c.b16 %v432, %v428
        %v481 = vpack.c.b16 %v437, %v433
        %v482 = vpack.c.b16 %v438, %v434
        %v483 = vpack.c.b16 %v439, %v435
        %v484 = vpack.c.b16 %v440, %v436
        %v485 = vpack.c.b16 %v445, %v441
        %v486 = vpack.c.b16 %v446, %v442
        %v487 = vpack.c.b16 %v447, %v443
        %v488 = vpack.c.b16 %v448, %v444
        %v489 = vpack.c.b16 %v453, %v449
        %v490 = vpack.c.b16 %v454, %v450
        %v491 = vpack.c.b16 %v455, %v451
        %v492 = vpack.c.b16 %v456, %v452
        %v493 = vpack.c.b16 %v461, %v457
        %v494 = vpack.c.b16 %v462, %v458
        %v495 = vpack.c.b16 %v463, %v459
        %v496 = vpack.c.b16 %v464, %v460
        %v593 = vunpack.c.l.b16 %v305
        %v594 = vunpack.c.l.b16 %v306
        %v595 = vunpack.c.l.b16 %v307
        %v596 = vunpack.c.l.b16 %v308
        %v597 = vunpack.c.l.b16 %v309
        %v598 = vunpack.c.l.b16 %v310
        %v599 = vunpack.c.l.b16 %v311
        %v600 = vunpack.c.l.b16 %v312
        %v601 = vunpack.c.l.b16 %v313
        %v602 = vunpack.c.l.b16 %v314
        %v603 = vunpack.c.l.b16 %v315
        %v604 = vunpack.c.l.b16 %v316
        %v605 = vunpack.c.l.b16 %v317
        %v606 = vunpack.c.l.b16 %v318
        %v607 = vunpack.c.l.b16 %v319
        %v608 = vunpack.c.l.b16 %v320
        %v609 = vunpack.c.l.b16 %v321
        %v610 = vunpack.c.l.b16 %v322
        %v611 = vunpack.c.l.b16 %v323
        %v612 = vunpack.c.l.b16 %v324
        %v613 = vunpack.c.l.b16 %v325
        %v614 = vunpack.c.l.b16 %v326
        %v615 = vunpack.c.l.b16 %v327
        %v616 = vunpack.c.l.b16 %v328
        %v617 = vunpack.c.l.b16 %v329
        %v618 = vunpack.c.l.b16 %v330
        %v619 = vunpack.c.l.b16 %v331
        %v620 = vunpack.c.l.b16 %v332
        %v621 = vunpack.c.l.b16 %v333
        %v622 = vunpack.c.l.b16 %v334
        %v623 = vunpack.c.l.b16 %v335
        %v624 = vunpack.c.l.b16 %v336
        %v625 = vunpack.c.l.b16 %v337
        %v626 = vunpack.c.l.b16 %v338
        %v627 = vunpack.c.l.b16 %v339
        %v628 = vunpack.c.l.b16 %v340
        %v629 = vunpack.c.l.b16 %v341
        %v630 = vunpack.c.l.b16 %v342
        %v631 = vunpack.c.l.b16 %v343
        %v632 = vunpack.c.l.b16 %v344
        %v633 = vunpack.c.l.b16 %v345
        %v634 = vunpack.c.l.b16 %v346
        %v635 = vunpack.c.l.b16 %v347
        %v636 = vunpack.c.l.b16 %v348
        %v637 = vunpack.c.l.b16 %v349
        %v638 = vunpack.c.l.b16 %v350
        %v639 = vunpack.c.l.b16 %v351
        %v640 = vunpack.c.l.b16 %v352
        %v641 = vunpack.c.l.b16 %v353
        %v642 = vunpack.c.l.b16 %v354
        %v643 = vunpack.c.l.b16 %v355
        %v644 = vunpack.c.l.b16 %v356
        %v645 = vunpack.c.l.b16 %v357
        %v646 = vunpack.c.l.b16 %v358
        %v647 = vunpack.c.l.b16 %v359
        %v648 = vunpack.c.l.b16 %v360
        %v649 = vunpack.c.l.b16 %v361
        %v650 = vunpack.c.l.b16 %v362
        %v651 = vunpack.c.l.b16 %v363
        %v652 = vunpack.c.l.b16 %v364
        %v653 = vunpack.c.l.b16 %v365
        %v654 = vunpack.c.l.b16 %v366
        %v655 = vunpack.c.l.b16 %v367
        %v656 = vunpack.c.l.b16 %v368
        %v657 = vpack.c.b16 %v594, %v593
        %v658 = vpack.c.b16 %v596, %v595
        %v659 = vpack.c.b16 %v598, %v597
        %v660 = vpack.c.b16 %v600, %v599
        %v661 = vpack.c.b16 %v602, %v601
        %v662 = vpack.c.b16 %v604, %v603
        %v663 = vpack.c.b16 %v606, %v605
        %v664 = vpack.c.b16 %v608, %v607
        %v665 = vpack.c.b16 %v610, %v609
        %v666 = vpack.c.b16 %v612, %v611
        %v667 = vpack.c.b16 %v614, %v613
        %v668 = vpack.c.b16 %v616, %v615
        %v669 = vpack.c.b16 %v618, %v617
        %v670 = vpack.c.b16 %v620, %v619
        %v671 = vpack.c.b16 %v622, %v621
        %v672 = vpack.c.b16 %v624, %v623
        %v673 = vpack.c.b16 %v626, %v625
        %v674 = vpack.c.b16 %v628, %v627
        %v675 = vpack.c.b16 %v630, %v629
        %v676 = vpack.c.b16 %v632, %v631
        %v677 = vpack.c.b16 %v634, %v633
        %v678 = vpack.c.b16 %v636, %v635
        %v679 = vpack.c.b16 %v638, %v637
        %v680 = vpack.c.b16 %v640, %v639
        %v681 = vpack.c.b16 %v642, %v641
        %v682 = vpack.c.b16 %v644, %v643
        %v683 = vpack.c.b16 %v646, %v645
        %v684 = vpack.c.b16 %v648, %v647
        %v685 = vpack.c.b16 %v650, %v649
        %v686 = vpack.c.b16 %v652, %v651
        %v687 = vpack.c.b16 %v654, %v653
        %v688 = vpack.c.b16 %v656, %v655
        %721 = vmatprep.subr.bf16.mxu0 0
        %722 = vmatpush1.bf16.msra.mxu0 %v657
        %723 = vmatprep.subr.bf16.mxu0 0
        %724 = vmatpush1.bf16.msra.mxu0 %v658
        %725 = vmatprep.subr.bf16.mxu0 0
        %726 = vmatpush1.bf16.msra.mxu0 %v659
        %727 = vmatprep.subr.bf16.mxu0 0
        %728 = vmatpush1.bf16.msra.mxu0 %v660
        %729 = vmatprep.subr.bf16.mxu0 0
        %730 = vmatpush1.bf16.msra.mxu0 %v661
        %731 = vmatprep.subr.bf16.mxu0 0
        %732 = vmatpush1.bf16.msra.mxu0 %v662
        %733 = vmatprep.subr.bf16.mxu0 0
        %734 = vmatpush1.bf16.msra.mxu0 %v663
        %735 = vmatprep.subr.bf16.mxu0 0
        %736 = vmatpush1.bf16.msra.mxu0 %v664
        %737 = vmatprep.subr.bf16.mxu0 0
        %738 = vmatpush1.bf16.msra.mxu0 %v665
        %739 = vmatprep.subr.bf16.mxu0 0
        %740 = vmatpush1.bf16.msra.mxu0 %v666
        %741 = vmatprep.subr.bf16.mxu0 0
        %742 = vmatpush1.bf16.msra.mxu0 %v667
        %743 = vmatprep.subr.bf16.mxu0 0
        %744 = vmatpush1.bf16.msra.mxu0 %v668
        %745 = vmatprep.subr.bf16.mxu0 0
        %746 = vmatpush1.bf16.msra.mxu0 %v669
        %747 = vmatprep.subr.bf16.mxu0 0
        %748 = vmatpush1.bf16.msra.mxu0 %v670
        %749 = vmatprep.subr.bf16.mxu0 0
        %750 = vmatpush1.bf16.msra.mxu0 %v671
        %751 = vmatprep.subr.bf16.mxu0 0
        %752 = vmatpush1.bf16.msra.mxu0 %v672
        %753 = vmatprep.mubr.bf16.mxu0 %v466
        %754 = vmatmul.mubr.bf16.gmra.mrb[0].mxu0 %v465
        %v755 = vpop.f32.mrb[0].mxu0
        %v756 = vadd.f32 0.0, %v755
        %v757 = vpop.f32.mrb[0].mxu0
        %v758 = vpop.f32.mrb[0].mxu0
        %v759 = vadd.f32 0.0, %v758
        %v760 = vpop.f32.mrb[0].mxu0
        %761 = vmatprep.mubr.bf16.mxu0 %v470
        %762 = vmatmul.mubr.bf16.gmra.mrb[0].mxu0 %v469
        %v763 = vpop.f32.mrb[0].mxu0
        %v764 = vadd.f32 0.0, %v763
        %v765 = vpop.f32.mrb[0].mxu0
        %v766 = vpop.f32.mrb[0].mxu0
        %v767 = vadd.f32 0.0, %v766
        %v768 = vpop.f32.mrb[0].mxu0
        %769 = vmatprep.mubr.bf16.mxu0 %v474
        %770 = vmatmul.mubr.bf16.gmra.mrb[0].mxu0 %v473
        %v771 = vpop.f32.mrb[0].mxu0
        %v772 = vadd.f32 0.0, %v771
        %v773 = vpop.f32.mrb[0].mxu0
        %v774 = vpop.f32.mrb[0].mxu0
        %v775 = vadd.f32 0.0, %v774
        %v776 = vpop.f32.mrb[0].mxu0
        %777 = vmatprep.mubr.bf16.mxu0 %v478
        %778 = vmatmul.mubr.bf16.gmra.mrb[0].mxu0 %v477
        %v779 = vpop.f32.mrb[0].mxu0
        %v780 = vadd.f32 0.0, %v779
        %v781 = vpop.f32.mrb[0].mxu0
        %v782 = vpop.f32.mrb[0].mxu0
        %v783 = vadd.f32 0.0, %v782
        %v784 = vpop.f32.mrb[0].mxu0
        %785 = vmatprep.mubr.bf16.mxu0 %v482
        %786 = vmatmul.mubr.bf16.gmra.mrb[0].mxu0 %v481
        %v787 = vpop.f32.mrb[0].mxu0
        %v788 = vadd.f32 0.0, %v787
        %v789 = vpop.f32.mrb[0].mxu0
        %v790 = vpop.f32.mrb[0].mxu0
        %v791 = vadd.f32 0.0, %v790
        %v792 = vpop.f32.mrb[0].mxu0
        %793 = vmatprep.mubr.bf16.mxu0 %v486
        %794 = vmatmul.mubr.bf16.gmra.mrb[0].mxu0 %v485
        %v795 = vpop.f32.mrb[0].mxu0
        %v796 = vadd.f32 0.0, %v795
        %v797 = vpop.f32.mrb[0].mxu0
        %v798 = vpop.f32.mrb[0].mxu0
        %v799 = vadd.f32 0.0, %v798
        %v800 = vpop.f32.mrb[0].mxu0
        %801 = vmatprep.mubr.bf16.mxu0 %v490
        %802 = vmatmul.mubr.bf16.gmra.mrb[0].mxu0 %v489
        %v803 = vpop.f32.mrb[0].mxu0
        %v804 = vadd.f32 0.0, %v803
        %v805 = vpop.f32.mrb[0].mxu0
        %v806 = vpop.f32.mrb[0].mxu0
        %v807 = vadd.f32 0.0, %v806
        %v808 = vpop.f32.mrb[0].mxu0
        %809 = vmatprep.mubr.bf16.mxu0 %v494
        %810 = vmatmul.mubr.bf16.gmra.mrb[0].mxu0 %v493
        %v811 = vpop.f32.mrb[0].mxu0
        %v812 = vadd.f32 0.0, %v811
        %v813 = vpop.f32.mrb[0].mxu0
        %v814 = vpop.f32.mrb[0].mxu0
        %v815 = vadd.f32 0.0, %v814
        %v816 = vpop.f32.mrb[0].mxu0
        %817 = vdwg.mxu0
        %818 = vmatprep.subr.bf16.mxu0 0
        %819 = vmatpush1.bf16.msra.mxu0 %v673
        %820 = vmatprep.subr.bf16.mxu0 0
        %821 = vmatpush1.bf16.msra.mxu0 %v674
        %822 = vmatprep.subr.bf16.mxu0 0
        %823 = vmatpush1.bf16.msra.mxu0 %v675
        %824 = vmatprep.subr.bf16.mxu0 0
        %825 = vmatpush1.bf16.msra.mxu0 %v676
        %826 = vmatprep.subr.bf16.mxu0 0
        %827 = vmatpush1.bf16.msra.mxu0 %v677
        %828 = vmatprep.subr.bf16.mxu0 0
        %829 = vmatpush1.bf16.msra.mxu0 %v678
        %830 = vmatprep.subr.bf16.mxu0 0
        %831 = vmatpush1.bf16.msra.mxu0 %v679
        %832 = vmatprep.subr.bf16.mxu0 0
        %833 = vmatpush1.bf16.msra.mxu0 %v680
        %834 = vmatprep.subr.bf16.mxu0 0
        %835 = vmatpush1.bf16.msra.mxu0 %v681
        %836 = vmatprep.subr.bf16.mxu0 0
        %837 = vmatpush1.bf16.msra.mxu0 %v682
        %838 = vmatprep.subr.bf16.mxu0 0
        %839 = vmatpush1.bf16.msra.mxu0 %v683
        %840 = vmatprep.subr.bf16.mxu0 0
        %841 = vmatpush1.bf16.msra.mxu0 %v684
        %842 = vmatprep.subr.bf16.mxu0 0
        %843 = vmatpush1.bf16.msra.mxu0 %v685
        %844 = vmatprep.subr.bf16.mxu0 0
        %845 = vmatpush1.bf16.msra.mxu0 %v686
        %846 = vmatprep.subr.bf16.mxu0 0
        %847 = vmatpush1.bf16.msra.mxu0 %v687
        %848 = vmatprep.subr.bf16.mxu0 0
        %849 = vmatpush1.bf16.msra.mxu0 %v688
        %850 = vmatprep.mubr.bf16.mxu0 %v468
        %851 = vmatmul.mubr.bf16.gmra.mrb[0].mxu0 %v467
        %v852 = vpop.f32.mrb[0].mxu0
        %v853 = vadd.f32 %v756, %v852
        %v854 = vpop.f32.mrb[0].mxu0
        %v855 = vpop.f32.mrb[0].mxu0
        %v856 = vadd.f32 %v759, %v855
        %v857 = vpop.f32.mrb[0].mxu0
        %858 = vmatprep.mubr.bf16.mxu0 %v472
        %859 = vmatmul.mubr.bf16.gmra.mrb[0].mxu0 %v471
        %v860 = vpop.f32.mrb[0].mxu0
        %v861 = vadd.f32 %v764, %v860
        %v862 = vpop.f32.mrb[0].mxu0
        %v863 = vpop.f32.mrb[0].mxu0
        %v864 = vadd.f32 %v767, %v863
        %v865 = vpop.f32.mrb[0].mxu0
        %866 = vmatprep.mubr.bf16.mxu0 %v476
        %867 = vmatmul.mubr.bf16.gmra.mrb[0].mxu0 %v475
        %v868 = vpop.f32.mrb[0].mxu0
        %v869 = vadd.f32 %v772, %v868
        %v870 = vpop.f32.mrb[0].mxu0
        %v871 = vpop.f32.mrb[0].mxu0
        %v872 = vadd.f32 %v775, %v871
        %v873 = vpop.f32.mrb[0].mxu0
        %874 = vmatprep.mubr.bf16.mxu0 %v480
        %875 = vmatmul.mubr.bf16.gmra.mrb[0].mxu0 %v479
        %v876 = vpop.f32.mrb[0].mxu0
        %v877 = vadd.f32 %v780, %v876
        %v878 = vpop.f32.mrb[0].mxu0
        %v879 = vpop.f32.mrb[0].mxu0
        %v880 = vadd.f32 %v783, %v879
        %v881 = vpop.f32.mrb[0].mxu0
        %882 = vmatprep.mubr.bf16.mxu0 %v484
        %883 = vmatmul.mubr.bf16.gmra.mrb[0].mxu0 %v483
        %v884 = vpop.f32.mrb[0].mxu0
        %v885 = vadd.f32 %v788, %v884
        %v886 = vpop.f32.mrb[0].mxu0
        %v887 = vpop.f32.mrb[0].mxu0
        %v888 = vadd.f32 %v791, %v887
        %v889 = vpop.f32.mrb[0].mxu0
        %890 = vmatprep.mubr.bf16.mxu0 %v488
        %891 = vmatmul.mubr.bf16.gmra.mrb[0].mxu0 %v487
        %v892 = vpop.f32.mrb[0].mxu0
        %v893 = vadd.f32 %v796, %v892
        %v894 = vpop.f32.mrb[0].mxu0
        %v895 = vpop.f32.mrb[0].mxu0
        %v896 = vadd.f32 %v799, %v895
        %v897 = vpop.f32.mrb[0].mxu0
        %898 = vmatprep.mubr.bf16.mxu0 %v492
        %899 = vmatmul.mubr.bf16.gmra.mrb[0].mxu0 %v491
        %v900 = vpop.f32.mrb[0].mxu0
        %v901 = vadd.f32 %v804, %v900
        %v902 = vpop.f32.mrb[0].mxu0
        %v903 = vpop.f32.mrb[0].mxu0
        %v904 = vadd.f32 %v807, %v903
        %v905 = vpop.f32.mrb[0].mxu0
        %906 = vmatprep.mubr.bf16.mxu0 %v496
        %907 = vmatmul.mubr.bf16.gmra.mrb[0].mxu0 %v495
        %v908 = vpop.f32.mrb[0].mxu0
        %v909 = vadd.f32 %v812, %v908
        %v910 = vpop.f32.mrb[0].mxu0
        %v911 = vpop.f32.mrb[0].mxu0
        %v912 = vadd.f32 %v815, %v911
        %v913 = vpop.f32.mrb[0].mxu0
        %914 = vdwg.mxu0
        %915 = vst [vmem:[%s263] sm:$0xff] %v853
        %916 = vst [vmem:[%s263 + $0x8] sm:$0xff] %v856
        %917 = vst [vmem:[%s263 + $0x10] sm:$0xff] %v861
        %918 = vst [vmem:[%s263 + $0x18] sm:$0xff] %v864
        %919 = vst [vmem:[%s263 + $0x20] sm:$0xff] %v869
        %920 = vst [vmem:[%s263 + $0x28] sm:$0xff] %v872
        %921 = vst [vmem:[%s263 + $0x30] sm:$0xff] %v877
        %922 = vst [vmem:[%s263 + $0x38] sm:$0xff] %v880
        %923 = vst [vmem:[%s263 + $0x40] sm:$0xff] %v885
        %924 = vst [vmem:[%s263 + $0x48] sm:$0xff] %v888
        %925 = vst [vmem:[%s263 + $0x50] sm:$0xff] %v893
        %926 = vst [vmem:[%s263 + $0x58] sm:$0xff] %v896
        %927 = vst [vmem:[%s263 + $0x60] sm:$0xff] %v901
        %928 = vst [vmem:[%s263 + $0x68] sm:$0xff] %v904
        %929 = vst [vmem:[%s263 + $0x70] sm:$0xff] %v909
        %930 = vst [vmem:[%s263 + $0x78] sm:$0xff] %v912
        %v931 = vadd.f32 %v853, %v856
        %v932 = vadd.f32 %v931, %v861
        %v933 = vadd.f32 %v932, %v864
        %v934 = vadd.f32 %v933, %v869
        %v935 = vadd.f32 %v934, %v872
        %v936 = vadd.f32 %v935, %v877
        %v937 = vadd.f32 %v936, %v880
        %v938 = vadd.f32 %v937, %v885
        %v939 = vadd.f32 %v938, %v888
        %v940 = vadd.f32 %v939, %v893
        %v941 = vadd.f32 %v940, %v896
        %v942 = vadd.f32 %v941, %v901
        %v943 = vadd.f32 %v942, %v904
        %v944 = vadd.f32 %v943, %v909
        %v945 = vadd.f32 %v944, %v912
        %v946 = vrot.slane %v945, 4
        %v947 = vadd.f32 %v945, %v946
        %v948 = vrot.slane %v947, 2
        %v949 = vadd.f32 %v947, %v948
        %v950 = vrot.slane %v949, 1
        %v951 = vadd.f32 %v949, %v950
        %v952 = vmul.f32 %v853, %v853
        %v953 = vmul.f32 %v856, %v856
        %v954 = vmul.f32 %v861, %v861
        %v955 = vmul.f32 %v864, %v864
        %v956 = vmul.f32 %v869, %v869
        %v957 = vmul.f32 %v872, %v872
        %v958 = vmul.f32 %v877, %v877
        %v959 = vmul.f32 %v880, %v880
        %v960 = vmul.f32 %v885, %v885
        %v961 = vmul.f32 %v888, %v888
        %v962 = vmul.f32 %v893, %v893
        %v963 = vmul.f32 %v896, %v896
        %v964 = vmul.f32 %v901, %v901
        %v965 = vmul.f32 %v904, %v904
        %v966 = vmul.f32 %v909, %v909
        %v967 = vmul.f32 %v912, %v912
        %v968 = vadd.f32 %v952, %v953
        %v969 = vadd.f32 %v968, %v954
        %v970 = vadd.f32 %v969, %v955
        %v971 = vadd.f32 %v970, %v956
        %v972 = vadd.f32 %v971, %v957
        %v973 = vadd.f32 %v972, %v958
        %v974 = vadd.f32 %v973, %v959
        %v975 = vadd.f32 %v974, %v960
        %v976 = vadd.f32 %v975, %v961
        %v977 = vadd.f32 %v976, %v962
        %v978 = vadd.f32 %v977, %v963
        %v979 = vadd.f32 %v978, %v964
        %v980 = vadd.f32 %v979, %v965
        %v981 = vadd.f32 %v980, %v966
        %v982 = vadd.f32 %v981, %v967
        %v983 = vrot.slane %v982, 4
        %v984 = vadd.f32 %v982, %v983
        %v985 = vrot.slane %v984, 2
        %v986 = vadd.f32 %v984, %v985
        %v987 = vrot.slane %v986, 1
        %v988 = vadd.f32 %v986, %v987
        %vm989 = vcmask 1040384
        %v990 = vsel %vm989, %v951, %v988
        %991 = vst [vmem:[%s271] sm:$0x3] %v990
        %s992 = smul.u32 16, %s23
        %p993 = scmp.lt.s32.totalorder %s22, 3
        %s994 = scalar_select %p993, %s22, 3
        %p995 = scmp.lt.s32.totalorder %s992, 15
        %s996 = scalar_select %p995, %s992, 15
        %s997 = smul.addr %s994, 16
        %s998 = sadd.s32 %s996, %s997
        %s999 = smul.addr %s998, 8
        %s1000 = scalar_lea.vmem %s2, %s999
        %p1001 = scmp.lt.s32.totalorder %s22, 3
        %s1002 = scalar_select %p1001, %s22, 3
        %p1003 = scmp.lt.s32.totalorder %s23, 0
        %s1004 = scalar_select %p1003, %s23, 0
        %s1005 = sadd.s32 %s1004, %s1002
        %s1006 = smul.addr %s1005, 2
        %s1007 = scalar_lea.vmem %s3, %s1006
        // Predicated region
        $region33: #{generator_forward.13} parent=27 // pred_check
          %p1008 = pneg %p104
        $region34: #{generator_forward.13} parent=27 // pred_check_branch
          %1010 = sbr.rel (%p1008) target = $region36
        $region35: #{generator_forward.13} parent=27 // pred_region
          %s1011 = smul.u32 16, %s23
        $region36: #{generator_forward.13} parent=27 // pred_fallthru
          _
        // Predicated region
        $region37: #{generator_forward.13} parent=27 // pred_check
          %p1012 = pneg %p132
        $region38: #{generator_forward.13} parent=27 // pred_check_branch
          %1014 = sbr.rel (%p1012) target = $region40
        $region39: #{generator_forward.13} parent=27 // pred_region
          _
        $region40: #{generator_forward.13} parent=27 // pred_fallthru
          _
      $region28: #{generator_forward.13} parent=5 // pred_fallthru
        _
      %p1015 = scmp.le.s32.totalorder 2, %s13
      // Predicated region
      $region41: #{generator_forward.13} parent=5 // pred_check
        %p1016 = pneg %p1015
      $region42: #{generator_forward.13} parent=5 // pred_check_branch
        %1018 = sbr.rel (%p1016) target = $region44
      $region43: #{generator_forward.13} parent=5 // pred_region
        %s1019 = ssub.s32 %s13, 2
        // Predicated region
        $region45: #{generator_forward.13} parent=43 // pred_check
          %p1020 = pneg %p110
        $region46: #{generator_forward.13} parent=43 // pred_check_branch
          %1022 = sbr.rel (%p1020) target = $region48
        $region47: #{generator_forward.13} parent=43 // pred_region
          %s1023 = smul.u32 16, %s25
          %p1024 = scmp.lt.s32.totalorder %s24, 3
          %s1025 = scalar_select %p1024, %s24, 3
          %p1026 = scmp.lt.s32.totalorder %s1023, 15
          %s1027 = scalar_select %p1026, %s1023, 15
          %s1028 = smul.addr %s1025, 16
          %s1029 = sadd.s32 %s1027, %s1028
          %s1030 = smul.addr %s1029, 8
          %s1031 = scalar_lea.vmem %s2, %s1030
        $region48: #{generator_forward.13} parent=43 // pred_fallthru
          _
        // Predicated region
        $region49: #{generator_forward.13} parent=43 // pred_check
          %p1032 = pneg %p138
        $region50: #{generator_forward.13} parent=43 // pred_check_branch
          %1034 = sbr.rel (%p1032) target = $region52
        $region51: #{generator_forward.13} parent=43 // pred_region
          %p1035 = scmp.lt.s32.totalorder %s24, 3
          %s1036 = scalar_select %p1035, %s24, 3
          %p1037 = scmp.lt.s32.totalorder %s25, 0
          %s1038 = scalar_select %p1037, %s25, 0
          %s1039 = sadd.s32 %s1038, %s1036
          %s1040 = smul.addr %s1039, 2
          %s1041 = scalar_lea.vmem %s3, %s1040
        $region52: #{generator_forward.13} parent=43 // pred_fallthru
          _
      $region44: #{generator_forward.13} parent=5 // pred_fallthru
        _
    $region6: #{generator_forward.13} parent=1 // loop_footer
      %s17 = sadd.s32 1, %s13
    $region7: #{generator_forward.13} parent=1 // loop_footer_branch
      %12 = sbr.rel target = $region3
    $region8: #{generator_forward.13} parent=1 // loop_exit
      _
    %1042 = vsyncpa [#allocation3], 1
    %s1043 = scalar_lea.sflag [#allocation3], 1
    %1044 = vsyncpa %s1043, 1

// kernel: generator_forward.16
$region0: #{generator_forward.16}
  #allocation0 [shape = 'u32[]', space=smem, size = 0x4, offset = 0x4, fixed_abs, tag = 'smem constant byte address 0x4 - core index']
  #allocation1 [shape = 'u32[144,128]{1,0:T(1,128)}', space=vmem, size = 0x12000, scoped, tag = 'internal scratch']
  %s0 = inlined_call_operand.vmem [shape: f32[4,512,128], index: 0, kind: input, shape index: {}]
  %s1 = inlined_call_operand.vmem [shape: f32[1,128], index: 1, kind: input, shape index: {}]
  %s2 = inlined_call_operand.vmem [shape: f32[1,128], index: 2, kind: input, shape index: {}]
  %s3 = inlined_call_operand.vmem [shape: bf16[4,512,128], index: 3, kind: output, shape index: {}]
  %s4 = sld [smem:[#allocation0]]
  $region45: #{generator_forward.16} parent=0
    _
  %s6 = ssub.s32 1, %s4
  %s7 = scalar_select 0, %s6, %s4
  loop: start=0, step=1, limit=6
  $region2: #{generator_forward.16} parent=0 // loop_pre_header
    _
  $region3: #{generator_forward.16} parent=0 // loop_header
    %s9 = sphi 0, %s13
    %p10 = scmp.ge.s32.totalorder %s9, 6
    %s16 = sphi 0, %s28
    %s17 = sphi 0, %s24
    %s18 = sphi 0, %s16
    %s19 = sphi 0, %s17
    %s20 = sphi 0, %s18
    %s21 = sphi 0, %s19
    %s33 = sphi 0, %s35
    %s36 = sphi 0, %s33
    %s37 = sphi 0, %s36
    %s53 = sphi 0, %s37
    %s57 = sphi 0, %s57
    %s59 = sphi 0, %s57
    %s60 = sphi 0, %s59
    %s74 = sphi 0, %s60
    %s78 = sphi 0, %s78
    %s80 = sphi 0, %s78
    %s81 = sphi 0, %s80
    %s95 = sphi 0, %s81
    %s103 = sphi 0, %s105
    %s106 = sphi 0, %s103
    %s107 = sphi 0, %s106
    %s123 = sphi 0, %s107
  $region4: #{generator_forward.16} parent=0 // loop_header_branch
    %12 = sbr.rel (%p10) target = $region8
  $region5: #{generator_forward.16} parent=0 // loop_body
    %s14 = ssub.s32 %s9, 1
    %s15 = ssub.s32 %s9, 2
    %s22 = sadd.s32 1, %s17
    %p23 = scmp.ge.s32.totalorder %s22, 1
    %s24 = scalar_select %p23, 0, %s22
    %s25 = sadd.s32 1, %s16
    %s26 = scalar_select %p23, %s25, %s16
    %p27 = scmp.ge.s32.totalorder %s26, 4
    %s28 = scalar_select %p27, 0, %s26
    %s29 = ssub.s32 %s16, %s28
    %s30 = ssub.s32 %s17, %s24
    %s31 = sor.u32 %s29, %s30
    %p32 = scmp.eq.s32.totalorder %s31, 0
    %s34 = sadd.s32 %s33, 1
    %s35 = scalar_select %p32, %s33, %s34
    %p38 = pneg %p32
    %p39 = scmp.eq.s32.totalorder %s9, 3
    %p40 = por %p38, %p39
    %p41 = scmp.ne.s32.totalorder %s33, %s36
    %p42 = scmp.eq.s32.totalorder %s9, 0
    %p43 = por %p41, %p42
    %p44 = scmp.ne.s32.totalorder %s33, %s36
    %p45 = scmp.eq.s32.totalorder %s14, 3
    %p46 = por %p44, %p45
    %p47 = scmp.ne.s32.totalorder %s36, %s37
    %p48 = scmp.eq.s32.totalorder %s14, 0
    %p49 = por %p47, %p48
    %p50 = scmp.ne.s32.totalorder %s36, %s37
    %p51 = scmp.eq.s32.totalorder %s15, 3
    %p52 = por %p50, %p51
    %p54 = scmp.ne.s32.totalorder %s37, %s53
    %p55 = scmp.eq.s32.totalorder %s15, 0
    %p56 = por %p54, %p55
    %s58 = sadd.s32 %s57, 1
    %p61 = scmp.eq.s32.totalorder %s9, 3
    %p62 = scmp.ne.s32.totalorder %s57, %s59
    %p63 = scmp.eq.s32.totalorder %s9, 0
    %p64 = por %p62, %p63
    %p65 = scmp.ne.s32.totalorder %s57, %s59
    %p66 = scmp.eq.s32.totalorder %s14, 3
    %p67 = por %p65, %p66
    %p68 = scmp.ne.s32.totalorder %s59, %s60
    %p69 = scmp.eq.s32.totalorder %s14, 0
    %p70 = por %p68, %p69
    %p71 = scmp.ne.s32.totalorder %s59, %s60
    %p72 = scmp.eq.s32.totalorder %s15, 3
    %p73 = por %p71, %p72
    %p75 = scmp.ne.s32.totalorder %s60, %s74
    %p76 = scmp.eq.s32.totalorder %s15, 0
    %p77 = por %p75, %p76
    %s79 = sadd.s32 %s78, 1
    %p82 = scmp.eq.s32.totalorder %s9, 3
    %p83 = scmp.ne.s32.totalorder %s78, %s80
    %p84 = scmp.eq.s32.totalorder %s9, 0
    %p85 = por %p83, %p84
    %p86 = scmp.ne.s32.totalorder %s78, %s80
    %p87 = scmp.eq.s32.totalorder %s14, 3
    %p88 = por %p86, %p87
    %p89 = scmp.ne.s32.totalorder %s80, %s81
    %p90 = scmp.eq.s32.totalorder %s14, 0
    %p91 = por %p89, %p90
    %p92 = scmp.ne.s32.totalorder %s80, %s81
    %p93 = scmp.eq.s32.totalorder %s15, 3
    %p94 = por %p92, %p93
    %p96 = scmp.ne.s32.totalorder %s81, %s95
    %p97 = scmp.eq.s32.totalorder %s15, 0
    %p98 = por %p96, %p97
    %s99 = ssub.s32 %s16, %s28
    %s100 = ssub.s32 %s17, %s24
    %s101 = sor.u32 %s99, %s100
    %p102 = scmp.eq.s32.totalorder %s101, 0
    %s104 = sadd.s32 %s103, 1
    %s105 = scalar_select %p102, %s103, %s104
    %p108 = pneg %p102
    %p109 = scmp.eq.s32.totalorder %s9, 3
    %p110 = por %p108, %p109
    %p111 = scmp.ne.s32.totalorder %s103, %s106
    %p112 = scmp.eq.s32.totalorder %s9, 0
    %p113 = por %p111, %p112
    %p114 = scmp.ne.s32.totalorder %s103, %s106
    %p115 = scmp.eq.s32.totalorder %s14, 3
    %p116 = por %p114, %p115
    %p117 = scmp.ne.s32.totalorder %s106, %s107
    %p118 = scmp.eq.s32.totalorder %s14, 0
    %p119 = por %p117, %p118
    %p120 = scmp.ne.s32.totalorder %s106, %s107
    %p121 = scmp.eq.s32.totalorder %s15, 3
    %p122 = por %p120, %p121
    %p124 = scmp.ne.s32.totalorder %s107, %s123
    %p125 = scmp.eq.s32.totalorder %s15, 0
    %p126 = por %p124, %p125
    %p127 = scmp.le.s32.totalorder 1, %s9
    %p128 = scmp.lt.s32.totalorder %s9, 5
    %p129 = pnand %p127, %p128
    %p130 = pneg %p129
    // Predicated region
    $region9: #{generator_forward.16} parent=5 // pred_check
      _
    $region10: #{generator_forward.16} parent=5 // pred_check_branch
      %132 = sbr.rel (%p129) target = $region12
    $region11: #{generator_forward.16} parent=5 // pred_region
      %s133 = ssub.s32 %s9, 1
      // Predicated region
      $region13: #{generator_forward.16} parent=11 // pred_check
        %p134 = pneg %p70
      $region14: #{generator_forward.16} parent=11 // pred_check_branch
        %136 = sbr.rel (%p134) target = $region16
      $region15: #{generator_forward.16} parent=11 // pred_region
        _
      $region16: #{generator_forward.16} parent=11 // pred_fallthru
        _
      // Predicated region
      $region17: #{generator_forward.16} parent=11 // pred_check
        %p137 = pneg %p91
      $region18: #{generator_forward.16} parent=11 // pred_check_branch
        %139 = sbr.rel (%p137) target = $region20
      $region19: #{generator_forward.16} parent=11 // pred_region
        _
      $region20: #{generator_forward.16} parent=11 // pred_fallthru
        _
    $region12: #{generator_forward.16} parent=5 // pred_fallthru
      _
    %p140 = scmp.lt.s32.totalorder %s9, 4
    // Predicated region
    $region21: #{generator_forward.16} parent=5 // pred_check
      %p141 = pneg %p140
    $region22: #{generator_forward.16} parent=5 // pred_check_branch
      %143 = sbr.rel (%p141) target = $region24
    $region23: #{generator_forward.16} parent=5 // pred_region
      // Predicated region
      $region25: #{generator_forward.16} parent=23 // pred_check
        %p144 = pneg %p43
      $region26: #{generator_forward.16} parent=23 // pred_check_branch
        %146 = sbr.rel (%p144) target = $region28
      $region27: #{generator_forward.16} parent=23 // pred_region
        %s147 = smul.u32 64, %s17
        %p148 = scmp.lt.s32.totalorder %s16, 3
        %s149 = scalar_select %p148, %s16, 3
        %p150 = scmp.lt.s32.totalorder %s147, 63
        %s151 = scalar_select %p150, %s147, 63
        %s152 = smul.addr %s149, 64
        %s153 = sadd.s32 %s151, %s152
        %s154 = smul.addr %s153, 8
        %s155 = scalar_lea.vmem %s0, %s154
        %s156 = smul.u32 64, %s17
      $region28: #{generator_forward.16} parent=23 // pred_fallthru
        _
    $region24: #{generator_forward.16} parent=5 // pred_fallthru
      _
    %p157 = scmp.le.s32.totalorder 1, %s9
    %p158 = scmp.lt.s32.totalorder %s9, 5
    %p159 = pnand %p157, %p158
    %p160 = pneg %p159
    // Predicated region
    $region29: #{generator_forward.16} parent=5 // pred_check
      _
    $region30: #{generator_forward.16} parent=5 // pred_check_branch
      %162 = sbr.rel (%p159) target = $region32
    $region31: #{generator_forward.16} parent=5 // pred_region
      %s163 = ssub.s32 %s9, 1
      %s164 = smul.u32 64, %s19
      %p165 = scmp.lt.s32.totalorder %s18, 3
      %s166 = scalar_select %p165, %s18, 3
      %p167 = scmp.lt.s32.totalorder %s164, 63
      %s168 = scalar_select %p167, %s164, 63
      %s169 = smul.addr %s166, 64
      %s170 = sadd.s32 %s168, %s169
      %s171 = smul.addr %s170, 8
      %s172 = scalar_lea.vmem %s0, %s171
      %p173 = pneg %p49
      %p174 = pneg %p46
      %p175 = pneg %p70
      %p176 = pneg %p67
      %p177 = pneg %p91
      %p178 = pneg %p88
      %p179 = pneg %p119
      %p180 = pneg %p116
      %s181 = smul.u32 64, %s19
      %p182 = scmp.lt.s32.totalorder %s18, 3
      %s183 = scalar_select %p182, %s18, 3
      %p184 = scmp.lt.s32.totalorder %s181, 63
      %s185 = scalar_select %p184, %s181, 63
      %s186 = smul.addr %s183, 64
      %s187 = sadd.s32 %s185, %s186
      %s188 = smul.addr %s187, 4
      %s189 = scalar_lea.vmem %s3, %s188
      %s190 = smul.u32 64, %s19
      %p191 = scmp.lt.s32.totalorder %s18, 3
      %s192 = scalar_select %p191, %s18, 3
      %p193 = scmp.lt.s32.totalorder %s190, 63
      %s194 = scalar_select %p193, %s190, 63
      %s195 = smul.addr %s192, 64
      %s196 = sadd.s32 %s194, %s195
      %s197 = smul.addr %s196, 8
      %s198 = scalar_lea.vmem %s0, %s197
      %s199 = smul.u32 64, %s19
      %s200 = smul.u32 64, %s19
      %p201 = scmp.lt.s32.totalorder %s18, 3
      %s202 = scalar_select %p201, %s18, 3
      %p203 = scmp.lt.s32.totalorder %s200, 63
      %s204 = scalar_select %p203, %s200, 63
      %s205 = smul.addr %s202, 64
      %s206 = sadd.s32 %s204, %s205
      %s207 = smul.addr %s206, 4
      %s208 = scalar_lea.vmem %s3, %s207
      %s209 = smul.u32 64, %s19
      %v210 = vld [vmem:[%s198] sm:$0xff]
      %v211 = vld [vmem:[%s198 + $0x8] sm:$0xff]
      %v212 = vld [vmem:[%s198 + $0x10] sm:$0xff]
      %v213 = vld [vmem:[%s198 + $0x18] sm:$0xff]
      %v214 = vld [vmem:[%s198 + $0x20] sm:$0xff]
      %v215 = vld [vmem:[%s198 + $0x28] sm:$0xff]
      %v216 = vld [vmem:[%s198 + $0x30] sm:$0xff]
      %v217 = vld [vmem:[%s198 + $0x38] sm:$0xff]
      %v218 = vld [vmem:[%s198 + $0x40] sm:$0xff]
      %v219 = vld [vmem:[%s198 + $0x48] sm:$0xff]
      %v220 = vld [vmem:[%s198 + $0x50] sm:$0xff]
      %v221 = vld [vmem:[%s198 + $0x58] sm:$0xff]
      %v222 = vld [vmem:[%s198 + $0x60] sm:$0xff]
      %v223 = vld [vmem:[%s198 + $0x68] sm:$0xff]
      %v224 = vld [vmem:[%s198 + $0x70] sm:$0xff]
      %v225 = vld [vmem:[%s198 + $0x78] sm:$0xff]
      %v226 = vld [vmem:[%s198 + $0x80] sm:$0xff]
      %v227 = vld [vmem:[%s198 + $0x88] sm:$0xff]
      %v228 = vld [vmem:[%s198 + $0x90] sm:$0xff]
      %v229 = vld [vmem:[%s198 + $0x98] sm:$0xff]
      %v230 = vld [vmem:[%s198 + $0xa0] sm:$0xff]
      %v231 = vld [vmem:[%s198 + $0xa8] sm:$0xff]
      %v232 = vld [vmem:[%s198 + $0xb0] sm:$0xff]
      %v233 = vld [vmem:[%s198 + $0xb8] sm:$0xff]
      %v234 = vld [vmem:[%s198 + $0xc0] sm:$0xff]
      %v235 = vld [vmem:[%s198 + $0xc8] sm:$0xff]
      %v236 = vld [vmem:[%s198 + $0xd0] sm:$0xff]
      %v237 = vld [vmem:[%s198 + $0xd8] sm:$0xff]
      %v238 = vld [vmem:[%s198 + $0xe0] sm:$0xff]
      %v239 = vld [vmem:[%s198 + $0xe8] sm:$0xff]
      %v240 = vld [vmem:[%s198 + $0xf0] sm:$0xff]
      %v241 = vld [vmem:[%s198 + $0xf8] sm:$0xff]
      %v242 = vld [vmem:[%s198 + $0x100] sm:$0xff]
      %v243 = vld [vmem:[%s198 + $0x108] sm:$0xff]
      %v244 = vld [vmem:[%s198 + $0x110] sm:$0xff]
      %v245 = vld [vmem:[%s198 + $0x118] sm:$0xff]
      %v246 = vld [vmem:[%s198 + $0x120] sm:$0xff]
      %v247 = vld [vmem:[%s198 + $0x128] sm:$0xff]
      %v248 = vld [vmem:[%s198 + $0x130] sm:$0xff]
      %v249 = vld [vmem:[%s198 + $0x138] sm:$0xff]
      %v250 = vld [vmem:[%s198 + $0x140] sm:$0xff]
      %v251 = vld [vmem:[%s198 + $0x148] sm:$0xff]
      %v252 = vld [vmem:[%s198 + $0x150] sm:$0xff]
      %v253 = vld [vmem:[%s198 + $0x158] sm:$0xff]
      %v254 = vld [vmem:[%s198 + $0x160] sm:$0xff]
      %v255 = vld [vmem:[%s198 + $0x168] sm:$0xff]
      %v256 = vld [vmem:[%s198 + $0x170] sm:$0xff]
      %v257 = vld [vmem:[%s198 + $0x178] sm:$0xff]
      %v258 = vld [vmem:[%s198 + $0x180] sm:$0xff]
      %v259 = vld [vmem:[%s198 + $0x188] sm:$0xff]
      %v260 = vld [vmem:[%s198 + $0x190] sm:$0xff]
      %v261 = vld [vmem:[%s198 + $0x198] sm:$0xff]
      %v262 = vld [vmem:[%s198 + $0x1a0] sm:$0xff]
      %v263 = vld [vmem:[%s198 + $0x1a8] sm:$0xff]
      %v264 = vld [vmem:[%s198 + $0x1b0] sm:$0xff]
      %v265 = vld [vmem:[%s198 + $0x1b8] sm:$0xff]
      %v266 = vld [vmem:[%s198 + $0x1c0] sm:$0xff]
      %v267 = vld [vmem:[%s198 + $0x1c8] sm:$0xff]
      %v268 = vld [vmem:[%s198 + $0x1d0] sm:$0xff]
      %v269 = vld [vmem:[%s198 + $0x1d8] sm:$0xff]
      %v270 = vld [vmem:[%s198 + $0x1e0] sm:$0xff]
      %v271 = vld [vmem:[%s198 + $0x1e8] sm:$0xff]
      %v272 = vld [vmem:[%s198 + $0x1f0] sm:$0xff]
      %v273 = vld [vmem:[%s198 + $0x1f8] sm:$0xff]
      %v274 = vld [vmem:[%s1] sm:$0x1]
      %v276 = vlaneseq
      %v277 = vshrl.u32 %v276, 7
      %v278 = vsub.s32 0, %v277
      %v279 = vrot.slane %v274, %v278
      %v281 = vmul.f32 %v210, %v279
      %v282 = vmul.f32 %v211, %v279
      %v283 = vmul.f32 %v212, %v279
      %v284 = vmul.f32 %v213, %v279
      %v285 = vmul.f32 %v214, %v279
      %v286 = vmul.f32 %v215, %v279
      %v287 = vmul.f32 %v216, %v279
      %v288 = vmul.f32 %v217, %v279
      %v289 = vmul.f32 %v218, %v279
      %v290 = vmul.f32 %v219, %v279
      %v291 = vmul.f32 %v220, %v279
      %v292 = vmul.f32 %v221, %v279
      %v293 = vmul.f32 %v222, %v279
      %v294 = vmul.f32 %v223, %v279
      %v295 = vmul.f32 %v224, %v279
      %v296 = vmul.f32 %v225, %v279
      %v297 = vmul.f32 %v226, %v279
      %v298 = vmul.f32 %v227, %v279
      %v299 = vmul.f32 %v228, %v279
      %v300 = vmul.f32 %v229, %v279
      %v301 = vmul.f32 %v230, %v279
      %v302 = vmul.f32 %v231, %v279
      %v303 = vmul.f32 %v232, %v279
      %v304 = vmul.f32 %v233, %v279
      %v305 = vmul.f32 %v234, %v279
      %v306 = vmul.f32 %v235, %v279
      %v307 = vmul.f32 %v236, %v279
      %v308 = vmul.f32 %v237, %v279
      %v309 = vmul.f32 %v238, %v279
      %v310 = vmul.f32 %v239, %v279
      %v311 = vmul.f32 %v240, %v279
      %v312 = vmul.f32 %v241, %v279
      %v313 = vmul.f32 %v242, %v279
      %v314 = vmul.f32 %v243, %v279
      %v315 = vmul.f32 %v244, %v279
      %v316 = vmul.f32 %v245, %v279
      %v317 = vmul.f32 %v246, %v279
      %v318 = vmul.f32 %v247, %v279
      %v319 = vmul.f32 %v248, %v279
      %v320 = vmul.f32 %v249, %v279
      %v321 = vmul.f32 %v250, %v279
      %v322 = vmul.f32 %v251, %v279
      %v323 = vmul.f32 %v252, %v279
      %v324 = vmul.f32 %v253, %v279
      %v325 = vmul.f32 %v254, %v279
      %v326 = vmul.f32 %v255, %v279
      %v327 = vmul.f32 %v256, %v279
      %v328 = vmul.f32 %v257, %v279
      %v329 = vmul.f32 %v258, %v279
      %v330 = vmul.f32 %v259, %v279
      %v331 = vmul.f32 %v260, %v279
      %v332 = vmul.f32 %v261, %v279
      %v333 = vmul.f32 %v262, %v279
      %v334 = vmul.f32 %v263, %v279
      %v335 = vmul.f32 %v264, %v279
      %v336 = vmul.f32 %v265, %v279
      %v337 = vmul.f32 %v266, %v279
      %v338 = vmul.f32 %v267, %v279
      %v339 = vmul.f32 %v268, %v279
      %v340 = vmul.f32 %v269, %v279
      %v341 = vmul.f32 %v270, %v279
      %v342 = vmul.f32 %v271, %v279
      %v343 = vmul.f32 %v272, %v279
      %v344 = vmul.f32 %v273, %v279
      %v345 = vld [vmem:[%s2] sm:$0x1]
      %v347 = vlaneseq
      %v348 = vshrl.u32 %v347, 7
      %v349 = vsub.s32 0, %v348
      %v350 = vrot.slane %v345, %v349
      %v352 = vadd.f32 %v281, %v350
      %v353 = vadd.f32 %v282, %v350
      %v354 = vadd.f32 %v283, %v350
      %v355 = vadd.f32 %v284, %v350
      %v356 = vadd.f32 %v285, %v350
      %v357 = vadd.f32 %v286, %v350
      %v358 = vadd.f32 %v287, %v350
      %v359 = vadd.f32 %v288, %v350
      %v360 = vadd.f32 %v289, %v350
      %v361 = vadd.f32 %v290, %v350
      %v362 = vadd.f32 %v291, %v350
      %v363 = vadd.f32 %v292, %v350
      %v364 = vadd.f32 %v293, %v350
      %v365 = vadd.f32 %v294, %v350
      %v366 = vadd.f32 %v295, %v350
      %v367 = vadd.f32 %v296, %v350
      %v368 = vadd.f32 %v297, %v350
      %v369 = vadd.f32 %v298, %v350
      %v370 = vadd.f32 %v299, %v350
      %v371 = vadd.f32 %v300, %v350
      %v372 = vadd.f32 %v301, %v350
      %v373 = vadd.f32 %v302, %v350
      %v374 = vadd.f32 %v303, %v350
      %v375 = vadd.f32 %v304, %v350
      %v376 = vadd.f32 %v305, %v350
      %v377 = vadd.f32 %v306, %v350
      %v378 = vadd.f32 %v307, %v350
      %v379 = vadd.f32 %v308, %v350
      %v380 = vadd.f32 %v309, %v350
      %v381 = vadd.f32 %v310, %v350
      %v382 = vadd.f32 %v311, %v350
      %v383 = vadd.f32 %v312, %v350
      %v384 = vadd.f32 %v313, %v350
      %v385 = vadd.f32 %v314, %v350
      %v386 = vadd.f32 %v315, %v350
      %v387 = vadd.f32 %v316, %v350
      %v388 = vadd.f32 %v317, %v350
      %v389 = vadd.f32 %v318, %v350
      %v390 = vadd.f32 %v319, %v350
      %v391 = vadd.f32 %v320, %v350
      %v392 = vadd.f32 %v321, %v350
      %v393 = vadd.f32 %v322, %v350
      %v394 = vadd.f32 %v323, %v350
      %v395 = vadd.f32 %v324, %v350
      %v396 = vadd.f32 %v325, %v350
      %v397 = vadd.f32 %v326, %v350
      %v398 = vadd.f32 %v327, %v350
      %v399 = vadd.f32 %v328, %v350
      %v400 = vadd.f32 %v329, %v350
      %v401 = vadd.f32 %v330, %v350
      %v402 = vadd.f32 %v331, %v350
      %v403 = vadd.f32 %v332, %v350
      %v404 = vadd.f32 %v333, %v350
      %v405 = vadd.f32 %v334, %v350
      %v406 = vadd.f32 %v335, %v350
      %v407 = vadd.f32 %v336, %v350
      %v408 = vadd.f32 %v337, %v350
      %v409 = vadd.f32 %v338, %v350
      %v410 = vadd.f32 %v339, %v350
      %v411 = vadd.f32 %v340, %v350
      %v412 = vadd.f32 %v341, %v350
      %v413 = vadd.f32 %v342, %v350
      %v414 = vadd.f32 %v343, %v350
      %v415 = vadd.f32 %v344, %v350
      %v416 = vmax.f32 %v352, 0.0
      %v417 = vmax.f32 %v353, 0.0
      %v418 = vmax.f32 %v354, 0.0
      %v419 = vmax.f32 %v355, 0.0
      %v420 = vmax.f32 %v356, 0.0
      %v421 = vmax.f32 %v357, 0.0
      %v422 = vmax.f32 %v358, 0.0
      %v423 = vmax.f32 %v359, 0.0
      %v424 = vmax.f32 %v360, 0.0
      %v425 = vmax.f32 %v361, 0.0
      %v426 = vmax.f32 %v362, 0.0
      %v427 = vmax.f32 %v363, 0.0
      %v428 = vmax.f32 %v364, 0.0
      %v429 = vmax.f32 %v365, 0.0
      %v430 = vmax.f32 %v366, 0.0
      %v431 = vmax.f32 %v367, 0.0
      %v432 = vmax.f32 %v368, 0.0
      %v433 = vmax.f32 %v369, 0.0
      %v434 = vmax.f32 %v370, 0.0
      %v435 = vmax.f32 %v371, 0.0
      %v436 = vmax.f32 %v372, 0.0
      %v437 = vmax.f32 %v373, 0.0
      %v438 = vmax.f32 %v374, 0.0
      %v439 = vmax.f32 %v375, 0.0
      %v440 = vmax.f32 %v376, 0.0
      %v441 = vmax.f32 %v377, 0.0
      %v442 = vmax.f32 %v378, 0.0
      %v443 = vmax.f32 %v379, 0.0
      %v444 = vmax.f32 %v380, 0.0
      %v445 = vmax.f32 %v381, 0.0
      %v446 = vmax.f32 %v382, 0.0
      %v447 = vmax.f32 %v383, 0.0
      %v448 = vmax.f32 %v384, 0.0
      %v449 = vmax.f32 %v385, 0.0
      %v450 = vmax.f32 %v386, 0.0
      %v451 = vmax.f32 %v387, 0.0
      %v452 = vmax.f32 %v388, 0.0
      %v453 = vmax.f32 %v389, 0.0
      %v454 = vmax.f32 %v390, 0.0
      %v455 = vmax.f32 %v391, 0.0
      %v456 = vmax.f32 %v392, 0.0
      %v457 = vmax.f32 %v393, 0.0
      %v458 = vmax.f32 %v394, 0.0
      %v459 = vmax.f32 %v395, 0.0
      %v460 = vmax.f32 %v396, 0.0
      %v461 = vmax.f32 %v397, 0.0
      %v462 = vmax.f32 %v398, 0.0
      %v463 = vmax.f32 %v399, 0.0
      %v464 = vmax.f32 %v400, 0.0
      %v465 = vmax.f32 %v401, 0.0
      %v466 = vmax.f32 %v402, 0.0
      %v467 = vmax.f32 %v403, 0.0
      %v468 = vmax.f32 %v404, 0.0
      %v469 = vmax.f32 %v405, 0.0
      %v470 = vmax.f32 %v406, 0.0
      %v471 = vmax.f32 %v407, 0.0
      %v472 = vmax.f32 %v408, 0.0
      %v473 = vmax.f32 %v409, 0.0
      %v474 = vmax.f32 %v410, 0.0
      %v475 = vmax.f32 %v411, 0.0
      %v476 = vmax.f32 %v412, 0.0
      %v477 = vmax.f32 %v413, 0.0
      %v478 = vmax.f32 %v414, 0.0
      %v479 = vmax.f32 %v415, 0.0
      %v480 = vpack.c.bf16 %v417, %v416
      %v481 = vpack.c.bf16 %v419, %v418
      %v482 = vpack.c.bf16 %v421, %v420
      %v483 = vpack.c.bf16 %v423, %v422
      %v484 = vpack.c.bf16 %v425, %v424
      %v485 = vpack.c.bf16 %v427, %v426
      %v486 = vpack.c.bf16 %v429, %v428
      %v487 = vpack.c.bf16 %v431, %v430
      %v488 = vpack.c.bf16 %v433, %v432
      %v489 = vpack.c.bf16 %v435, %v434
      %v490 = vpack.c.bf16 %v437, %v436
      %v491 = vpack.c.bf16 %v439, %v438
      %v492 = vpack.c.bf16 %v441, %v440
      %v493 = vpack.c.bf16 %v443, %v442
      %v494 = vpack.c.bf16 %v445, %v444
      %v495 = vpack.c.bf16 %v447, %v446
      %v496 = vpack.c.bf16 %v449, %v448
      %v497 = vpack.c.bf16 %v451, %v450
      %v498 = vpack.c.bf16 %v453, %v452
      %v499 = vpack.c.bf16 %v455, %v454
      %v500 = vpack.c.bf16 %v457, %v456
      %v501 = vpack.c.bf16 %v459, %v458
      %v502 = vpack.c.bf16 %v461, %v460
      %v503 = vpack.c.bf16 %v463, %v462
      %v504 = vpack.c.bf16 %v465, %v464
      %v505 = vpack.c.bf16 %v467, %v466
      %v506 = vpack.c.bf16 %v469, %v468
      %v507 = vpack.c.bf16 %v471, %v470
      %v508 = vpack.c.bf16 %v473, %v472
      %v509 = vpack.c.bf16 %v475, %v474
      %v510 = vpack.c.bf16 %v477, %v476
      %v511 = vpack.c.bf16 %v479, %v478
      %v544 = vunpack.c.l.b16 %v480
      %v545 = vunpack.c.h.b16 %v480
      %v546 = vunpack.c.l.b16 %v481
      %v547 = vunpack.c.h.b16 %v481
      %v548 = vunpack.c.l.b16 %v482
      %v549 = vunpack.c.h.b16 %v482
      %v550 = vunpack.c.l.b16 %v483
      %v551 = vunpack.c.h.b16 %v483
      %v552 = vunpack.c.l.b16 %v484
      %v553 = vunpack.c.h.b16 %v484
      %v554 = vunpack.c.l.b16 %v485
      %v555 = vunpack.c.h.b16 %v485
      %v556 = vunpack.c.l.b16 %v486
      %v557 = vunpack.c.h.b16 %v486
      %v558 = vunpack.c.l.b16 %v487
      %v559 = vunpack.c.h.b16 %v487
      %v560 = vunpack.c.l.b16 %v488
      %v561 = vunpack.c.h.b16 %v488
      %v562 = vunpack.c.l.b16 %v489
      %v563 = vunpack.c.h.b16 %v489
      %v564 = vunpack.c.l.b16 %v490
      %v565 = vunpack.c.h.b16 %v490
      %v566 = vunpack.c.l.b16 %v491
      %v567 = vunpack.c.h.b16 %v491
      %v568 = vunpack.c.l.b16 %v492
      %v569 = vunpack.c.h.b16 %v492
      %v570 = vunpack.c.l.b16 %v493
      %v571 = vunpack.c.h.b16 %v493
      %v572 = vunpack.c.l.b16 %v494
      %v573 = vunpack.c.h.b16 %v494
      %v574 = vunpack.c.l.b16 %v495
      %v575 = vunpack.c.h.b16 %v495
      %v576 = vunpack.c.l.b16 %v496
      %v577 = vunpack.c.h.b16 %v496
      %v578 = vunpack.c.l.b16 %v497
      %v579 = vunpack.c.h.b16 %v497
      %v580 = vunpack.c.l.b16 %v498
      %v581 = vunpack.c.h.b16 %v498
      %v582 = vunpack.c.l.b16 %v499
      %v583 = vunpack.c.h.b16 %v499
      %v584 = vunpack.c.l.b16 %v500
      %v585 = vunpack.c.h.b16 %v500
      %v586 = vunpack.c.l.b16 %v501
      %v587 = vunpack.c.h.b16 %v501
      %v588 = vunpack.c.l.b16 %v502
      %v589 = vunpack.c.h.b16 %v502
      %v590 = vunpack.c.l.b16 %v503
      %v591 = vunpack.c.h.b16 %v503
      %v592 = vunpack.c.l.b16 %v504
      %v593 = vunpack.c.h.b16 %v504
      %v594 = vunpack.c.l.b16 %v505
      %v595 = vunpack.c.h.b16 %v505
      %v596 = vunpack.c.l.b16 %v506
      %v597 = vunpack.c.h.b16 %v506
      %v598 = vunpack.c.l.b16 %v507
      %v599 = vunpack.c.h.b16 %v507
      %v600 = vunpack.c.l.b16 %v508
      %v601 = vunpack.c.h.b16 %v508
      %v602 = vunpack.c.l.b16 %v509
      %v603 = vunpack.c.h.b16 %v509
      %v604 = vunpack.c.l.b16 %v510
      %v605 = vunpack.c.h.b16 %v510
      %v606 = vunpack.c.l.b16 %v511
      %v607 = vunpack.c.h.b16 %v511
      %v608 = vpack.c.b16 %v544, %v544
      %v609 = vpack.c.b16 %v545, %v545
      %v610 = vpack.c.b16 %v546, %v546
      %v611 = vpack.c.b16 %v547, %v547
      %v612 = vpack.c.b16 %v548, %v548
      %v613 = vpack.c.b16 %v549, %v549
      %v614 = vpack.c.b16 %v550, %v550
      %v615 = vpack.c.b16 %v551, %v551
      %v616 = vpack.c.b16 %v552, %v552
      %v617 = vpack.c.b16 %v553, %v553
      %v618 = vpack.c.b16 %v554, %v554
      %v619 = vpack.c.b16 %v555, %v555
      %v620 = vpack.c.b16 %v556, %v556
      %v621 = vpack.c.b16 %v557, %v557
      %v622 = vpack.c.b16 %v558, %v558
      %v623 = vpack.c.b16 %v559, %v559
      %v624 = vpack.c.b16 %v560, %v560
      %v625 = vpack.c.b16 %v561, %v561
      %v626 = vpack.c.b16 %v562, %v562
      %v627 = vpack.c.b16 %v563, %v563
      %v628 = vpack.c.b16 %v564, %v564
      %v629 = vpack.c.b16 %v565, %v565
      %v630 = vpack.c.b16 %v566, %v566
      %v631 = vpack.c.b16 %v567, %v567
      %v632 = vpack.c.b16 %v568, %v568
      %v633 = vpack.c.b16 %v569, %v569
      %v634 = vpack.c.b16 %v570, %v570
      %v635 = vpack.c.b16 %v571, %v571
      %v636 = vpack.c.b16 %v572, %v572
      %v637 = vpack.c.b16 %v573, %v573
      %v638 = vpack.c.b16 %v574, %v574
      %v639 = vpack.c.b16 %v575, %v575
      %v640 = vpack.c.b16 %v576, %v576
      %v641 = vpack.c.b16 %v577, %v577
      %v642 = vpack.c.b16 %v578, %v578
      %v643 = vpack.c.b16 %v579, %v579
      %v644 = vpack.c.b16 %v580, %v580
      %v645 = vpack.c.b16 %v581, %v581
      %v646 = vpack.c.b16 %v582, %v582
      %v647 = vpack.c.b16 %v583, %v583
      %v648 = vpack.c.b16 %v584, %v584
      %v649 = vpack.c.b16 %v585, %v585
      %v650 = vpack.c.b16 %v586, %v586
      %v651 = vpack.c.b16 %v587, %v587
      %v652 = vpack.c.b16 %v588, %v588
      %v653 = vpack.c.b16 %v589, %v589
      %v654 = vpack.c.b16 %v590, %v590
      %v655 = vpack.c.b16 %v591, %v591
      %v656 = vpack.c.b16 %v592, %v592
      %v657 = vpack.c.b16 %v593, %v593
      %v658 = vpack.c.b16 %v594, %v594
      %v659 = vpack.c.b16 %v595, %v595
      %v660 = vpack.c.b16 %v596, %v596
      %v661 = vpack.c.b16 %v597, %v597
      %v662 = vpack.c.b16 %v598, %v598
      %v663 = vpack.c.b16 %v599, %v599
      %v664 = vpack.c.b16 %v600, %v600
      %v665 = vpack.c.b16 %v601, %v601
      %v666 = vpack.c.b16 %v602, %v602
      %v667 = vpack.c.b16 %v603, %v603
      %v668 = vpack.c.b16 %v604, %v604
      %v669 = vpack.c.b16 %v605, %v605
      %v670 = vpack.c.b16 %v606, %v606
      %v671 = vpack.c.b16 %v607, %v607
      %736 = vst [vmem:[%s208] sm:$0xf] %v608
      %737 = vst [vmem:[%s208 + $0x4] sm:$0xf] %v609
      %738 = vst [vmem:[%s208 + $0x8] sm:$0xf] %v610
      %739 = vst [vmem:[%s208 + $0xc] sm:$0xf] %v611
      %740 = vst [vmem:[%s208 + $0x10] sm:$0xf] %v612
      %741 = vst [vmem:[%s208 + $0x14] sm:$0xf] %v613
      %742 = vst [vmem:[%s208 + $0x18] sm:$0xf] %v614
      %743 = vst [vmem:[%s208 + $0x1c] sm:$0xf] %v615
      %744 = vst [vmem:[%s208 + $0x20] sm:$0xf] %v616
      %745 = vst [vmem:[%s208 + $0x24] sm:$0xf] %v617
      %746 = vst [vmem:[%s208 + $0x28] sm:$0xf] %v618
      %747 = vst [vmem:[%s208 + $0x2c] sm:$0xf] %v619
      %748 = vst [vmem:[%s208 + $0x30] sm:$0xf] %v620
      %749 = vst [vmem:[%s208 + $0x34] sm:$0xf] %v621
      %750 = vst [vmem:[%s208 + $0x38] sm:$0xf] %v622
      %751 = vst [vmem:[%s208 + $0x3c] sm:$0xf] %v623
      %752 = vst [vmem:[%s208 + $0x40] sm:$0xf] %v624
      %753 = vst [vmem:[%s208 + $0x44] sm:$0xf] %v625
      %754 = vst [vmem:[%s208 + $0x48] sm:$0xf] %v626
      %755 = vst [vmem:[%s208 + $0x4c] sm:$0xf] %v627
      %756 = vst [vmem:[%s208 + $0x50] sm:$0xf] %v628
      %757 = vst [vmem:[%s208 + $0x54] sm:$0xf] %v629
      %758 = vst [vmem:[%s208 + $0x58] sm:$0xf] %v630
      %759 = vst [vmem:[%s208 + $0x5c] sm:$0xf] %v631
      %760 = vst [vmem:[%s208 + $0x60] sm:$0xf] %v632
      %761 = vst [vmem:[%s208 + $0x64] sm:$0xf] %v633
      %762 = vst [vmem:[%s208 + $0x68] sm:$0xf] %v634
      %763 = vst [vmem:[%s208 + $0x6c] sm:$0xf] %v635
      %764 = vst [vmem:[%s208 + $0x70] sm:$0xf] %v636
      %765 = vst [vmem:[%s208 + $0x74] sm:$0xf] %v637
      %766 = vst [vmem:[%s208 + $0x78] sm:$0xf] %v638
      %767 = vst [vmem:[%s208 + $0x7c] sm:$0xf] %v639
      %768 = vst [vmem:[%s208 + $0x80] sm:$0xf] %v640
      %769 = vst [vmem:[%s208 + $0x84] sm:$0xf] %v641
      %770 = vst [vmem:[%s208 + $0x88] sm:$0xf] %v642
      %771 = vst [vmem:[%s208 + $0x8c] sm:$0xf] %v643
      %772 = vst [vmem:[%s208 + $0x90] sm:$0xf] %v644
      %773 = vst [vmem:[%s208 + $0x94] sm:$0xf] %v645
      %774 = vst [vmem:[%s208 + $0x98] sm:$0xf] %v646
      %775 = vst [vmem:[%s208 + $0x9c] sm:$0xf] %v647
      %776 = vst [vmem:[%s208 + $0xa0] sm:$0xf] %v648
      %777 = vst [vmem:[%s208 + $0xa4] sm:$0xf] %v649
      %778 = vst [vmem:[%s208 + $0xa8] sm:$0xf] %v650
      %779 = vst [vmem:[%s208 + $0xac] sm:$0xf] %v651
      %780 = vst [vmem:[%s208 + $0xb0] sm:$0xf] %v652
      %781 = vst [vmem:[%s208 + $0xb4] sm:$0xf] %v653
      %782 = vst [vmem:[%s208 + $0xb8] sm:$0xf] %v654
      %783 = vst [vmem:[%s208 + $0xbc] sm:$0xf] %v655
      %784 = vst [vmem:[%s208 + $0xc0] sm:$0xf] %v656
      %785 = vst [vmem:[%s208 + $0xc4] sm:$0xf] %v657
      %786 = vst [vmem:[%s208 + $0xc8] sm:$0xf] %v658
      %787 = vst [vmem:[%s208 + $0xcc] sm:$0xf] %v659
      %788 = vst [vmem:[%s208 + $0xd0] sm:$0xf] %v660
      %789 = vst [vmem:[%s208 + $0xd4] sm:$0xf] %v661
      %790 = vst [vmem:[%s208 + $0xd8] sm:$0xf] %v662
      %791 = vst [vmem:[%s208 + $0xdc] sm:$0xf] %v663
      %792 = vst [vmem:[%s208 + $0xe0] sm:$0xf] %v664
      %793 = vst [vmem:[%s208 + $0xe4] sm:$0xf] %v665
      %794 = vst [vmem:[%s208 + $0xe8] sm:$0xf] %v666
      %795 = vst [vmem:[%s208 + $0xec] sm:$0xf] %v667
      %796 = vst [vmem:[%s208 + $0xf0] sm:$0xf] %v668
      %797 = vst [vmem:[%s208 + $0xf4] sm:$0xf] %v669
      %798 = vst [vmem:[%s208 + $0xf8] sm:$0xf] %v670
      %799 = vst [vmem:[%s208 + $0xfc] sm:$0xf] %v671
      %s800 = smul.u32 64, %s19
      %p801 = scmp.lt.s32.totalorder %s18, 3
      %s802 = scalar_select %p801, %s18, 3
      %p803 = scmp.lt.s32.totalorder %s800, 63
      %s804 = scalar_select %p803, %s800, 63
      %s805 = smul.addr %s802, 64
      %s806 = sadd.s32 %s804, %s805
      %s807 = smul.addr %s806, 4
      %s808 = scalar_lea.vmem %s3, %s807
      // Predicated region
      $region33: #{generator_forward.16} parent=31 // pred_check
        %p809 = pneg %p116
      $region34: #{generator_forward.16} parent=31 // pred_check_branch
        %811 = sbr.rel (%p809) target = $region36
      $region35: #{generator_forward.16} parent=31 // pred_region
        %s812 = smul.u32 64, %s19
      $region36: #{generator_forward.16} parent=31 // pred_fallthru
        _
    $region32: #{generator_forward.16} parent=5 // pred_fallthru
      _
    %p813 = scmp.le.s32.totalorder 2, %s9
    // Predicated region
    $region37: #{generator_forward.16} parent=5 // pred_check
      %p814 = pneg %p813
    $region38: #{generator_forward.16} parent=5 // pred_check_branch
      %816 = sbr.rel (%p814) target = $region40
    $region39: #{generator_forward.16} parent=5 // pred_region
      %s817 = ssub.s32 %s9, 2
      // Predicated region
      $region41: #{generator_forward.16} parent=39 // pred_check
        %p818 = pneg %p122
      $region42: #{generator_forward.16} parent=39 // pred_check_branch
        %820 = sbr.rel (%p818) target = $region44
      $region43: #{generator_forward.16} parent=39 // pred_region
        %s821 = smul.u32 64, %s21
        %p822 = scmp.lt.s32.totalorder %s20, 3
        %s823 = scalar_select %p822, %s20, 3
        %p824 = scmp.lt.s32.totalorder %s821, 63
        %s825 = scalar_select %p824, %s821, 63
        %s826 = smul.addr %s823, 64
        %s827 = sadd.s32 %s825, %s826
        %s828 = smul.addr %s827, 4
        %s829 = scalar_lea.vmem %s3, %s828
      $region44: #{generator_forward.16} parent=39 // pred_fallthru
        _
    $region40: #{generator_forward.16} parent=5 // pred_fallthru
      _
  $region6: #{generator_forward.16} parent=0 // loop_footer
    %s13 = sadd.s32 1, %s9
  $region7: #{generator_forward.16} parent=0 // loop_footer_branch
    %8 = sbr.rel target = $region3
  $region8: #{generator_forward.16} parent=0 // loop_exit
    _

// kernel: generator_forward.15
$region0: #{generator_forward.15}
  #allocation0 [shape = 'u32[]', space=smem, size = 0x4, offset = 0x4, fixed_abs, tag = 'smem constant byte address 0x4 - core index']
  #allocation1 [shape = 'u32[144,128]{1,0:T(1,128)}', space=vmem, size = 0x12000, scoped, tag = 'internal scratch']
  %s0 = inlined_call_operand.vmem [shape: bf16[4,512,512], index: 0, kind: input, shape index: {}]
  %s1 = inlined_call_operand.vmem [shape: bf16[4,512,128], index: 1, kind: input, shape index: {}]
  %s2 = inlined_call_operand.vmem [shape: f32[4,512,128], index: 2, kind: output, shape index: {0}]
  %s3 = inlined_call_operand.vmem [shape: f32[4,1,2,128], index: 3, kind: output, shape index: {1}]
  %4 = xla_tuple %s2, %s3
  %s5 = sld [smem:[#allocation0]]
  $region49: #{generator_forward.15} parent=0
    _
  %s7 = ssub.s32 1, %s5
  %s8 = scalar_select 0, %s7, %s5
  loop: start=0, step=1, limit=6
  $region2: #{generator_forward.15} parent=0 // loop_pre_header
    _
  $region3: #{generator_forward.15} parent=0 // loop_header
    %s10 = sphi 0, %s14
    %p11 = scmp.ge.s32.totalorder %s10, 6
    %s17 = sphi 0, %s29
    %s18 = sphi 0, %s25
    %s19 = sphi 0, %s17
    %s20 = sphi 0, %s18
    %s21 = sphi 0, %s19
    %s22 = sphi 0, %s20
    %s34 = sphi 0, %s36
    %s37 = sphi 0, %s34
    %s38 = sphi 0, %s37
    %s54 = sphi 0, %s38
    %s60 = sphi 0, %s62
    %s63 = sphi 0, %s60
    %s64 = sphi 0, %s63
    %s80 = sphi 0, %s64
    %s88 = sphi 0, %s90
    %s91 = sphi 0, %s88
    %s92 = sphi 0, %s91
    %s108 = sphi 0, %s92
    %s116 = sphi 0, %s118
    %s119 = sphi 0, %s116
    %s120 = sphi 0, %s119
    %s136 = sphi 0, %s120
  $region4: #{generator_forward.15} parent=0 // loop_header_branch
    %13 = sbr.rel (%p11) target = $region8
  $region5: #{generator_forward.15} parent=0 // loop_body
    %s15 = ssub.s32 %s10, 1
    %s16 = ssub.s32 %s10, 2
    %s23 = sadd.s32 1, %s18
    %p24 = scmp.ge.s32.totalorder %s23, 1
    %s25 = scalar_select %p24, 0, %s23
    %s26 = sadd.s32 1, %s17
    %s27 = scalar_select %p24, %s26, %s17
    %p28 = scmp.ge.s32.totalorder %s27, 4
    %s29 = scalar_select %p28, 0, %s27
    %s30 = ssub.s32 %s17, %s29
    %s31 = ssub.s32 %s18, %s25
    %s32 = sor.u32 %s30, %s31
    %p33 = scmp.eq.s32.totalorder %s32, 0
    %s35 = sadd.s32 %s34, 1
    %s36 = scalar_select %p33, %s34, %s35
    %p39 = pneg %p33
    %p40 = scmp.eq.s32.totalorder %s10, 3
    %p41 = por %p39, %p40
    %p42 = scmp.ne.s32.totalorder %s34, %s37
    %p43 = scmp.eq.s32.totalorder %s10, 0
    %p44 = por %p42, %p43
    %p45 = scmp.ne.s32.totalorder %s34, %s37
    %p46 = scmp.eq.s32.totalorder %s15, 3
    %p47 = por %p45, %p46
    %p48 = scmp.ne.s32.totalorder %s37, %s38
    %p49 = scmp.eq.s32.totalorder %s15, 0
    %p50 = por %p48, %p49
    %p51 = scmp.ne.s32.totalorder %s37, %s38
    %p52 = scmp.eq.s32.totalorder %s16, 3
    %p53 = por %p51, %p52
    %p55 = scmp.ne.s32.totalorder %s38, %s54
    %p56 = scmp.eq.s32.totalorder %s16, 0
    %p57 = por %p55, %p56
    %s58 = ssub.s32 %s17, %s29
    %p59 = scmp.eq.s32.totalorder %s58, 0
    %s61 = sadd.s32 %s60, 1
    %s62 = scalar_select %p59, %s60, %s61
    %p65 = pneg %p59
    %p66 = scmp.eq.s32.totalorder %s10, 3
    %p67 = por %p65, %p66
    %p68 = scmp.ne.s32.totalorder %s60, %s63
    %p69 = scmp.eq.s32.totalorder %s10, 0
    %p70 = por %p68, %p69
    %p71 = scmp.ne.s32.totalorder %s60, %s63
    %p72 = scmp.eq.s32.totalorder %s15, 3
    %p73 = por %p71, %p72
    %p74 = scmp.ne.s32.totalorder %s63, %s64
    %p75 = scmp.eq.s32.totalorder %s15, 0
    %p76 = por %p74, %p75
    %p77 = scmp.ne.s32.totalorder %s63, %s64
    %p78 = scmp.eq.s32.totalorder %s16, 3
    %p79 = por %p77, %p78
    %p81 = scmp.ne.s32.totalorder %s64, %s80
    %p82 = scmp.eq.s32.totalorder %s16, 0
    %p83 = por %p81, %p82
    %s84 = ssub.s32 %s17, %s29
    %s85 = ssub.s32 %s18, %s25
    %s86 = sor.u32 %s84, %s85
    %p87 = scmp.eq.s32.totalorder %s86, 0
    %s89 = sadd.s32 %s88, 1
    %s90 = scalar_select %p87, %s88, %s89
    %p93 = pneg %p87
    %p94 = scmp.eq.s32.totalorder %s10, 3
    %p95 = por %p93, %p94
    %p96 = scmp.ne.s32.totalorder %s88, %s91
    %p97 = scmp.eq.s32.totalorder %s10, 0
    %p98 = por %p96, %p97
    %p99 = scmp.ne.s32.totalorder %s88, %s91
    %p100 = scmp.eq.s32.totalorder %s15, 3
    %p101 = por %p99, %p100
    %p102 = scmp.ne.s32.totalorder %s91, %s92
    %p103 = scmp.eq.s32.totalorder %s15, 0
    %p104 = por %p102, %p103
    %p105 = scmp.ne.s32.totalorder %s91, %s92
    %p106 = scmp.eq.s32.totalorder %s16, 3
    %p107 = por %p105, %p106
    %p109 = scmp.ne.s32.totalorder %s92, %s108
    %p110 = scmp.eq.s32.totalorder %s16, 0
    %p111 = por %p109, %p110
    %s112 = ssub.s32 %s17, %s29
    %s113 = ssub.s32 %s18, %s25
    %s114 = sor.u32 %s112, %s113
    %p115 = scmp.eq.s32.totalorder %s114, 0
    %s117 = sadd.s32 %s116, 1
    %s118 = scalar_select %p115, %s116, %s117
    %p121 = pneg %p115
    %p122 = scmp.eq.s32.totalorder %s10, 3
    %p123 = por %p121, %p122
    %p124 = scmp.ne.s32.totalorder %s116, %s119
    %p125 = scmp.eq.s32.totalorder %s10, 0
    %p126 = por %p124, %p125
    %p127 = scmp.ne.s32.totalorder %s116, %s119
    %p128 = scmp.eq.s32.totalorder %s15, 3
    %p129 = por %p127, %p128
    %p130 = scmp.ne.s32.totalorder %s119, %s120
    %p131 = scmp.eq.s32.totalorder %s15, 0
    %p132 = por %p130, %p131
    %p133 = scmp.ne.s32.totalorder %s119, %s120
    %p134 = scmp.eq.s32.totalorder %s16, 3
    %p135 = por %p133, %p134
    %p137 = scmp.ne.s32.totalorder %s120, %s136
    %p138 = scmp.eq.s32.totalorder %s16, 0
    %p139 = por %p137, %p138
    %p140 = scmp.le.s32.totalorder 1, %s10
    %p141 = scmp.lt.s32.totalorder %s10, 5
    %p142 = pnand %p140, %p141
    %p143 = pneg %p142
    // Predicated region
    $region9: #{generator_forward.15} parent=5 // pred_check
      _
    $region10: #{generator_forward.15} parent=5 // pred_check_branch
      %145 = sbr.rel (%p142) target = $region12
    $region11: #{generator_forward.15} parent=5 // pred_region
      %s146 = ssub.s32 %s10, 1
    $region12: #{generator_forward.15} parent=5 // pred_fallthru
      _
    %p147 = scmp.lt.s32.totalorder %s10, 4
    // Predicated region
    $region13: #{generator_forward.15} parent=5 // pred_check
      %p148 = pneg %p147
    $region14: #{generator_forward.15} parent=5 // pred_check_branch
      %150 = sbr.rel (%p148) target = $region16
    $region15: #{generator_forward.15} parent=5 // pred_region
      // Predicated region
      $region17: #{generator_forward.15} parent=15 // pred_check
        %p151 = pneg %p44
      $region18: #{generator_forward.15} parent=15 // pred_check_branch
        %153 = sbr.rel (%p151) target = $region20
      $region19: #{generator_forward.15} parent=15 // pred_region
        %s154 = smul.u32 64, %s18
        %p155 = scmp.lt.s32.totalorder %s17, 3
        %s156 = scalar_select %p155, %s17, 3
        %p157 = scmp.lt.s32.totalorder %s154, 63
        %s158 = scalar_select %p157, %s154, 63
        %s159 = smul.addr %s158, 4
        %s160 = smul.addr %s156, 256
        %s161 = sadd.s32 %s159, %s160
        %s162 = smul.addr %s161, 4
        %s163 = scalar_lea.vmem %s0, %s162
        %s164 = smul.u32 64, %s18
      $region20: #{generator_forward.15} parent=15 // pred_fallthru
        _
      // Predicated region
      $region21: #{generator_forward.15} parent=15 // pred_check
        %p165 = pneg %p70
      $region22: #{generator_forward.15} parent=15 // pred_check_branch
        %167 = sbr.rel (%p165) target = $region24
      $region23: #{generator_forward.15} parent=15 // pred_region
        %p168 = scmp.lt.s32.totalorder %s17, 3
        %s169 = scalar_select %p168, %s17, 3
        %s170 = smul.addr %s169, 64
        %s171 = smul.addr %s170, 4
        %s172 = scalar_lea.vmem %s1, %s171
      $region24: #{generator_forward.15} parent=15 // pred_fallthru
        _
    $region16: #{generator_forward.15} parent=5 // pred_fallthru
      _
    %p173 = scmp.le.s32.totalorder 1, %s10
    %p174 = scmp.lt.s32.totalorder %s10, 5
    %p175 = pnand %p173, %p174
    %p176 = pneg %p175
    // Predicated region
    $region25: #{generator_forward.15} parent=5 // pred_check
      _
    $region26: #{generator_forward.15} parent=5 // pred_check_branch
      %178 = sbr.rel (%p175) target = $region28
    $region27: #{generator_forward.15} parent=5 // pred_region
      %s179 = ssub.s32 %s10, 1
      %s180 = smul.u32 64, %s20
      %p181 = scmp.lt.s32.totalorder %s19, 3
      %s182 = scalar_select %p181, %s19, 3
      %p183 = scmp.lt.s32.totalorder %s180, 63
      %s184 = scalar_select %p183, %s180, 63
      %s185 = smul.addr %s184, 4
      %s186 = smul.addr %s182, 256
      %s187 = sadd.s32 %s185, %s186
      %s188 = smul.addr %s187, 4
      %s189 = scalar_lea.vmem %s0, %s188
      %p190 = pneg %p50
      %p191 = pneg %p47
      %p192 = scmp.lt.s32.totalorder %s19, 3
      %s193 = scalar_select %p192, %s19, 3
      %s194 = smul.addr %s193, 64
      %s195 = smul.addr %s194, 4
      %s196 = scalar_lea.vmem %s1, %s195
      %p197 = pneg %p76
      %p198 = pneg %p73
      %p199 = pneg %p104
      %p200 = pneg %p101
      %s201 = smul.u32 64, %s20
      %p202 = scmp.lt.s32.totalorder %s19, 3
      %s203 = scalar_select %p202, %s19, 3
      %p204 = scmp.lt.s32.totalorder %s201, 63
      %s205 = scalar_select %p204, %s201, 63
      %s206 = smul.addr %s203, 64
      %s207 = sadd.s32 %s205, %s206
      %s208 = smul.addr %s207, 8
      %s209 = scalar_lea.vmem %s2, %s208
      %p210 = pneg %p132
      %p211 = pneg %p129
      %p212 = scmp.lt.s32.totalorder %s19, 3
      %s213 = scalar_select %p212, %s19, 3
      %p214 = scmp.lt.s32.totalorder %s20, 0
      %s215 = scalar_select %p214, %s20, 0
      %s216 = sadd.s32 %s215, %s213
      %s217 = smul.addr %s216, 2
      %s218 = scalar_lea.vmem %s3, %s217
      %s219 = smul.u32 64, %s20
      %p220 = scmp.lt.s32.totalorder %s19, 3
      %s221 = scalar_select %p220, %s19, 3
      %p222 = scmp.lt.s32.totalorder %s219, 63
      %s223 = scalar_select %p222, %s219, 63
      %s224 = smul.addr %s223, 4
      %s225 = smul.addr %s221, 256
      %s226 = sadd.s32 %s224, %s225
      %s227 = smul.addr %s226, 4
      %s228 = scalar_lea.vmem %s0, %s227
      %s229 = smul.u32 64, %s20
      %p230 = scmp.lt.s32.totalorder %s19, 3
      %s231 = scalar_select %p230, %s19, 3
      %s232 = smul.addr %s231, 64
      %s233 = smul.addr %s232, 4
      %s234 = scalar_lea.vmem %s1, %s233
      %s235 = smul.u32 64, %s20
      %p236 = scmp.lt.s32.totalorder %s19, 3
      %s237 = scalar_select %p236, %s19, 3
      %p238 = scmp.lt.s32.totalorder %s235, 63
      %s239 = scalar_select %p238, %s235, 63
      %s240 = smul.addr %s237, 64
      %s241 = sadd.s32 %s239, %s240
      %s242 = smul.addr %s241, 8
      %s243 = scalar_lea.vmem %s2, %s242
      %s244 = smul.u32 64, %s20
      %p245 = scmp.lt.s32.totalorder %s19, 3
      %s246 = scalar_select %p245, %s19, 3
      %p247 = scmp.lt.s32.totalorder %s20, 0
      %s248 = scalar_select %p247, %s20, 0
      %s249 = sadd.s32 %s248, %s246
      %s250 = smul.addr %s249, 2
      %s251 = scalar_lea.vmem %s3, %s250
      %v253 = vld [vmem:[%s228] sm:$0xff]
      %v254 = vld [vmem:[%s228 + $0x8] sm:$0xff]
      %v255 = vld [vmem:[%s228 + $0x10] sm:$0xff]
      %v256 = vld [vmem:[%s228 + $0x18] sm:$0xff]
      %v257 = vld [vmem:[%s228 + $0x20] sm:$0xff]
      %v258 = vld [vmem:[%s228 + $0x28] sm:$0xff]
      %v259 = vld [vmem:[%s228 + $0x30] sm:$0xff]
      %v260 = vld [vmem:[%s228 + $0x38] sm:$0xff]
      %v261 = vld [vmem:[%s228 + $0x40] sm:$0xff]
      %v262 = vld [vmem:[%s228 + $0x48] sm:$0xff]
      %v263 = vld [vmem:[%s228 + $0x50] sm:$0xff]
      %v264 = vld [vmem:[%s228 + $0x58] sm:$0xff]
      %v265 = vld [vmem:[%s228 + $0x60] sm:$0xff]
      %v266 = vld [vmem:[%s228 + $0x68] sm:$0xff]
      %v267 = vld [vmem:[%s228 + $0x70] sm:$0xff]
      %v268 = vld [vmem:[%s228 + $0x78] sm:$0xff]
      %v269 = vld [vmem:[%s228 + $0x80] sm:$0xff]
      %v270 = vld [vmem:[%s228 + $0x88] sm:$0xff]
      %v271 = vld [vmem:[%s228 + $0x90] sm:$0xff]
      %v272 = vld [vmem:[%s228 + $0x98] sm:$0xff]
      %v273 = vld [vmem:[%s228 + $0xa0] sm:$0xff]
      %v274 = vld [vmem:[%s228 + $0xa8] sm:$0xff]
      %v275 = vld [vmem:[%s228 + $0xb0] sm:$0xff]
      %v276 = vld [vmem:[%s228 + $0xb8] sm:$0xff]
      %v277 = vld [vmem:[%s228 + $0xc0] sm:$0xff]
      %v278 = vld [vmem:[%s228 + $0xc8] sm:$0xff]
      %v279 = vld [vmem:[%s228 + $0xd0] sm:$0xff]
      %v280 = vld [vmem:[%s228 + $0xd8] sm:$0xff]
      %v281 = vld [vmem:[%s228 + $0xe0] sm:$0xff]
      %v282 = vld [vmem:[%s228 + $0xe8] sm:$0xff]
      %v283 = vld [vmem:[%s228 + $0xf0] sm:$0xff]
      %v284 = vld [vmem:[%s228 + $0xf8] sm:$0xff]
      %v285 = vld [vmem:[%s228 + $0x100] sm:$0xff]
      %v286 = vld [vmem:[%s228 + $0x108] sm:$0xff]
      %v287 = vld [vmem:[%s228 + $0x110] sm:$0xff]
      %v288 = vld [vmem:[%s228 + $0x118] sm:$0xff]
      %v289 = vld [vmem:[%s228 + $0x120] sm:$0xff]
      %v290 = vld [vmem:[%s228 + $0x128] sm:$0xff]
      %v291 = vld [vmem:[%s228 + $0x130] sm:$0xff]
      %v292 = vld [vmem:[%s228 + $0x138] sm:$0xff]
      %v293 = vld [vmem:[%s228 + $0x140] sm:$0xff]
      %v294 = vld [vmem:[%s228 + $0x148] sm:$0xff]
      %v295 = vld [vmem:[%s228 + $0x150] sm:$0xff]
      %v296 = vld [vmem:[%s228 + $0x158] sm:$0xff]
      %v297 = vld [vmem:[%s228 + $0x160] sm:$0xff]
      %v298 = vld [vmem:[%s228 + $0x168] sm:$0xff]
      %v299 = vld [vmem:[%s228 + $0x170] sm:$0xff]
      %v300 = vld [vmem:[%s228 + $0x178] sm:$0xff]
      %v301 = vld [vmem:[%s228 + $0x180] sm:$0xff]
      %v302 = vld [vmem:[%s228 + $0x188] sm:$0xff]
      %v303 = vld [vmem:[%s228 + $0x190] sm:$0xff]
      %v304 = vld [vmem:[%s228 + $0x198] sm:$0xff]
      %v305 = vld [vmem:[%s228 + $0x1a0] sm:$0xff]
      %v306 = vld [vmem:[%s228 + $0x1a8] sm:$0xff]
      %v307 = vld [vmem:[%s228 + $0x1b0] sm:$0xff]
      %v308 = vld [vmem:[%s228 + $0x1b8] sm:$0xff]
      %v309 = vld [vmem:[%s228 + $0x1c0] sm:$0xff]
      %v310 = vld [vmem:[%s228 + $0x1c8] sm:$0xff]
      %v311 = vld [vmem:[%s228 + $0x1d0] sm:$0xff]
      %v312 = vld [vmem:[%s228 + $0x1d8] sm:$0xff]
      %v313 = vld [vmem:[%s228 + $0x1e0] sm:$0xff]
      %v314 = vld [vmem:[%s228 + $0x1e8] sm:$0xff]
      %v315 = vld [vmem:[%s228 + $0x1f0] sm:$0xff]
      %v316 = vld [vmem:[%s228 + $0x1f8] sm:$0xff]
      %v317 = vld [vmem:[%s228 + $0x200] sm:$0xff]
      %v318 = vld [vmem:[%s228 + $0x208] sm:$0xff]
      %v319 = vld [vmem:[%s228 + $0x210] sm:$0xff]
      %v320 = vld [vmem:[%s228 + $0x218] sm:$0xff]
      %v321 = vld [vmem:[%s228 + $0x220] sm:$0xff]
      %v322 = vld [vmem:[%s228 + $0x228] sm:$0xff]
      %v323 = vld [vmem:[%s228 + $0x230] sm:$0xff]
      %v324 = vld [vmem:[%s228 + $0x238] sm:$0xff]
      %v325 = vld [vmem:[%s228 + $0x240] sm:$0xff]
      %v326 = vld [vmem:[%s228 + $0x248] sm:$0xff]
      %v327 = vld [vmem:[%s228 + $0x250] sm:$0xff]
      %v328 = vld [vmem:[%s228 + $0x258] sm:$0xff]
      %v329 = vld [vmem:[%s228 + $0x260] sm:$0xff]
      %v330 = vld [vmem:[%s228 + $0x268] sm:$0xff]
      %v331 = vld [vmem:[%s228 + $0x270] sm:$0xff]
      %v332 = vld [vmem:[%s228 + $0x278] sm:$0xff]
      %v333 = vld [vmem:[%s228 + $0x280] sm:$0xff]
      %v334 = vld [vmem:[%s228 + $0x288] sm:$0xff]
      %v335 = vld [vmem:[%s228 + $0x290] sm:$0xff]
      %v336 = vld [vmem:[%s228 + $0x298] sm:$0xff]
      %v337 = vld [vmem:[%s228 + $0x2a0] sm:$0xff]
      %v338 = vld [vmem:[%s228 + $0x2a8] sm:$0xff]
      %v339 = vld [vmem:[%s228 + $0x2b0] sm:$0xff]
      %v340 = vld [vmem:[%s228 + $0x2b8] sm:$0xff]
      %v341 = vld [vmem:[%s228 + $0x2c0] sm:$0xff]
      %v342 = vld [vmem:[%s228 + $0x2c8] sm:$0xff]
      %v343 = vld [vmem:[%s228 + $0x2d0] sm:$0xff]
      %v344 = vld [vmem:[%s228 + $0x2d8] sm:$0xff]
      %v345 = vld [vmem:[%s228 + $0x2e0] sm:$0xff]
      %v346 = vld [vmem:[%s228 + $0x2e8] sm:$0xff]
      %v347 = vld [vmem:[%s228 + $0x2f0] sm:$0xff]
      %v348 = vld [vmem:[%s228 + $0x2f8] sm:$0xff]
      %v349 = vld [vmem:[%s228 + $0x300] sm:$0xff]
      %v350 = vld [vmem:[%s228 + $0x308] sm:$0xff]
      %v351 = vld [vmem:[%s228 + $0x310] sm:$0xff]
      %v352 = vld [vmem:[%s228 + $0x318] sm:$0xff]
      %v353 = vld [vmem:[%s228 + $0x320] sm:$0xff]
      %v354 = vld [vmem:[%s228 + $0x328] sm:$0xff]
      %v355 = vld [vmem:[%s228 + $0x330] sm:$0xff]
      %v356 = vld [vmem:[%s228 + $0x338] sm:$0xff]
      %v357 = vld [vmem:[%s228 + $0x340] sm:$0xff]
      %v358 = vld [vmem:[%s228 + $0x348] sm:$0xff]
      %v359 = vld [vmem:[%s228 + $0x350] sm:$0xff]
      %v360 = vld [vmem:[%s228 + $0x358] sm:$0xff]
      %v361 = vld [vmem:[%s228 + $0x360] sm:$0xff]
      %v362 = vld [vmem:[%s228 + $0x368] sm:$0xff]
      %v363 = vld [vmem:[%s228 + $0x370] sm:$0xff]
      %v364 = vld [vmem:[%s228 + $0x378] sm:$0xff]
      %v365 = vld [vmem:[%s228 + $0x380] sm:$0xff]
      %v366 = vld [vmem:[%s228 + $0x388] sm:$0xff]
      %v367 = vld [vmem:[%s228 + $0x390] sm:$0xff]
      %v368 = vld [vmem:[%s228 + $0x398] sm:$0xff]
      %v369 = vld [vmem:[%s228 + $0x3a0] sm:$0xff]
      %v370 = vld [vmem:[%s228 + $0x3a8] sm:$0xff]
      %v371 = vld [vmem:[%s228 + $0x3b0] sm:$0xff]
      %v372 = vld [vmem:[%s228 + $0x3b8] sm:$0xff]
      %v373 = vld [vmem:[%s228 + $0x3c0] sm:$0xff]
      %v374 = vld [vmem:[%s228 + $0x3c8] sm:$0xff]
      %v375 = vld [vmem:[%s228 + $0x3d0] sm:$0xff]
      %v376 = vld [vmem:[%s228 + $0x3d8] sm:$0xff]
      %v377 = vld [vmem:[%s228 + $0x3e0] sm:$0xff]
      %v378 = vld [vmem:[%s228 + $0x3e8] sm:$0xff]
      %v379 = vld [vmem:[%s228 + $0x3f0] sm:$0xff]
      %v380 = vld [vmem:[%s228 + $0x3f8] sm:$0xff]
      %v381 = vld [vmem:[%s234] sm:$0xf]
      %v382 = vld [vmem:[%s234 + $0x4] sm:$0xf]
      %v383 = vld [vmem:[%s234 + $0x8] sm:$0xf]
      %v384 = vld [vmem:[%s234 + $0xc] sm:$0xf]
      %v385 = vld [vmem:[%s234 + $0x10] sm:$0xf]
      %v386 = vld [vmem:[%s234 + $0x14] sm:$0xf]
      %v387 = vld [vmem:[%s234 + $0x18] sm:$0xf]
      %v388 = vld [vmem:[%s234 + $0x1c] sm:$0xf]
      %v389 = vld [vmem:[%s234 + $0x20] sm:$0xf]
      %v390 = vld [vmem:[%s234 + $0x24] sm:$0xf]
      %v391 = vld [vmem:[%s234 + $0x28] sm:$0xf]
      %v392 = vld [vmem:[%s234 + $0x2c] sm:$0xf]
      %v393 = vld [vmem:[%s234 + $0x30] sm:$0xf]
      %v394 = vld [vmem:[%s234 + $0x34] sm:$0xf]
      %v395 = vld [vmem:[%s234 + $0x38] sm:$0xf]
      %v396 = vld [vmem:[%s234 + $0x3c] sm:$0xf]
      %v397 = vld [vmem:[%s234 + $0x40] sm:$0xf]
      %v398 = vld [vmem:[%s234 + $0x44] sm:$0xf]
      %v399 = vld [vmem:[%s234 + $0x48] sm:$0xf]
      %v400 = vld [vmem:[%s234 + $0x4c] sm:$0xf]
      %v401 = vld [vmem:[%s234 + $0x50] sm:$0xf]
      %v402 = vld [vmem:[%s234 + $0x54] sm:$0xf]
      %v403 = vld [vmem:[%s234 + $0x58] sm:$0xf]
      %v404 = vld [vmem:[%s234 + $0x5c] sm:$0xf]
      %v405 = vld [vmem:[%s234 + $0x60] sm:$0xf]
      %v406 = vld [vmem:[%s234 + $0x64] sm:$0xf]
      %v407 = vld [vmem:[%s234 + $0x68] sm:$0xf]
      %v408 = vld [vmem:[%s234 + $0x6c] sm:$0xf]
      %v409 = vld [vmem:[%s234 + $0x70] sm:$0xf]
      %v410 = vld [vmem:[%s234 + $0x74] sm:$0xf]
      %v411 = vld [vmem:[%s234 + $0x78] sm:$0xf]
      %v412 = vld [vmem:[%s234 + $0x7c] sm:$0xf]
      %v413 = vld [vmem:[%s234 + $0x80] sm:$0xf]
      %v414 = vld [vmem:[%s234 + $0x84] sm:$0xf]
      %v415 = vld [vmem:[%s234 + $0x88] sm:$0xf]
      %v416 = vld [vmem:[%s234 + $0x8c] sm:$0xf]
      %v417 = vld [vmem:[%s234 + $0x90] sm:$0xf]
      %v418 = vld [vmem:[%s234 + $0x94] sm:$0xf]
      %v419 = vld [vmem:[%s234 + $0x98] sm:$0xf]
      %v420 = vld [vmem:[%s234 + $0x9c] sm:$0xf]
      %v421 = vld [vmem:[%s234 + $0xa0] sm:$0xf]
      %v422 = vld [vmem:[%s234 + $0xa4] sm:$0xf]
      %v423 = vld [vmem:[%s234 + $0xa8] sm:$0xf]
      %v424 = vld [vmem:[%s234 + $0xac] sm:$0xf]
      %v425 = vld [vmem:[%s234 + $0xb0] sm:$0xf]
      %v426 = vld [vmem:[%s234 + $0xb4] sm:$0xf]
      %v427 = vld [vmem:[%s234 + $0xb8] sm:$0xf]
      %v428 = vld [vmem:[%s234 + $0xbc] sm:$0xf]
      %v429 = vld [vmem:[%s234 + $0xc0] sm:$0xf]
      %v430 = vld [vmem:[%s234 + $0xc4] sm:$0xf]
      %v431 = vld [vmem:[%s234 + $0xc8] sm:$0xf]
      %v432 = vld [vmem:[%s234 + $0xcc] sm:$0xf]
      %v433 = vld [vmem:[%s234 + $0xd0] sm:$0xf]
      %v434 = vld [vmem:[%s234 + $0xd4] sm:$0xf]
      %v435 = vld [vmem:[%s234 + $0xd8] sm:$0xf]
      %v436 = vld [vmem:[%s234 + $0xdc] sm:$0xf]
      %v437 = vld [vmem:[%s234 + $0xe0] sm:$0xf]
      %v438 = vld [vmem:[%s234 + $0xe4] sm:$0xf]
      %v439 = vld [vmem:[%s234 + $0xe8] sm:$0xf]
      %v440 = vld [vmem:[%s234 + $0xec] sm:$0xf]
      %v441 = vld [vmem:[%s234 + $0xf0] sm:$0xf]
      %v442 = vld [vmem:[%s234 + $0xf4] sm:$0xf]
      %v443 = vld [vmem:[%s234 + $0xf8] sm:$0xf]
      %v444 = vld [vmem:[%s234 + $0xfc] sm:$0xf]
      %v573 = vunpack.c.l.b16 %v253
      %v574 = vunpack.c.h.b16 %v253
      %v575 = vunpack.c.l.b16 %v254
      %v576 = vunpack.c.h.b16 %v254
      %v577 = vunpack.c.l.b16 %v255
      %v578 = vunpack.c.h.b16 %v255
      %v579 = vunpack.c.l.b16 %v256
      %v580 = vunpack.c.h.b16 %v256
      %v581 = vunpack.c.l.b16 %v257
      %v582 = vunpack.c.h.b16 %v257
      %v583 = vunpack.c.l.b16 %v258
      %v584 = vunpack.c.h.b16 %v258
      %v585 = vunpack.c.l.b16 %v259
      %v586 = vunpack.c.h.b16 %v259
      %v587 = vunpack.c.l.b16 %v260
      %v588 = vunpack.c.h.b16 %v260
      %v589 = vunpack.c.l.b16 %v261
      %v590 = vunpack.c.h.b16 %v261
      %v591 = vunpack.c.l.b16 %v262
      %v592 = vunpack.c.h.b16 %v262
      %v593 = vunpack.c.l.b16 %v263
      %v594 = vunpack.c.h.b16 %v263
      %v595 = vunpack.c.l.b16 %v264
      %v596 = vunpack.c.h.b16 %v264
      %v597 = vunpack.c.l.b16 %v265
      %v598 = vunpack.c.h.b16 %v265
      %v599 = vunpack.c.l.b16 %v266
      %v600 = vunpack.c.h.b16 %v266
      %v601 = vunpack.c.l.b16 %v267
      %v602 = vunpack.c.h.b16 %v267
      %v603 = vunpack.c.l.b16 %v268
      %v604 = vunpack.c.h.b16 %v268
      %v605 = vunpack.c.l.b16 %v269
      %v606 = vunpack.c.h.b16 %v269
      %v607 = vunpack.c.l.b16 %v270
      %v608 = vunpack.c.h.b16 %v270
      %v609 = vunpack.c.l.b16 %v271
      %v610 = vunpack.c.h.b16 %v271
      %v611 = vunpack.c.l.b16 %v272
      %v612 = vunpack.c.h.b16 %v272
      %v613 = vunpack.c.l.b16 %v273
      %v614 = vunpack.c.h.b16 %v273
      %v615 = vunpack.c.l.b16 %v274
      %v616 = vunpack.c.h.b16 %v274
      %v617 = vunpack.c.l.b16 %v275
      %v618 = vunpack.c.h.b16 %v275
      %v619 = vunpack.c.l.b16 %v276
      %v620 = vunpack.c.h.b16 %v276
      %v621 = vunpack.c.l.b16 %v277
      %v622 = vunpack.c.h.b16 %v277
      %v623 = vunpack.c.l.b16 %v278
      %v624 = vunpack.c.h.b16 %v278
      %v625 = vunpack.c.l.b16 %v279
      %v626 = vunpack.c.h.b16 %v279
      %v627 = vunpack.c.l.b16 %v280
      %v628 = vunpack.c.h.b16 %v280
      %v629 = vunpack.c.l.b16 %v281
      %v630 = vunpack.c.h.b16 %v281
      %v631 = vunpack.c.l.b16 %v282
      %v632 = vunpack.c.h.b16 %v282
      %v633 = vunpack.c.l.b16 %v283
      %v634 = vunpack.c.h.b16 %v283
      %v635 = vunpack.c.l.b16 %v284
      %v636 = vunpack.c.h.b16 %v284
      %v637 = vunpack.c.l.b16 %v285
      %v638 = vunpack.c.h.b16 %v285
      %v639 = vunpack.c.l.b16 %v286
      %v640 = vunpack.c.h.b16 %v286
      %v641 = vunpack.c.l.b16 %v287
      %v642 = vunpack.c.h.b16 %v287
      %v643 = vunpack.c.l.b16 %v288
      %v644 = vunpack.c.h.b16 %v288
      %v645 = vunpack.c.l.b16 %v289
      %v646 = vunpack.c.h.b16 %v289
      %v647 = vunpack.c.l.b16 %v290
      %v648 = vunpack.c.h.b16 %v290
      %v649 = vunpack.c.l.b16 %v291
      %v650 = vunpack.c.h.b16 %v291
      %v651 = vunpack.c.l.b16 %v292
      %v652 = vunpack.c.h.b16 %v292
      %v653 = vunpack.c.l.b16 %v293
      %v654 = vunpack.c.h.b16 %v293
      %v655 = vunpack.c.l.b16 %v294
      %v656 = vunpack.c.h.b16 %v294
      %v657 = vunpack.c.l.b16 %v295
      %v658 = vunpack.c.h.b16 %v295
      %v659 = vunpack.c.l.b16 %v296
      %v660 = vunpack.c.h.b16 %v296
      %v661 = vunpack.c.l.b16 %v297
      %v662 = vunpack.c.h.b16 %v297
      %v663 = vunpack.c.l.b16 %v298
      %v664 = vunpack.c.h.b16 %v298
      %v665 = vunpack.c.l.b16 %v299
      %v666 = vunpack.c.h.b16 %v299
      %v667 = vunpack.c.l.b16 %v300
      %v668 = vunpack.c.h.b16 %v300
      %v669 = vunpack.c.l.b16 %v301
      %v670 = vunpack.c.h.b16 %v301
      %v671 = vunpack.c.l.b16 %v302
      %v672 = vunpack.c.h.b16 %v302
      %v673 = vunpack.c.l.b16 %v303
      %v674 = vunpack.c.h.b16 %v303
      %v675 = vunpack.c.l.b16 %v304
      %v676 = vunpack.c.h.b16 %v304
      %v677 = vunpack.c.l.b16 %v305
      %v678 = vunpack.c.h.b16 %v305
      %v679 = vunpack.c.l.b16 %v306
      %v680 = vunpack.c.h.b16 %v306
      %v681 = vunpack.c.l.b16 %v307
      %v682 = vunpack.c.h.b16 %v307
      %v683 = vunpack.c.l.b16 %v308
      %v684 = vunpack.c.h.b16 %v308
      %v685 = vunpack.c.l.b16 %v309
      %v686 = vunpack.c.h.b16 %v309
      %v687 = vunpack.c.l.b16 %v310
      %v688 = vunpack.c.h.b16 %v310
      %v689 = vunpack.c.l.b16 %v311
      %v690 = vunpack.c.h.b16 %v311
      %v691 = vunpack.c.l.b16 %v312
      %v692 = vunpack.c.h.b16 %v312
      %v693 = vunpack.c.l.b16 %v313
      %v694 = vunpack.c.h.b16 %v313
      %v695 = vunpack.c.l.b16 %v314
      %v696 = vunpack.c.h.b16 %v314
      %v697 = vunpack.c.l.b16 %v315
      %v698 = vunpack.c.h.b16 %v315
      %v699 = vunpack.c.l.b16 %v316
      %v700 = vunpack.c.h.b16 %v316
      %v701 = vunpack.c.l.b16 %v317
      %v702 = vunpack.c.h.b16 %v317
      %v703 = vunpack.c.l.b16 %v318
      %v704 = vunpack.c.h.b16 %v318
      %v705 = vunpack.c.l.b16 %v319
      %v706 = vunpack.c.h.b16 %v319
      %v707 = vunpack.c.l.b16 %v320
      %v708 = vunpack.c.h.b16 %v320
      %v709 = vunpack.c.l.b16 %v321
      %v710 = vunpack.c.h.b16 %v321
      %v711 = vunpack.c.l.b16 %v322
      %v712 = vunpack.c.h.b16 %v322
      %v713 = vunpack.c.l.b16 %v323
      %v714 = vunpack.c.h.b16 %v323
      %v715 = vunpack.c.l.b16 %v324
      %v716 = vunpack.c.h.b16 %v324
      %v717 = vunpack.c.l.b16 %v325
      %v718 = vunpack.c.h.b16 %v325
      %v719 = vunpack.c.l.b16 %v326
      %v720 = vunpack.c.h.b16 %v326
      %v721 = vunpack.c.l.b16 %v327
      %v722 = vunpack.c.h.b16 %v327
      %v723 = vunpack.c.l.b16 %v328
      %v724 = vunpack.c.h.b16 %v328
      %v725 = vunpack.c.l.b16 %v329
      %v726 = vunpack.c.h.b16 %v329
      %v727 = vunpack.c.l.b16 %v330
      %v728 = vunpack.c.h.b16 %v330
      %v729 = vunpack.c.l.b16 %v331
      %v730 = vunpack.c.h.b16 %v331
      %v731 = vunpack.c.l.b16 %v332
      %v732 = vunpack.c.h.b16 %v332
      %v733 = vunpack.c.l.b16 %v333
      %v734 = vunpack.c.h.b16 %v333
      %v735 = vunpack.c.l.b16 %v334
      %v736 = vunpack.c.h.b16 %v334
      %v737 = vunpack.c.l.b16 %v335
      %v738 = vunpack.c.h.b16 %v335
      %v739 = vunpack.c.l.b16 %v336
      %v740 = vunpack.c.h.b16 %v336
      %v741 = vunpack.c.l.b16 %v337
      %v742 = vunpack.c.h.b16 %v337
      %v743 = vunpack.c.l.b16 %v338
      %v744 = vunpack.c.h.b16 %v338
      %v745 = vunpack.c.l.b16 %v339
      %v746 = vunpack.c.h.b16 %v339
      %v747 = vunpack.c.l.b16 %v340
      %v748 = vunpack.c.h.b16 %v340
      %v749 = vunpack.c.l.b16 %v341
      %v750 = vunpack.c.h.b16 %v341
      %v751 = vunpack.c.l.b16 %v342
      %v752 = vunpack.c.h.b16 %v342
      %v753 = vunpack.c.l.b16 %v343
      %v754 = vunpack.c.h.b16 %v343
      %v755 = vunpack.c.l.b16 %v344
      %v756 = vunpack.c.h.b16 %v344
      %v757 = vunpack.c.l.b16 %v345
      %v758 = vunpack.c.h.b16 %v345
      %v759 = vunpack.c.l.b16 %v346
      %v760 = vunpack.c.h.b16 %v346
      %v761 = vunpack.c.l.b16 %v347
      %v762 = vunpack.c.h.b16 %v347
      %v763 = vunpack.c.l.b16 %v348
      %v764 = vunpack.c.h.b16 %v348
      %v765 = vunpack.c.l.b16 %v349
      %v766 = vunpack.c.h.b16 %v349
      %v767 = vunpack.c.l.b16 %v350
      %v768 = vunpack.c.h.b16 %v350
      %v769 = vunpack.c.l.b16 %v351
      %v770 = vunpack.c.h.b16 %v351
      %v771 = vunpack.c.l.b16 %v352
      %v772 = vunpack.c.h.b16 %v352
      %v773 = vunpack.c.l.b16 %v353
      %v774 = vunpack.c.h.b16 %v353
      %v775 = vunpack.c.l.b16 %v354
      %v776 = vunpack.c.h.b16 %v354
      %v777 = vunpack.c.l.b16 %v355
      %v778 = vunpack.c.h.b16 %v355
      %v779 = vunpack.c.l.b16 %v356
      %v780 = vunpack.c.h.b16 %v356
      %v781 = vunpack.c.l.b16 %v357
      %v782 = vunpack.c.h.b16 %v357
      %v783 = vunpack.c.l.b16 %v358
      %v784 = vunpack.c.h.b16 %v358
      %v785 = vunpack.c.l.b16 %v359
      %v786 = vunpack.c.h.b16 %v359
      %v787 = vunpack.c.l.b16 %v360
      %v788 = vunpack.c.h.b16 %v360
      %v789 = vunpack.c.l.b16 %v361
      %v790 = vunpack.c.h.b16 %v361
      %v791 = vunpack.c.l.b16 %v362
      %v792 = vunpack.c.h.b16 %v362
      %v793 = vunpack.c.l.b16 %v363
      %v794 = vunpack.c.h.b16 %v363
      %v795 = vunpack.c.l.b16 %v364
      %v796 = vunpack.c.h.b16 %v364
      %v797 = vunpack.c.l.b16 %v365
      %v798 = vunpack.c.h.b16 %v365
      %v799 = vunpack.c.l.b16 %v366
      %v800 = vunpack.c.h.b16 %v366
      %v801 = vunpack.c.l.b16 %v367
      %v802 = vunpack.c.h.b16 %v367
      %v803 = vunpack.c.l.b16 %v368
      %v804 = vunpack.c.h.b16 %v368
      %v805 = vunpack.c.l.b16 %v369
      %v806 = vunpack.c.h.b16 %v369
      %v807 = vunpack.c.l.b16 %v370
      %v808 = vunpack.c.h.b16 %v370
      %v809 = vunpack.c.l.b16 %v371
      %v810 = vunpack.c.h.b16 %v371
      %v811 = vunpack.c.l.b16 %v372
      %v812 = vunpack.c.h.b16 %v372
      %v813 = vunpack.c.l.b16 %v373
      %v814 = vunpack.c.h.b16 %v373
      %v815 = vunpack.c.l.b16 %v374
      %v816 = vunpack.c.h.b16 %v374
      %v817 = vunpack.c.l.b16 %v375
      %v818 = vunpack.c.h.b16 %v375
      %v819 = vunpack.c.l.b16 %v376
      %v820 = vunpack.c.h.b16 %v376
      %v821 = vunpack.c.l.b16 %v377
      %v822 = vunpack.c.h.b16 %v377
      %v823 = vunpack.c.l.b16 %v378
      %v824 = vunpack.c.h.b16 %v378
      %v825 = vunpack.c.l.b16 %v379
      %v826 = vunpack.c.h.b16 %v379
      %v827 = vunpack.c.l.b16 %v380
      %v828 = vunpack.c.h.b16 %v380
      %v829 = vpack.c.b16 %v577, %v573
      %v830 = vpack.c.b16 %v578, %v574
      %v831 = vpack.c.b16 %v579, %v575
      %v832 = vpack.c.b16 %v580, %v576
      %v833 = vpack.c.b16 %v585, %v581
      %v834 = vpack.c.b16 %v586, %v582
      %v835 = vpack.c.b16 %v587, %v583
      %v836 = vpack.c.b16 %v588, %v584
      %v837 = vpack.c.b16 %v593, %v589
      %v838 = vpack.c.b16 %v594, %v590
      %v839 = vpack.c.b16 %v595, %v591
      %v840 = vpack.c.b16 %v596, %v592
      %v841 = vpack.c.b16 %v601, %v597
      %v842 = vpack.c.b16 %v602, %v598
      %v843 = vpack.c.b16 %v603, %v599
      %v844 = vpack.c.b16 %v604, %v600
      %v845 = vpack.c.b16 %v609, %v605
      %v846 = vpack.c.b16 %v610, %v606
      %v847 = vpack.c.b16 %v611, %v607
      %v848 = vpack.c.b16 %v612, %v608
      %v849 = vpack.c.b16 %v617, %v613
      %v850 = vpack.c.b16 %v618, %v614
      %v851 = vpack.c.b16 %v619, %v615
      %v852 = vpack.c.b16 %v620, %v616
      %v853 = vpack.c.b16 %v625, %v621
      %v854 = vpack.c.b16 %v626, %v622
      %v855 = vpack.c.b16 %v627, %v623
      %v856 = vpack.c.b16 %v628, %v624
      %v857 = vpack.c.b16 %v633, %v629
      %v858 = vpack.c.b16 %v634, %v630
      %v859 = vpack.c.b16 %v635, %v631
      %v860 = vpack.c.b16 %v636, %v632
      %v861 = vpack.c.b16 %v641, %v637
      %v862 = vpack.c.b16 %v642, %v638
      %v863 = vpack.c.b16 %v643, %v639
      %v864 = vpack.c.b16 %v644, %v640
      %v865 = vpack.c.b16 %v649, %v645
      %v866 = vpack.c.b16 %v650, %v646
      %v867 = vpack.c.b16 %v651, %v647
      %v868 = vpack.c.b16 %v652, %v648
      %v869 = vpack.c.b16 %v657, %v653
      %v870 = vpack.c.b16 %v658, %v654
      %v871 = vpack.c.b16 %v659, %v655
      %v872 = vpack.c.b16 %v660, %v656
      %v873 = vpack.c.b16 %v665, %v661
      %v874 = vpack.c.b16 %v666, %v662
      %v875 = vpack.c.b16 %v667, %v663
      %v876 = vpack.c.b16 %v668, %v664
      %v877 = vpack.c.b16 %v673, %v669
      %v878 = vpack.c.b16 %v674, %v670
      %v879 = vpack.c.b16 %v675, %v671
      %v880 = vpack.c.b16 %v676, %v672
      %v881 = vpack.c.b16 %v681, %v677
      %v882 = vpack.c.b16 %v682, %v678
      %v883 = vpack.c.b16 %v683, %v679
      %v884 = vpack.c.b16 %v684, %v680
      %v885 = vpack.c.b16 %v689, %v685
      %v886 = vpack.c.b16 %v690, %v686
      %v887 = vpack.c.b16 %v691, %v687
      %v888 = vpack.c.b16 %v692, %v688
      %v889 = vpack.c.b16 %v697, %v693
      %v890 = vpack.c.b16 %v698, %v694
      %v891 = vpack.c.b16 %v699, %v695
      %v892 = vpack.c.b16 %v700, %v696
      %v893 = vpack.c.b16 %v705, %v701
      %v894 = vpack.c.b16 %v706, %v702
      %v895 = vpack.c.b16 %v707, %v703
      %v896 = vpack.c.b16 %v708, %v704
      %v897 = vpack.c.b16 %v713, %v709
      %v898 = vpack.c.b16 %v714, %v710
      %v899 = vpack.c.b16 %v715, %v711
      %v900 = vpack.c.b16 %v716, %v712
      %v901 = vpack.c.b16 %v721, %v717
      %v902 = vpack.c.b16 %v722, %v718
      %v903 = vpack.c.b16 %v723, %v719
      %v904 = vpack.c.b16 %v724, %v720
      %v905 = vpack.c.b16 %v729, %v725
      %v906 = vpack.c.b16 %v730, %v726
      %v907 = vpack.c.b16 %v731, %v727
      %v908 = vpack.c.b16 %v732, %v728
      %v909 = vpack.c.b16 %v737, %v733
      %v910 = vpack.c.b16 %v738, %v734
      %v911 = vpack.c.b16 %v739, %v735
      %v912 = vpack.c.b16 %v740, %v736
      %v913 = vpack.c.b16 %v745, %v741
      %v914 = vpack.c.b16 %v746, %v742
      %v915 = vpack.c.b16 %v747, %v743
      %v916 = vpack.c.b16 %v748, %v744
      %v917 = vpack.c.b16 %v753, %v749
      %v918 = vpack.c.b16 %v754, %v750
      %v919 = vpack.c.b16 %v755, %v751
      %v920 = vpack.c.b16 %v756, %v752
      %v921 = vpack.c.b16 %v761, %v757
      %v922 = vpack.c.b16 %v762, %v758
      %v923 = vpack.c.b16 %v763, %v759
      %v924 = vpack.c.b16 %v764, %v760
      %v925 = vpack.c.b16 %v769, %v765
      %v926 = vpack.c.b16 %v770, %v766
      %v927 = vpack.c.b16 %v771, %v767
      %v928 = vpack.c.b16 %v772, %v768
      %v929 = vpack.c.b16 %v777, %v773
      %v930 = vpack.c.b16 %v778, %v774
      %v931 = vpack.c.b16 %v779, %v775
      %v932 = vpack.c.b16 %v780, %v776
      %v933 = vpack.c.b16 %v785, %v781
      %v934 = vpack.c.b16 %v786, %v782
      %v935 = vpack.c.b16 %v787, %v783
      %v936 = vpack.c.b16 %v788, %v784
      %v937 = vpack.c.b16 %v793, %v789
      %v938 = vpack.c.b16 %v794, %v790
      %v939 = vpack.c.b16 %v795, %v791
      %v940 = vpack.c.b16 %v796, %v792
      %v941 = vpack.c.b16 %v801, %v797
      %v942 = vpack.c.b16 %v802, %v798
      %v943 = vpack.c.b16 %v803, %v799
      %v944 = vpack.c.b16 %v804, %v800
      %v945 = vpack.c.b16 %v809, %v805
      %v946 = vpack.c.b16 %v810, %v806
      %v947 = vpack.c.b16 %v811, %v807
      %v948 = vpack.c.b16 %v812, %v808
      %v949 = vpack.c.b16 %v817, %v813
      %v950 = vpack.c.b16 %v818, %v814
      %v951 = vpack.c.b16 %v819, %v815
      %v952 = vpack.c.b16 %v820, %v816
      %v953 = vpack.c.b16 %v825, %v821
      %v954 = vpack.c.b16 %v826, %v822
      %v955 = vpack.c.b16 %v827, %v823
      %v956 = vpack.c.b16 %v828, %v824
      %v1149 = vunpack.c.l.b16 %v381
      %v1150 = vunpack.c.l.b16 %v382
      %v1151 = vunpack.c.l.b16 %v383
      %v1152 = vunpack.c.l.b16 %v384
      %v1153 = vunpack.c.l.b16 %v385
      %v1154 = vunpack.c.l.b16 %v386
      %v1155 = vunpack.c.l.b16 %v387
      %v1156 = vunpack.c.l.b16 %v388
      %v1157 = vunpack.c.l.b16 %v389
      %v1158 = vunpack.c.l.b16 %v390
      %v1159 = vunpack.c.l.b16 %v391
      %v1160 = vunpack.c.l.b16 %v392
      %v1161 = vunpack.c.l.b16 %v393
      %v1162 = vunpack.c.l.b16 %v394
      %v1163 = vunpack.c.l.b16 %v395
      %v1164 = vunpack.c.l.b16 %v396
      %v1165 = vunpack.c.l.b16 %v397
      %v1166 = vunpack.c.l.b16 %v398
      %v1167 = vunpack.c.l.b16 %v399
      %v1168 = vunpack.c.l.b16 %v400
      %v1169 = vunpack.c.l.b16 %v401
      %v1170 = vunpack.c.l.b16 %v402
      %v1171 = vunpack.c.l.b16 %v403
      %v1172 = vunpack.c.l.b16 %v404
      %v1173 = vunpack.c.l.b16 %v405
      %v1174 = vunpack.c.l.b16 %v406
      %v1175 = vunpack.c.l.b16 %v407
      %v1176 = vunpack.c.l.b16 %v408
      %v1177 = vunpack.c.l.b16 %v409
      %v1178 = vunpack.c.l.b16 %v410
      %v1179 = vunpack.c.l.b16 %v411
      %v1180 = vunpack.c.l.b16 %v412
      %v1181 = vunpack.c.l.b16 %v413
      %v1182 = vunpack.c.l.b16 %v414
      %v1183 = vunpack.c.l.b16 %v415
      %v1184 = vunpack.c.l.b16 %v416
      %v1185 = vunpack.c.l.b16 %v417
      %v1186 = vunpack.c.l.b16 %v418
      %v1187 = vunpack.c.l.b16 %v419
      %v1188 = vunpack.c.l.b16 %v420
      %v1189 = vunpack.c.l.b16 %v421
      %v1190 = vunpack.c.l.b16 %v422
      %v1191 = vunpack.c.l.b16 %v423
      %v1192 = vunpack.c.l.b16 %v424
      %v1193 = vunpack.c.l.b16 %v425
      %v1194 = vunpack.c.l.b16 %v426
      %v1195 = vunpack.c.l.b16 %v427
      %v1196 = vunpack.c.l.b16 %v428
      %v1197 = vunpack.c.l.b16 %v429
      %v1198 = vunpack.c.l.b16 %v430
      %v1199 = vunpack.c.l.b16 %v431
      %v1200 = vunpack.c.l.b16 %v432
      %v1201 = vunpack.c.l.b16 %v433
      %v1202 = vunpack.c.l.b16 %v434
      %v1203 = vunpack.c.l.b16 %v435
      %v1204 = vunpack.c.l.b16 %v436
      %v1205 = vunpack.c.l.b16 %v437
      %v1206 = vunpack.c.l.b16 %v438
      %v1207 = vunpack.c.l.b16 %v439
      %v1208 = vunpack.c.l.b16 %v440
      %v1209 = vunpack.c.l.b16 %v441
      %v1210 = vunpack.c.l.b16 %v442
      %v1211 = vunpack.c.l.b16 %v443
      %v1212 = vunpack.c.l.b16 %v444
      %v1213 = vpack.c.b16 %v1150, %v1149
      %v1214 = vpack.c.b16 %v1152, %v1151
      %v1215 = vpack.c.b16 %v1154, %v1153
      %v1216 = vpack.c.b16 %v1156, %v1155
      %v1217 = vpack.c.b16 %v1158, %v1157
      %v1218 = vpack.c.b16 %v1160, %v1159
      %v1219 = vpack.c.b16 %v1162, %v1161
      %v1220 = vpack.c.b16 %v1164, %v1163
      %v1221 = vpack.c.b16 %v1166, %v1165
      %v1222 = vpack.c.b16 %v1168, %v1167
      %v1223 = vpack.c.b16 %v1170, %v1169
      %v1224 = vpack.c.b16 %v1172, %v1171
      %v1225 = vpack.c.b16 %v1174, %v1173
      %v1226 = vpack.c.b16 %v1176, %v1175
      %v1227 = vpack.c.b16 %v1178, %v1177
      %v1228 = vpack.c.b16 %v1180, %v1179
      %v1229 = vpack.c.b16 %v1182, %v1181
      %v1230 = vpack.c.b16 %v1184, %v1183
      %v1231 = vpack.c.b16 %v1186, %v1185
      %v1232 = vpack.c.b16 %v1188, %v1187
      %v1233 = vpack.c.b16 %v1190, %v1189
      %v1234 = vpack.c.b16 %v1192, %v1191
      %v1235 = vpack.c.b16 %v1194, %v1193
      %v1236 = vpack.c.b16 %v1196, %v1195
      %v1237 = vpack.c.b16 %v1198, %v1197
      %v1238 = vpack.c.b16 %v1200, %v1199
      %v1239 = vpack.c.b16 %v1202, %v1201
      %v1240 = vpack.c.b16 %v1204, %v1203
      %v1241 = vpack.c.b16 %v1206, %v1205
      %v1242 = vpack.c.b16 %v1208, %v1207
      %v1243 = vpack.c.b16 %v1210, %v1209
      %v1244 = vpack.c.b16 %v1212, %v1211
      %1277 = vmatprep.subr.bf16.mxu0 0
      %1278 = vmatpush1.bf16.msra.mxu0 %v1213
      %1279 = vmatprep.subr.bf16.mxu0 0
      %1280 = vmatpush1.bf16.msra.mxu0 %v1214
      %1281 = vmatprep.subr.bf16.mxu0 0
      %1282 = vmatpush1.bf16.msra.mxu0 %v1215
      %1283 = vmatprep.subr.bf16.mxu0 0
      %1284 = vmatpush1.bf16.msra.mxu0 %v1216
      %1285 = vmatprep.subr.bf16.mxu0 0
      %1286 = vmatpush1.bf16.msra.mxu0 %v1217
      %1287 = vmatprep.subr.bf16.mxu0 0
      %1288 = vmatpush1.bf16.msra.mxu0 %v1218
      %1289 = vmatprep.subr.bf16.mxu0 0
      %1290 = vmatpush1.bf16.msra.mxu0 %v1219
      %1291 = vmatprep.subr.bf16.mxu0 0
      %1292 = vmatpush1.bf16.msra.mxu0 %v1220
      %1293 = vmatprep.subr.bf16.mxu0 0
      %1294 = vmatpush1.bf16.msra.mxu0 %v1221
      %1295 = vmatprep.subr.bf16.mxu0 0
      %1296 = vmatpush1.bf16.msra.mxu0 %v1222
      %1297 = vmatprep.subr.bf16.mxu0 0
      %1298 = vmatpush1.bf16.msra.mxu0 %v1223
      %1299 = vmatprep.subr.bf16.mxu0 0
      %1300 = vmatpush1.bf16.msra.mxu0 %v1224
      %1301 = vmatprep.subr.bf16.mxu0 0
      %1302 = vmatpush1.bf16.msra.mxu0 %v1225
      %1303 = vmatprep.subr.bf16.mxu0 0
      %1304 = vmatpush1.bf16.msra.mxu0 %v1226
      %1305 = vmatprep.subr.bf16.mxu0 0
      %1306 = vmatpush1.bf16.msra.mxu0 %v1227
      %1307 = vmatprep.subr.bf16.mxu0 0
      %1308 = vmatpush1.bf16.msra.mxu0 %v1228
      %1309 = vmatprep.mubr.bf16.mxu0 %v830
      %1310 = vmatmul.mubr.bf16.gmra.mrb[0].mxu0 %v829
      %v1311 = vpop.f32.mrb[0].mxu0
      %v1312 = vadd.f32 0.0, %v1311
      %v1313 = vpop.f32.mrb[0].mxu0
      %v1314 = vpop.f32.mrb[0].mxu0
      %v1315 = vadd.f32 0.0, %v1314
      %v1316 = vpop.f32.mrb[0].mxu0
      %1317 = vmatprep.mubr.bf16.mxu0 %v834
      %1318 = vmatmul.mubr.bf16.gmra.mrb[0].mxu0 %v833
      %v1319 = vpop.f32.mrb[0].mxu0
      %v1320 = vadd.f32 0.0, %v1319
      %v1321 = vpop.f32.mrb[0].mxu0
      %v1322 = vpop.f32.mrb[0].mxu0
      %v1323 = vadd.f32 0.0, %v1322
      %v1324 = vpop.f32.mrb[0].mxu0
      %1325 = vmatprep.mubr.bf16.mxu0 %v838
      %1326 = vmatmul.mubr.bf16.gmra.mrb[0].mxu0 %v837
      %v1327 = vpop.f32.mrb[0].mxu0
      %v1328 = vadd.f32 0.0, %v1327
      %v1329 = vpop.f32.mrb[0].mxu0
      %v1330 = vpop.f32.mrb[0].mxu0
      %v1331 = vadd.f32 0.0, %v1330
      %v1332 = vpop.f32.mrb[0].mxu0
      %1333 = vmatprep.mubr.bf16.mxu0 %v842
      %1334 = vmatmul.mubr.bf16.gmra.mrb[0].mxu0 %v841
      %v1335 = vpop.f32.mrb[0].mxu0
      %v1336 = vadd.f32 0.0, %v1335
      %v1337 = vpop.f32.mrb[0].mxu0
      %v1338 = vpop.f32.mrb[0].mxu0
      %v1339 = vadd.f32 0.0, %v1338
      %v1340 = vpop.f32.mrb[0].mxu0
      %1341 = vmatprep.mubr.bf16.mxu0 %v846
      %1342 = vmatmul.mubr.bf16.gmra.mrb[0].mxu0 %v845
      %v1343 = vpop.f32.mrb[0].mxu0
      %v1344 = vadd.f32 0.0, %v1343
      %v1345 = vpop.f32.mrb[0].mxu0
      %v1346 = vpop.f32.mrb[0].mxu0
      %v1347 = vadd.f32 0.0, %v1346
      %v1348 = vpop.f32.mrb[0].mxu0
      %1349 = vmatprep.mubr.bf16.mxu0 %v850
      %1350 = vmatmul.mubr.bf16.gmra.mrb[0].mxu0 %v849
      %v1351 = vpop.f32.mrb[0].mxu0
      %v1352 = vadd.f32 0.0, %v1351
      %v1353 = vpop.f32.mrb[0].mxu0
      %v1354 = vpop.f32.mrb[0].mxu0
      %v1355 = vadd.f32 0.0, %v1354
      %v1356 = vpop.f32.mrb[0].mxu0
      %1357 = vmatprep.mubr.bf16.mxu0 %v854
      %1358 = vmatmul.mubr.bf16.gmra.mrb[0].mxu0 %v853
      %v1359 = vpop.f32.mrb[0].mxu0
      %v1360 = vadd.f32 0.0, %v1359
      %v1361 = vpop.f32.mrb[0].mxu0
      %v1362 = vpop.f32.mrb[0].mxu0
      %v1363 = vadd.f32 0.0, %v1362
      %v1364 = vpop.f32.mrb[0].mxu0
      %1365 = vmatprep.mubr.bf16.mxu0 %v858
      %1366 = vmatmul.mubr.bf16.gmra.mrb[0].mxu0 %v857
      %v1367 = vpop.f32.mrb[0].mxu0
      %v1368 = vadd.f32 0.0, %v1367
      %v1369 = vpop.f32.mrb[0].mxu0
      %v1370 = vpop.f32.mrb[0].mxu0
      %v1371 = vadd.f32 0.0, %v1370
      %v1372 = vpop.f32.mrb[0].mxu0
      %1373 = vmatprep.mubr.bf16.mxu0 %v862
      %1374 = vmatmul.mubr.bf16.gmra.mrb[0].mxu0 %v861
      %v1375 = vpop.f32.mrb[0].mxu0
      %v1376 = vadd.f32 0.0, %v1375
      %v1377 = vpop.f32.mrb[0].mxu0
      %v1378 = vpop.f32.mrb[0].mxu0
      %v1379 = vadd.f32 0.0, %v1378
      %v1380 = vpop.f32.mrb[0].mxu0
      %1381 = vmatprep.mubr.bf16.mxu0 %v866
      %1382 = vmatmul.mubr.bf16.gmra.mrb[0].mxu0 %v865
      %v1383 = vpop.f32.mrb[0].mxu0
      %v1384 = vadd.f32 0.0, %v1383
      %v1385 = vpop.f32.mrb[0].mxu0
      %v1386 = vpop.f32.mrb[0].mxu0
      %v1387 = vadd.f32 0.0, %v1386
      %v1388 = vpop.f32.mrb[0].mxu0
      %1389 = vmatprep.mubr.bf16.mxu0 %v870
      %1390 = vmatmul.mubr.bf16.gmra.mrb[0].mxu0 %v869
      %v1391 = vpop.f32.mrb[0].mxu0
      %v1392 = vadd.f32 0.0, %v1391
      %v1393 = vpop.f32.mrb[0].mxu0
      %v1394 = vpop.f32.mrb[0].mxu0
      %v1395 = vadd.f32 0.0, %v1394
      %v1396 = vpop.f32.mrb[0].mxu0
      %1397 = vmatprep.mubr.bf16.mxu0 %v874
      %1398 = vmatmul.mubr.bf16.gmra.mrb[0].mxu0 %v873
      %v1399 = vpop.f32.mrb[0].mxu0
      %v1400 = vadd.f32 0.0, %v1399
      %v1401 = vpop.f32.mrb[0].mxu0
      %v1402 = vpop.f32.mrb[0].mxu0
      %v1403 = vadd.f32 0.0, %v1402
      %v1404 = vpop.f32.mrb[0].mxu0
      %1405 = vmatprep.mubr.bf16.mxu0 %v878
      %1406 = vmatmul.mubr.bf16.gmra.mrb[0].mxu0 %v877
      %v1407 = vpop.f32.mrb[0].mxu0
      %v1408 = vadd.f32 0.0, %v1407
      %v1409 = vpop.f32.mrb[0].mxu0
      %v1410 = vpop.f32.mrb[0].mxu0
      %v1411 = vadd.f32 0.0, %v1410
      %v1412 = vpop.f32.mrb[0].mxu0
      %1413 = vmatprep.mubr.bf16.mxu0 %v882
      %1414 = vmatmul.mubr.bf16.gmra.mrb[0].mxu0 %v881
      %v1415 = vpop.f32.mrb[0].mxu0
      %v1416 = vadd.f32 0.0, %v1415
      %v1417 = vpop.f32.mrb[0].mxu0
      %v1418 = vpop.f32.mrb[0].mxu0
      %v1419 = vadd.f32 0.0, %v1418
      %v1420 = vpop.f32.mrb[0].mxu0
      %1421 = vmatprep.mubr.bf16.mxu0 %v886
      %1422 = vmatmul.mubr.bf16.gmra.mrb[0].mxu0 %v885
      %v1423 = vpop.f32.mrb[0].mxu0
      %v1424 = vadd.f32 0.0, %v1423
      %v1425 = vpop.f32.mrb[0].mxu0
      %v1426 = vpop.f32.mrb[0].mxu0
      %v1427 = vadd.f32 0.0, %v1426
      %v1428 = vpop.f32.mrb[0].mxu0
      %1429 = vmatprep.mubr.bf16.mxu0 %v890
      %1430 = vmatmul.mubr.bf16.gmra.mrb[0].mxu0 %v889
      %v1431 = vpop.f32.mrb[0].mxu0
      %v1432 = vadd.f32 0.0, %v1431
      %v1433 = vpop.f32.mrb[0].mxu0
      %v1434 = vpop.f32.mrb[0].mxu0
      %v1435 = vadd.f32 0.0, %v1434
      %v1436 = vpop.f32.mrb[0].mxu0
      %1437 = vmatprep.mubr.bf16.mxu0 %v894
      %1438 = vmatmul.mubr.bf16.gmra.mrb[0].mxu0 %v893
      %v1439 = vpop.f32.mrb[0].mxu0
      %v1440 = vadd.f32 0.0, %v1439
      %v1441 = vpop.f32.mrb[0].mxu0
      %v1442 = vpop.f32.mrb[0].mxu0
      %v1443 = vadd.f32 0.0, %v1442
      %v1444 = vpop.f32.mrb[0].mxu0
      %1445 = vmatprep.mubr.bf16.mxu0 %v898
      %1446 = vmatmul.mubr.bf16.gmra.mrb[0].mxu0 %v897
      %v1447 = vpop.f32.mrb[0].mxu0
      %v1448 = vadd.f32 0.0, %v1447
      %v1449 = vpop.f32.mrb[0].mxu0
      %v1450 = vpop.f32.mrb[0].mxu0
      %v1451 = vadd.f32 0.0, %v1450
      %v1452 = vpop.f32.mrb[0].mxu0
      %1453 = vmatprep.mubr.bf16.mxu0 %v902
      %1454 = vmatmul.mubr.bf16.gmra.mrb[0].mxu0 %v901
      %v1455 = vpop.f32.mrb[0].mxu0
      %v1456 = vadd.f32 0.0, %v1455
      %v1457 = vpop.f32.mrb[0].mxu0
      %v1458 = vpop.f32.mrb[0].mxu0
      %v1459 = vadd.f32 0.0, %v1458
      %v1460 = vpop.f32.mrb[0].mxu0
      %1461 = vmatprep.mubr.bf16.mxu0 %v906
      %1462 = vmatmul.mubr.bf16.gmra.mrb[0].mxu0 %v905
      %v1463 = vpop.f32.mrb[0].mxu0
      %v1464 = vadd.f32 0.0, %v1463
      %v1465 = vpop.f32.mrb[0].mxu0
      %v1466 = vpop.f32.mrb[0].mxu0
      %v1467 = vadd.f32 0.0, %v1466
      %v1468 = vpop.f32.mrb[0].mxu0
      %1469 = vmatprep.mubr.bf16.mxu0 %v910
      %1470 = vmatmul.mubr.bf16.gmra.mrb[0].mxu0 %v909
      %v1471 = vpop.f32.mrb[0].mxu0
      %v1472 = vadd.f32 0.0, %v1471
      %v1473 = vpop.f32.mrb[0].mxu0
      %v1474 = vpop.f32.mrb[0].mxu0
      %v1475 = vadd.f32 0.0, %v1474
      %v1476 = vpop.f32.mrb[0].mxu0
      %1477 = vmatprep.mubr.bf16.mxu0 %v914
      %1478 = vmatmul.mubr.bf16.gmra.mrb[0].mxu0 %v913
      %v1479 = vpop.f32.mrb[0].mxu0
      %v1480 = vadd.f32 0.0, %v1479
      %v1481 = vpop.f32.mrb[0].mxu0
      %v1482 = vpop.f32.mrb[0].mxu0
      %v1483 = vadd.f32 0.0, %v1482
      %v1484 = vpop.f32.mrb[0].mxu0
      %1485 = vmatprep.mubr.bf16.mxu0 %v918
      %1486 = vmatmul.mubr.bf16.gmra.mrb[0].mxu0 %v917
      %v1487 = vpop.f32.mrb[0].mxu0
      %v1488 = vadd.f32 0.0, %v1487
      %v1489 = vpop.f32.mrb[0].mxu0
      %v1490 = vpop.f32.mrb[0].mxu0
      %v1491 = vadd.f32 0.0, %v1490
      %v1492 = vpop.f32.mrb[0].mxu0
      %1493 = vmatprep.mubr.bf16.mxu0 %v922
      %1494 = vmatmul.mubr.bf16.gmra.mrb[0].mxu0 %v921
      %v1495 = vpop.f32.mrb[0].mxu0
      %v1496 = vadd.f32 0.0, %v1495
      %v1497 = vpop.f32.mrb[0].mxu0
      %v1498 = vpop.f32.mrb[0].mxu0
      %v1499 = vadd.f32 0.0, %v1498
      %v1500 = vpop.f32.mrb[0].mxu0
      %1501 = vmatprep.mubr.bf16.mxu0 %v926
      %1502 = vmatmul.mubr.bf16.gmra.mrb[0].mxu0 %v925
      %v1503 = vpop.f32.mrb[0].mxu0
      %v1504 = vadd.f32 0.0, %v1503
      %v1505 = vpop.f32.mrb[0].mxu0
      %v1506 = vpop.f32.mrb[0].mxu0
      %v1507 = vadd.f32 0.0, %v1506
      %v1508 = vpop.f32.mrb[0].mxu0
      %1509 = vmatprep.mubr.bf16.mxu0 %v930
      %1510 = vmatmul.mubr.bf16.gmra.mrb[0].mxu0 %v929
      %v1511 = vpop.f32.mrb[0].mxu0
      %v1512 = vadd.f32 0.0, %v1511
      %v1513 = vpop.f32.mrb[0].mxu0
      %v1514 = vpop.f32.mrb[0].mxu0
      %v1515 = vadd.f32 0.0, %v1514
      %v1516 = vpop.f32.mrb[0].mxu0
      %1517 = vmatprep.mubr.bf16.mxu0 %v934
      %1518 = vmatmul.mubr.bf16.gmra.mrb[0].mxu0 %v933
      %v1519 = vpop.f32.mrb[0].mxu0
      %v1520 = vadd.f32 0.0, %v1519
      %v1521 = vpop.f32.mrb[0].mxu0
      %v1522 = vpop.f32.mrb[0].mxu0
      %v1523 = vadd.f32 0.0, %v1522
      %v1524 = vpop.f32.mrb[0].mxu0
      %1525 = vmatprep.mubr.bf16.mxu0 %v938
      %1526 = vmatmul.mubr.bf16.gmra.mrb[0].mxu0 %v937
      %v1527 = vpop.f32.mrb[0].mxu0
      %v1528 = vadd.f32 0.0, %v1527
      %v1529 = vpop.f32.mrb[0].mxu0
      %v1530 = vpop.f32.mrb[0].mxu0
      %v1531 = vadd.f32 0.0, %v1530
      %v1532 = vpop.f32.mrb[0].mxu0
      %1533 = vmatprep.mubr.bf16.mxu0 %v942
      %1534 = vmatmul.mubr.bf16.gmra.mrb[0].mxu0 %v941
      %v1535 = vpop.f32.mrb[0].mxu0
      %v1536 = vadd.f32 0.0, %v1535
      %v1537 = vpop.f32.mrb[0].mxu0
      %v1538 = vpop.f32.mrb[0].mxu0
      %v1539 = vadd.f32 0.0, %v1538
      %v1540 = vpop.f32.mrb[0].mxu0
      %1541 = vmatprep.mubr.bf16.mxu0 %v946
      %1542 = vmatmul.mubr.bf16.gmra.mrb[0].mxu0 %v945
      %v1543 = vpop.f32.mrb[0].mxu0
      %v1544 = vadd.f32 0.0, %v1543
      %v1545 = vpop.f32.mrb[0].mxu0
      %v1546 = vpop.f32.mrb[0].mxu0
      %v1547 = vadd.f32 0.0, %v1546
      %v1548 = vpop.f32.mrb[0].mxu0
      %1549 = vmatprep.mubr.bf16.mxu0 %v950
      %1550 = vmatmul.mubr.bf16.gmra.mrb[0].mxu0 %v949
      %v1551 = vpop.f32.mrb[0].mxu0
      %v1552 = vadd.f32 0.0, %v1551
      %v1553 = vpop.f32.mrb[0].mxu0
      %v1554 = vpop.f32.mrb[0].mxu0
      %v1555 = vadd.f32 0.0, %v1554
      %v1556 = vpop.f32.mrb[0].mxu0
      %1557 = vmatprep.mubr.bf16.mxu0 %v954
      %1558 = vmatmul.mubr.bf16.gmra.mrb[0].mxu0 %v953
      %v1559 = vpop.f32.mrb[0].mxu0
      %v1560 = vadd.f32 0.0, %v1559
      %v1561 = vpop.f32.mrb[0].mxu0
      %v1562 = vpop.f32.mrb[0].mxu0
      %v1563 = vadd.f32 0.0, %v1562
      %v1564 = vpop.f32.mrb[0].mxu0
      %1565 = vdwg.mxu0
      %1566 = vmatprep.subr.bf16.mxu0 0
      %1567 = vmatpush1.bf16.msra.mxu0 %v1229
      %1568 = vmatprep.subr.bf16.mxu0 0
      %1569 = vmatpush1.bf16.msra.mxu0 %v1230
      %1570 = vmatprep.subr.bf16.mxu0 0
      %1571 = vmatpush1.bf16.msra.mxu0 %v1231
      %1572 = vmatprep.subr.bf16.mxu0 0
      %1573 = vmatpush1.bf16.msra.mxu0 %v1232
      %1574 = vmatprep.subr.bf16.mxu0 0
      %1575 = vmatpush1.bf16.msra.mxu0 %v1233
      %1576 = vmatprep.subr.bf16.mxu0 0
      %1577 = vmatpush1.bf16.msra.mxu0 %v1234
      %1578 = vmatprep.subr.bf16.mxu0 0
      %1579 = vmatpush1.bf16.msra.mxu0 %v1235
      %1580 = vmatprep.subr.bf16.mxu0 0
      %1581 = vmatpush1.bf16.msra.mxu0 %v1236
      %1582 = vmatprep.subr.bf16.mxu0 0
      %1583 = vmatpush1.bf16.msra.mxu0 %v1237
      %1584 = vmatprep.subr.bf16.mxu0 0
      %1585 = vmatpush1.bf16.msra.mxu0 %v1238
      %1586 = vmatprep.subr.bf16.mxu0 0
      %1587 = vmatpush1.bf16.msra.mxu0 %v1239
      %1588 = vmatprep.subr.bf16.mxu0 0
      %1589 = vmatpush1.bf16.msra.mxu0 %v1240
      %1590 = vmatprep.subr.bf16.mxu0 0
      %1591 = vmatpush1.bf16.msra.mxu0 %v1241
      %1592 = vmatprep.subr.bf16.mxu0 0
      %1593 = vmatpush1.bf16.msra.mxu0 %v1242
      %1594 = vmatprep.subr.bf16.mxu0 0
      %1595 = vmatpush1.bf16.msra.mxu0 %v1243
      %1596 = vmatprep.subr.bf16.mxu0 0
      %1597 = vmatpush1.bf16.msra.mxu0 %v1244
      %1598 = vmatprep.mubr.bf16.mxu0 %v832
      %1599 = vmatmul.mubr.bf16.gmra.mrb[0].mxu0 %v831
      %v1600 = vpop.f32.mrb[0].mxu0
      %v1601 = vadd.f32 %v1312, %v1600
      %v1602 = vpop.f32.mrb[0].mxu0
      %v1603 = vpop.f32.mrb[0].mxu0
      %v1604 = vadd.f32 %v1315, %v1603
      %v1605 = vpop.f32.mrb[0].mxu0
      %1606 = vmatprep.mubr.bf16.mxu0 %v836
      %1607 = vmatmul.mubr.bf16.gmra.mrb[0].mxu0 %v835
      %v1608 = vpop.f32.mrb[0].mxu0
      %v1609 = vadd.f32 %v1320, %v1608
      %v1610 = vpop.f32.mrb[0].mxu0
      %v1611 = vpop.f32.mrb[0].mxu0
      %v1612 = vadd.f32 %v1323, %v1611
      %v1613 = vpop.f32.mrb[0].mxu0
      %1614 = vmatprep.mubr.bf16.mxu0 %v840
      %1615 = vmatmul.mubr.bf16.gmra.mrb[0].mxu0 %v839
      %v1616 = vpop.f32.mrb[0].mxu0
      %v1617 = vadd.f32 %v1328, %v1616
      %v1618 = vpop.f32.mrb[0].mxu0
      %v1619 = vpop.f32.mrb[0].mxu0
      %v1620 = vadd.f32 %v1331, %v1619
      %v1621 = vpop.f32.mrb[0].mxu0
      %1622 = vmatprep.mubr.bf16.mxu0 %v844
      %1623 = vmatmul.mubr.bf16.gmra.mrb[0].mxu0 %v843
      %v1624 = vpop.f32.mrb[0].mxu0
      %v1625 = vadd.f32 %v1336, %v1624
      %v1626 = vpop.f32.mrb[0].mxu0
      %v1627 = vpop.f32.mrb[0].mxu0
      %v1628 = vadd.f32 %v1339, %v1627
      %v1629 = vpop.f32.mrb[0].mxu0
      %1630 = vmatprep.mubr.bf16.mxu0 %v848
      %1631 = vmatmul.mubr.bf16.gmra.mrb[0].mxu0 %v847
      %v1632 = vpop.f32.mrb[0].mxu0
      %v1633 = vadd.f32 %v1344, %v1632
      %v1634 = vpop.f32.mrb[0].mxu0
      %v1635 = vpop.f32.mrb[0].mxu0
      %v1636 = vadd.f32 %v1347, %v1635
      %v1637 = vpop.f32.mrb[0].mxu0
      %1638 = vmatprep.mubr.bf16.mxu0 %v852
      %1639 = vmatmul.mubr.bf16.gmra.mrb[0].mxu0 %v851
      %v1640 = vpop.f32.mrb[0].mxu0
      %v1641 = vadd.f32 %v1352, %v1640
      %v1642 = vpop.f32.mrb[0].mxu0
      %v1643 = vpop.f32.mrb[0].mxu0
      %v1644 = vadd.f32 %v1355, %v1643
      %v1645 = vpop.f32.mrb[0].mxu0
      %1646 = vmatprep.mubr.bf16.mxu0 %v856
      %1647 = vmatmul.mubr.bf16.gmra.mrb[0].mxu0 %v855
      %v1648 = vpop.f32.mrb[0].mxu0
      %v1649 = vadd.f32 %v1360, %v1648
      %v1650 = vpop.f32.mrb[0].mxu0
      %v1651 = vpop.f32.mrb[0].mxu0
      %v1652 = vadd.f32 %v1363, %v1651
      %v1653 = vpop.f32.mrb[0].mxu0
      %1654 = vmatprep.mubr.bf16.mxu0 %v860
      %1655 = vmatmul.mubr.bf16.gmra.mrb[0].mxu0 %v859
      %v1656 = vpop.f32.mrb[0].mxu0
      %v1657 = vadd.f32 %v1368, %v1656
      %v1658 = vpop.f32.mrb[0].mxu0
      %v1659 = vpop.f32.mrb[0].mxu0
      %v1660 = vadd.f32 %v1371, %v1659
      %v1661 = vpop.f32.mrb[0].mxu0
      %1662 = vmatprep.mubr.bf16.mxu0 %v864
      %1663 = vmatmul.mubr.bf16.gmra.mrb[0].mxu0 %v863
      %v1664 = vpop.f32.mrb[0].mxu0
      %v1665 = vadd.f32 %v1376, %v1664
      %v1666 = vpop.f32.mrb[0].mxu0
      %v1667 = vpop.f32.mrb[0].mxu0
      %v1668 = vadd.f32 %v1379, %v1667
      %v1669 = vpop.f32.mrb[0].mxu0
      %1670 = vmatprep.mubr.bf16.mxu0 %v868
      %1671 = vmatmul.mubr.bf16.gmra.mrb[0].mxu0 %v867
      %v1672 = vpop.f32.mrb[0].mxu0
      %v1673 = vadd.f32 %v1384, %v1672
      %v1674 = vpop.f32.mrb[0].mxu0
      %v1675 = vpop.f32.mrb[0].mxu0
      %v1676 = vadd.f32 %v1387, %v1675
      %v1677 = vpop.f32.mrb[0].mxu0
      %1678 = vmatprep.mubr.bf16.mxu0 %v872
      %1679 = vmatmul.mubr.bf16.gmra.mrb[0].mxu0 %v871
      %v1680 = vpop.f32.mrb[0].mxu0
      %v1681 = vadd.f32 %v1392, %v1680
      %v1682 = vpop.f32.mrb[0].mxu0
      %v1683 = vpop.f32.mrb[0].mxu0
      %v1684 = vadd.f32 %v1395, %v1683
      %v1685 = vpop.f32.mrb[0].mxu0
      %1686 = vmatprep.mubr.bf16.mxu0 %v876
      %1687 = vmatmul.mubr.bf16.gmra.mrb[0].mxu0 %v875
      %v1688 = vpop.f32.mrb[0].mxu0
      %v1689 = vadd.f32 %v1400, %v1688
      %v1690 = vpop.f32.mrb[0].mxu0
      %v1691 = vpop.f32.mrb[0].mxu0
      %v1692 = vadd.f32 %v1403, %v1691
      %v1693 = vpop.f32.mrb[0].mxu0
      %1694 = vmatprep.mubr.bf16.mxu0 %v880
      %1695 = vmatmul.mubr.bf16.gmra.mrb[0].mxu0 %v879
      %v1696 = vpop.f32.mrb[0].mxu0
      %v1697 = vadd.f32 %v1408, %v1696
      %v1698 = vpop.f32.mrb[0].mxu0
      %v1699 = vpop.f32.mrb[0].mxu0
      %v1700 = vadd.f32 %v1411, %v1699
      %v1701 = vpop.f32.mrb[0].mxu0
      %1702 = vmatprep.mubr.bf16.mxu0 %v884
      %1703 = vmatmul.mubr.bf16.gmra.mrb[0].mxu0 %v883
      %v1704 = vpop.f32.mrb[0].mxu0
      %v1705 = vadd.f32 %v1416, %v1704
      %v1706 = vpop.f32.mrb[0].mxu0
      %v1707 = vpop.f32.mrb[0].mxu0
      %v1708 = vadd.f32 %v1419, %v1707
      %v1709 = vpop.f32.mrb[0].mxu0
      %1710 = vmatprep.mubr.bf16.mxu0 %v888
      %1711 = vmatmul.mubr.bf16.gmra.mrb[0].mxu0 %v887
      %v1712 = vpop.f32.mrb[0].mxu0
      %v1713 = vadd.f32 %v1424, %v1712
      %v1714 = vpop.f32.mrb[0].mxu0
      %v1715 = vpop.f32.mrb[0].mxu0
      %v1716 = vadd.f32 %v1427, %v1715
      %v1717 = vpop.f32.mrb[0].mxu0
      %1718 = vmatprep.mubr.bf16.mxu0 %v892
      %1719 = vmatmul.mubr.bf16.gmra.mrb[0].mxu0 %v891
      %v1720 = vpop.f32.mrb[0].mxu0
      %v1721 = vadd.f32 %v1432, %v1720
      %v1722 = vpop.f32.mrb[0].mxu0
      %v1723 = vpop.f32.mrb[0].mxu0
      %v1724 = vadd.f32 %v1435, %v1723
      %v1725 = vpop.f32.mrb[0].mxu0
      %1726 = vmatprep.mubr.bf16.mxu0 %v896
      %1727 = vmatmul.mubr.bf16.gmra.mrb[0].mxu0 %v895
      %v1728 = vpop.f32.mrb[0].mxu0
      %v1729 = vadd.f32 %v1440, %v1728
      %v1730 = vpop.f32.mrb[0].mxu0
      %v1731 = vpop.f32.mrb[0].mxu0
      %v1732 = vadd.f32 %v1443, %v1731
      %v1733 = vpop.f32.mrb[0].mxu0
      %1734 = vmatprep.mubr.bf16.mxu0 %v900
      %1735 = vmatmul.mubr.bf16.gmra.mrb[0].mxu0 %v899
      %v1736 = vpop.f32.mrb[0].mxu0
      %v1737 = vadd.f32 %v1448, %v1736
      %v1738 = vpop.f32.mrb[0].mxu0
      %v1739 = vpop.f32.mrb[0].mxu0
      %v1740 = vadd.f32 %v1451, %v1739
      %v1741 = vpop.f32.mrb[0].mxu0
      %1742 = vmatprep.mubr.bf16.mxu0 %v904
      %1743 = vmatmul.mubr.bf16.gmra.mrb[0].mxu0 %v903
      %v1744 = vpop.f32.mrb[0].mxu0
      %v1745 = vadd.f32 %v1456, %v1744
      %v1746 = vpop.f32.mrb[0].mxu0
      %v1747 = vpop.f32.mrb[0].mxu0
      %v1748 = vadd.f32 %v1459, %v1747
      %v1749 = vpop.f32.mrb[0].mxu0
      %1750 = vmatprep.mubr.bf16.mxu0 %v908
      %1751 = vmatmul.mubr.bf16.gmra.mrb[0].mxu0 %v907
      %v1752 = vpop.f32.mrb[0].mxu0
      %v1753 = vadd.f32 %v1464, %v1752
      %v1754 = vpop.f32.mrb[0].mxu0
      %v1755 = vpop.f32.mrb[0].mxu0
      %v1756 = vadd.f32 %v1467, %v1755
      %v1757 = vpop.f32.mrb[0].mxu0
      %1758 = vmatprep.mubr.bf16.mxu0 %v912
      %1759 = vmatmul.mubr.bf16.gmra.mrb[0].mxu0 %v911
      %v1760 = vpop.f32.mrb[0].mxu0
      %v1761 = vadd.f32 %v1472, %v1760
      %v1762 = vpop.f32.mrb[0].mxu0
      %v1763 = vpop.f32.mrb[0].mxu0
      %v1764 = vadd.f32 %v1475, %v1763
      %v1765 = vpop.f32.mrb[0].mxu0
      %1766 = vmatprep.mubr.bf16.mxu0 %v916
      %1767 = vmatmul.mubr.bf16.gmra.mrb[0].mxu0 %v915
      %v1768 = vpop.f32.mrb[0].mxu0
      %v1769 = vadd.f32 %v1480, %v1768
      %v1770 = vpop.f32.mrb[0].mxu0
      %v1771 = vpop.f32.mrb[0].mxu0
      %v1772 = vadd.f32 %v1483, %v1771
      %v1773 = vpop.f32.mrb[0].mxu0
      %1774 = vmatprep.mubr.bf16.mxu0 %v920
      %1775 = vmatmul.mubr.bf16.gmra.mrb[0].mxu0 %v919
      %v1776 = vpop.f32.mrb[0].mxu0
      %v1777 = vadd.f32 %v1488, %v1776
      %v1778 = vpop.f32.mrb[0].mxu0
      %v1779 = vpop.f32.mrb[0].mxu0
      %v1780 = vadd.f32 %v1491, %v1779
      %v1781 = vpop.f32.mrb[0].mxu0
      %1782 = vmatprep.mubr.bf16.mxu0 %v924
      %1783 = vmatmul.mubr.bf16.gmra.mrb[0].mxu0 %v923
      %v1784 = vpop.f32.mrb[0].mxu0
      %v1785 = vadd.f32 %v1496, %v1784
      %v1786 = vpop.f32.mrb[0].mxu0
      %v1787 = vpop.f32.mrb[0].mxu0
      %v1788 = vadd.f32 %v1499, %v1787
      %v1789 = vpop.f32.mrb[0].mxu0
      %1790 = vmatprep.mubr.bf16.mxu0 %v928
      %1791 = vmatmul.mubr.bf16.gmra.mrb[0].mxu0 %v927
      %v1792 = vpop.f32.mrb[0].mxu0
      %v1793 = vadd.f32 %v1504, %v1792
      %v1794 = vpop.f32.mrb[0].mxu0
      %v1795 = vpop.f32.mrb[0].mxu0
      %v1796 = vadd.f32 %v1507, %v1795
      %v1797 = vpop.f32.mrb[0].mxu0
      %1798 = vmatprep.mubr.bf16.mxu0 %v932
      %1799 = vmatmul.mubr.bf16.gmra.mrb[0].mxu0 %v931
      %v1800 = vpop.f32.mrb[0].mxu0
      %v1801 = vadd.f32 %v1512, %v1800
      %v1802 = vpop.f32.mrb[0].mxu0
      %v1803 = vpop.f32.mrb[0].mxu0
      %v1804 = vadd.f32 %v1515, %v1803
      %v1805 = vpop.f32.mrb[0].mxu0
      %1806 = vmatprep.mubr.bf16.mxu0 %v936
      %1807 = vmatmul.mubr.bf16.gmra.mrb[0].mxu0 %v935
      %v1808 = vpop.f32.mrb[0].mxu0
      %v1809 = vadd.f32 %v1520, %v1808
      %v1810 = vpop.f32.mrb[0].mxu0
      %v1811 = vpop.f32.mrb[0].mxu0
      %v1812 = vadd.f32 %v1523, %v1811
      %v1813 = vpop.f32.mrb[0].mxu0
      %1814 = vmatprep.mubr.bf16.mxu0 %v940
      %1815 = vmatmul.mubr.bf16.gmra.mrb[0].mxu0 %v939
      %v1816 = vpop.f32.mrb[0].mxu0
      %v1817 = vadd.f32 %v1528, %v1816
      %v1818 = vpop.f32.mrb[0].mxu0
      %v1819 = vpop.f32.mrb[0].mxu0
      %v1820 = vadd.f32 %v1531, %v1819
      %v1821 = vpop.f32.mrb[0].mxu0
      %1822 = vmatprep.mubr.bf16.mxu0 %v944
      %1823 = vmatmul.mubr.bf16.gmra.mrb[0].mxu0 %v943
      %v1824 = vpop.f32.mrb[0].mxu0
      %v1825 = vadd.f32 %v1536, %v1824
      %v1826 = vpop.f32.mrb[0].mxu0
      %v1827 = vpop.f32.mrb[0].mxu0
      %v1828 = vadd.f32 %v1539, %v1827
      %v1829 = vpop.f32.mrb[0].mxu0
      %1830 = vmatprep.mubr.bf16.mxu0 %v948
      %1831 = vmatmul.mubr.bf16.gmra.mrb[0].mxu0 %v947
      %v1832 = vpop.f32.mrb[0].mxu0
      %v1833 = vadd.f32 %v1544, %v1832
      %v1834 = vpop.f32.mrb[0].mxu0
      %v1835 = vpop.f32.mrb[0].mxu0
      %v1836 = vadd.f32 %v1547, %v1835
      %v1837 = vpop.f32.mrb[0].mxu0
      %1838 = vmatprep.mubr.bf16.mxu0 %v952
      %1839 = vmatmul.mubr.bf16.gmra.mrb[0].mxu0 %v951
      %v1840 = vpop.f32.mrb[0].mxu0
      %v1841 = vadd.f32 %v1552, %v1840
      %v1842 = vpop.f32.mrb[0].mxu0
      %v1843 = vpop.f32.mrb[0].mxu0
      %v1844 = vadd.f32 %v1555, %v1843
      %v1845 = vpop.f32.mrb[0].mxu0
      %1846 = vmatprep.mubr.bf16.mxu0 %v956
      %1847 = vmatmul.mubr.bf16.gmra.mrb[0].mxu0 %v955
      %v1848 = vpop.f32.mrb[0].mxu0
      %v1849 = vadd.f32 %v1560, %v1848
      %v1850 = vpop.f32.mrb[0].mxu0
      %v1851 = vpop.f32.mrb[0].mxu0
      %v1852 = vadd.f32 %v1563, %v1851
      %v1853 = vpop.f32.mrb[0].mxu0
      %1854 = vdwg.mxu0
      %1855 = vst [vmem:[%s243] sm:$0xff] %v1601
      %1856 = vst [vmem:[%s243 + $0x8] sm:$0xff] %v1604
      %1857 = vst [vmem:[%s243 + $0x10] sm:$0xff] %v1609
      %1858 = vst [vmem:[%s243 + $0x18] sm:$0xff] %v1612
      %1859 = vst [vmem:[%s243 + $0x20] sm:$0xff] %v1617
      %1860 = vst [vmem:[%s243 + $0x28] sm:$0xff] %v1620
      %1861 = vst [vmem:[%s243 + $0x30] sm:$0xff] %v1625
      %1862 = vst [vmem:[%s243 + $0x38] sm:$0xff] %v1628
      %1863 = vst [vmem:[%s243 + $0x40] sm:$0xff] %v1633
      %1864 = vst [vmem:[%s243 + $0x48] sm:$0xff] %v1636
      %1865 = vst [vmem:[%s243 + $0x50] sm:$0xff] %v1641
      %1866 = vst [vmem:[%s243 + $0x58] sm:$0xff] %v1644
      %1867 = vst [vmem:[%s243 + $0x60] sm:$0xff] %v1649
      %1868 = vst [vmem:[%s243 + $0x68] sm:$0xff] %v1652
      %1869 = vst [vmem:[%s243 + $0x70] sm:$0xff] %v1657
      %1870 = vst [vmem:[%s243 + $0x78] sm:$0xff] %v1660
      %1871 = vst [vmem:[%s243 + $0x80] sm:$0xff] %v1665
      %1872 = vst [vmem:[%s243 + $0x88] sm:$0xff] %v1668
      %1873 = vst [vmem:[%s243 + $0x90] sm:$0xff] %v1673
      %1874 = vst [vmem:[%s243 + $0x98] sm:$0xff] %v1676
      %1875 = vst [vmem:[%s243 + $0xa0] sm:$0xff] %v1681
      %1876 = vst [vmem:[%s243 + $0xa8] sm:$0xff] %v1684
      %1877 = vst [vmem:[%s243 + $0xb0] sm:$0xff] %v1689
      %1878 = vst [vmem:[%s243 + $0xb8] sm:$0xff] %v1692
      %1879 = vst [vmem:[%s243 + $0xc0] sm:$0xff] %v1697
      %1880 = vst [vmem:[%s243 + $0xc8] sm:$0xff] %v1700
      %1881 = vst [vmem:[%s243 + $0xd0] sm:$0xff] %v1705
      %1882 = vst [vmem:[%s243 + $0xd8] sm:$0xff] %v1708
      %1883 = vst [vmem:[%s243 + $0xe0] sm:$0xff] %v1713
      %1884 = vst [vmem:[%s243 + $0xe8] sm:$0xff] %v1716
      %1885 = vst [vmem:[%s243 + $0xf0] sm:$0xff] %v1721
      %1886 = vst [vmem:[%s243 + $0xf8] sm:$0xff] %v1724
      %1887 = vst [vmem:[%s243 + $0x100] sm:$0xff] %v1729
      %1888 = vst [vmem:[%s243 + $0x108] sm:$0xff] %v1732
      %1889 = vst [vmem:[%s243 + $0x110] sm:$0xff] %v1737
      %1890 = vst [vmem:[%s243 + $0x118] sm:$0xff] %v1740
      %1891 = vst [vmem:[%s243 + $0x120] sm:$0xff] %v1745
      %1892 = vst [vmem:[%s243 + $0x128] sm:$0xff] %v1748
      %1893 = vst [vmem:[%s243 + $0x130] sm:$0xff] %v1753
      %1894 = vst [vmem:[%s243 + $0x138] sm:$0xff] %v1756
      %1895 = vst [vmem:[%s243 + $0x140] sm:$0xff] %v1761
      %1896 = vst [vmem:[%s243 + $0x148] sm:$0xff] %v1764
      %1897 = vst [vmem:[%s243 + $0x150] sm:$0xff] %v1769
      %1898 = vst [vmem:[%s243 + $0x158] sm:$0xff] %v1772
      %1899 = vst [vmem:[%s243 + $0x160] sm:$0xff] %v1777
      %1900 = vst [vmem:[%s243 + $0x168] sm:$0xff] %v1780
      %1901 = vst [vmem:[%s243 + $0x170] sm:$0xff] %v1785
      %1902 = vst [vmem:[%s243 + $0x178] sm:$0xff] %v1788
      %1903 = vst [vmem:[%s243 + $0x180] sm:$0xff] %v1793
      %1904 = vst [vmem:[%s243 + $0x188] sm:$0xff] %v1796
      %1905 = vst [vmem:[%s243 + $0x190] sm:$0xff] %v1801
      %1906 = vst [vmem:[%s243 + $0x198] sm:$0xff] %v1804
      %1907 = vst [vmem:[%s243 + $0x1a0] sm:$0xff] %v1809
      %1908 = vst [vmem:[%s243 + $0x1a8] sm:$0xff] %v1812
      %1909 = vst [vmem:[%s243 + $0x1b0] sm:$0xff] %v1817
      %1910 = vst [vmem:[%s243 + $0x1b8] sm:$0xff] %v1820
      %1911 = vst [vmem:[%s243 + $0x1c0] sm:$0xff] %v1825
      %1912 = vst [vmem:[%s243 + $0x1c8] sm:$0xff] %v1828
      %1913 = vst [vmem:[%s243 + $0x1d0] sm:$0xff] %v1833
      %1914 = vst [vmem:[%s243 + $0x1d8] sm:$0xff] %v1836
      %1915 = vst [vmem:[%s243 + $0x1e0] sm:$0xff] %v1841
      %1916 = vst [vmem:[%s243 + $0x1e8] sm:$0xff] %v1844
      %1917 = vst [vmem:[%s243 + $0x1f0] sm:$0xff] %v1849
      %1918 = vst [vmem:[%s243 + $0x1f8] sm:$0xff] %v1852
      %v1919 = vadd.f32 %v1601, %v1604
      %v1920 = vadd.f32 %v1919, %v1609
      %v1921 = vadd.f32 %v1920, %v1612
      %v1922 = vadd.f32 %v1921, %v1617
      %v1923 = vadd.f32 %v1922, %v1620
      %v1924 = vadd.f32 %v1923, %v1625
      %v1925 = vadd.f32 %v1924, %v1628
      %v1926 = vadd.f32 %v1925, %v1633
      %v1927 = vadd.f32 %v1926, %v1636
      %v1928 = vadd.f32 %v1927, %v1641
      %v1929 = vadd.f32 %v1928, %v1644
      %v1930 = vadd.f32 %v1929, %v1649
      %v1931 = vadd.f32 %v1930, %v1652
      %v1932 = vadd.f32 %v1931, %v1657
      %v1933 = vadd.f32 %v1932, %v1660
      %v1934 = vadd.f32 %v1933, %v1665
      %v1935 = vadd.f32 %v1934, %v1668
      %v1936 = vadd.f32 %v1935, %v1673
      %v1937 = vadd.f32 %v1936, %v1676
      %v1938 = vadd.f32 %v1937, %v1681
      %v1939 = vadd.f32 %v1938, %v1684
      %v1940 = vadd.f32 %v1939, %v1689
      %v1941 = vadd.f32 %v1940, %v1692
      %v1942 = vadd.f32 %v1941, %v1697
      %v1943 = vadd.f32 %v1942, %v1700
      %v1944 = vadd.f32 %v1943, %v1705
      %v1945 = vadd.f32 %v1944, %v1708
      %v1946 = vadd.f32 %v1945, %v1713
      %v1947 = vadd.f32 %v1946, %v1716
      %v1948 = vadd.f32 %v1947, %v1721
      %v1949 = vadd.f32 %v1948, %v1724
      %v1950 = vadd.f32 %v1949, %v1729
      %v1951 = vadd.f32 %v1950, %v1732
      %v1952 = vadd.f32 %v1951, %v1737
      %v1953 = vadd.f32 %v1952, %v1740
      %v1954 = vadd.f32 %v1953, %v1745
      %v1955 = vadd.f32 %v1954, %v1748
      %v1956 = vadd.f32 %v1955, %v1753
      %v1957 = vadd.f32 %v1956, %v1756
      %v1958 = vadd.f32 %v1957, %v1761
      %v1959 = vadd.f32 %v1958, %v1764
      %v1960 = vadd.f32 %v1959, %v1769
      %v1961 = vadd.f32 %v1960, %v1772
      %v1962 = vadd.f32 %v1961, %v1777
      %v1963 = vadd.f32 %v1962, %v1780
      %v1964 = vadd.f32 %v1963, %v1785
      %v1965 = vadd.f32 %v1964, %v1788
      %v1966 = vadd.f32 %v1965, %v1793
      %v1967 = vadd.f32 %v1966, %v1796
      %v1968 = vadd.f32 %v1967, %v1801
      %v1969 = vadd.f32 %v1968, %v1804
      %v1970 = vadd.f32 %v1969, %v1809
      %v1971 = vadd.f32 %v1970, %v1812
      %v1972 = vadd.f32 %v1971, %v1817
      %v1973 = vadd.f32 %v1972, %v1820
      %v1974 = vadd.f32 %v1973, %v1825
      %v1975 = vadd.f32 %v1974, %v1828
      %v1976 = vadd.f32 %v1975, %v1833
      %v1977 = vadd.f32 %v1976, %v1836
      %v1978 = vadd.f32 %v1977, %v1841
      %v1979 = vadd.f32 %v1978, %v1844
      %v1980 = vadd.f32 %v1979, %v1849
      %v1981 = vadd.f32 %v1980, %v1852
      %v1982 = vrot.slane %v1981, 4
      %v1983 = vadd.f32 %v1981, %v1982
      %v1984 = vrot.slane %v1983, 2
      %v1985 = vadd.f32 %v1983, %v1984
      %v1986 = vrot.slane %v1985, 1
      %v1987 = vadd.f32 %v1985, %v1986
      %v1988 = vmul.f32 %v1601, %v1601
      %v1989 = vmul.f32 %v1604, %v1604
      %v1990 = vmul.f32 %v1609, %v1609
      %v1991 = vmul.f32 %v1612, %v1612
      %v1992 = vmul.f32 %v1617, %v1617
      %v1993 = vmul.f32 %v1620, %v1620
      %v1994 = vmul.f32 %v1625, %v1625
      %v1995 = vmul.f32 %v1628, %v1628
      %v1996 = vmul.f32 %v1633, %v1633
      %v1997 = vmul.f32 %v1636, %v1636
      %v1998 = vmul.f32 %v1641, %v1641
      %v1999 = vmul.f32 %v1644, %v1644
      %v2000 = vmul.f32 %v1649, %v1649
      %v2001 = vmul.f32 %v1652, %v1652
      %v2002 = vmul.f32 %v1657, %v1657
      %v2003 = vmul.f32 %v1660, %v1660
      %v2004 = vmul.f32 %v1665, %v1665
      %v2005 = vmul.f32 %v1668, %v1668
      %v2006 = vmul.f32 %v1673, %v1673
      %v2007 = vmul.f32 %v1676, %v1676
      %v2008 = vmul.f32 %v1681, %v1681
      %v2009 = vmul.f32 %v1684, %v1684
      %v2010 = vmul.f32 %v1689, %v1689
      %v2011 = vmul.f32 %v1692, %v1692
      %v2012 = vmul.f32 %v1697, %v1697
      %v2013 = vmul.f32 %v1700, %v1700
      %v2014 = vmul.f32 %v1705, %v1705
      %v2015 = vmul.f32 %v1708, %v1708
      %v2016 = vmul.f32 %v1713, %v1713
      %v2017 = vmul.f32 %v1716, %v1716
      %v2018 = vmul.f32 %v1721, %v1721
      %v2019 = vmul.f32 %v1724, %v1724
      %v2020 = vmul.f32 %v1729, %v1729
      %v2021 = vmul.f32 %v1732, %v1732
      %v2022 = vmul.f32 %v1737, %v1737
      %v2023 = vmul.f32 %v1740, %v1740
      %v2024 = vmul.f32 %v1745, %v1745
      %v2025 = vmul.f32 %v1748, %v1748
      %v2026 = vmul.f32 %v1753, %v1753
      %v2027 = vmul.f32 %v1756, %v1756
      %v2028 = vmul.f32 %v1761, %v1761
      %v2029 = vmul.f32 %v1764, %v1764
      %v2030 = vmul.f32 %v1769, %v1769
      %v2031 = vmul.f32 %v1772, %v1772
      %v2032 = vmul.f32 %v1777, %v1777
      %v2033 = vmul.f32 %v1780, %v1780
      %v2034 = vmul.f32 %v1785, %v1785
      %v2035 = vmul.f32 %v1788, %v1788
      %v2036 = vmul.f32 %v1793, %v1793
      %v2037 = vmul.f32 %v1796, %v1796
      %v2038 = vmul.f32 %v1801, %v1801
      %v2039 = vmul.f32 %v1804, %v1804
      %v2040 = vmul.f32 %v1809, %v1809
      %v2041 = vmul.f32 %v1812, %v1812
      %v2042 = vmul.f32 %v1817, %v1817
      %v2043 = vmul.f32 %v1820, %v1820
      %v2044 = vmul.f32 %v1825, %v1825
      %v2045 = vmul.f32 %v1828, %v1828
      %v2046 = vmul.f32 %v1833, %v1833
      %v2047 = vmul.f32 %v1836, %v1836
      %v2048 = vmul.f32 %v1841, %v1841
      %v2049 = vmul.f32 %v1844, %v1844
      %v2050 = vmul.f32 %v1849, %v1849
      %v2051 = vmul.f32 %v1852, %v1852
      %v2052 = vadd.f32 %v1988, %v1989
      %v2053 = vadd.f32 %v2052, %v1990
      %v2054 = vadd.f32 %v2053, %v1991
      %v2055 = vadd.f32 %v2054, %v1992
      %v2056 = vadd.f32 %v2055, %v1993
      %v2057 = vadd.f32 %v2056, %v1994
      %v2058 = vadd.f32 %v2057, %v1995
      %v2059 = vadd.f32 %v2058, %v1996
      %v2060 = vadd.f32 %v2059, %v1997
      %v2061 = vadd.f32 %v2060, %v1998
      %v2062 = vadd.f32 %v2061, %v1999
      %v2063 = vadd.f32 %v2062, %v2000
      %v2064 = vadd.f32 %v2063, %v2001
      %v2065 = vadd.f32 %v2064, %v2002
      %v2066 = vadd.f32 %v2065, %v2003
      %v2067 = vadd.f32 %v2066, %v2004
      %v2068 = vadd.f32 %v2067, %v2005
      %v2069 = vadd.f32 %v2068, %v2006
      %v2070 = vadd.f32 %v2069, %v2007
      %v2071 = vadd.f32 %v2070, %v2008
      %v2072 = vadd.f32 %v2071, %v2009
      %v2073 = vadd.f32 %v2072, %v2010
      %v2074 = vadd.f32 %v2073, %v2011
      %v2075 = vadd.f32 %v2074, %v2012
      %v2076 = vadd.f32 %v2075, %v2013
      %v2077 = vadd.f32 %v2076, %v2014
      %v2078 = vadd.f32 %v2077, %v2015
      %v2079 = vadd.f32 %v2078, %v2016
      %v2080 = vadd.f32 %v2079, %v2017
      %v2081 = vadd.f32 %v2080, %v2018
      %v2082 = vadd.f32 %v2081, %v2019
      %v2083 = vadd.f32 %v2082, %v2020
      %v2084 = vadd.f32 %v2083, %v2021
      %v2085 = vadd.f32 %v2084, %v2022
      %v2086 = vadd.f32 %v2085, %v2023
      %v2087 = vadd.f32 %v2086, %v2024
      %v2088 = vadd.f32 %v2087, %v2025
      %v2089 = vadd.f32 %v2088, %v2026
      %v2090 = vadd.f32 %v2089, %v2027
      %v2091 = vadd.f32 %v2090, %v2028
      %v2092 = vadd.f32 %v2091, %v2029
      %v2093 = vadd.f32 %v2092, %v2030
      %v2094 = vadd.f32 %v2093, %v2031
      %v2095 = vadd.f32 %v2094, %v2032
      %v2096 = vadd.f32 %v2095, %v2033
      %v2097 = vadd.f32 %v2096, %v2034
      %v2098 = vadd.f32 %v2097, %v2035
      %v2099 = vadd.f32 %v2098, %v2036
      %v2100 = vadd.f32 %v2099, %v2037
      %v2101 = vadd.f32 %v2100, %v2038
      %v2102 = vadd.f32 %v2101, %v2039
      %v2103 = vadd.f32 %v2102, %v2040
      %v2104 = vadd.f32 %v2103, %v2041
      %v2105 = vadd.f32 %v2104, %v2042
      %v2106 = vadd.f32 %v2105, %v2043
      %v2107 = vadd.f32 %v2106, %v2044
      %v2108 = vadd.f32 %v2107, %v2045
      %v2109 = vadd.f32 %v2108, %v2046
      %v2110 = vadd.f32 %v2109, %v2047
      %v2111 = vadd.f32 %v2110, %v2048
      %v2112 = vadd.f32 %v2111, %v2049
      %v2113 = vadd.f32 %v2112, %v2050
      %v2114 = vadd.f32 %v2113, %v2051
      %v2115 = vrot.slane %v2114, 4
      %v2116 = vadd.f32 %v2114, %v2115
      %v2117 = vrot.slane %v2116, 2
      %v2118 = vadd.f32 %v2116, %v2117
      %v2119 = vrot.slane %v2118, 1
      %v2120 = vadd.f32 %v2118, %v2119
      %vm2121 = vcmask 1040384
      %v2122 = vsel %vm2121, %v1987, %v2120
      %2123 = vst [vmem:[%s251] sm:$0x3] %v2122
      %s2124 = smul.u32 64, %s20
      %p2125 = scmp.lt.s32.totalorder %s19, 3
      %s2126 = scalar_select %p2125, %s19, 3
      %p2127 = scmp.lt.s32.totalorder %s2124, 63
      %s2128 = scalar_select %p2127, %s2124, 63
      %s2129 = smul.addr %s2126, 64
      %s2130 = sadd.s32 %s2128, %s2129
      %s2131 = smul.addr %s2130, 8
      %s2132 = scalar_lea.vmem %s2, %s2131
      %p2133 = scmp.lt.s32.totalorder %s19, 3
      %s2134 = scalar_select %p2133, %s19, 3
      %p2135 = scmp.lt.s32.totalorder %s20, 0
      %s2136 = scalar_select %p2135, %s20, 0
      %s2137 = sadd.s32 %s2136, %s2134
      %s2138 = smul.addr %s2137, 2
      %s2139 = scalar_lea.vmem %s3, %s2138
      // Predicated region
      $region29: #{generator_forward.15} parent=27 // pred_check
        %p2140 = pneg %p101
      $region30: #{generator_forward.15} parent=27 // pred_check_branch
        %2142 = sbr.rel (%p2140) target = $region32
      $region31: #{generator_forward.15} parent=27 // pred_region
        %s2143 = smul.u32 64, %s20
      $region32: #{generator_forward.15} parent=27 // pred_fallthru
        _
      // Predicated region
      $region33: #{generator_forward.15} parent=27 // pred_check
        %p2144 = pneg %p129
      $region34: #{generator_forward.15} parent=27 // pred_check_branch
        %2146 = sbr.rel (%p2144) target = $region36
      $region35: #{generator_forward.15} parent=27 // pred_region
        _
      $region36: #{generator_forward.15} parent=27 // pred_fallthru
        _
    $region28: #{generator_forward.15} parent=5 // pred_fallthru
      _
    %p2147 = scmp.le.s32.totalorder 2, %s10
    // Predicated region
    $region37: #{generator_forward.15} parent=5 // pred_check
      %p2148 = pneg %p2147
    $region38: #{generator_forward.15} parent=5 // pred_check_branch
      %2150 = sbr.rel (%p2148) target = $region40
    $region39: #{generator_forward.15} parent=5 // pred_region
      %s2151 = ssub.s32 %s10, 2
      // Predicated region
      $region41: #{generator_forward.15} parent=39 // pred_check
        %p2152 = pneg %p107
      $region42: #{generator_forward.15} parent=39 // pred_check_branch
        %2154 = sbr.rel (%p2152) target = $region44
      $region43: #{generator_forward.15} parent=39 // pred_region
        %s2155 = smul.u32 64, %s22
        %p2156 = scmp.lt.s32.totalorder %s21, 3
        %s2157 = scalar_select %p2156, %s21, 3
        %p2158 = scmp.lt.s32.totalorder %s2155, 63
        %s2159 = scalar_select %p2158, %s2155, 63
        %s2160 = smul.addr %s2157, 64
        %s2161 = sadd.s32 %s2159, %s2160
        %s2162 = smul.addr %s2161, 8
        %s2163 = scalar_lea.vmem %s2, %s2162
      $region44: #{generator_forward.15} parent=39 // pred_fallthru
        _
      // Predicated region
      $region45: #{generator_forward.15} parent=39 // pred_check
        %p2164 = pneg %p135
      $region46: #{generator_forward.15} parent=39 // pred_check_branch
        %2166 = sbr.rel (%p2164) target = $region48
      $region47: #{generator_forward.15} parent=39 // pred_region
        %p2167 = scmp.lt.s32.totalorder %s21, 3
        %s2168 = scalar_select %p2167, %s21, 3
        %p2169 = scmp.lt.s32.totalorder %s22, 0
        %s2170 = scalar_select %p2169, %s22, 0
        %s2171 = sadd.s32 %s2170, %s2168
        %s2172 = smul.addr %s2171, 2
        %s2173 = scalar_lea.vmem %s3, %s2172
      $region48: #{generator_forward.15} parent=39 // pred_fallthru
        _
    $region40: #{generator_forward.15} parent=5 // pred_fallthru
      _
  $region6: #{generator_forward.15} parent=0 // loop_footer
    %s14 = sadd.s32 1, %s10
  $region7: #{generator_forward.15} parent=0 // loop_footer_branch
    %9 = sbr.rel target = $region3
  $region8: #{generator_forward.15} parent=0 // loop_exit
    _

// kernel: generator_forward.17
$region0: #{generator_forward.17}
  #allocation0 [shape = 'u32[]', space=smem, size = 0x4, offset = 0x4, fixed_abs, tag = 'smem constant byte address 0x4 - core index']
  #allocation1 [shape = 'u32[144,128]{1,0:T(1,128)}', space=vmem, size = 0x12000, scoped, tag = 'internal scratch']
  %s0 = inlined_call_operand.vmem [shape: bf16[4,2048,512], index: 0, kind: input, shape index: {}]
  %s1 = inlined_call_operand.vmem [shape: bf16[4,512,128], index: 1, kind: input, shape index: {}]
  %s2 = inlined_call_operand.vmem [shape: f32[1,128], index: 2, kind: input, shape index: {}]
  %s3 = inlined_call_operand.vmem [shape: f32[4,2048,128], index: 3, kind: output, shape index: {}]
  %s4 = sld [smem:[#allocation0]]
  $region45: #{generator_forward.17} parent=0
    _
  %s6 = ssub.s32 1, %s4
  %s7 = scalar_select 0, %s6, %s4
  loop: start=0, step=1, limit=10
  $region2: #{generator_forward.17} parent=0 // loop_pre_header
    _
  $region3: #{generator_forward.17} parent=0 // loop_header
    %s9 = sphi 0, %s13
    %p10 = scmp.ge.s32.totalorder %s9, 10
    %s16 = sphi 0, %s28
    %s17 = sphi 0, %s24
    %s18 = sphi 0, %s16
    %s19 = sphi 0, %s17
    %s20 = sphi 0, %s18
    %s21 = sphi 0, %s19
    %s33 = sphi 0, %s35
    %s36 = sphi 0, %s33
    %s37 = sphi 0, %s36
    %s53 = sphi 0, %s37
    %s59 = sphi 0, %s61
    %s62 = sphi 0, %s59
    %s63 = sphi 0, %s62
    %s79 = sphi 0, %s63
    %s83 = sphi 0, %s83
    %s85 = sphi 0, %s83
    %s86 = sphi 0, %s85
    %s100 = sphi 0, %s86
    %s108 = sphi 0, %s110
    %s111 = sphi 0, %s108
    %s112 = sphi 0, %s111
    %s128 = sphi 0, %s112
  $region4: #{generator_forward.17} parent=0 // loop_header_branch
    %12 = sbr.rel (%p10) target = $region8
  $region5: #{generator_forward.17} parent=0 // loop_body
    %s14 = ssub.s32 %s9, 1
    %s15 = ssub.s32 %s9, 2
    %s22 = sadd.s32 1, %s17
    %p23 = scmp.ge.s32.totalorder %s22, 2
    %s24 = scalar_select %p23, 0, %s22
    %s25 = sadd.s32 1, %s16
    %s26 = scalar_select %p23, %s25, %s16
    %p27 = scmp.ge.s32.totalorder %s26, 4
    %s28 = scalar_select %p27, 0, %s26
    %s29 = ssub.s32 %s16, %s28
    %s30 = ssub.s32 %s17, %s24
    %s31 = sor.u32 %s29, %s30
    %p32 = scmp.eq.s32.totalorder %s31, 0
    %s34 = sadd.s32 %s33, 1
    %s35 = scalar_select %p32, %s33, %s34
    %p38 = pneg %p32
    %p39 = scmp.eq.s32.totalorder %s9, 7
    %p40 = por %p38, %p39
    %p41 = scmp.ne.s32.totalorder %s33, %s36
    %p42 = scmp.eq.s32.totalorder %s9, 0
    %p43 = por %p41, %p42
    %p44 = scmp.ne.s32.totalorder %s33, %s36
    %p45 = scmp.eq.s32.totalorder %s14, 7
    %p46 = por %p44, %p45
    %p47 = scmp.ne.s32.totalorder %s36, %s37
    %p48 = scmp.eq.s32.totalorder %s14, 0
    %p49 = por %p47, %p48
    %p50 = scmp.ne.s32.totalorder %s36, %s37
    %p51 = scmp.eq.s32.totalorder %s15, 7
    %p52 = por %p50, %p51
    %p54 = scmp.ne.s32.totalorder %s37, %s53
    %p55 = scmp.eq.s32.totalorder %s15, 0
    %p56 = por %p54, %p55
    %s57 = ssub.s32 %s16, %s28
    %p58 = scmp.eq.s32.totalorder %s57, 0
    %s60 = sadd.s32 %s59, 1
    %s61 = scalar_select %p58, %s59, %s60
    %p64 = pneg %p58
    %p65 = scmp.eq.s32.totalorder %s9, 7
    %p66 = por %p64, %p65
    %p67 = scmp.ne.s32.totalorder %s59, %s62
    %p68 = scmp.eq.s32.totalorder %s9, 0
    %p69 = por %p67, %p68
    %p70 = scmp.ne.s32.totalorder %s59, %s62
    %p71 = scmp.eq.s32.totalorder %s14, 7
    %p72 = por %p70, %p71
    %p73 = scmp.ne.s32.totalorder %s62, %s63
    %p74 = scmp.eq.s32.totalorder %s14, 0
    %p75 = por %p73, %p74
    %p76 = scmp.ne.s32.totalorder %s62, %s63
    %p77 = scmp.eq.s32.totalorder %s15, 7
    %p78 = por %p76, %p77
    %p80 = scmp.ne.s32.totalorder %s63, %s79
    %p81 = scmp.eq.s32.totalorder %s15, 0
    %p82 = por %p80, %p81
    %s84 = sadd.s32 %s83, 1
    %p87 = scmp.eq.s32.totalorder %s9, 7
    %p88 = scmp.ne.s32.totalorder %s83, %s85
    %p89 = scmp.eq.s32.totalorder %s9, 0
    %p90 = por %p88, %p89
    %p91 = scmp.ne.s32.totalorder %s83, %s85
    %p92 = scmp.eq.s32.totalorder %s14, 7
    %p93 = por %p91, %p92
    %p94 = scmp.ne.s32.totalorder %s85, %s86
    %p95 = scmp.eq.s32.totalorder %s14, 0
    %p96 = por %p94, %p95
    %p97 = scmp.ne.s32.totalorder %s85, %s86
    %p98 = scmp.eq.s32.totalorder %s15, 7
    %p99 = por %p97, %p98
    %p101 = scmp.ne.s32.totalorder %s86, %s100
    %p102 = scmp.eq.s32.totalorder %s15, 0
    %p103 = por %p101, %p102
    %s104 = ssub.s32 %s16, %s28
    %s105 = ssub.s32 %s17, %s24
    %s106 = sor.u32 %s104, %s105
    %p107 = scmp.eq.s32.totalorder %s106, 0
    %s109 = sadd.s32 %s108, 1
    %s110 = scalar_select %p107, %s108, %s109
    %p113 = pneg %p107
    %p114 = scmp.eq.s32.totalorder %s9, 7
    %p115 = por %p113, %p114
    %p116 = scmp.ne.s32.totalorder %s108, %s111
    %p117 = scmp.eq.s32.totalorder %s9, 0
    %p118 = por %p116, %p117
    %p119 = scmp.ne.s32.totalorder %s108, %s111
    %p120 = scmp.eq.s32.totalorder %s14, 7
    %p121 = por %p119, %p120
    %p122 = scmp.ne.s32.totalorder %s111, %s112
    %p123 = scmp.eq.s32.totalorder %s14, 0
    %p124 = por %p122, %p123
    %p125 = scmp.ne.s32.totalorder %s111, %s112
    %p126 = scmp.eq.s32.totalorder %s15, 7
    %p127 = por %p125, %p126
    %p129 = scmp.ne.s32.totalorder %s112, %s128
    %p130 = scmp.eq.s32.totalorder %s15, 0
    %p131 = por %p129, %p130
    %p132 = scmp.le.s32.totalorder 1, %s9
    %p133 = scmp.lt.s32.totalorder %s9, 9
    %p134 = pnand %p132, %p133
    %p135 = pneg %p134
    // Predicated region
    $region9: #{generator_forward.17} parent=5 // pred_check
      _
    $region10: #{generator_forward.17} parent=5 // pred_check_branch
      %137 = sbr.rel (%p134) target = $region12
    $region11: #{generator_forward.17} parent=5 // pred_region
      %s138 = ssub.s32 %s9, 1
      // Predicated region
      $region13: #{generator_forward.17} parent=11 // pred_check
        %p139 = pneg %p96
      $region14: #{generator_forward.17} parent=11 // pred_check_branch
        %141 = sbr.rel (%p139) target = $region16
      $region15: #{generator_forward.17} parent=11 // pred_region
        _
      $region16: #{generator_forward.17} parent=11 // pred_fallthru
        _
    $region12: #{generator_forward.17} parent=5 // pred_fallthru
      _
    %p142 = scmp.lt.s32.totalorder %s9, 8
    // Predicated region
    $region17: #{generator_forward.17} parent=5 // pred_check
      %p143 = pneg %p142
    $region18: #{generator_forward.17} parent=5 // pred_check_branch
      %145 = sbr.rel (%p143) target = $region20
    $region19: #{generator_forward.17} parent=5 // pred_region
      // Predicated region
      $region21: #{generator_forward.17} parent=19 // pred_check
        %p146 = pneg %p43
      $region22: #{generator_forward.17} parent=19 // pred_check_branch
        %148 = sbr.rel (%p146) target = $region24
      $region23: #{generator_forward.17} parent=19 // pred_region
        %s149 = smul.u32 128, %s17
        %p150 = scmp.lt.s32.totalorder %s16, 3
        %s151 = scalar_select %p150, %s16, 3
        %p152 = scmp.lt.s32.totalorder %s149, 255
        %s153 = scalar_select %p152, %s149, 255
        %s154 = smul.addr %s153, 4
        %s155 = smul.addr %s151, 1024
        %s156 = sadd.s32 %s154, %s155
        %s157 = smul.addr %s156, 4
        %s158 = scalar_lea.vmem %s0, %s157
        %s159 = smul.u32 128, %s17
      $region24: #{generator_forward.17} parent=19 // pred_fallthru
        _
      // Predicated region
      $region25: #{generator_forward.17} parent=19 // pred_check
        %p160 = pneg %p69
      $region26: #{generator_forward.17} parent=19 // pred_check_branch
        %162 = sbr.rel (%p160) target = $region28
      $region27: #{generator_forward.17} parent=19 // pred_region
        %p163 = scmp.lt.s32.totalorder %s16, 3
        %s164 = scalar_select %p163, %s16, 3
        %s165 = smul.addr %s164, 64
        %s166 = smul.addr %s165, 4
        %s167 = scalar_lea.vmem %s1, %s166
      $region28: #{generator_forward.17} parent=19 // pred_fallthru
        _
    $region20: #{generator_forward.17} parent=5 // pred_fallthru
      _
    %p168 = scmp.le.s32.totalorder 1, %s9
    %p169 = scmp.lt.s32.totalorder %s9, 9
    %p170 = pnand %p168, %p169
    %p171 = pneg %p170
    // Predicated region
    $region29: #{generator_forward.17} parent=5 // pred_check
      _
    $region30: #{generator_forward.17} parent=5 // pred_check_branch
      %173 = sbr.rel (%p170) target = $region32
    $region31: #{generator_forward.17} parent=5 // pred_region
      %s174 = ssub.s32 %s9, 1
      %s175 = smul.u32 128, %s19
      %p176 = scmp.lt.s32.totalorder %s18, 3
      %s177 = scalar_select %p176, %s18, 3
      %p178 = scmp.lt.s32.totalorder %s175, 255
      %s179 = scalar_select %p178, %s175, 255
      %s180 = smul.addr %s179, 4
      %s181 = smul.addr %s177, 1024
      %s182 = sadd.s32 %s180, %s181
      %s183 = smul.addr %s182, 4
      %s184 = scalar_lea.vmem %s0, %s183
      %p185 = pneg %p49
      %p186 = pneg %p46
      %p187 = scmp.lt.s32.totalorder %s18, 3
      %s188 = scalar_select %p187, %s18, 3
      %s189 = smul.addr %s188, 64
      %s190 = smul.addr %s189, 4
      %s191 = scalar_lea.vmem %s1, %s190
      %p192 = pneg %p75
      %p193 = pneg %p72
      %p194 = pneg %p96
      %p195 = pneg %p93
      %p196 = pneg %p124
      %p197 = pneg %p121
      %s198 = smul.u32 128, %s19
      %p199 = scmp.lt.s32.totalorder %s18, 3
      %s200 = scalar_select %p199, %s18, 3
      %p201 = scmp.lt.s32.totalorder %s198, 255
      %s202 = scalar_select %p201, %s198, 255
      %s203 = smul.addr %s200, 256
      %s204 = sadd.s32 %s202, %s203
      %s205 = smul.addr %s204, 8
      %s206 = scalar_lea.vmem %s3, %s205
      %s207 = smul.u32 128, %s19
      %p208 = scmp.lt.s32.totalorder %s18, 3
      %s209 = scalar_select %p208, %s18, 3
      %p210 = scmp.lt.s32.totalorder %s207, 255
      %s211 = scalar_select %p210, %s207, 255
      %s212 = smul.addr %s211, 4
      %s213 = smul.addr %s209, 1024
      %s214 = sadd.s32 %s212, %s213
      %s215 = smul.addr %s214, 4
      %s216 = scalar_lea.vmem %s0, %s215
      %s217 = smul.u32 128, %s19
      %p218 = scmp.lt.s32.totalorder %s18, 3
      %s219 = scalar_select %p218, %s18, 3
      %s220 = smul.addr %s219, 64
      %s221 = smul.addr %s220, 4
      %s222 = scalar_lea.vmem %s1, %s221
      %s223 = smul.u32 128, %s19
      %p224 = scmp.lt.s32.totalorder %s18, 3
      %s225 = scalar_select %p224, %s18, 3
      %p226 = scmp.lt.s32.totalorder %s223, 255
      %s227 = scalar_select %p226, %s223, 255
      %s228 = smul.addr %s225, 256
      %s229 = sadd.s32 %s227, %s228
      %s230 = smul.addr %s229, 8
      %s231 = scalar_lea.vmem %s3, %s230
      %s232 = smul.u32 128, %s19
      %v234 = vld [vmem:[%s216] sm:$0xff]
      %v235 = vld [vmem:[%s216 + $0x8] sm:$0xff]
      %v236 = vld [vmem:[%s216 + $0x10] sm:$0xff]
      %v237 = vld [vmem:[%s216 + $0x18] sm:$0xff]
      %v238 = vld [vmem:[%s216 + $0x20] sm:$0xff]
      %v239 = vld [vmem:[%s216 + $0x28] sm:$0xff]
      %v240 = vld [vmem:[%s216 + $0x30] sm:$0xff]
      %v241 = vld [vmem:[%s216 + $0x38] sm:$0xff]
      %v242 = vld [vmem:[%s216 + $0x40] sm:$0xff]
      %v243 = vld [vmem:[%s216 + $0x48] sm:$0xff]
      %v244 = vld [vmem:[%s216 + $0x50] sm:$0xff]
      %v245 = vld [vmem:[%s216 + $0x58] sm:$0xff]
      %v246 = vld [vmem:[%s216 + $0x60] sm:$0xff]
      %v247 = vld [vmem:[%s216 + $0x68] sm:$0xff]
      %v248 = vld [vmem:[%s216 + $0x70] sm:$0xff]
      %v249 = vld [vmem:[%s216 + $0x78] sm:$0xff]
      %v250 = vld [vmem:[%s216 + $0x80] sm:$0xff]
      %v251 = vld [vmem:[%s216 + $0x88] sm:$0xff]
      %v252 = vld [vmem:[%s216 + $0x90] sm:$0xff]
      %v253 = vld [vmem:[%s216 + $0x98] sm:$0xff]
      %v254 = vld [vmem:[%s216 + $0xa0] sm:$0xff]
      %v255 = vld [vmem:[%s216 + $0xa8] sm:$0xff]
      %v256 = vld [vmem:[%s216 + $0xb0] sm:$0xff]
      %v257 = vld [vmem:[%s216 + $0xb8] sm:$0xff]
      %v258 = vld [vmem:[%s216 + $0xc0] sm:$0xff]
      %v259 = vld [vmem:[%s216 + $0xc8] sm:$0xff]
      %v260 = vld [vmem:[%s216 + $0xd0] sm:$0xff]
      %v261 = vld [vmem:[%s216 + $0xd8] sm:$0xff]
      %v262 = vld [vmem:[%s216 + $0xe0] sm:$0xff]
      %v263 = vld [vmem:[%s216 + $0xe8] sm:$0xff]
      %v264 = vld [vmem:[%s216 + $0xf0] sm:$0xff]
      %v265 = vld [vmem:[%s216 + $0xf8] sm:$0xff]
      %v266 = vld [vmem:[%s216 + $0x100] sm:$0xff]
      %v267 = vld [vmem:[%s216 + $0x108] sm:$0xff]
      %v268 = vld [vmem:[%s216 + $0x110] sm:$0xff]
      %v269 = vld [vmem:[%s216 + $0x118] sm:$0xff]
      %v270 = vld [vmem:[%s216 + $0x120] sm:$0xff]
      %v271 = vld [vmem:[%s216 + $0x128] sm:$0xff]
      %v272 = vld [vmem:[%s216 + $0x130] sm:$0xff]
      %v273 = vld [vmem:[%s216 + $0x138] sm:$0xff]
      %v274 = vld [vmem:[%s216 + $0x140] sm:$0xff]
      %v275 = vld [vmem:[%s216 + $0x148] sm:$0xff]
      %v276 = vld [vmem:[%s216 + $0x150] sm:$0xff]
      %v277 = vld [vmem:[%s216 + $0x158] sm:$0xff]
      %v278 = vld [vmem:[%s216 + $0x160] sm:$0xff]
      %v279 = vld [vmem:[%s216 + $0x168] sm:$0xff]
      %v280 = vld [vmem:[%s216 + $0x170] sm:$0xff]
      %v281 = vld [vmem:[%s216 + $0x178] sm:$0xff]
      %v282 = vld [vmem:[%s216 + $0x180] sm:$0xff]
      %v283 = vld [vmem:[%s216 + $0x188] sm:$0xff]
      %v284 = vld [vmem:[%s216 + $0x190] sm:$0xff]
      %v285 = vld [vmem:[%s216 + $0x198] sm:$0xff]
      %v286 = vld [vmem:[%s216 + $0x1a0] sm:$0xff]
      %v287 = vld [vmem:[%s216 + $0x1a8] sm:$0xff]
      %v288 = vld [vmem:[%s216 + $0x1b0] sm:$0xff]
      %v289 = vld [vmem:[%s216 + $0x1b8] sm:$0xff]
      %v290 = vld [vmem:[%s216 + $0x1c0] sm:$0xff]
      %v291 = vld [vmem:[%s216 + $0x1c8] sm:$0xff]
      %v292 = vld [vmem:[%s216 + $0x1d0] sm:$0xff]
      %v293 = vld [vmem:[%s216 + $0x1d8] sm:$0xff]
      %v294 = vld [vmem:[%s216 + $0x1e0] sm:$0xff]
      %v295 = vld [vmem:[%s216 + $0x1e8] sm:$0xff]
      %v296 = vld [vmem:[%s216 + $0x1f0] sm:$0xff]
      %v297 = vld [vmem:[%s216 + $0x1f8] sm:$0xff]
      %v298 = vld [vmem:[%s216 + $0x200] sm:$0xff]
      %v299 = vld [vmem:[%s216 + $0x208] sm:$0xff]
      %v300 = vld [vmem:[%s216 + $0x210] sm:$0xff]
      %v301 = vld [vmem:[%s216 + $0x218] sm:$0xff]
      %v302 = vld [vmem:[%s216 + $0x220] sm:$0xff]
      %v303 = vld [vmem:[%s216 + $0x228] sm:$0xff]
      %v304 = vld [vmem:[%s216 + $0x230] sm:$0xff]
      %v305 = vld [vmem:[%s216 + $0x238] sm:$0xff]
      %v306 = vld [vmem:[%s216 + $0x240] sm:$0xff]
      %v307 = vld [vmem:[%s216 + $0x248] sm:$0xff]
      %v308 = vld [vmem:[%s216 + $0x250] sm:$0xff]
      %v309 = vld [vmem:[%s216 + $0x258] sm:$0xff]
      %v310 = vld [vmem:[%s216 + $0x260] sm:$0xff]
      %v311 = vld [vmem:[%s216 + $0x268] sm:$0xff]
      %v312 = vld [vmem:[%s216 + $0x270] sm:$0xff]
      %v313 = vld [vmem:[%s216 + $0x278] sm:$0xff]
      %v314 = vld [vmem:[%s216 + $0x280] sm:$0xff]
      %v315 = vld [vmem:[%s216 + $0x288] sm:$0xff]
      %v316 = vld [vmem:[%s216 + $0x290] sm:$0xff]
      %v317 = vld [vmem:[%s216 + $0x298] sm:$0xff]
      %v318 = vld [vmem:[%s216 + $0x2a0] sm:$0xff]
      %v319 = vld [vmem:[%s216 + $0x2a8] sm:$0xff]
      %v320 = vld [vmem:[%s216 + $0x2b0] sm:$0xff]
      %v321 = vld [vmem:[%s216 + $0x2b8] sm:$0xff]
      %v322 = vld [vmem:[%s216 + $0x2c0] sm:$0xff]
      %v323 = vld [vmem:[%s216 + $0x2c8] sm:$0xff]
      %v324 = vld [vmem:[%s216 + $0x2d0] sm:$0xff]
      %v325 = vld [vmem:[%s216 + $0x2d8] sm:$0xff]
      %v326 = vld [vmem:[%s216 + $0x2e0] sm:$0xff]
      %v327 = vld [vmem:[%s216 + $0x2e8] sm:$0xff]
      %v328 = vld [vmem:[%s216 + $0x2f0] sm:$0xff]
      %v329 = vld [vmem:[%s216 + $0x2f8] sm:$0xff]
      %v330 = vld [vmem:[%s216 + $0x300] sm:$0xff]
      %v331 = vld [vmem:[%s216 + $0x308] sm:$0xff]
      %v332 = vld [vmem:[%s216 + $0x310] sm:$0xff]
      %v333 = vld [vmem:[%s216 + $0x318] sm:$0xff]
      %v334 = vld [vmem:[%s216 + $0x320] sm:$0xff]
      %v335 = vld [vmem:[%s216 + $0x328] sm:$0xff]
      %v336 = vld [vmem:[%s216 + $0x330] sm:$0xff]
      %v337 = vld [vmem:[%s216 + $0x338] sm:$0xff]
      %v338 = vld [vmem:[%s216 + $0x340] sm:$0xff]
      %v339 = vld [vmem:[%s216 + $0x348] sm:$0xff]
      %v340 = vld [vmem:[%s216 + $0x350] sm:$0xff]
      %v341 = vld [vmem:[%s216 + $0x358] sm:$0xff]
      %v342 = vld [vmem:[%s216 + $0x360] sm:$0xff]
      %v343 = vld [vmem:[%s216 + $0x368] sm:$0xff]
      %v344 = vld [vmem:[%s216 + $0x370] sm:$0xff]
      %v345 = vld [vmem:[%s216 + $0x378] sm:$0xff]
      %v346 = vld [vmem:[%s216 + $0x380] sm:$0xff]
      %v347 = vld [vmem:[%s216 + $0x388] sm:$0xff]
      %v348 = vld [vmem:[%s216 + $0x390] sm:$0xff]
      %v349 = vld [vmem:[%s216 + $0x398] sm:$0xff]
      %v350 = vld [vmem:[%s216 + $0x3a0] sm:$0xff]
      %v351 = vld [vmem:[%s216 + $0x3a8] sm:$0xff]
      %v352 = vld [vmem:[%s216 + $0x3b0] sm:$0xff]
      %v353 = vld [vmem:[%s216 + $0x3b8] sm:$0xff]
      %v354 = vld [vmem:[%s216 + $0x3c0] sm:$0xff]
      %v355 = vld [vmem:[%s216 + $0x3c8] sm:$0xff]
      %v356 = vld [vmem:[%s216 + $0x3d0] sm:$0xff]
      %v357 = vld [vmem:[%s216 + $0x3d8] sm:$0xff]
      %v358 = vld [vmem:[%s216 + $0x3e0] sm:$0xff]
      %v359 = vld [vmem:[%s216 + $0x3e8] sm:$0xff]
      %v360 = vld [vmem:[%s216 + $0x3f0] sm:$0xff]
      %v361 = vld [vmem:[%s216 + $0x3f8] sm:$0xff]
      %v362 = vld [vmem:[%s216 + $0x400] sm:$0xff]
      %v363 = vld [vmem:[%s216 + $0x408] sm:$0xff]
      %v364 = vld [vmem:[%s216 + $0x410] sm:$0xff]
      %v365 = vld [vmem:[%s216 + $0x418] sm:$0xff]
      %v366 = vld [vmem:[%s216 + $0x420] sm:$0xff]
      %v367 = vld [vmem:[%s216 + $0x428] sm:$0xff]
      %v368 = vld [vmem:[%s216 + $0x430] sm:$0xff]
      %v369 = vld [vmem:[%s216 + $0x438] sm:$0xff]
      %v370 = vld [vmem:[%s216 + $0x440] sm:$0xff]
      %v371 = vld [vmem:[%s216 + $0x448] sm:$0xff]
      %v372 = vld [vmem:[%s216 + $0x450] sm:$0xff]
      %v373 = vld [vmem:[%s216 + $0x458] sm:$0xff]
      %v374 = vld [vmem:[%s216 + $0x460] sm:$0xff]
      %v375 = vld [vmem:[%s216 + $0x468] sm:$0xff]
      %v376 = vld [vmem:[%s216 + $0x470] sm:$0xff]
      %v377 = vld [vmem:[%s216 + $0x478] sm:$0xff]
      %v378 = vld [vmem:[%s216 + $0x480] sm:$0xff]
      %v379 = vld [vmem:[%s216 + $0x488] sm:$0xff]
      %v380 = vld [vmem:[%s216 + $0x490] sm:$0xff]
      %v381 = vld [vmem:[%s216 + $0x498] sm:$0xff]
      %v382 = vld [vmem:[%s216 + $0x4a0] sm:$0xff]
      %v383 = vld [vmem:[%s216 + $0x4a8] sm:$0xff]
      %v384 = vld [vmem:[%s216 + $0x4b0] sm:$0xff]
      %v385 = vld [vmem:[%s216 + $0x4b8] sm:$0xff]
      %v386 = vld [vmem:[%s216 + $0x4c0] sm:$0xff]
      %v387 = vld [vmem:[%s216 + $0x4c8] sm:$0xff]
      %v388 = vld [vmem:[%s216 + $0x4d0] sm:$0xff]
      %v389 = vld [vmem:[%s216 + $0x4d8] sm:$0xff]
      %v390 = vld [vmem:[%s216 + $0x4e0] sm:$0xff]
      %v391 = vld [vmem:[%s216 + $0x4e8] sm:$0xff]
      %v392 = vld [vmem:[%s216 + $0x4f0] sm:$0xff]
      %v393 = vld [vmem:[%s216 + $0x4f8] sm:$0xff]
      %v394 = vld [vmem:[%s216 + $0x500] sm:$0xff]
      %v395 = vld [vmem:[%s216 + $0x508] sm:$0xff]
      %v396 = vld [vmem:[%s216 + $0x510] sm:$0xff]
      %v397 = vld [vmem:[%s216 + $0x518] sm:$0xff]
      %v398 = vld [vmem:[%s216 + $0x520] sm:$0xff]
      %v399 = vld [vmem:[%s216 + $0x528] sm:$0xff]
      %v400 = vld [vmem:[%s216 + $0x530] sm:$0xff]
      %v401 = vld [vmem:[%s216 + $0x538] sm:$0xff]
      %v402 = vld [vmem:[%s216 + $0x540] sm:$0xff]
      %v403 = vld [vmem:[%s216 + $0x548] sm:$0xff]
      %v404 = vld [vmem:[%s216 + $0x550] sm:$0xff]
      %v405 = vld [vmem:[%s216 + $0x558] sm:$0xff]
      %v406 = vld [vmem:[%s216 + $0x560] sm:$0xff]
      %v407 = vld [vmem:[%s216 + $0x568] sm:$0xff]
      %v408 = vld [vmem:[%s216 + $0x570] sm:$0xff]
      %v409 = vld [vmem:[%s216 + $0x578] sm:$0xff]
      %v410 = vld [vmem:[%s216 + $0x580] sm:$0xff]
      %v411 = vld [vmem:[%s216 + $0x588] sm:$0xff]
      %v412 = vld [vmem:[%s216 + $0x590] sm:$0xff]
      %v413 = vld [vmem:[%s216 + $0x598] sm:$0xff]
      %v414 = vld [vmem:[%s216 + $0x5a0] sm:$0xff]
      %v415 = vld [vmem:[%s216 + $0x5a8] sm:$0xff]
      %v416 = vld [vmem:[%s216 + $0x5b0] sm:$0xff]
      %v417 = vld [vmem:[%s216 + $0x5b8] sm:$0xff]
      %v418 = vld [vmem:[%s216 + $0x5c0] sm:$0xff]
      %v419 = vld [vmem:[%s216 + $0x5c8] sm:$0xff]
      %v420 = vld [vmem:[%s216 + $0x5d0] sm:$0xff]
      %v421 = vld [vmem:[%s216 + $0x5d8] sm:$0xff]
      %v422 = vld [vmem:[%s216 + $0x5e0] sm:$0xff]
      %v423 = vld [vmem:[%s216 + $0x5e8] sm:$0xff]
      %v424 = vld [vmem:[%s216 + $0x5f0] sm:$0xff]
      %v425 = vld [vmem:[%s216 + $0x5f8] sm:$0xff]
      %v426 = vld [vmem:[%s216 + $0x600] sm:$0xff]
      %v427 = vld [vmem:[%s216 + $0x608] sm:$0xff]
      %v428 = vld [vmem:[%s216 + $0x610] sm:$0xff]
      %v429 = vld [vmem:[%s216 + $0x618] sm:$0xff]
      %v430 = vld [vmem:[%s216 + $0x620] sm:$0xff]
      %v431 = vld [vmem:[%s216 + $0x628] sm:$0xff]
      %v432 = vld [vmem:[%s216 + $0x630] sm:$0xff]
      %v433 = vld [vmem:[%s216 + $0x638] sm:$0xff]
      %v434 = vld [vmem:[%s216 + $0x640] sm:$0xff]
      %v435 = vld [vmem:[%s216 + $0x648] sm:$0xff]
      %v436 = vld [vmem:[%s216 + $0x650] sm:$0xff]
      %v437 = vld [vmem:[%s216 + $0x658] sm:$0xff]
      %v438 = vld [vmem:[%s216 + $0x660] sm:$0xff]
      %v439 = vld [vmem:[%s216 + $0x668] sm:$0xff]
      %v440 = vld [vmem:[%s216 + $0x670] sm:$0xff]
      %v441 = vld [vmem:[%s216 + $0x678] sm:$0xff]
      %v442 = vld [vmem:[%s216 + $0x680] sm:$0xff]
      %v443 = vld [vmem:[%s216 + $0x688] sm:$0xff]
      %v444 = vld [vmem:[%s216 + $0x690] sm:$0xff]
      %v445 = vld [vmem:[%s216 + $0x698] sm:$0xff]
      %v446 = vld [vmem:[%s216 + $0x6a0] sm:$0xff]
      %v447 = vld [vmem:[%s216 + $0x6a8] sm:$0xff]
      %v448 = vld [vmem:[%s216 + $0x6b0] sm:$0xff]
      %v449 = vld [vmem:[%s216 + $0x6b8] sm:$0xff]
      %v450 = vld [vmem:[%s216 + $0x6c0] sm:$0xff]
      %v451 = vld [vmem:[%s216 + $0x6c8] sm:$0xff]
      %v452 = vld [vmem:[%s216 + $0x6d0] sm:$0xff]
      %v453 = vld [vmem:[%s216 + $0x6d8] sm:$0xff]
      %v454 = vld [vmem:[%s216 + $0x6e0] sm:$0xff]
      %v455 = vld [vmem:[%s216 + $0x6e8] sm:$0xff]
      %v456 = vld [vmem:[%s216 + $0x6f0] sm:$0xff]
      %v457 = vld [vmem:[%s216 + $0x6f8] sm:$0xff]
      %v458 = vld [vmem:[%s216 + $0x700] sm:$0xff]
      %v459 = vld [vmem:[%s216 + $0x708] sm:$0xff]
      %v460 = vld [vmem:[%s216 + $0x710] sm:$0xff]
      %v461 = vld [vmem:[%s216 + $0x718] sm:$0xff]
      %v462 = vld [vmem:[%s216 + $0x720] sm:$0xff]
      %v463 = vld [vmem:[%s216 + $0x728] sm:$0xff]
      %v464 = vld [vmem:[%s216 + $0x730] sm:$0xff]
      %v465 = vld [vmem:[%s216 + $0x738] sm:$0xff]
      %v466 = vld [vmem:[%s216 + $0x740] sm:$0xff]
      %v467 = vld [vmem:[%s216 + $0x748] sm:$0xff]
      %v468 = vld [vmem:[%s216 + $0x750] sm:$0xff]
      %v469 = vld [vmem:[%s216 + $0x758] sm:$0xff]
      %v470 = vld [vmem:[%s216 + $0x760] sm:$0xff]
      %v471 = vld [vmem:[%s216 + $0x768] sm:$0xff]
      %v472 = vld [vmem:[%s216 + $0x770] sm:$0xff]
      %v473 = vld [vmem:[%s216 + $0x778] sm:$0xff]
      %v474 = vld [vmem:[%s216 + $0x780] sm:$0xff]
      %v475 = vld [vmem:[%s216 + $0x788] sm:$0xff]
      %v476 = vld [vmem:[%s216 + $0x790] sm:$0xff]
      %v477 = vld [vmem:[%s216 + $0x798] sm:$0xff]
      %v478 = vld [vmem:[%s216 + $0x7a0] sm:$0xff]
      %v479 = vld [vmem:[%s216 + $0x7a8] sm:$0xff]
      %v480 = vld [vmem:[%s216 + $0x7b0] sm:$0xff]
      %v481 = vld [vmem:[%s216 + $0x7b8] sm:$0xff]
      %v482 = vld [vmem:[%s216 + $0x7c0] sm:$0xff]
      %v483 = vld [vmem:[%s216 + $0x7c8] sm:$0xff]
      %v484 = vld [vmem:[%s216 + $0x7d0] sm:$0xff]
      %v485 = vld [vmem:[%s216 + $0x7d8] sm:$0xff]
      %v486 = vld [vmem:[%s216 + $0x7e0] sm:$0xff]
      %v487 = vld [vmem:[%s216 + $0x7e8] sm:$0xff]
      %v488 = vld [vmem:[%s216 + $0x7f0] sm:$0xff]
      %v489 = vld [vmem:[%s216 + $0x7f8] sm:$0xff]
      %v490 = vld [vmem:[%s222] sm:$0xf]
      %v491 = vld [vmem:[%s222 + $0x4] sm:$0xf]
      %v492 = vld [vmem:[%s222 + $0x8] sm:$0xf]
      %v493 = vld [vmem:[%s222 + $0xc] sm:$0xf]
      %v494 = vld [vmem:[%s222 + $0x10] sm:$0xf]
      %v495 = vld [vmem:[%s222 + $0x14] sm:$0xf]
      %v496 = vld [vmem:[%s222 + $0x18] sm:$0xf]
      %v497 = vld [vmem:[%s222 + $0x1c] sm:$0xf]
      %v498 = vld [vmem:[%s222 + $0x20] sm:$0xf]
      %v499 = vld [vmem:[%s222 + $0x24] sm:$0xf]
      %v500 = vld [vmem:[%s222 + $0x28] sm:$0xf]
      %v501 = vld [vmem:[%s222 + $0x2c] sm:$0xf]
      %v502 = vld [vmem:[%s222 + $0x30] sm:$0xf]
      %v503 = vld [vmem:[%s222 + $0x34] sm:$0xf]
      %v504 = vld [vmem:[%s222 + $0x38] sm:$0xf]
      %v505 = vld [vmem:[%s222 + $0x3c] sm:$0xf]
      %v506 = vld [vmem:[%s222 + $0x40] sm:$0xf]
      %v507 = vld [vmem:[%s222 + $0x44] sm:$0xf]
      %v508 = vld [vmem:[%s222 + $0x48] sm:$0xf]
      %v509 = vld [vmem:[%s222 + $0x4c] sm:$0xf]
      %v510 = vld [vmem:[%s222 + $0x50] sm:$0xf]
      %v511 = vld [vmem:[%s222 + $0x54] sm:$0xf]
      %v512 = vld [vmem:[%s222 + $0x58] sm:$0xf]
      %v513 = vld [vmem:[%s222 + $0x5c] sm:$0xf]
      %v514 = vld [vmem:[%s222 + $0x60] sm:$0xf]
      %v515 = vld [vmem:[%s222 + $0x64] sm:$0xf]
      %v516 = vld [vmem:[%s222 + $0x68] sm:$0xf]
      %v517 = vld [vmem:[%s222 + $0x6c] sm:$0xf]
      %v518 = vld [vmem:[%s222 + $0x70] sm:$0xf]
      %v519 = vld [vmem:[%s222 + $0x74] sm:$0xf]
      %v520 = vld [vmem:[%s222 + $0x78] sm:$0xf]
      %v521 = vld [vmem:[%s222 + $0x7c] sm:$0xf]
      %v522 = vld [vmem:[%s222 + $0x80] sm:$0xf]
      %v523 = vld [vmem:[%s222 + $0x84] sm:$0xf]
      %v524 = vld [vmem:[%s222 + $0x88] sm:$0xf]
      %v525 = vld [vmem:[%s222 + $0x8c] sm:$0xf]
      %v526 = vld [vmem:[%s222 + $0x90] sm:$0xf]
      %v527 = vld [vmem:[%s222 + $0x94] sm:$0xf]
      %v528 = vld [vmem:[%s222 + $0x98] sm:$0xf]
      %v529 = vld [vmem:[%s222 + $0x9c] sm:$0xf]
      %v530 = vld [vmem:[%s222 + $0xa0] sm:$0xf]
      %v531 = vld [vmem:[%s222 + $0xa4] sm:$0xf]
      %v532 = vld [vmem:[%s222 + $0xa8] sm:$0xf]
      %v533 = vld [vmem:[%s222 + $0xac] sm:$0xf]
      %v534 = vld [vmem:[%s222 + $0xb0] sm:$0xf]
      %v535 = vld [vmem:[%s222 + $0xb4] sm:$0xf]
      %v536 = vld [vmem:[%s222 + $0xb8] sm:$0xf]
      %v537 = vld [vmem:[%s222 + $0xbc] sm:$0xf]
      %v538 = vld [vmem:[%s222 + $0xc0] sm:$0xf]
      %v539 = vld [vmem:[%s222 + $0xc4] sm:$0xf]
      %v540 = vld [vmem:[%s222 + $0xc8] sm:$0xf]
      %v541 = vld [vmem:[%s222 + $0xcc] sm:$0xf]
      %v542 = vld [vmem:[%s222 + $0xd0] sm:$0xf]
      %v543 = vld [vmem:[%s222 + $0xd4] sm:$0xf]
      %v544 = vld [vmem:[%s222 + $0xd8] sm:$0xf]
      %v545 = vld [vmem:[%s222 + $0xdc] sm:$0xf]
      %v546 = vld [vmem:[%s222 + $0xe0] sm:$0xf]
      %v547 = vld [vmem:[%s222 + $0xe4] sm:$0xf]
      %v548 = vld [vmem:[%s222 + $0xe8] sm:$0xf]
      %v549 = vld [vmem:[%s222 + $0xec] sm:$0xf]
      %v550 = vld [vmem:[%s222 + $0xf0] sm:$0xf]
      %v551 = vld [vmem:[%s222 + $0xf4] sm:$0xf]
      %v552 = vld [vmem:[%s222 + $0xf8] sm:$0xf]
      %v553 = vld [vmem:[%s222 + $0xfc] sm:$0xf]
      %v554 = vld [vmem:[%s2] sm:$0x1]
      %v556 = vlaneseq
      %v557 = vshrl.u32 %v556, 7
      %v558 = vsub.s32 0, %v557
      %v559 = vrot.slane %v554, %v558
      %v817 = vunpack.c.l.b16 %v234
      %v818 = vunpack.c.h.b16 %v234
      %v819 = vunpack.c.l.b16 %v235
      %v820 = vunpack.c.h.b16 %v235
      %v821 = vunpack.c.l.b16 %v236
      %v822 = vunpack.c.h.b16 %v236
      %v823 = vunpack.c.l.b16 %v237
      %v824 = vunpack.c.h.b16 %v237
      %v825 = vunpack.c.l.b16 %v238
      %v826 = vunpack.c.h.b16 %v238
      %v827 = vunpack.c.l.b16 %v239
      %v828 = vunpack.c.h.b16 %v239
      %v829 = vunpack.c.l.b16 %v240
      %v830 = vunpack.c.h.b16 %v240
      %v831 = vunpack.c.l.b16 %v241
      %v832 = vunpack.c.h.b16 %v241
      %v833 = vunpack.c.l.b16 %v242
      %v834 = vunpack.c.h.b16 %v242
      %v835 = vunpack.c.l.b16 %v243
      %v836 = vunpack.c.h.b16 %v243
      %v837 = vunpack.c.l.b16 %v244
      %v838 = vunpack.c.h.b16 %v244
      %v839 = vunpack.c.l.b16 %v245
      %v840 = vunpack.c.h.b16 %v245
      %v841 = vunpack.c.l.b16 %v246
      %v842 = vunpack.c.h.b16 %v246
      %v843 = vunpack.c.l.b16 %v247
      %v844 = vunpack.c.h.b16 %v247
      %v845 = vunpack.c.l.b16 %v248
      %v846 = vunpack.c.h.b16 %v248
      %v847 = vunpack.c.l.b16 %v249
      %v848 = vunpack.c.h.b16 %v249
      %v849 = vunpack.c.l.b16 %v250
      %v850 = vunpack.c.h.b16 %v250
      %v851 = vunpack.c.l.b16 %v251
      %v852 = vunpack.c.h.b16 %v251
      %v853 = vunpack.c.l.b16 %v252
      %v854 = vunpack.c.h.b16 %v252
      %v855 = vunpack.c.l.b16 %v253
      %v856 = vunpack.c.h.b16 %v253
      %v857 = vunpack.c.l.b16 %v254
      %v858 = vunpack.c.h.b16 %v254
      %v859 = vunpack.c.l.b16 %v255
      %v860 = vunpack.c.h.b16 %v255
      %v861 = vunpack.c.l.b16 %v256
      %v862 = vunpack.c.h.b16 %v256
      %v863 = vunpack.c.l.b16 %v257
      %v864 = vunpack.c.h.b16 %v257
      %v865 = vunpack.c.l.b16 %v258
      %v866 = vunpack.c.h.b16 %v258
      %v867 = vunpack.c.l.b16 %v259
      %v868 = vunpack.c.h.b16 %v259
      %v869 = vunpack.c.l.b16 %v260
      %v870 = vunpack.c.h.b16 %v260
      %v871 = vunpack.c.l.b16 %v261
      %v872 = vunpack.c.h.b16 %v261
      %v873 = vunpack.c.l.b16 %v262
      %v874 = vunpack.c.h.b16 %v262
      %v875 = vunpack.c.l.b16 %v263
      %v876 = vunpack.c.h.b16 %v263
      %v877 = vunpack.c.l.b16 %v264
      %v878 = vunpack.c.h.b16 %v264
      %v879 = vunpack.c.l.b16 %v265
      %v880 = vunpack.c.h.b16 %v265
      %v881 = vunpack.c.l.b16 %v266
      %v882 = vunpack.c.h.b16 %v266
      %v883 = vunpack.c.l.b16 %v267
      %v884 = vunpack.c.h.b16 %v267
      %v885 = vunpack.c.l.b16 %v268
      %v886 = vunpack.c.h.b16 %v268
      %v887 = vunpack.c.l.b16 %v269
      %v888 = vunpack.c.h.b16 %v269
      %v889 = vunpack.c.l.b16 %v270
      %v890 = vunpack.c.h.b16 %v270
      %v891 = vunpack.c.l.b16 %v271
      %v892 = vunpack.c.h.b16 %v271
      %v893 = vunpack.c.l.b16 %v272
      %v894 = vunpack.c.h.b16 %v272
      %v895 = vunpack.c.l.b16 %v273
      %v896 = vunpack.c.h.b16 %v273
      %v897 = vunpack.c.l.b16 %v274
      %v898 = vunpack.c.h.b16 %v274
      %v899 = vunpack.c.l.b16 %v275
      %v900 = vunpack.c.h.b16 %v275
      %v901 = vunpack.c.l.b16 %v276
      %v902 = vunpack.c.h.b16 %v276
      %v903 = vunpack.c.l.b16 %v277
      %v904 = vunpack.c.h.b16 %v277
      %v905 = vunpack.c.l.b16 %v278
      %v906 = vunpack.c.h.b16 %v278
      %v907 = vunpack.c.l.b16 %v279
      %v908 = vunpack.c.h.b16 %v279
      %v909 = vunpack.c.l.b16 %v280
      %v910 = vunpack.c.h.b16 %v280
      %v911 = vunpack.c.l.b16 %v281
      %v912 = vunpack.c.h.b16 %v281
      %v913 = vunpack.c.l.b16 %v282
      %v914 = vunpack.c.h.b16 %v282
      %v915 = vunpack.c.l.b16 %v283
      %v916 = vunpack.c.h.b16 %v283
      %v917 = vunpack.c.l.b16 %v284
      %v918 = vunpack.c.h.b16 %v284
      %v919 = vunpack.c.l.b16 %v285
      %v920 = vunpack.c.h.b16 %v285
      %v921 = vunpack.c.l.b16 %v286
      %v922 = vunpack.c.h.b16 %v286
      %v923 = vunpack.c.l.b16 %v287
      %v924 = vunpack.c.h.b16 %v287
      %v925 = vunpack.c.l.b16 %v288
      %v926 = vunpack.c.h.b16 %v288
      %v927 = vunpack.c.l.b16 %v289
      %v928 = vunpack.c.h.b16 %v289
      %v929 = vunpack.c.l.b16 %v290
      %v930 = vunpack.c.h.b16 %v290
      %v931 = vunpack.c.l.b16 %v291
      %v932 = vunpack.c.h.b16 %v291
      %v933 = vunpack.c.l.b16 %v292
      %v934 = vunpack.c.h.b16 %v292
      %v935 = vunpack.c.l.b16 %v293
      %v936 = vunpack.c.h.b16 %v293
      %v937 = vunpack.c.l.b16 %v294
      %v938 = vunpack.c.h.b16 %v294
      %v939 = vunpack.c.l.b16 %v295
      %v940 = vunpack.c.h.b16 %v295
      %v941 = vunpack.c.l.b16 %v296
      %v942 = vunpack.c.h.b16 %v296
      %v943 = vunpack.c.l.b16 %v297
      %v944 = vunpack.c.h.b16 %v297
      %v945 = vunpack.c.l.b16 %v298
      %v946 = vunpack.c.h.b16 %v298
      %v947 = vunpack.c.l.b16 %v299
      %v948 = vunpack.c.h.b16 %v299
      %v949 = vunpack.c.l.b16 %v300
      %v950 = vunpack.c.h.b16 %v300
      %v951 = vunpack.c.l.b16 %v301
      %v952 = vunpack.c.h.b16 %v301
      %v953 = vunpack.c.l.b16 %v302
      %v954 = vunpack.c.h.b16 %v302
      %v955 = vunpack.c.l.b16 %v303
      %v956 = vunpack.c.h.b16 %v303
      %v957 = vunpack.c.l.b16 %v304
      %v958 = vunpack.c.h.b16 %v304
      %v959 = vunpack.c.l.b16 %v305
      %v960 = vunpack.c.h.b16 %v305
      %v961 = vunpack.c.l.b16 %v306
      %v962 = vunpack.c.h.b16 %v306
      %v963 = vunpack.c.l.b16 %v307
      %v964 = vunpack.c.h.b16 %v307
      %v965 = vunpack.c.l.b16 %v308
      %v966 = vunpack.c.h.b16 %v308
      %v967 = vunpack.c.l.b16 %v309
      %v968 = vunpack.c.h.b16 %v309
      %v969 = vunpack.c.l.b16 %v310
      %v970 = vunpack.c.h.b16 %v310
      %v971 = vunpack.c.l.b16 %v311
      %v972 = vunpack.c.h.b16 %v311
      %v973 = vunpack.c.l.b16 %v312
      %v974 = vunpack.c.h.b16 %v312
      %v975 = vunpack.c.l.b16 %v313
      %v976 = vunpack.c.h.b16 %v313
      %v977 = vunpack.c.l.b16 %v314
      %v978 = vunpack.c.h.b16 %v314
      %v979 = vunpack.c.l.b16 %v315
      %v980 = vunpack.c.h.b16 %v315
      %v981 = vunpack.c.l.b16 %v316
      %v982 = vunpack.c.h.b16 %v316
      %v983 = vunpack.c.l.b16 %v317
      %v984 = vunpack.c.h.b16 %v317
      %v985 = vunpack.c.l.b16 %v318
      %v986 = vunpack.c.h.b16 %v318
      %v987 = vunpack.c.l.b16 %v319
      %v988 = vunpack.c.h.b16 %v319
      %v989 = vunpack.c.l.b16 %v320
      %v990 = vunpack.c.h.b16 %v320
      %v991 = vunpack.c.l.b16 %v321
      %v992 = vunpack.c.h.b16 %v321
      %v993 = vunpack.c.l.b16 %v322
      %v994 = vunpack.c.h.b16 %v322
      %v995 = vunpack.c.l.b16 %v323
      %v996 = vunpack.c.h.b16 %v323
      %v997 = vunpack.c.l.b16 %v324
      %v998 = vunpack.c.h.b16 %v324
      %v999 = vunpack.c.l.b16 %v325
      %v1000 = vunpack.c.h.b16 %v325
      %v1001 = vunpack.c.l.b16 %v326
      %v1002 = vunpack.c.h.b16 %v326
      %v1003 = vunpack.c.l.b16 %v327
      %v1004 = vunpack.c.h.b16 %v327
      %v1005 = vunpack.c.l.b16 %v328
      %v1006 = vunpack.c.h.b16 %v328
      %v1007 = vunpack.c.l.b16 %v329
      %v1008 = vunpack.c.h.b16 %v329
      %v1009 = vunpack.c.l.b16 %v330
      %v1010 = vunpack.c.h.b16 %v330
      %v1011 = vunpack.c.l.b16 %v331
      %v1012 = vunpack.c.h.b16 %v331
      %v1013 = vunpack.c.l.b16 %v332
      %v1014 = vunpack.c.h.b16 %v332
      %v1015 = vunpack.c.l.b16 %v333
      %v1016 = vunpack.c.h.b16 %v333
      %v1017 = vunpack.c.l.b16 %v334
      %v1018 = vunpack.c.h.b16 %v334
      %v1019 = vunpack.c.l.b16 %v335
      %v1020 = vunpack.c.h.b16 %v335
      %v1021 = vunpack.c.l.b16 %v336
      %v1022 = vunpack.c.h.b16 %v336
      %v1023 = vunpack.c.l.b16 %v337
      %v1024 = vunpack.c.h.b16 %v337
      %v1025 = vunpack.c.l.b16 %v338
      %v1026 = vunpack.c.h.b16 %v338
      %v1027 = vunpack.c.l.b16 %v339
      %v1028 = vunpack.c.h.b16 %v339
      %v1029 = vunpack.c.l.b16 %v340
      %v1030 = vunpack.c.h.b16 %v340
      %v1031 = vunpack.c.l.b16 %v341
      %v1032 = vunpack.c.h.b16 %v341
      %v1033 = vunpack.c.l.b16 %v342
      %v1034 = vunpack.c.h.b16 %v342
      %v1035 = vunpack.c.l.b16 %v343
      %v1036 = vunpack.c.h.b16 %v343
      %v1037 = vunpack.c.l.b16 %v344
      %v1038 = vunpack.c.h.b16 %v344
      %v1039 = vunpack.c.l.b16 %v345
      %v1040 = vunpack.c.h.b16 %v345
      %v1041 = vunpack.c.l.b16 %v346
      %v1042 = vunpack.c.h.b16 %v346
      %v1043 = vunpack.c.l.b16 %v347
      %v1044 = vunpack.c.h.b16 %v347
      %v1045 = vunpack.c.l.b16 %v348
      %v1046 = vunpack.c.h.b16 %v348
      %v1047 = vunpack.c.l.b16 %v349
      %v1048 = vunpack.c.h.b16 %v349
      %v1049 = vunpack.c.l.b16 %v350
      %v1050 = vunpack.c.h.b16 %v350
      %v1051 = vunpack.c.l.b16 %v351
      %v1052 = vunpack.c.h.b16 %v351
      %v1053 = vunpack.c.l.b16 %v352
      %v1054 = vunpack.c.h.b16 %v352
      %v1055 = vunpack.c.l.b16 %v353
      %v1056 = vunpack.c.h.b16 %v353
      %v1057 = vunpack.c.l.b16 %v354
      %v1058 = vunpack.c.h.b16 %v354
      %v1059 = vunpack.c.l.b16 %v355
      %v1060 = vunpack.c.h.b16 %v355
      %v1061 = vunpack.c.l.b16 %v356
      %v1062 = vunpack.c.h.b16 %v356
      %v1063 = vunpack.c.l.b16 %v357
      %v1064 = vunpack.c.h.b16 %v357
      %v1065 = vunpack.c.l.b16 %v358
      %v1066 = vunpack.c.h.b16 %v358
      %v1067 = vunpack.c.l.b16 %v359
      %v1068 = vunpack.c.h.b16 %v359
      %v1069 = vunpack.c.l.b16 %v360
      %v1070 = vunpack.c.h.b16 %v360
      %v1071 = vunpack.c.l.b16 %v361
      %v1072 = vunpack.c.h.b16 %v361
      %v1073 = vunpack.c.l.b16 %v362
      %v1074 = vunpack.c.h.b16 %v362
      %v1075 = vunpack.c.l.b16 %v363
      %v1076 = vunpack.c.h.b16 %v363
      %v1077 = vunpack.c.l.b16 %v364
      %v1078 = vunpack.c.h.b16 %v364
      %v1079 = vunpack.c.l.b16 %v365
      %v1080 = vunpack.c.h.b16 %v365
      %v1081 = vunpack.c.l.b16 %v366
      %v1082 = vunpack.c.h.b16 %v366
      %v1083 = vunpack.c.l.b16 %v367
      %v1084 = vunpack.c.h.b16 %v367
      %v1085 = vunpack.c.l.b16 %v368
      %v1086 = vunpack.c.h.b16 %v368
      %v1087 = vunpack.c.l.b16 %v369
      %v1088 = vunpack.c.h.b16 %v369
      %v1089 = vunpack.c.l.b16 %v370
      %v1090 = vunpack.c.h.b16 %v370
      %v1091 = vunpack.c.l.b16 %v371
      %v1092 = vunpack.c.h.b16 %v371
      %v1093 = vunpack.c.l.b16 %v372
      %v1094 = vunpack.c.h.b16 %v372
      %v1095 = vunpack.c.l.b16 %v373
      %v1096 = vunpack.c.h.b16 %v373
      %v1097 = vunpack.c.l.b16 %v374
      %v1098 = vunpack.c.h.b16 %v374
      %v1099 = vunpack.c.l.b16 %v375
      %v1100 = vunpack.c.h.b16 %v375
      %v1101 = vunpack.c.l.b16 %v376
      %v1102 = vunpack.c.h.b16 %v376
      %v1103 = vunpack.c.l.b16 %v377
      %v1104 = vunpack.c.h.b16 %v377
      %v1105 = vunpack.c.l.b16 %v378
      %v1106 = vunpack.c.h.b16 %v378
      %v1107 = vunpack.c.l.b16 %v379
      %v1108 = vunpack.c.h.b16 %v379
      %v1109 = vunpack.c.l.b16 %v380
      %v1110 = vunpack.c.h.b16 %v380
      %v1111 = vunpack.c.l.b16 %v381
      %v1112 = vunpack.c.h.b16 %v381
      %v1113 = vunpack.c.l.b16 %v382
      %v1114 = vunpack.c.h.b16 %v382
      %v1115 = vunpack.c.l.b16 %v383
      %v1116 = vunpack.c.h.b16 %v383
      %v1117 = vunpack.c.l.b16 %v384
      %v1118 = vunpack.c.h.b16 %v384
      %v1119 = vunpack.c.l.b16 %v385
      %v1120 = vunpack.c.h.b16 %v385
      %v1121 = vunpack.c.l.b16 %v386
      %v1122 = vunpack.c.h.b16 %v386
      %v1123 = vunpack.c.l.b16 %v387
      %v1124 = vunpack.c.h.b16 %v387
      %v1125 = vunpack.c.l.b16 %v388
      %v1126 = vunpack.c.h.b16 %v388
      %v1127 = vunpack.c.l.b16 %v389
      %v1128 = vunpack.c.h.b16 %v389
      %v1129 = vunpack.c.l.b16 %v390
      %v1130 = vunpack.c.h.b16 %v390
      %v1131 = vunpack.c.l.b16 %v391
      %v1132 = vunpack.c.h.b16 %v391
      %v1133 = vunpack.c.l.b16 %v392
      %v1134 = vunpack.c.h.b16 %v392
      %v1135 = vunpack.c.l.b16 %v393
      %v1136 = vunpack.c.h.b16 %v393
      %v1137 = vunpack.c.l.b16 %v394
      %v1138 = vunpack.c.h.b16 %v394
      %v1139 = vunpack.c.l.b16 %v395
      %v1140 = vunpack.c.h.b16 %v395
      %v1141 = vunpack.c.l.b16 %v396
      %v1142 = vunpack.c.h.b16 %v396
      %v1143 = vunpack.c.l.b16 %v397
      %v1144 = vunpack.c.h.b16 %v397
      %v1145 = vunpack.c.l.b16 %v398
      %v1146 = vunpack.c.h.b16 %v398
      %v1147 = vunpack.c.l.b16 %v399
      %v1148 = vunpack.c.h.b16 %v399
      %v1149 = vunpack.c.l.b16 %v400
      %v1150 = vunpack.c.h.b16 %v400
      %v1151 = vunpack.c.l.b16 %v401
      %v1152 = vunpack.c.h.b16 %v401
      %v1153 = vunpack.c.l.b16 %v402
      %v1154 = vunpack.c.h.b16 %v402
      %v1155 = vunpack.c.l.b16 %v403
      %v1156 = vunpack.c.h.b16 %v403
      %v1157 = vunpack.c.l.b16 %v404
      %v1158 = vunpack.c.h.b16 %v404
      %v1159 = vunpack.c.l.b16 %v405
      %v1160 = vunpack.c.h.b16 %v405
      %v1161 = vunpack.c.l.b16 %v406
      %v1162 = vunpack.c.h.b16 %v406
      %v1163 = vunpack.c.l.b16 %v407
      %v1164 = vunpack.c.h.b16 %v407
      %v1165 = vunpack.c.l.b16 %v408
      %v1166 = vunpack.c.h.b16 %v408
      %v1167 = vunpack.c.l.b16 %v409
      %v1168 = vunpack.c.h.b16 %v409
      %v1169 = vunpack.c.l.b16 %v410
      %v1170 = vunpack.c.h.b16 %v410
      %v1171 = vunpack.c.l.b16 %v411
      %v1172 = vunpack.c.h.b16 %v411
      %v1173 = vunpack.c.l.b16 %v412
      %v1174 = vunpack.c.h.b16 %v412
      %v1175 = vunpack.c.l.b16 %v413
      %v1176 = vunpack.c.h.b16 %v413
      %v1177 = vunpack.c.l.b16 %v414
      %v1178 = vunpack.c.h.b16 %v414
      %v1179 = vunpack.c.l.b16 %v415
      %v1180 = vunpack.c.h.b16 %v415
      %v1181 = vunpack.c.l.b16 %v416
      %v1182 = vunpack.c.h.b16 %v416
      %v1183 = vunpack.c.l.b16 %v417
      %v1184 = vunpack.c.h.b16 %v417
      %v1185 = vunpack.c.l.b16 %v418
      %v1186 = vunpack.c.h.b16 %v418
      %v1187 = vunpack.c.l.b16 %v419
      %v1188 = vunpack.c.h.b16 %v419
      %v1189 = vunpack.c.l.b16 %v420
      %v1190 = vunpack.c.h.b16 %v420
      %v1191 = vunpack.c.l.b16 %v421
      %v1192 = vunpack.c.h.b16 %v421
      %v1193 = vunpack.c.l.b16 %v422
      %v1194 = vunpack.c.h.b16 %v422
      %v1195 = vunpack.c.l.b16 %v423
      %v1196 = vunpack.c.h.b16 %v423
      %v1197 = vunpack.c.l.b16 %v424
      %v1198 = vunpack.c.h.b16 %v424
      %v1199 = vunpack.c.l.b16 %v425
      %v1200 = vunpack.c.h.b16 %v425
      %v1201 = vunpack.c.l.b16 %v426
      %v1202 = vunpack.c.h.b16 %v426
      %v1203 = vunpack.c.l.b16 %v427
      %v1204 = vunpack.c.h.b16 %v427
      %v1205 = vunpack.c.l.b16 %v428
      %v1206 = vunpack.c.h.b16 %v428
      %v1207 = vunpack.c.l.b16 %v429
      %v1208 = vunpack.c.h.b16 %v429
      %v1209 = vunpack.c.l.b16 %v430
      %v1210 = vunpack.c.h.b16 %v430
      %v1211 = vunpack.c.l.b16 %v431
      %v1212 = vunpack.c.h.b16 %v431
      %v1213 = vunpack.c.l.b16 %v432
      %v1214 = vunpack.c.h.b16 %v432
      %v1215 = vunpack.c.l.b16 %v433
      %v1216 = vunpack.c.h.b16 %v433
      %v1217 = vunpack.c.l.b16 %v434
      %v1218 = vunpack.c.h.b16 %v434
      %v1219 = vunpack.c.l.b16 %v435
      %v1220 = vunpack.c.h.b16 %v435
      %v1221 = vunpack.c.l.b16 %v436
      %v1222 = vunpack.c.h.b16 %v436
      %v1223 = vunpack.c.l.b16 %v437
      %v1224 = vunpack.c.h.b16 %v437
      %v1225 = vunpack.c.l.b16 %v438
      %v1226 = vunpack.c.h.b16 %v438
      %v1227 = vunpack.c.l.b16 %v439
      %v1228 = vunpack.c.h.b16 %v439
      %v1229 = vunpack.c.l.b16 %v440
      %v1230 = vunpack.c.h.b16 %v440
      %v1231 = vunpack.c.l.b16 %v441
      %v1232 = vunpack.c.h.b16 %v441
      %v1233 = vunpack.c.l.b16 %v442
      %v1234 = vunpack.c.h.b16 %v442
      %v1235 = vunpack.c.l.b16 %v443
      %v1236 = vunpack.c.h.b16 %v443
      %v1237 = vunpack.c.l.b16 %v444
      %v1238 = vunpack.c.h.b16 %v444
      %v1239 = vunpack.c.l.b16 %v445
      %v1240 = vunpack.c.h.b16 %v445
      %v1241 = vunpack.c.l.b16 %v446
      %v1242 = vunpack.c.h.b16 %v446
      %v1243 = vunpack.c.l.b16 %v447
      %v1244 = vunpack.c.h.b16 %v447
      %v1245 = vunpack.c.l.b16 %v448
      %v1246 = vunpack.c.h.b16 %v448
      %v1247 = vunpack.c.l.b16 %v449
      %v1248 = vunpack.c.h.b16 %v449
      %v1249 = vunpack.c.l.b16 %v450
      %v1250 = vunpack.c.h.b16 %v450
      %v1251 = vunpack.c.l.b16 %v451
      %v1252 = vunpack.c.h.b16 %v451
      %v1253 = vunpack.c.l.b16 %v452
      %v1254 = vunpack.c.h.b16 %v452
      %v1255 = vunpack.c.l.b16 %v453
      %v1256 = vunpack.c.h.b16 %v453
      %v1257 = vunpack.c.l.b16 %v454
      %v1258 = vunpack.c.h.b16 %v454
      %v1259 = vunpack.c.l.b16 %v455
      %v1260 = vunpack.c.h.b16 %v455
      %v1261 = vunpack.c.l.b16 %v456
      %v1262 = vunpack.c.h.b16 %v456
      %v1263 = vunpack.c.l.b16 %v457
      %v1264 = vunpack.c.h.b16 %v457
      %v1265 = vunpack.c.l.b16 %v458
      %v1266 = vunpack.c.h.b16 %v458
      %v1267 = vunpack.c.l.b16 %v459
      %v1268 = vunpack.c.h.b16 %v459
      %v1269 = vunpack.c.l.b16 %v460
      %v1270 = vunpack.c.h.b16 %v460
      %v1271 = vunpack.c.l.b16 %v461
      %v1272 = vunpack.c.h.b16 %v461
      %v1273 = vunpack.c.l.b16 %v462
      %v1274 = vunpack.c.h.b16 %v462
      %v1275 = vunpack.c.l.b16 %v463
      %v1276 = vunpack.c.h.b16 %v463
      %v1277 = vunpack.c.l.b16 %v464
      %v1278 = vunpack.c.h.b16 %v464
      %v1279 = vunpack.c.l.b16 %v465
      %v1280 = vunpack.c.h.b16 %v465
      %v1281 = vunpack.c.l.b16 %v466
      %v1282 = vunpack.c.h.b16 %v466
      %v1283 = vunpack.c.l.b16 %v467
      %v1284 = vunpack.c.h.b16 %v467
      %v1285 = vunpack.c.l.b16 %v468
      %v1286 = vunpack.c.h.b16 %v468
      %v1287 = vunpack.c.l.b16 %v469
      %v1288 = vunpack.c.h.b16 %v469
      %v1289 = vunpack.c.l.b16 %v470
      %v1290 = vunpack.c.h.b16 %v470
      %v1291 = vunpack.c.l.b16 %v471
      %v1292 = vunpack.c.h.b16 %v471
      %v1293 = vunpack.c.l.b16 %v472
      %v1294 = vunpack.c.h.b16 %v472
      %v1295 = vunpack.c.l.b16 %v473
      %v1296 = vunpack.c.h.b16 %v473
      %v1297 = vunpack.c.l.b16 %v474
      %v1298 = vunpack.c.h.b16 %v474
      %v1299 = vunpack.c.l.b16 %v475
      %v1300 = vunpack.c.h.b16 %v475
      %v1301 = vunpack.c.l.b16 %v476
      %v1302 = vunpack.c.h.b16 %v476
      %v1303 = vunpack.c.l.b16 %v477
      %v1304 = vunpack.c.h.b16 %v477
      %v1305 = vunpack.c.l.b16 %v478
      %v1306 = vunpack.c.h.b16 %v478
      %v1307 = vunpack.c.l.b16 %v479
      %v1308 = vunpack.c.h.b16 %v479
      %v1309 = vunpack.c.l.b16 %v480
      %v1310 = vunpack.c.h.b16 %v480
      %v1311 = vunpack.c.l.b16 %v481
      %v1312 = vunpack.c.h.b16 %v481
      %v1313 = vunpack.c.l.b16 %v482
      %v1314 = vunpack.c.h.b16 %v482
      %v1315 = vunpack.c.l.b16 %v483
      %v1316 = vunpack.c.h.b16 %v483
      %v1317 = vunpack.c.l.b16 %v484
      %v1318 = vunpack.c.h.b16 %v484
      %v1319 = vunpack.c.l.b16 %v485
      %v1320 = vunpack.c.h.b16 %v485
      %v1321 = vunpack.c.l.b16 %v486
      %v1322 = vunpack.c.h.b16 %v486
      %v1323 = vunpack.c.l.b16 %v487
      %v1324 = vunpack.c.h.b16 %v487
      %v1325 = vunpack.c.l.b16 %v488
      %v1326 = vunpack.c.h.b16 %v488
      %v1327 = vunpack.c.l.b16 %v489
      %v1328 = vunpack.c.h.b16 %v489
      %v1329 = vpack.c.b16 %v821, %v817
      %v1330 = vpack.c.b16 %v822, %v818
      %v1331 = vpack.c.b16 %v823, %v819
      %v1332 = vpack.c.b16 %v824, %v820
      %v1333 = vpack.c.b16 %v829, %v825
      %v1334 = vpack.c.b16 %v830, %v826
      %v1335 = vpack.c.b16 %v831, %v827
      %v1336 = vpack.c.b16 %v832, %v828
      %v1337 = vpack.c.b16 %v837, %v833
      %v1338 = vpack.c.b16 %v838, %v834
      %v1339 = vpack.c.b16 %v839, %v835
      %v1340 = vpack.c.b16 %v840, %v836
      %v1341 = vpack.c.b16 %v845, %v841
      %v1342 = vpack.c.b16 %v846, %v842
      %v1343 = vpack.c.b16 %v847, %v843
      %v1344 = vpack.c.b16 %v848, %v844
      %v1345 = vpack.c.b16 %v853, %v849
      %v1346 = vpack.c.b16 %v854, %v850
      %v1347 = vpack.c.b16 %v855, %v851
      %v1348 = vpack.c.b16 %v856, %v852
      %v1349 = vpack.c.b16 %v861, %v857
      %v1350 = vpack.c.b16 %v862, %v858
      %v1351 = vpack.c.b16 %v863, %v859
      %v1352 = vpack.c.b16 %v864, %v860
      %v1353 = vpack.c.b16 %v869, %v865
      %v1354 = vpack.c.b16 %v870, %v866
      %v1355 = vpack.c.b16 %v871, %v867
      %v1356 = vpack.c.b16 %v872, %v868
      %v1357 = vpack.c.b16 %v877, %v873
      %v1358 = vpack.c.b16 %v878, %v874
      %v1359 = vpack.c.b16 %v879, %v875
      %v1360 = vpack.c.b16 %v880, %v876
      %v1361 = vpack.c.b16 %v885, %v881
      %v1362 = vpack.c.b16 %v886, %v882
      %v1363 = vpack.c.b16 %v887, %v883
      %v1364 = vpack.c.b16 %v888, %v884
      %v1365 = vpack.c.b16 %v893, %v889
      %v1366 = vpack.c.b16 %v894, %v890
      %v1367 = vpack.c.b16 %v895, %v891
      %v1368 = vpack.c.b16 %v896, %v892
      %v1369 = vpack.c.b16 %v901, %v897
      %v1370 = vpack.c.b16 %v902, %v898
      %v1371 = vpack.c.b16 %v903, %v899
      %v1372 = vpack.c.b16 %v904, %v900
      %v1373 = vpack.c.b16 %v909, %v905
      %v1374 = vpack.c.b16 %v910, %v906
      %v1375 = vpack.c.b16 %v911, %v907
      %v1376 = vpack.c.b16 %v912, %v908
      %v1377 = vpack.c.b16 %v917, %v913
      %v1378 = vpack.c.b16 %v918, %v914
      %v1379 = vpack.c.b16 %v919, %v915
      %v1380 = vpack.c.b16 %v920, %v916
      %v1381 = vpack.c.b16 %v925, %v921
      %v1382 = vpack.c.b16 %v926, %v922
      %v1383 = vpack.c.b16 %v927, %v923
      %v1384 = vpack.c.b16 %v928, %v924
      %v1385 = vpack.c.b16 %v933, %v929
      %v1386 = vpack.c.b16 %v934, %v930
      %v1387 = vpack.c.b16 %v935, %v931
      %v1388 = vpack.c.b16 %v936, %v932
      %v1389 = vpack.c.b16 %v941, %v937
      %v1390 = vpack.c.b16 %v942, %v938
      %v1391 = vpack.c.b16 %v943, %v939
      %v1392 = vpack.c.b16 %v944, %v940
      %v1393 = vpack.c.b16 %v949, %v945
      %v1394 = vpack.c.b16 %v950, %v946
      %v1395 = vpack.c.b16 %v951, %v947
      %v1396 = vpack.c.b16 %v952, %v948
      %v1397 = vpack.c.b16 %v957, %v953
      %v1398 = vpack.c.b16 %v958, %v954
      %v1399 = vpack.c.b16 %v959, %v955
      %v1400 = vpack.c.b16 %v960, %v956
      %v1401 = vpack.c.b16 %v965, %v961
      %v1402 = vpack.c.b16 %v966, %v962
      %v1403 = vpack.c.b16 %v967, %v963
      %v1404 = vpack.c.b16 %v968, %v964
      %v1405 = vpack.c.b16 %v973, %v969
      %v1406 = vpack.c.b16 %v974, %v970
      %v1407 = vpack.c.b16 %v975, %v971
      %v1408 = vpack.c.b16 %v976, %v972
      %v1409 = vpack.c.b16 %v981, %v977
      %v1410 = vpack.c.b16 %v982, %v978
      %v1411 = vpack.c.b16 %v983, %v979
      %v1412 = vpack.c.b16 %v984, %v980
      %v1413 = vpack.c.b16 %v989, %v985
      %v1414 = vpack.c.b16 %v990, %v986
      %v1415 = vpack.c.b16 %v991, %v987
      %v1416 = vpack.c.b16 %v992, %v988
      %v1417 = vpack.c.b16 %v997, %v993
      %v1418 = vpack.c.b16 %v998, %v994
      %v1419 = vpack.c.b16 %v999, %v995
      %v1420 = vpack.c.b16 %v1000, %v996
      %v1421 = vpack.c.b16 %v1005, %v1001
      %v1422 = vpack.c.b16 %v1006, %v1002
      %v1423 = vpack.c.b16 %v1007, %v1003
      %v1424 = vpack.c.b16 %v1008, %v1004
      %v1425 = vpack.c.b16 %v1013, %v1009
      %v1426 = vpack.c.b16 %v1014, %v1010
      %v1427 = vpack.c.b16 %v1015, %v1011
      %v1428 = vpack.c.b16 %v1016, %v1012
      %v1429 = vpack.c.b16 %v1021, %v1017
      %v1430 = vpack.c.b16 %v1022, %v1018
      %v1431 = vpack.c.b16 %v1023, %v1019
      %v1432 = vpack.c.b16 %v1024, %v1020
      %v1433 = vpack.c.b16 %v1029, %v1025
      %v1434 = vpack.c.b16 %v1030, %v1026
      %v1435 = vpack.c.b16 %v1031, %v1027
      %v1436 = vpack.c.b16 %v1032, %v1028
      %v1437 = vpack.c.b16 %v1037, %v1033
      %v1438 = vpack.c.b16 %v1038, %v1034
      %v1439 = vpack.c.b16 %v1039, %v1035
      %v1440 = vpack.c.b16 %v1040, %v1036
      %v1441 = vpack.c.b16 %v1045, %v1041
      %v1442 = vpack.c.b16 %v1046, %v1042
      %v1443 = vpack.c.b16 %v1047, %v1043
      %v1444 = vpack.c.b16 %v1048, %v1044
      %v1445 = vpack.c.b16 %v1053, %v1049
      %v1446 = vpack.c.b16 %v1054, %v1050
      %v1447 = vpack.c.b16 %v1055, %v1051
      %v1448 = vpack.c.b16 %v1056, %v1052
      %v1449 = vpack.c.b16 %v1061, %v1057
      %v1450 = vpack.c.b16 %v1062, %v1058
      %v1451 = vpack.c.b16 %v1063, %v1059
      %v1452 = vpack.c.b16 %v1064, %v1060
      %v1453 = vpack.c.b16 %v1069, %v1065
      %v1454 = vpack.c.b16 %v1070, %v1066
      %v1455 = vpack.c.b16 %v1071, %v1067
      %v1456 = vpack.c.b16 %v1072, %v1068
      %v1457 = vpack.c.b16 %v1077, %v1073
      %v1458 = vpack.c.b16 %v1078, %v1074
      %v1459 = vpack.c.b16 %v1079, %v1075
      %v1460 = vpack.c.b16 %v1080, %v1076
      %v1461 = vpack.c.b16 %v1085, %v1081
      %v1462 = vpack.c.b16 %v1086, %v1082
      %v1463 = vpack.c.b16 %v1087, %v1083
      %v1464 = vpack.c.b16 %v1088, %v1084
      %v1465 = vpack.c.b16 %v1093, %v1089
      %v1466 = vpack.c.b16 %v1094, %v1090
      %v1467 = vpack.c.b16 %v1095, %v1091
      %v1468 = vpack.c.b16 %v1096, %v1092
      %v1469 = vpack.c.b16 %v1101, %v1097
      %v1470 = vpack.c.b16 %v1102, %v1098
      %v1471 = vpack.c.b16 %v1103, %v1099
      %v1472 = vpack.c.b16 %v1104, %v1100
      %v1473 = vpack.c.b16 %v1109, %v1105
      %v1474 = vpack.c.b16 %v1110, %v1106
      %v1475 = vpack.c.b16 %v1111, %v1107
      %v1476 = vpack.c.b16 %v1112, %v1108
      %v1477 = vpack.c.b16 %v1117, %v1113
      %v1478 = vpack.c.b16 %v1118, %v1114
      %v1479 = vpack.c.b16 %v1119, %v1115
      %v1480 = vpack.c.b16 %v1120, %v1116
      %v1481 = vpack.c.b16 %v1125, %v1121
      %v1482 = vpack.c.b16 %v1126, %v1122
      %v1483 = vpack.c.b16 %v1127, %v1123
      %v1484 = vpack.c.b16 %v1128, %v1124
      %v1485 = vpack.c.b16 %v1133, %v1129
      %v1486 = vpack.c.b16 %v1134, %v1130
      %v1487 = vpack.c.b16 %v1135, %v1131
      %v1488 = vpack.c.b16 %v1136, %v1132
      %v1489 = vpack.c.b16 %v1141, %v1137
      %v1490 = vpack.c.b16 %v1142, %v1138
      %v1491 = vpack.c.b16 %v1143, %v1139
      %v1492 = vpack.c.b16 %v1144, %v1140
      %v1493 = vpack.c.b16 %v1149, %v1145
      %v1494 = vpack.c.b16 %v1150, %v1146
      %v1495 = vpack.c.b16 %v1151, %v1147
      %v1496 = vpack.c.b16 %v1152, %v1148
      %v1497 = vpack.c.b16 %v1157, %v1153
      %v1498 = vpack.c.b16 %v1158, %v1154
      %v1499 = vpack.c.b16 %v1159, %v1155
      %v1500 = vpack.c.b16 %v1160, %v1156
      %v1501 = vpack.c.b16 %v1165, %v1161
      %v1502 = vpack.c.b16 %v1166, %v1162
      %v1503 = vpack.c.b16 %v1167, %v1163
      %v1504 = vpack.c.b16 %v1168, %v1164
      %v1505 = vpack.c.b16 %v1173, %v1169
      %v1506 = vpack.c.b16 %v1174, %v1170
      %v1507 = vpack.c.b16 %v1175, %v1171
      %v1508 = vpack.c.b16 %v1176, %v1172
      %v1509 = vpack.c.b16 %v1181, %v1177
      %v1510 = vpack.c.b16 %v1182, %v1178
      %v1511 = vpack.c.b16 %v1183, %v1179
      %v1512 = vpack.c.b16 %v1184, %v1180
      %v1513 = vpack.c.b16 %v1189, %v1185
      %v1514 = vpack.c.b16 %v1190, %v1186
      %v1515 = vpack.c.b16 %v1191, %v1187
      %v1516 = vpack.c.b16 %v1192, %v1188
      %v1517 = vpack.c.b16 %v1197, %v1193
      %v1518 = vpack.c.b16 %v1198, %v1194
      %v1519 = vpack.c.b16 %v1199, %v1195
      %v1520 = vpack.c.b16 %v1200, %v1196
      %v1521 = vpack.c.b16 %v1205, %v1201
      %v1522 = vpack.c.b16 %v1206, %v1202
      %v1523 = vpack.c.b16 %v1207, %v1203
      %v1524 = vpack.c.b16 %v1208, %v1204
      %v1525 = vpack.c.b16 %v1213, %v1209
      %v1526 = vpack.c.b16 %v1214, %v1210
      %v1527 = vpack.c.b16 %v1215, %v1211
      %v1528 = vpack.c.b16 %v1216, %v1212
      %v1529 = vpack.c.b16 %v1221, %v1217
      %v1530 = vpack.c.b16 %v1222, %v1218
      %v1531 = vpack.c.b16 %v1223, %v1219
      %v1532 = vpack.c.b16 %v1224, %v1220
      %v1533 = vpack.c.b16 %v1229, %v1225
      %v1534 = vpack.c.b16 %v1230, %v1226
      %v1535 = vpack.c.b16 %v1231, %v1227
      %v1536 = vpack.c.b16 %v1232, %v1228
      %v1537 = vpack.c.b16 %v1237, %v1233
      %v1538 = vpack.c.b16 %v1238, %v1234
      %v1539 = vpack.c.b16 %v1239, %v1235
      %v1540 = vpack.c.b16 %v1240, %v1236
      %v1541 = vpack.c.b16 %v1245, %v1241
      %v1542 = vpack.c.b16 %v1246, %v1242
      %v1543 = vpack.c.b16 %v1247, %v1243
      %v1544 = vpack.c.b16 %v1248, %v1244
      %v1545 = vpack.c.b16 %v1253, %v1249
      %v1546 = vpack.c.b16 %v1254, %v1250
      %v1547 = vpack.c.b16 %v1255, %v1251
      %v1548 = vpack.c.b16 %v1256, %v1252
      %v1549 = vpack.c.b16 %v1261, %v1257
      %v1550 = vpack.c.b16 %v1262, %v1258
      %v1551 = vpack.c.b16 %v1263, %v1259
      %v1552 = vpack.c.b16 %v1264, %v1260
      %v1553 = vpack.c.b16 %v1269, %v1265
      %v1554 = vpack.c.b16 %v1270, %v1266
      %v1555 = vpack.c.b16 %v1271, %v1267
      %v1556 = vpack.c.b16 %v1272, %v1268
      %v1557 = vpack.c.b16 %v1277, %v1273
      %v1558 = vpack.c.b16 %v1278, %v1274
      %v1559 = vpack.c.b16 %v1279, %v1275
      %v1560 = vpack.c.b16 %v1280, %v1276
      %v1561 = vpack.c.b16 %v1285, %v1281
      %v1562 = vpack.c.b16 %v1286, %v1282
      %v1563 = vpack.c.b16 %v1287, %v1283
      %v1564 = vpack.c.b16 %v1288, %v1284
      %v1565 = vpack.c.b16 %v1293, %v1289
      %v1566 = vpack.c.b16 %v1294, %v1290
      %v1567 = vpack.c.b16 %v1295, %v1291
      %v1568 = vpack.c.b16 %v1296, %v1292
      %v1569 = vpack.c.b16 %v1301, %v1297
      %v1570 = vpack.c.b16 %v1302, %v1298
      %v1571 = vpack.c.b16 %v1303, %v1299
      %v1572 = vpack.c.b16 %v1304, %v1300
      %v1573 = vpack.c.b16 %v1309, %v1305
      %v1574 = vpack.c.b16 %v1310, %v1306
      %v1575 = vpack.c.b16 %v1311, %v1307
      %v1576 = vpack.c.b16 %v1312, %v1308
      %v1577 = vpack.c.b16 %v1317, %v1313
      %v1578 = vpack.c.b16 %v1318, %v1314
      %v1579 = vpack.c.b16 %v1319, %v1315
      %v1580 = vpack.c.b16 %v1320, %v1316
      %v1581 = vpack.c.b16 %v1325, %v1321
      %v1582 = vpack.c.b16 %v1326, %v1322
      %v1583 = vpack.c.b16 %v1327, %v1323
      %v1584 = vpack.c.b16 %v1328, %v1324
      %v1905 = vunpack.c.l.b16 %v490
      %v1906 = vunpack.c.l.b16 %v491
      %v1907 = vunpack.c.l.b16 %v492
      %v1908 = vunpack.c.l.b16 %v493
      %v1909 = vunpack.c.l.b16 %v494
      %v1910 = vunpack.c.l.b16 %v495
      %v1911 = vunpack.c.l.b16 %v496
      %v1912 = vunpack.c.l.b16 %v497
      %v1913 = vunpack.c.l.b16 %v498
      %v1914 = vunpack.c.l.b16 %v499
      %v1915 = vunpack.c.l.b16 %v500
      %v1916 = vunpack.c.l.b16 %v501
      %v1917 = vunpack.c.l.b16 %v502
      %v1918 = vunpack.c.l.b16 %v503
      %v1919 = vunpack.c.l.b16 %v504
      %v1920 = vunpack.c.l.b16 %v505
      %v1921 = vunpack.c.l.b16 %v506
      %v1922 = vunpack.c.l.b16 %v507
      %v1923 = vunpack.c.l.b16 %v508
      %v1924 = vunpack.c.l.b16 %v509
      %v1925 = vunpack.c.l.b16 %v510
      %v1926 = vunpack.c.l.b16 %v511
      %v1927 = vunpack.c.l.b16 %v512
      %v1928 = vunpack.c.l.b16 %v513
      %v1929 = vunpack.c.l.b16 %v514
      %v1930 = vunpack.c.l.b16 %v515
      %v1931 = vunpack.c.l.b16 %v516
      %v1932 = vunpack.c.l.b16 %v517
      %v1933 = vunpack.c.l.b16 %v518
      %v1934 = vunpack.c.l.b16 %v519
      %v1935 = vunpack.c.l.b16 %v520
      %v1936 = vunpack.c.l.b16 %v521
      %v1937 = vunpack.c.l.b16 %v522
      %v1938 = vunpack.c.l.b16 %v523
      %v1939 = vunpack.c.l.b16 %v524
      %v1940 = vunpack.c.l.b16 %v525
      %v1941 = vunpack.c.l.b16 %v526
      %v1942 = vunpack.c.l.b16 %v527
      %v1943 = vunpack.c.l.b16 %v528
      %v1944 = vunpack.c.l.b16 %v529
      %v1945 = vunpack.c.l.b16 %v530
      %v1946 = vunpack.c.l.b16 %v531
      %v1947 = vunpack.c.l.b16 %v532
      %v1948 = vunpack.c.l.b16 %v533
      %v1949 = vunpack.c.l.b16 %v534
      %v1950 = vunpack.c.l.b16 %v535
      %v1951 = vunpack.c.l.b16 %v536
      %v1952 = vunpack.c.l.b16 %v537
      %v1953 = vunpack.c.l.b16 %v538
      %v1954 = vunpack.c.l.b16 %v539
      %v1955 = vunpack.c.l.b16 %v540
      %v1956 = vunpack.c.l.b16 %v541
      %v1957 = vunpack.c.l.b16 %v542
      %v1958 = vunpack.c.l.b16 %v543
      %v1959 = vunpack.c.l.b16 %v544
      %v1960 = vunpack.c.l.b16 %v545
      %v1961 = vunpack.c.l.b16 %v546
      %v1962 = vunpack.c.l.b16 %v547
      %v1963 = vunpack.c.l.b16 %v548
      %v1964 = vunpack.c.l.b16 %v549
      %v1965 = vunpack.c.l.b16 %v550
      %v1966 = vunpack.c.l.b16 %v551
      %v1967 = vunpack.c.l.b16 %v552
      %v1968 = vunpack.c.l.b16 %v553
      %v1969 = vpack.c.b16 %v1906, %v1905
      %v1970 = vpack.c.b16 %v1908, %v1907
      %v1971 = vpack.c.b16 %v1910, %v1909
      %v1972 = vpack.c.b16 %v1912, %v1911
      %v1973 = vpack.c.b16 %v1914, %v1913
      %v1974 = vpack.c.b16 %v1916, %v1915
      %v1975 = vpack.c.b16 %v1918, %v1917
      %v1976 = vpack.c.b16 %v1920, %v1919
      %v1977 = vpack.c.b16 %v1922, %v1921
      %v1978 = vpack.c.b16 %v1924, %v1923
      %v1979 = vpack.c.b16 %v1926, %v1925
      %v1980 = vpack.c.b16 %v1928, %v1927
      %v1981 = vpack.c.b16 %v1930, %v1929
      %v1982 = vpack.c.b16 %v1932, %v1931
      %v1983 = vpack.c.b16 %v1934, %v1933
      %v1984 = vpack.c.b16 %v1936, %v1935
      %v1985 = vpack.c.b16 %v1938, %v1937
      %v1986 = vpack.c.b16 %v1940, %v1939
      %v1987 = vpack.c.b16 %v1942, %v1941
      %v1988 = vpack.c.b16 %v1944, %v1943
      %v1989 = vpack.c.b16 %v1946, %v1945
      %v1990 = vpack.c.b16 %v1948, %v1947
      %v1991 = vpack.c.b16 %v1950, %v1949
      %v1992 = vpack.c.b16 %v1952, %v1951
      %v1993 = vpack.c.b16 %v1954, %v1953
      %v1994 = vpack.c.b16 %v1956, %v1955
      %v1995 = vpack.c.b16 %v1958, %v1957
      %v1996 = vpack.c.b16 %v1960, %v1959
      %v1997 = vpack.c.b16 %v1962, %v1961
      %v1998 = vpack.c.b16 %v1964, %v1963
      %v1999 = vpack.c.b16 %v1966, %v1965
      %v2000 = vpack.c.b16 %v1968, %v1967
      %2033 = vmatprep.subr.bf16.mxu0 0
      %2034 = vmatpush1.bf16.msra.mxu0 %v1969
      %2035 = vmatprep.subr.bf16.mxu0 0
      %2036 = vmatpush1.bf16.msra.mxu0 %v1970
      %2037 = vmatprep.subr.bf16.mxu0 0
      %2038 = vmatpush1.bf16.msra.mxu0 %v1971
      %2039 = vmatprep.subr.bf16.mxu0 0
      %2040 = vmatpush1.bf16.msra.mxu0 %v1972
      %2041 = vmatprep.subr.bf16.mxu0 0
      %2042 = vmatpush1.bf16.msra.mxu0 %v1973
      %2043 = vmatprep.subr.bf16.mxu0 0
      %2044 = vmatpush1.bf16.msra.mxu0 %v1974
      %2045 = vmatprep.subr.bf16.mxu0 0
      %2046 = vmatpush1.bf16.msra.mxu0 %v1975
      %2047 = vmatprep.subr.bf16.mxu0 0
      %2048 = vmatpush1.bf16.msra.mxu0 %v1976
      %2049 = vmatprep.subr.bf16.mxu0 0
      %2050 = vmatpush1.bf16.msra.mxu0 %v1977
      %2051 = vmatprep.subr.bf16.mxu0 0
      %2052 = vmatpush1.bf16.msra.mxu0 %v1978
      %2053 = vmatprep.subr.bf16.mxu0 0
      %2054 = vmatpush1.bf16.msra.mxu0 %v1979
      %2055 = vmatprep.subr.bf16.mxu0 0
      %2056 = vmatpush1.bf16.msra.mxu0 %v1980
      %2057 = vmatprep.subr.bf16.mxu0 0
      %2058 = vmatpush1.bf16.msra.mxu0 %v1981
      %2059 = vmatprep.subr.bf16.mxu0 0
      %2060 = vmatpush1.bf16.msra.mxu0 %v1982
      %2061 = vmatprep.subr.bf16.mxu0 0
      %2062 = vmatpush1.bf16.msra.mxu0 %v1983
      %2063 = vmatprep.subr.bf16.mxu0 0
      %2064 = vmatpush1.bf16.msra.mxu0 %v1984
      %2065 = vmatprep.mubr.bf16.mxu0 %v1330
      %2066 = vmatmul.mubr.bf16.gmra.mrb[0].mxu0 %v1329
      %v2067 = vpop.f32.mrb[0].mxu0
      %v2068 = vadd.f32 %v559, %v2067
      %v2069 = vpop.f32.mrb[0].mxu0
      %v2070 = vpop.f32.mrb[0].mxu0
      %v2071 = vadd.f32 %v559, %v2070
      %v2072 = vpop.f32.mrb[0].mxu0
      %2073 = vmatprep.mubr.bf16.mxu0 %v1334
      %2074 = vmatmul.mubr.bf16.gmra.mrb[0].mxu0 %v1333
      %v2075 = vpop.f32.mrb[0].mxu0
      %v2076 = vadd.f32 %v559, %v2075
      %v2077 = vpop.f32.mrb[0].mxu0
      %v2078 = vpop.f32.mrb[0].mxu0
      %v2079 = vadd.f32 %v559, %v2078
      %v2080 = vpop.f32.mrb[0].mxu0
      %2081 = vmatprep.mubr.bf16.mxu0 %v1338
      %2082 = vmatmul.mubr.bf16.gmra.mrb[0].mxu0 %v1337
      %v2083 = vpop.f32.mrb[0].mxu0
      %v2084 = vadd.f32 %v559, %v2083
      %v2085 = vpop.f32.mrb[0].mxu0
      %v2086 = vpop.f32.mrb[0].mxu0
      %v2087 = vadd.f32 %v559, %v2086
      %v2088 = vpop.f32.mrb[0].mxu0
      %2089 = vmatprep.mubr.bf16.mxu0 %v1342
      %2090 = vmatmul.mubr.bf16.gmra.mrb[0].mxu0 %v1341
      %v2091 = vpop.f32.mrb[0].mxu0
      %v2092 = vadd.f32 %v559, %v2091
      %v2093 = vpop.f32.mrb[0].mxu0
      %v2094 = vpop.f32.mrb[0].mxu0
      %v2095 = vadd.f32 %v559, %v2094
      %v2096 = vpop.f32.mrb[0].mxu0
      %2097 = vmatprep.mubr.bf16.mxu0 %v1346
      %2098 = vmatmul.mubr.bf16.gmra.mrb[0].mxu0 %v1345
      %v2099 = vpop.f32.mrb[0].mxu0
      %v2100 = vadd.f32 %v559, %v2099
      %v2101 = vpop.f32.mrb[0].mxu0
      %v2102 = vpop.f32.mrb[0].mxu0
      %v2103 = vadd.f32 %v559, %v2102
      %v2104 = vpop.f32.mrb[0].mxu0
      %2105 = vmatprep.mubr.bf16.mxu0 %v1350
      %2106 = vmatmul.mubr.bf16.gmra.mrb[0].mxu0 %v1349
      %v2107 = vpop.f32.mrb[0].mxu0
      %v2108 = vadd.f32 %v559, %v2107
      %v2109 = vpop.f32.mrb[0].mxu0
      %v2110 = vpop.f32.mrb[0].mxu0
      %v2111 = vadd.f32 %v559, %v2110
      %v2112 = vpop.f32.mrb[0].mxu0
      %2113 = vmatprep.mubr.bf16.mxu0 %v1354
      %2114 = vmatmul.mubr.bf16.gmra.mrb[0].mxu0 %v1353
      %v2115 = vpop.f32.mrb[0].mxu0
      %v2116 = vadd.f32 %v559, %v2115
      %v2117 = vpop.f32.mrb[0].mxu0
      %v2118 = vpop.f32.mrb[0].mxu0
      %v2119 = vadd.f32 %v559, %v2118
      %v2120 = vpop.f32.mrb[0].mxu0
      %2121 = vmatprep.mubr.bf16.mxu0 %v1358
      %2122 = vmatmul.mubr.bf16.gmra.mrb[0].mxu0 %v1357
      %v2123 = vpop.f32.mrb[0].mxu0
      %v2124 = vadd.f32 %v559, %v2123
      %v2125 = vpop.f32.mrb[0].mxu0
      %v2126 = vpop.f32.mrb[0].mxu0
      %v2127 = vadd.f32 %v559, %v2126
      %v2128 = vpop.f32.mrb[0].mxu0
      %2129 = vmatprep.mubr.bf16.mxu0 %v1362
      %2130 = vmatmul.mubr.bf16.gmra.mrb[0].mxu0 %v1361
      %v2131 = vpop.f32.mrb[0].mxu0
      %v2132 = vadd.f32 %v559, %v2131
      %v2133 = vpop.f32.mrb[0].mxu0
      %v2134 = vpop.f32.mrb[0].mxu0
      %v2135 = vadd.f32 %v559, %v2134
      %v2136 = vpop.f32.mrb[0].mxu0
      %2137 = vmatprep.mubr.bf16.mxu0 %v1366
      %2138 = vmatmul.mubr.bf16.gmra.mrb[0].mxu0 %v1365
      %v2139 = vpop.f32.mrb[0].mxu0
      %v2140 = vadd.f32 %v559, %v2139
      %v2141 = vpop.f32.mrb[0].mxu0
      %v2142 = vpop.f32.mrb[0].mxu0
      %v2143 = vadd.f32 %v559, %v2142
      %v2144 = vpop.f32.mrb[0].mxu0
      %2145 = vmatprep.mubr.bf16.mxu0 %v1370
      %2146 = vmatmul.mubr.bf16.gmra.mrb[0].mxu0 %v1369
      %v2147 = vpop.f32.mrb[0].mxu0
      %v2148 = vadd.f32 %v559, %v2147
      %v2149 = vpop.f32.mrb[0].mxu0
      %v2150 = vpop.f32.mrb[0].mxu0
      %v2151 = vadd.f32 %v559, %v2150
      %v2152 = vpop.f32.mrb[0].mxu0
      %2153 = vmatprep.mubr.bf16.mxu0 %v1374
      %2154 = vmatmul.mubr.bf16.gmra.mrb[0].mxu0 %v1373
      %v2155 = vpop.f32.mrb[0].mxu0
      %v2156 = vadd.f32 %v559, %v2155
      %v2157 = vpop.f32.mrb[0].mxu0
      %v2158 = vpop.f32.mrb[0].mxu0
      %v2159 = vadd.f32 %v559, %v2158
      %v2160 = vpop.f32.mrb[0].mxu0
      %2161 = vmatprep.mubr.bf16.mxu0 %v1378
      %2162 = vmatmul.mubr.bf16.gmra.mrb[0].mxu0 %v1377
      %v2163 = vpop.f32.mrb[0].mxu0
      %v2164 = vadd.f32 %v559, %v2163
      %v2165 = vpop.f32.mrb[0].mxu0
      %v2166 = vpop.f32.mrb[0].mxu0
      %v2167 = vadd.f32 %v559, %v2166
      %v2168 = vpop.f32.mrb[0].mxu0
      %2169 = vmatprep.mubr.bf16.mxu0 %v1382
      %2170 = vmatmul.mubr.bf16.gmra.mrb[0].mxu0 %v1381
      %v2171 = vpop.f32.mrb[0].mxu0
      %v2172 = vadd.f32 %v559, %v2171
      %v2173 = vpop.f32.mrb[0].mxu0
      %v2174 = vpop.f32.mrb[0].mxu0
      %v2175 = vadd.f32 %v559, %v2174
      %v2176 = vpop.f32.mrb[0].mxu0
      %2177 = vmatprep.mubr.bf16.mxu0 %v1386
      %2178 = vmatmul.mubr.bf16.gmra.mrb[0].mxu0 %v1385
      %v2179 = vpop.f32.mrb[0].mxu0
      %v2180 = vadd.f32 %v559, %v2179
      %v2181 = vpop.f32.mrb[0].mxu0
      %v2182 = vpop.f32.mrb[0].mxu0
      %v2183 = vadd.f32 %v559, %v2182
      %v2184 = vpop.f32.mrb[0].mxu0
      %2185 = vmatprep.mubr.bf16.mxu0 %v1390
      %2186 = vmatmul.mubr.bf16.gmra.mrb[0].mxu0 %v1389
      %v2187 = vpop.f32.mrb[0].mxu0
      %v2188 = vadd.f32 %v559, %v2187
      %v2189 = vpop.f32.mrb[0].mxu0
      %v2190 = vpop.f32.mrb[0].mxu0
      %v2191 = vadd.f32 %v559, %v2190
      %v2192 = vpop.f32.mrb[0].mxu0
      %2193 = vmatprep.mubr.bf16.mxu0 %v1394
      %2194 = vmatmul.mubr.bf16.gmra.mrb[0].mxu0 %v1393
      %v2195 = vpop.f32.mrb[0].mxu0
      %v2196 = vadd.f32 %v559, %v2195
      %v2197 = vpop.f32.mrb[0].mxu0
      %v2198 = vpop.f32.mrb[0].mxu0
      %v2199 = vadd.f32 %v559, %v2198
      %v2200 = vpop.f32.mrb[0].mxu0
      %2201 = vmatprep.mubr.bf16.mxu0 %v1398
      %2202 = vmatmul.mubr.bf16.gmra.mrb[0].mxu0 %v1397
      %v2203 = vpop.f32.mrb[0].mxu0
      %v2204 = vadd.f32 %v559, %v2203
      %v2205 = vpop.f32.mrb[0].mxu0
      %v2206 = vpop.f32.mrb[0].mxu0
      %v2207 = vadd.f32 %v559, %v2206
      %v2208 = vpop.f32.mrb[0].mxu0
      %2209 = vmatprep.mubr.bf16.mxu0 %v1402
      %2210 = vmatmul.mubr.bf16.gmra.mrb[0].mxu0 %v1401
      %v2211 = vpop.f32.mrb[0].mxu0
      %v2212 = vadd.f32 %v559, %v2211
      %v2213 = vpop.f32.mrb[0].mxu0
      %v2214 = vpop.f32.mrb[0].mxu0
      %v2215 = vadd.f32 %v559, %v2214
      %v2216 = vpop.f32.mrb[0].mxu0
      %2217 = vmatprep.mubr.bf16.mxu0 %v1406
      %2218 = vmatmul.mubr.bf16.gmra.mrb[0].mxu0 %v1405
      %v2219 = vpop.f32.mrb[0].mxu0
      %v2220 = vadd.f32 %v559, %v2219
      %v2221 = vpop.f32.mrb[0].mxu0
      %v2222 = vpop.f32.mrb[0].mxu0
      %v2223 = vadd.f32 %v559, %v2222
      %v2224 = vpop.f32.mrb[0].mxu0
      %2225 = vmatprep.mubr.bf16.mxu0 %v1410
      %2226 = vmatmul.mubr.bf16.gmra.mrb[0].mxu0 %v1409
      %v2227 = vpop.f32.mrb[0].mxu0
      %v2228 = vadd.f32 %v559, %v2227
      %v2229 = vpop.f32.mrb[0].mxu0
      %v2230 = vpop.f32.mrb[0].mxu0
      %v2231 = vadd.f32 %v559, %v2230
      %v2232 = vpop.f32.mrb[0].mxu0
      %2233 = vmatprep.mubr.bf16.mxu0 %v1414
      %2234 = vmatmul.mubr.bf16.gmra.mrb[0].mxu0 %v1413
      %v2235 = vpop.f32.mrb[0].mxu0
      %v2236 = vadd.f32 %v559, %v2235
      %v2237 = vpop.f32.mrb[0].mxu0
      %v2238 = vpop.f32.mrb[0].mxu0
      %v2239 = vadd.f32 %v559, %v2238
      %v2240 = vpop.f32.mrb[0].mxu0
      %2241 = vmatprep.mubr.bf16.mxu0 %v1418
      %2242 = vmatmul.mubr.bf16.gmra.mrb[0].mxu0 %v1417
      %v2243 = vpop.f32.mrb[0].mxu0
      %v2244 = vadd.f32 %v559, %v2243
      %v2245 = vpop.f32.mrb[0].mxu0
      %v2246 = vpop.f32.mrb[0].mxu0
      %v2247 = vadd.f32 %v559, %v2246
      %v2248 = vpop.f32.mrb[0].mxu0
      %2249 = vmatprep.mubr.bf16.mxu0 %v1422
      %2250 = vmatmul.mubr.bf16.gmra.mrb[0].mxu0 %v1421
      %v2251 = vpop.f32.mrb[0].mxu0
      %v2252 = vadd.f32 %v559, %v2251
      %v2253 = vpop.f32.mrb[0].mxu0
      %v2254 = vpop.f32.mrb[0].mxu0
      %v2255 = vadd.f32 %v559, %v2254
      %v2256 = vpop.f32.mrb[0].mxu0
      %2257 = vmatprep.mubr.bf16.mxu0 %v1426
      %2258 = vmatmul.mubr.bf16.gmra.mrb[0].mxu0 %v1425
      %v2259 = vpop.f32.mrb[0].mxu0
      %v2260 = vadd.f32 %v559, %v2259
      %v2261 = vpop.f32.mrb[0].mxu0
      %v2262 = vpop.f32.mrb[0].mxu0
      %v2263 = vadd.f32 %v559, %v2262
      %v2264 = vpop.f32.mrb[0].mxu0
      %2265 = vmatprep.mubr.bf16.mxu0 %v1430
      %2266 = vmatmul.mubr.bf16.gmra.mrb[0].mxu0 %v1429
      %v2267 = vpop.f32.mrb[0].mxu0
      %v2268 = vadd.f32 %v559, %v2267
      %v2269 = vpop.f32.mrb[0].mxu0
      %v2270 = vpop.f32.mrb[0].mxu0
      %v2271 = vadd.f32 %v559, %v2270
      %v2272 = vpop.f32.mrb[0].mxu0
      %2273 = vmatprep.mubr.bf16.mxu0 %v1434
      %2274 = vmatmul.mubr.bf16.gmra.mrb[0].mxu0 %v1433
      %v2275 = vpop.f32.mrb[0].mxu0
      %v2276 = vadd.f32 %v559, %v2275
      %v2277 = vpop.f32.mrb[0].mxu0
      %v2278 = vpop.f32.mrb[0].mxu0
      %v2279 = vadd.f32 %v559, %v2278
      %v2280 = vpop.f32.mrb[0].mxu0
      %2281 = vmatprep.mubr.bf16.mxu0 %v1438
      %2282 = vmatmul.mubr.bf16.gmra.mrb[0].mxu0 %v1437
      %v2283 = vpop.f32.mrb[0].mxu0
      %v2284 = vadd.f32 %v559, %v2283
      %v2285 = vpop.f32.mrb[0].mxu0
      %v2286 = vpop.f32.mrb[0].mxu0
      %v2287 = vadd.f32 %v559, %v2286
      %v2288 = vpop.f32.mrb[0].mxu0
      %2289 = vmatprep.mubr.bf16.mxu0 %v1442
      %2290 = vmatmul.mubr.bf16.gmra.mrb[0].mxu0 %v1441
      %v2291 = vpop.f32.mrb[0].mxu0
      %v2292 = vadd.f32 %v559, %v2291
      %v2293 = vpop.f32.mrb[0].mxu0
      %v2294 = vpop.f32.mrb[0].mxu0
      %v2295 = vadd.f32 %v559, %v2294
      %v2296 = vpop.f32.mrb[0].mxu0
      %2297 = vmatprep.mubr.bf16.mxu0 %v1446
      %2298 = vmatmul.mubr.bf16.gmra.mrb[0].mxu0 %v1445
      %v2299 = vpop.f32.mrb[0].mxu0
      %v2300 = vadd.f32 %v559, %v2299
      %v2301 = vpop.f32.mrb[0].mxu0
      %v2302 = vpop.f32.mrb[0].mxu0
      %v2303 = vadd.f32 %v559, %v2302
      %v2304 = vpop.f32.mrb[0].mxu0
      %2305 = vmatprep.mubr.bf16.mxu0 %v1450
      %2306 = vmatmul.mubr.bf16.gmra.mrb[0].mxu0 %v1449
      %v2307 = vpop.f32.mrb[0].mxu0
      %v2308 = vadd.f32 %v559, %v2307
      %v2309 = vpop.f32.mrb[0].mxu0
      %v2310 = vpop.f32.mrb[0].mxu0
      %v2311 = vadd.f32 %v559, %v2310
      %v2312 = vpop.f32.mrb[0].mxu0
      %2313 = vmatprep.mubr.bf16.mxu0 %v1454
      %2314 = vmatmul.mubr.bf16.gmra.mrb[0].mxu0 %v1453
      %v2315 = vpop.f32.mrb[0].mxu0
      %v2316 = vadd.f32 %v559, %v2315
      %v2317 = vpop.f32.mrb[0].mxu0
      %v2318 = vpop.f32.mrb[0].mxu0
      %v2319 = vadd.f32 %v559, %v2318
      %v2320 = vpop.f32.mrb[0].mxu0
      %2321 = vmatprep.mubr.bf16.mxu0 %v1458
      %2322 = vmatmul.mubr.bf16.gmra.mrb[0].mxu0 %v1457
      %v2323 = vpop.f32.mrb[0].mxu0
      %v2324 = vadd.f32 %v559, %v2323
      %v2325 = vpop.f32.mrb[0].mxu0
      %v2326 = vpop.f32.mrb[0].mxu0
      %v2327 = vadd.f32 %v559, %v2326
      %v2328 = vpop.f32.mrb[0].mxu0
      %2329 = vmatprep.mubr.bf16.mxu0 %v1462
      %2330 = vmatmul.mubr.bf16.gmra.mrb[0].mxu0 %v1461
      %v2331 = vpop.f32.mrb[0].mxu0
      %v2332 = vadd.f32 %v559, %v2331
      %v2333 = vpop.f32.mrb[0].mxu0
      %v2334 = vpop.f32.mrb[0].mxu0
      %v2335 = vadd.f32 %v559, %v2334
      %v2336 = vpop.f32.mrb[0].mxu0
      %2337 = vmatprep.mubr.bf16.mxu0 %v1466
      %2338 = vmatmul.mubr.bf16.gmra.mrb[0].mxu0 %v1465
      %v2339 = vpop.f32.mrb[0].mxu0
      %v2340 = vadd.f32 %v559, %v2339
      %v2341 = vpop.f32.mrb[0].mxu0
      %v2342 = vpop.f32.mrb[0].mxu0
      %v2343 = vadd.f32 %v559, %v2342
      %v2344 = vpop.f32.mrb[0].mxu0
      %2345 = vmatprep.mubr.bf16.mxu0 %v1470
      %2346 = vmatmul.mubr.bf16.gmra.mrb[0].mxu0 %v1469
      %v2347 = vpop.f32.mrb[0].mxu0
      %v2348 = vadd.f32 %v559, %v2347
      %v2349 = vpop.f32.mrb[0].mxu0
      %v2350 = vpop.f32.mrb[0].mxu0
      %v2351 = vadd.f32 %v559, %v2350
      %v2352 = vpop.f32.mrb[0].mxu0
      %2353 = vmatprep.mubr.bf16.mxu0 %v1474
      %2354 = vmatmul.mubr.bf16.gmra.mrb[0].mxu0 %v1473
      %v2355 = vpop.f32.mrb[0].mxu0
      %v2356 = vadd.f32 %v559, %v2355
      %v2357 = vpop.f32.mrb[0].mxu0
      %v2358 = vpop.f32.mrb[0].mxu0
      %v2359 = vadd.f32 %v559, %v2358
      %v2360 = vpop.f32.mrb[0].mxu0
      %2361 = vmatprep.mubr.bf16.mxu0 %v1478
      %2362 = vmatmul.mubr.bf16.gmra.mrb[0].mxu0 %v1477
      %v2363 = vpop.f32.mrb[0].mxu0
      %v2364 = vadd.f32 %v559, %v2363
      %v2365 = vpop.f32.mrb[0].mxu0
      %v2366 = vpop.f32.mrb[0].mxu0
      %v2367 = vadd.f32 %v559, %v2366
      %v2368 = vpop.f32.mrb[0].mxu0
      %2369 = vmatprep.mubr.bf16.mxu0 %v1482
      %2370 = vmatmul.mubr.bf16.gmra.mrb[0].mxu0 %v1481
      %v2371 = vpop.f32.mrb[0].mxu0
      %v2372 = vadd.f32 %v559, %v2371
      %v2373 = vpop.f32.mrb[0].mxu0
      %v2374 = vpop.f32.mrb[0].mxu0
      %v2375 = vadd.f32 %v559, %v2374
      %v2376 = vpop.f32.mrb[0].mxu0
      %2377 = vmatprep.mubr.bf16.mxu0 %v1486
      %2378 = vmatmul.mubr.bf16.gmra.mrb[0].mxu0 %v1485
      %v2379 = vpop.f32.mrb[0].mxu0
      %v2380 = vadd.f32 %v559, %v2379
      %v2381 = vpop.f32.mrb[0].mxu0
      %v2382 = vpop.f32.mrb[0].mxu0
      %v2383 = vadd.f32 %v559, %v2382
      %v2384 = vpop.f32.mrb[0].mxu0
      %2385 = vmatprep.mubr.bf16.mxu0 %v1490
      %2386 = vmatmul.mubr.bf16.gmra.mrb[0].mxu0 %v1489
      %v2387 = vpop.f32.mrb[0].mxu0
      %v2388 = vadd.f32 %v559, %v2387
      %v2389 = vpop.f32.mrb[0].mxu0
      %v2390 = vpop.f32.mrb[0].mxu0
      %v2391 = vadd.f32 %v559, %v2390
      %v2392 = vpop.f32.mrb[0].mxu0
      %2393 = vmatprep.mubr.bf16.mxu0 %v1494
      %2394 = vmatmul.mubr.bf16.gmra.mrb[0].mxu0 %v1493
      %v2395 = vpop.f32.mrb[0].mxu0
      %v2396 = vadd.f32 %v559, %v2395
      %v2397 = vpop.f32.mrb[0].mxu0
      %v2398 = vpop.f32.mrb[0].mxu0
      %v2399 = vadd.f32 %v559, %v2398
      %v2400 = vpop.f32.mrb[0].mxu0
      %2401 = vmatprep.mubr.bf16.mxu0 %v1498
      %2402 = vmatmul.mubr.bf16.gmra.mrb[0].mxu0 %v1497
      %v2403 = vpop.f32.mrb[0].mxu0
      %v2404 = vadd.f32 %v559, %v2403
      %v2405 = vpop.f32.mrb[0].mxu0
      %v2406 = vpop.f32.mrb[0].mxu0
      %v2407 = vadd.f32 %v559, %v2406
      %v2408 = vpop.f32.mrb[0].mxu0
      %2409 = vmatprep.mubr.bf16.mxu0 %v1502
      %2410 = vmatmul.mubr.bf16.gmra.mrb[0].mxu0 %v1501
      %v2411 = vpop.f32.mrb[0].mxu0
      %v2412 = vadd.f32 %v559, %v2411
      %v2413 = vpop.f32.mrb[0].mxu0
      %v2414 = vpop.f32.mrb[0].mxu0
      %v2415 = vadd.f32 %v559, %v2414
      %v2416 = vpop.f32.mrb[0].mxu0
      %2417 = vmatprep.mubr.bf16.mxu0 %v1506
      %2418 = vmatmul.mubr.bf16.gmra.mrb[0].mxu0 %v1505
      %v2419 = vpop.f32.mrb[0].mxu0
      %v2420 = vadd.f32 %v559, %v2419
      %v2421 = vpop.f32.mrb[0].mxu0
      %v2422 = vpop.f32.mrb[0].mxu0
      %v2423 = vadd.f32 %v559, %v2422
      %v2424 = vpop.f32.mrb[0].mxu0
      %2425 = vmatprep.mubr.bf16.mxu0 %v1510
      %2426 = vmatmul.mubr.bf16.gmra.mrb[0].mxu0 %v1509
      %v2427 = vpop.f32.mrb[0].mxu0
      %v2428 = vadd.f32 %v559, %v2427
      %v2429 = vpop.f32.mrb[0].mxu0
      %v2430 = vpop.f32.mrb[0].mxu0
      %v2431 = vadd.f32 %v559, %v2430
      %v2432 = vpop.f32.mrb[0].mxu0
      %2433 = vmatprep.mubr.bf16.mxu0 %v1514
      %2434 = vmatmul.mubr.bf16.gmra.mrb[0].mxu0 %v1513
      %v2435 = vpop.f32.mrb[0].mxu0
      %v2436 = vadd.f32 %v559, %v2435
      %v2437 = vpop.f32.mrb[0].mxu0
      %v2438 = vpop.f32.mrb[0].mxu0
      %v2439 = vadd.f32 %v559, %v2438
      %v2440 = vpop.f32.mrb[0].mxu0
      %2441 = vmatprep.mubr.bf16.mxu0 %v1518
      %2442 = vmatmul.mubr.bf16.gmra.mrb[0].mxu0 %v1517
      %v2443 = vpop.f32.mrb[0].mxu0
      %v2444 = vadd.f32 %v559, %v2443
      %v2445 = vpop.f32.mrb[0].mxu0
      %v2446 = vpop.f32.mrb[0].mxu0
      %v2447 = vadd.f32 %v559, %v2446
      %v2448 = vpop.f32.mrb[0].mxu0
      %2449 = vmatprep.mubr.bf16.mxu0 %v1522
      %2450 = vmatmul.mubr.bf16.gmra.mrb[0].mxu0 %v1521
      %v2451 = vpop.f32.mrb[0].mxu0
      %v2452 = vadd.f32 %v559, %v2451
      %v2453 = vpop.f32.mrb[0].mxu0
      %v2454 = vpop.f32.mrb[0].mxu0
      %v2455 = vadd.f32 %v559, %v2454
      %v2456 = vpop.f32.mrb[0].mxu0
      %2457 = vmatprep.mubr.bf16.mxu0 %v1526
      %2458 = vmatmul.mubr.bf16.gmra.mrb[0].mxu0 %v1525
      %v2459 = vpop.f32.mrb[0].mxu0
      %v2460 = vadd.f32 %v559, %v2459
      %v2461 = vpop.f32.mrb[0].mxu0
      %v2462 = vpop.f32.mrb[0].mxu0
      %v2463 = vadd.f32 %v559, %v2462
      %v2464 = vpop.f32.mrb[0].mxu0
      %2465 = vmatprep.mubr.bf16.mxu0 %v1530
      %2466 = vmatmul.mubr.bf16.gmra.mrb[0].mxu0 %v1529
      %v2467 = vpop.f32.mrb[0].mxu0
      %v2468 = vadd.f32 %v559, %v2467
      %v2469 = vpop.f32.mrb[0].mxu0
      %v2470 = vpop.f32.mrb[0].mxu0
      %v2471 = vadd.f32 %v559, %v2470
      %v2472 = vpop.f32.mrb[0].mxu0
      %2473 = vmatprep.mubr.bf16.mxu0 %v1534
      %2474 = vmatmul.mubr.bf16.gmra.mrb[0].mxu0 %v1533
      %v2475 = vpop.f32.mrb[0].mxu0
      %v2476 = vadd.f32 %v559, %v2475
      %v2477 = vpop.f32.mrb[0].mxu0
      %v2478 = vpop.f32.mrb[0].mxu0
      %v2479 = vadd.f32 %v559, %v2478
      %v2480 = vpop.f32.mrb[0].mxu0
      %2481 = vmatprep.mubr.bf16.mxu0 %v1538
      %2482 = vmatmul.mubr.bf16.gmra.mrb[0].mxu0 %v1537
      %v2483 = vpop.f32.mrb[0].mxu0
      %v2484 = vadd.f32 %v559, %v2483
      %v2485 = vpop.f32.mrb[0].mxu0
      %v2486 = vpop.f32.mrb[0].mxu0
      %v2487 = vadd.f32 %v559, %v2486
      %v2488 = vpop.f32.mrb[0].mxu0
      %2489 = vmatprep.mubr.bf16.mxu0 %v1542
      %2490 = vmatmul.mubr.bf16.gmra.mrb[0].mxu0 %v1541
      %v2491 = vpop.f32.mrb[0].mxu0
      %v2492 = vadd.f32 %v559, %v2491
      %v2493 = vpop.f32.mrb[0].mxu0
      %v2494 = vpop.f32.mrb[0].mxu0
      %v2495 = vadd.f32 %v559, %v2494
      %v2496 = vpop.f32.mrb[0].mxu0
      %2497 = vmatprep.mubr.bf16.mxu0 %v1546
      %2498 = vmatmul.mubr.bf16.gmra.mrb[0].mxu0 %v1545
      %v2499 = vpop.f32.mrb[0].mxu0
      %v2500 = vadd.f32 %v559, %v2499
      %v2501 = vpop.f32.mrb[0].mxu0
      %v2502 = vpop.f32.mrb[0].mxu0
      %v2503 = vadd.f32 %v559, %v2502
      %v2504 = vpop.f32.mrb[0].mxu0
      %2505 = vmatprep.mubr.bf16.mxu0 %v1550
      %2506 = vmatmul.mubr.bf16.gmra.mrb[0].mxu0 %v1549
      %v2507 = vpop.f32.mrb[0].mxu0
      %v2508 = vadd.f32 %v559, %v2507
      %v2509 = vpop.f32.mrb[0].mxu0
      %v2510 = vpop.f32.mrb[0].mxu0
      %v2511 = vadd.f32 %v559, %v2510
      %v2512 = vpop.f32.mrb[0].mxu0
      %2513 = vmatprep.mubr.bf16.mxu0 %v1554
      %2514 = vmatmul.mubr.bf16.gmra.mrb[0].mxu0 %v1553
      %v2515 = vpop.f32.mrb[0].mxu0
      %v2516 = vadd.f32 %v559, %v2515
      %v2517 = vpop.f32.mrb[0].mxu0
      %v2518 = vpop.f32.mrb[0].mxu0
      %v2519 = vadd.f32 %v559, %v2518
      %v2520 = vpop.f32.mrb[0].mxu0
      %2521 = vmatprep.mubr.bf16.mxu0 %v1558
      %2522 = vmatmul.mubr.bf16.gmra.mrb[0].mxu0 %v1557
      %v2523 = vpop.f32.mrb[0].mxu0
      %v2524 = vadd.f32 %v559, %v2523
      %v2525 = vpop.f32.mrb[0].mxu0
      %v2526 = vpop.f32.mrb[0].mxu0
      %v2527 = vadd.f32 %v559, %v2526
      %v2528 = vpop.f32.mrb[0].mxu0
      %2529 = vmatprep.mubr.bf16.mxu0 %v1562
      %2530 = vmatmul.mubr.bf16.gmra.mrb[0].mxu0 %v1561
      %v2531 = vpop.f32.mrb[0].mxu0
      %v2532 = vadd.f32 %v559, %v2531
      %v2533 = vpop.f32.mrb[0].mxu0
      %v2534 = vpop.f32.mrb[0].mxu0
      %v2535 = vadd.f32 %v559, %v2534
      %v2536 = vpop.f32.mrb[0].mxu0
      %2537 = vmatprep.mubr.bf16.mxu0 %v1566
      %2538 = vmatmul.mubr.bf16.gmra.mrb[0].mxu0 %v1565
      %v2539 = vpop.f32.mrb[0].mxu0
      %v2540 = vadd.f32 %v559, %v2539
      %v2541 = vpop.f32.mrb[0].mxu0
      %v2542 = vpop.f32.mrb[0].mxu0
      %v2543 = vadd.f32 %v559, %v2542
      %v2544 = vpop.f32.mrb[0].mxu0
      %2545 = vmatprep.mubr.bf16.mxu0 %v1570
      %2546 = vmatmul.mubr.bf16.gmra.mrb[0].mxu0 %v1569
      %v2547 = vpop.f32.mrb[0].mxu0
      %v2548 = vadd.f32 %v559, %v2547
      %v2549 = vpop.f32.mrb[0].mxu0
      %v2550 = vpop.f32.mrb[0].mxu0
      %v2551 = vadd.f32 %v559, %v2550
      %v2552 = vpop.f32.mrb[0].mxu0
      %2553 = vmatprep.mubr.bf16.mxu0 %v1574
      %2554 = vmatmul.mubr.bf16.gmra.mrb[0].mxu0 %v1573
      %v2555 = vpop.f32.mrb[0].mxu0
      %v2556 = vadd.f32 %v559, %v2555
      %v2557 = vpop.f32.mrb[0].mxu0
      %v2558 = vpop.f32.mrb[0].mxu0
      %v2559 = vadd.f32 %v559, %v2558
      %v2560 = vpop.f32.mrb[0].mxu0
      %2561 = vmatprep.mubr.bf16.mxu0 %v1578
      %2562 = vmatmul.mubr.bf16.gmra.mrb[0].mxu0 %v1577
      %v2563 = vpop.f32.mrb[0].mxu0
      %v2564 = vadd.f32 %v559, %v2563
      %v2565 = vpop.f32.mrb[0].mxu0
      %v2566 = vpop.f32.mrb[0].mxu0
      %v2567 = vadd.f32 %v559, %v2566
      %v2568 = vpop.f32.mrb[0].mxu0
      %2569 = vmatprep.mubr.bf16.mxu0 %v1582
      %2570 = vmatmul.mubr.bf16.gmra.mrb[0].mxu0 %v1581
      %v2571 = vpop.f32.mrb[0].mxu0
      %v2572 = vadd.f32 %v559, %v2571
      %v2573 = vpop.f32.mrb[0].mxu0
      %v2574 = vpop.f32.mrb[0].mxu0
      %v2575 = vadd.f32 %v559, %v2574
      %v2576 = vpop.f32.mrb[0].mxu0
      %2577 = vdwg.mxu0
      %2578 = vmatprep.subr.bf16.mxu0 0
      %2579 = vmatpush1.bf16.msra.mxu0 %v1985
      %2580 = vmatprep.subr.bf16.mxu0 0
      %2581 = vmatpush1.bf16.msra.mxu0 %v1986
      %2582 = vmatprep.subr.bf16.mxu0 0
      %2583 = vmatpush1.bf16.msra.mxu0 %v1987
      %2584 = vmatprep.subr.bf16.mxu0 0
      %2585 = vmatpush1.bf16.msra.mxu0 %v1988
      %2586 = vmatprep.subr.bf16.mxu0 0
      %2587 = vmatpush1.bf16.msra.mxu0 %v1989
      %2588 = vmatprep.subr.bf16.mxu0 0
      %2589 = vmatpush1.bf16.msra.mxu0 %v1990
      %2590 = vmatprep.subr.bf16.mxu0 0
      %2591 = vmatpush1.bf16.msra.mxu0 %v1991
      %2592 = vmatprep.subr.bf16.mxu0 0
      %2593 = vmatpush1.bf16.msra.mxu0 %v1992
      %2594 = vmatprep.subr.bf16.mxu0 0
      %2595 = vmatpush1.bf16.msra.mxu0 %v1993
      %2596 = vmatprep.subr.bf16.mxu0 0
      %2597 = vmatpush1.bf16.msra.mxu0 %v1994
      %2598 = vmatprep.subr.bf16.mxu0 0
      %2599 = vmatpush1.bf16.msra.mxu0 %v1995
      %2600 = vmatprep.subr.bf16.mxu0 0
      %2601 = vmatpush1.bf16.msra.mxu0 %v1996
      %2602 = vmatprep.subr.bf16.mxu0 0
      %2603 = vmatpush1.bf16.msra.mxu0 %v1997
      %2604 = vmatprep.subr.bf16.mxu0 0
      %2605 = vmatpush1.bf16.msra.mxu0 %v1998
      %2606 = vmatprep.subr.bf16.mxu0 0
      %2607 = vmatpush1.bf16.msra.mxu0 %v1999
      %2608 = vmatprep.subr.bf16.mxu0 0
      %2609 = vmatpush1.bf16.msra.mxu0 %v2000
      %2610 = vmatprep.mubr.bf16.mxu0 %v1332
      %2611 = vmatmul.mubr.bf16.gmra.mrb[0].mxu0 %v1331
      %v2612 = vpop.f32.mrb[0].mxu0
      %v2613 = vadd.f32 %v2068, %v2612
      %v2614 = vpop.f32.mrb[0].mxu0
      %v2615 = vpop.f32.mrb[0].mxu0
      %v2616 = vadd.f32 %v2071, %v2615
      %v2617 = vpop.f32.mrb[0].mxu0
      %2618 = vmatprep.mubr.bf16.mxu0 %v1336
      %2619 = vmatmul.mubr.bf16.gmra.mrb[0].mxu0 %v1335
      %v2620 = vpop.f32.mrb[0].mxu0
      %v2621 = vadd.f32 %v2076, %v2620
      %v2622 = vpop.f32.mrb[0].mxu0
      %v2623 = vpop.f32.mrb[0].mxu0
      %v2624 = vadd.f32 %v2079, %v2623
      %v2625 = vpop.f32.mrb[0].mxu0
      %2626 = vmatprep.mubr.bf16.mxu0 %v1340
      %2627 = vmatmul.mubr.bf16.gmra.mrb[0].mxu0 %v1339
      %v2628 = vpop.f32.mrb[0].mxu0
      %v2629 = vadd.f32 %v2084, %v2628
      %v2630 = vpop.f32.mrb[0].mxu0
      %v2631 = vpop.f32.mrb[0].mxu0
      %v2632 = vadd.f32 %v2087, %v2631
      %v2633 = vpop.f32.mrb[0].mxu0
      %2634 = vmatprep.mubr.bf16.mxu0 %v1344
      %2635 = vmatmul.mubr.bf16.gmra.mrb[0].mxu0 %v1343
      %v2636 = vpop.f32.mrb[0].mxu0
      %v2637 = vadd.f32 %v2092, %v2636
      %v2638 = vpop.f32.mrb[0].mxu0
      %v2639 = vpop.f32.mrb[0].mxu0
      %v2640 = vadd.f32 %v2095, %v2639
      %v2641 = vpop.f32.mrb[0].mxu0
      %2642 = vmatprep.mubr.bf16.mxu0 %v1348
      %2643 = vmatmul.mubr.bf16.gmra.mrb[0].mxu0 %v1347
      %v2644 = vpop.f32.mrb[0].mxu0
      %v2645 = vadd.f32 %v2100, %v2644
      %v2646 = vpop.f32.mrb[0].mxu0
      %v2647 = vpop.f32.mrb[0].mxu0
      %v2648 = vadd.f32 %v2103, %v2647
      %v2649 = vpop.f32.mrb[0].mxu0
      %2650 = vmatprep.mubr.bf16.mxu0 %v1352
      %2651 = vmatmul.mubr.bf16.gmra.mrb[0].mxu0 %v1351
      %v2652 = vpop.f32.mrb[0].mxu0
      %v2653 = vadd.f32 %v2108, %v2652
      %v2654 = vpop.f32.mrb[0].mxu0
      %v2655 = vpop.f32.mrb[0].mxu0
      %v2656 = vadd.f32 %v2111, %v2655
      %v2657 = vpop.f32.mrb[0].mxu0
      %2658 = vmatprep.mubr.bf16.mxu0 %v1356
      %2659 = vmatmul.mubr.bf16.gmra.mrb[0].mxu0 %v1355
      %v2660 = vpop.f32.mrb[0].mxu0
      %v2661 = vadd.f32 %v2116, %v2660
      %v2662 = vpop.f32.mrb[0].mxu0
      %v2663 = vpop.f32.mrb[0].mxu0
      %v2664 = vadd.f32 %v2119, %v2663
      %v2665 = vpop.f32.mrb[0].mxu0
      %2666 = vmatprep.mubr.bf16.mxu0 %v1360
      %2667 = vmatmul.mubr.bf16.gmra.mrb[0].mxu0 %v1359
      %v2668 = vpop.f32.mrb[0].mxu0
      %v2669 = vadd.f32 %v2124, %v2668
      %v2670 = vpop.f32.mrb[0].mxu0
      %v2671 = vpop.f32.mrb[0].mxu0
      %v2672 = vadd.f32 %v2127, %v2671
      %v2673 = vpop.f32.mrb[0].mxu0
      %2674 = vmatprep.mubr.bf16.mxu0 %v1364
      %2675 = vmatmul.mubr.bf16.gmra.mrb[0].mxu0 %v1363
      %v2676 = vpop.f32.mrb[0].mxu0
      %v2677 = vadd.f32 %v2132, %v2676
      %v2678 = vpop.f32.mrb[0].mxu0
      %v2679 = vpop.f32.mrb[0].mxu0
      %v2680 = vadd.f32 %v2135, %v2679
      %v2681 = vpop.f32.mrb[0].mxu0
      %2682 = vmatprep.mubr.bf16.mxu0 %v1368
      %2683 = vmatmul.mubr.bf16.gmra.mrb[0].mxu0 %v1367
      %v2684 = vpop.f32.mrb[0].mxu0
      %v2685 = vadd.f32 %v2140, %v2684
      %v2686 = vpop.f32.mrb[0].mxu0
      %v2687 = vpop.f32.mrb[0].mxu0
      %v2688 = vadd.f32 %v2143, %v2687
      %v2689 = vpop.f32.mrb[0].mxu0
      %2690 = vmatprep.mubr.bf16.mxu0 %v1372
      %2691 = vmatmul.mubr.bf16.gmra.mrb[0].mxu0 %v1371
      %v2692 = vpop.f32.mrb[0].mxu0
      %v2693 = vadd.f32 %v2148, %v2692
      %v2694 = vpop.f32.mrb[0].mxu0
      %v2695 = vpop.f32.mrb[0].mxu0
      %v2696 = vadd.f32 %v2151, %v2695
      %v2697 = vpop.f32.mrb[0].mxu0
      %2698 = vmatprep.mubr.bf16.mxu0 %v1376
      %2699 = vmatmul.mubr.bf16.gmra.mrb[0].mxu0 %v1375
      %v2700 = vpop.f32.mrb[0].mxu0
      %v2701 = vadd.f32 %v2156, %v2700
      %v2702 = vpop.f32.mrb[0].mxu0
      %v2703 = vpop.f32.mrb[0].mxu0
      %v2704 = vadd.f32 %v2159, %v2703
      %v2705 = vpop.f32.mrb[0].mxu0
      %2706 = vmatprep.mubr.bf16.mxu0 %v1380
      %2707 = vmatmul.mubr.bf16.gmra.mrb[0].mxu0 %v1379
      %v2708 = vpop.f32.mrb[0].mxu0
      %v2709 = vadd.f32 %v2164, %v2708
      %v2710 = vpop.f32.mrb[0].mxu0
      %v2711 = vpop.f32.mrb[0].mxu0
      %v2712 = vadd.f32 %v2167, %v2711
      %v2713 = vpop.f32.mrb[0].mxu0
      %2714 = vmatprep.mubr.bf16.mxu0 %v1384
      %2715 = vmatmul.mubr.bf16.gmra.mrb[0].mxu0 %v1383
      %v2716 = vpop.f32.mrb[0].mxu0
      %v2717 = vadd.f32 %v2172, %v2716
      %v2718 = vpop.f32.mrb[0].mxu0
      %v2719 = vpop.f32.mrb[0].mxu0
      %v2720 = vadd.f32 %v2175, %v2719
      %v2721 = vpop.f32.mrb[0].mxu0
      %2722 = vmatprep.mubr.bf16.mxu0 %v1388
      %2723 = vmatmul.mubr.bf16.gmra.mrb[0].mxu0 %v1387
      %v2724 = vpop.f32.mrb[0].mxu0
      %v2725 = vadd.f32 %v2180, %v2724
      %v2726 = vpop.f32.mrb[0].mxu0
      %v2727 = vpop.f32.mrb[0].mxu0
      %v2728 = vadd.f32 %v2183, %v2727
      %v2729 = vpop.f32.mrb[0].mxu0
      %2730 = vmatprep.mubr.bf16.mxu0 %v1392
      %2731 = vmatmul.mubr.bf16.gmra.mrb[0].mxu0 %v1391
      %v2732 = vpop.f32.mrb[0].mxu0
      %v2733 = vadd.f32 %v2188, %v2732
      %v2734 = vpop.f32.mrb[0].mxu0
      %v2735 = vpop.f32.mrb[0].mxu0
      %v2736 = vadd.f32 %v2191, %v2735
      %v2737 = vpop.f32.mrb[0].mxu0
      %2738 = vmatprep.mubr.bf16.mxu0 %v1396
      %2739 = vmatmul.mubr.bf16.gmra.mrb[0].mxu0 %v1395
      %v2740 = vpop.f32.mrb[0].mxu0
      %v2741 = vadd.f32 %v2196, %v2740
      %v2742 = vpop.f32.mrb[0].mxu0
      %v2743 = vpop.f32.mrb[0].mxu0
      %v2744 = vadd.f32 %v2199, %v2743
      %v2745 = vpop.f32.mrb[0].mxu0
      %2746 = vmatprep.mubr.bf16.mxu0 %v1400
      %2747 = vmatmul.mubr.bf16.gmra.mrb[0].mxu0 %v1399
      %v2748 = vpop.f32.mrb[0].mxu0
      %v2749 = vadd.f32 %v2204, %v2748
      %v2750 = vpop.f32.mrb[0].mxu0
      %v2751 = vpop.f32.mrb[0].mxu0
      %v2752 = vadd.f32 %v2207, %v2751
      %v2753 = vpop.f32.mrb[0].mxu0
      %2754 = vmatprep.mubr.bf16.mxu0 %v1404
      %2755 = vmatmul.mubr.bf16.gmra.mrb[0].mxu0 %v1403
      %v2756 = vpop.f32.mrb[0].mxu0
      %v2757 = vadd.f32 %v2212, %v2756
      %v2758 = vpop.f32.mrb[0].mxu0
      %v2759 = vpop.f32.mrb[0].mxu0
      %v2760 = vadd.f32 %v2215, %v2759
      %v2761 = vpop.f32.mrb[0].mxu0
      %2762 = vmatprep.mubr.bf16.mxu0 %v1408
      %2763 = vmatmul.mubr.bf16.gmra.mrb[0].mxu0 %v1407
      %v2764 = vpop.f32.mrb[0].mxu0
      %v2765 = vadd.f32 %v2220, %v2764
      %v2766 = vpop.f32.mrb[0].mxu0
      %v2767 = vpop.f32.mrb[0].mxu0
      %v2768 = vadd.f32 %v2223, %v2767
      %v2769 = vpop.f32.mrb[0].mxu0
      %2770 = vmatprep.mubr.bf16.mxu0 %v1412
      %2771 = vmatmul.mubr.bf16.gmra.mrb[0].mxu0 %v1411
      %v2772 = vpop.f32.mrb[0].mxu0
      %v2773 = vadd.f32 %v2228, %v2772
      %v2774 = vpop.f32.mrb[0].mxu0
      %v2775 = vpop.f32.mrb[0].mxu0
      %v2776 = vadd.f32 %v2231, %v2775
      %v2777 = vpop.f32.mrb[0].mxu0
      %2778 = vmatprep.mubr.bf16.mxu0 %v1416
      %2779 = vmatmul.mubr.bf16.gmra.mrb[0].mxu0 %v1415
      %v2780 = vpop.f32.mrb[0].mxu0
      %v2781 = vadd.f32 %v2236, %v2780
      %v2782 = vpop.f32.mrb[0].mxu0
      %v2783 = vpop.f32.mrb[0].mxu0
      %v2784 = vadd.f32 %v2239, %v2783
      %v2785 = vpop.f32.mrb[0].mxu0
      %2786 = vmatprep.mubr.bf16.mxu0 %v1420
      %2787 = vmatmul.mubr.bf16.gmra.mrb[0].mxu0 %v1419
      %v2788 = vpop.f32.mrb[0].mxu0
      %v2789 = vadd.f32 %v2244, %v2788
      %v2790 = vpop.f32.mrb[0].mxu0
      %v2791 = vpop.f32.mrb[0].mxu0
      %v2792 = vadd.f32 %v2247, %v2791
      %v2793 = vpop.f32.mrb[0].mxu0
      %2794 = vmatprep.mubr.bf16.mxu0 %v1424
      %2795 = vmatmul.mubr.bf16.gmra.mrb[0].mxu0 %v1423
      %v2796 = vpop.f32.mrb[0].mxu0
      %v2797 = vadd.f32 %v2252, %v2796
      %v2798 = vpop.f32.mrb[0].mxu0
      %v2799 = vpop.f32.mrb[0].mxu0
      %v2800 = vadd.f32 %v2255, %v2799
      %v2801 = vpop.f32.mrb[0].mxu0
      %2802 = vmatprep.mubr.bf16.mxu0 %v1428
      %2803 = vmatmul.mubr.bf16.gmra.mrb[0].mxu0 %v1427
      %v2804 = vpop.f32.mrb[0].mxu0
      %v2805 = vadd.f32 %v2260, %v2804
      %v2806 = vpop.f32.mrb[0].mxu0
      %v2807 = vpop.f32.mrb[0].mxu0
      %v2808 = vadd.f32 %v2263, %v2807
      %v2809 = vpop.f32.mrb[0].mxu0
      %2810 = vmatprep.mubr.bf16.mxu0 %v1432
      %2811 = vmatmul.mubr.bf16.gmra.mrb[0].mxu0 %v1431
      %v2812 = vpop.f32.mrb[0].mxu0
      %v2813 = vadd.f32 %v2268, %v2812
      %v2814 = vpop.f32.mrb[0].mxu0
      %v2815 = vpop.f32.mrb[0].mxu0
      %v2816 = vadd.f32 %v2271, %v2815
      %v2817 = vpop.f32.mrb[0].mxu0
      %2818 = vmatprep.mubr.bf16.mxu0 %v1436
      %2819 = vmatmul.mubr.bf16.gmra.mrb[0].mxu0 %v1435
      %v2820 = vpop.f32.mrb[0].mxu0
      %v2821 = vadd.f32 %v2276, %v2820
      %v2822 = vpop.f32.mrb[0].mxu0
      %v2823 = vpop.f32.mrb[0].mxu0
      %v2824 = vadd.f32 %v2279, %v2823
      %v2825 = vpop.f32.mrb[0].mxu0
      %2826 = vmatprep.mubr.bf16.mxu0 %v1440
      %2827 = vmatmul.mubr.bf16.gmra.mrb[0].mxu0 %v1439
      %v2828 = vpop.f32.mrb[0].mxu0
      %v2829 = vadd.f32 %v2284, %v2828
      %v2830 = vpop.f32.mrb[0].mxu0
      %v2831 = vpop.f32.mrb[0].mxu0
      %v2832 = vadd.f32 %v2287, %v2831
      %v2833 = vpop.f32.mrb[0].mxu0
      %2834 = vmatprep.mubr.bf16.mxu0 %v1444
      %2835 = vmatmul.mubr.bf16.gmra.mrb[0].mxu0 %v1443
      %v2836 = vpop.f32.mrb[0].mxu0
      %v2837 = vadd.f32 %v2292, %v2836
      %v2838 = vpop.f32.mrb[0].mxu0
      %v2839 = vpop.f32.mrb[0].mxu0
      %v2840 = vadd.f32 %v2295, %v2839
      %v2841 = vpop.f32.mrb[0].mxu0
      %2842 = vmatprep.mubr.bf16.mxu0 %v1448
      %2843 = vmatmul.mubr.bf16.gmra.mrb[0].mxu0 %v1447
      %v2844 = vpop.f32.mrb[0].mxu0
      %v2845 = vadd.f32 %v2300, %v2844
      %v2846 = vpop.f32.mrb[0].mxu0
      %v2847 = vpop.f32.mrb[0].mxu0
      %v2848 = vadd.f32 %v2303, %v2847
      %v2849 = vpop.f32.mrb[0].mxu0
      %2850 = vmatprep.mubr.bf16.mxu0 %v1452
      %2851 = vmatmul.mubr.bf16.gmra.mrb[0].mxu0 %v1451
      %v2852 = vpop.f32.mrb[0].mxu0
      %v2853 = vadd.f32 %v2308, %v2852
      %v2854 = vpop.f32.mrb[0].mxu0
      %v2855 = vpop.f32.mrb[0].mxu0
      %v2856 = vadd.f32 %v2311, %v2855
      %v2857 = vpop.f32.mrb[0].mxu0
      %2858 = vmatprep.mubr.bf16.mxu0 %v1456
      %2859 = vmatmul.mubr.bf16.gmra.mrb[0].mxu0 %v1455
      %v2860 = vpop.f32.mrb[0].mxu0
      %v2861 = vadd.f32 %v2316, %v2860
      %v2862 = vpop.f32.mrb[0].mxu0
      %v2863 = vpop.f32.mrb[0].mxu0
      %v2864 = vadd.f32 %v2319, %v2863
      %v2865 = vpop.f32.mrb[0].mxu0
      %2866 = vmatprep.mubr.bf16.mxu0 %v1460
      %2867 = vmatmul.mubr.bf16.gmra.mrb[0].mxu0 %v1459
      %v2868 = vpop.f32.mrb[0].mxu0
      %v2869 = vadd.f32 %v2324, %v2868
      %v2870 = vpop.f32.mrb[0].mxu0
      %v2871 = vpop.f32.mrb[0].mxu0
      %v2872 = vadd.f32 %v2327, %v2871
      %v2873 = vpop.f32.mrb[0].mxu0
      %2874 = vmatprep.mubr.bf16.mxu0 %v1464
      %2875 = vmatmul.mubr.bf16.gmra.mrb[0].mxu0 %v1463
      %v2876 = vpop.f32.mrb[0].mxu0
      %v2877 = vadd.f32 %v2332, %v2876
      %v2878 = vpop.f32.mrb[0].mxu0
      %v2879 = vpop.f32.mrb[0].mxu0
      %v2880 = vadd.f32 %v2335, %v2879
      %v2881 = vpop.f32.mrb[0].mxu0
      %2882 = vmatprep.mubr.bf16.mxu0 %v1468
      %2883 = vmatmul.mubr.bf16.gmra.mrb[0].mxu0 %v1467
      %v2884 = vpop.f32.mrb[0].mxu0
      %v2885 = vadd.f32 %v2340, %v2884
      %v2886 = vpop.f32.mrb[0].mxu0
      %v2887 = vpop.f32.mrb[0].mxu0
      %v2888 = vadd.f32 %v2343, %v2887
      %v2889 = vpop.f32.mrb[0].mxu0
      %2890 = vmatprep.mubr.bf16.mxu0 %v1472
      %2891 = vmatmul.mubr.bf16.gmra.mrb[0].mxu0 %v1471
      %v2892 = vpop.f32.mrb[0].mxu0
      %v2893 = vadd.f32 %v2348, %v2892
      %v2894 = vpop.f32.mrb[0].mxu0
      %v2895 = vpop.f32.mrb[0].mxu0
      %v2896 = vadd.f32 %v2351, %v2895
      %v2897 = vpop.f32.mrb[0].mxu0
      %2898 = vmatprep.mubr.bf16.mxu0 %v1476
      %2899 = vmatmul.mubr.bf16.gmra.mrb[0].mxu0 %v1475
      %v2900 = vpop.f32.mrb[0].mxu0
      %v2901 = vadd.f32 %v2356, %v2900
      %v2902 = vpop.f32.mrb[0].mxu0
      %v2903 = vpop.f32.mrb[0].mxu0
      %v2904 = vadd.f32 %v2359, %v2903
      %v2905 = vpop.f32.mrb[0].mxu0
      %2906 = vmatprep.mubr.bf16.mxu0 %v1480
      %2907 = vmatmul.mubr.bf16.gmra.mrb[0].mxu0 %v1479
      %v2908 = vpop.f32.mrb[0].mxu0
      %v2909 = vadd.f32 %v2364, %v2908
      %v2910 = vpop.f32.mrb[0].mxu0
      %v2911 = vpop.f32.mrb[0].mxu0
      %v2912 = vadd.f32 %v2367, %v2911
      %v2913 = vpop.f32.mrb[0].mxu0
      %2914 = vmatprep.mubr.bf16.mxu0 %v1484
      %2915 = vmatmul.mubr.bf16.gmra.mrb[0].mxu0 %v1483
      %v2916 = vpop.f32.mrb[0].mxu0
      %v2917 = vadd.f32 %v2372, %v2916
      %v2918 = vpop.f32.mrb[0].mxu0
      %v2919 = vpop.f32.mrb[0].mxu0
      %v2920 = vadd.f32 %v2375, %v2919
      %v2921 = vpop.f32.mrb[0].mxu0
      %2922 = vmatprep.mubr.bf16.mxu0 %v1488
      %2923 = vmatmul.mubr.bf16.gmra.mrb[0].mxu0 %v1487
      %v2924 = vpop.f32.mrb[0].mxu0
      %v2925 = vadd.f32 %v2380, %v2924
      %v2926 = vpop.f32.mrb[0].mxu0
      %v2927 = vpop.f32.mrb[0].mxu0
      %v2928 = vadd.f32 %v2383, %v2927
      %v2929 = vpop.f32.mrb[0].mxu0
      %2930 = vmatprep.mubr.bf16.mxu0 %v1492
      %2931 = vmatmul.mubr.bf16.gmra.mrb[0].mxu0 %v1491
      %v2932 = vpop.f32.mrb[0].mxu0
      %v2933 = vadd.f32 %v2388, %v2932
      %v2934 = vpop.f32.mrb[0].mxu0
      %v2935 = vpop.f32.mrb[0].mxu0
      %v2936 = vadd.f32 %v2391, %v2935
      %v2937 = vpop.f32.mrb[0].mxu0
      %2938 = vmatprep.mubr.bf16.mxu0 %v1496
      %2939 = vmatmul.mubr.bf16.gmra.mrb[0].mxu0 %v1495
      %v2940 = vpop.f32.mrb[0].mxu0
      %v2941 = vadd.f32 %v2396, %v2940
      %v2942 = vpop.f32.mrb[0].mxu0
      %v2943 = vpop.f32.mrb[0].mxu0
      %v2944 = vadd.f32 %v2399, %v2943
      %v2945 = vpop.f32.mrb[0].mxu0
      %2946 = vmatprep.mubr.bf16.mxu0 %v1500
      %2947 = vmatmul.mubr.bf16.gmra.mrb[0].mxu0 %v1499
      %v2948 = vpop.f32.mrb[0].mxu0
      %v2949 = vadd.f32 %v2404, %v2948
      %v2950 = vpop.f32.mrb[0].mxu0
      %v2951 = vpop.f32.mrb[0].mxu0
      %v2952 = vadd.f32 %v2407, %v2951
      %v2953 = vpop.f32.mrb[0].mxu0
      %2954 = vmatprep.mubr.bf16.mxu0 %v1504
      %2955 = vmatmul.mubr.bf16.gmra.mrb[0].mxu0 %v1503
      %v2956 = vpop.f32.mrb[0].mxu0
      %v2957 = vadd.f32 %v2412, %v2956
      %v2958 = vpop.f32.mrb[0].mxu0
      %v2959 = vpop.f32.mrb[0].mxu0
      %v2960 = vadd.f32 %v2415, %v2959
      %v2961 = vpop.f32.mrb[0].mxu0
      %2962 = vmatprep.mubr.bf16.mxu0 %v1508
      %2963 = vmatmul.mubr.bf16.gmra.mrb[0].mxu0 %v1507
      %v2964 = vpop.f32.mrb[0].mxu0
      %v2965 = vadd.f32 %v2420, %v2964
      %v2966 = vpop.f32.mrb[0].mxu0
      %v2967 = vpop.f32.mrb[0].mxu0
      %v2968 = vadd.f32 %v2423, %v2967
      %v2969 = vpop.f32.mrb[0].mxu0
      %2970 = vmatprep.mubr.bf16.mxu0 %v1512
      %2971 = vmatmul.mubr.bf16.gmra.mrb[0].mxu0 %v1511
      %v2972 = vpop.f32.mrb[0].mxu0
      %v2973 = vadd.f32 %v2428, %v2972
      %v2974 = vpop.f32.mrb[0].mxu0
      %v2975 = vpop.f32.mrb[0].mxu0
      %v2976 = vadd.f32 %v2431, %v2975
      %v2977 = vpop.f32.mrb[0].mxu0
      %2978 = vmatprep.mubr.bf16.mxu0 %v1516
      %2979 = vmatmul.mubr.bf16.gmra.mrb[0].mxu0 %v1515
      %v2980 = vpop.f32.mrb[0].mxu0
      %v2981 = vadd.f32 %v2436, %v2980
      %v2982 = vpop.f32.mrb[0].mxu0
      %v2983 = vpop.f32.mrb[0].mxu0
      %v2984 = vadd.f32 %v2439, %v2983
      %v2985 = vpop.f32.mrb[0].mxu0
      %2986 = vmatprep.mubr.bf16.mxu0 %v1520
      %2987 = vmatmul.mubr.bf16.gmra.mrb[0].mxu0 %v1519
      %v2988 = vpop.f32.mrb[0].mxu0
      %v2989 = vadd.f32 %v2444, %v2988
      %v2990 = vpop.f32.mrb[0].mxu0
      %v2991 = vpop.f32.mrb[0].mxu0
      %v2992 = vadd.f32 %v2447, %v2991
      %v2993 = vpop.f32.mrb[0].mxu0
      %2994 = vmatprep.mubr.bf16.mxu0 %v1524
      %2995 = vmatmul.mubr.bf16.gmra.mrb[0].mxu0 %v1523
      %v2996 = vpop.f32.mrb[0].mxu0
      %v2997 = vadd.f32 %v2452, %v2996
      %v2998 = vpop.f32.mrb[0].mxu0
      %v2999 = vpop.f32.mrb[0].mxu0
      %v3000 = vadd.f32 %v2455, %v2999
      %v3001 = vpop.f32.mrb[0].mxu0
      %3002 = vmatprep.mubr.bf16.mxu0 %v1528
      %3003 = vmatmul.mubr.bf16.gmra.mrb[0].mxu0 %v1527
      %v3004 = vpop.f32.mrb[0].mxu0
      %v3005 = vadd.f32 %v2460, %v3004
      %v3006 = vpop.f32.mrb[0].mxu0
      %v3007 = vpop.f32.mrb[0].mxu0
      %v3008 = vadd.f32 %v2463, %v3007
      %v3009 = vpop.f32.mrb[0].mxu0
      %3010 = vmatprep.mubr.bf16.mxu0 %v1532
      %3011 = vmatmul.mubr.bf16.gmra.mrb[0].mxu0 %v1531
      %v3012 = vpop.f32.mrb[0].mxu0
      %v3013 = vadd.f32 %v2468, %v3012
      %v3014 = vpop.f32.mrb[0].mxu0
      %v3015 = vpop.f32.mrb[0].mxu0
      %v3016 = vadd.f32 %v2471, %v3015
      %v3017 = vpop.f32.mrb[0].mxu0
      %3018 = vmatprep.mubr.bf16.mxu0 %v1536
      %3019 = vmatmul.mubr.bf16.gmra.mrb[0].mxu0 %v1535
      %v3020 = vpop.f32.mrb[0].mxu0
      %v3021 = vadd.f32 %v2476, %v3020
      %v3022 = vpop.f32.mrb[0].mxu0
      %v3023 = vpop.f32.mrb[0].mxu0
      %v3024 = vadd.f32 %v2479, %v3023
      %v3025 = vpop.f32.mrb[0].mxu0
      %3026 = vmatprep.mubr.bf16.mxu0 %v1540
      %3027 = vmatmul.mubr.bf16.gmra.mrb[0].mxu0 %v1539
      %v3028 = vpop.f32.mrb[0].mxu0
      %v3029 = vadd.f32 %v2484, %v3028
      %v3030 = vpop.f32.mrb[0].mxu0
      %v3031 = vpop.f32.mrb[0].mxu0
      %v3032 = vadd.f32 %v2487, %v3031
      %v3033 = vpop.f32.mrb[0].mxu0
      %3034 = vmatprep.mubr.bf16.mxu0 %v1544
      %3035 = vmatmul.mubr.bf16.gmra.mrb[0].mxu0 %v1543
      %v3036 = vpop.f32.mrb[0].mxu0
      %v3037 = vadd.f32 %v2492, %v3036
      %v3038 = vpop.f32.mrb[0].mxu0
      %v3039 = vpop.f32.mrb[0].mxu0
      %v3040 = vadd.f32 %v2495, %v3039
      %v3041 = vpop.f32.mrb[0].mxu0
      %3042 = vmatprep.mubr.bf16.mxu0 %v1548
      %3043 = vmatmul.mubr.bf16.gmra.mrb[0].mxu0 %v1547
      %v3044 = vpop.f32.mrb[0].mxu0
      %v3045 = vadd.f32 %v2500, %v3044
      %v3046 = vpop.f32.mrb[0].mxu0
      %v3047 = vpop.f32.mrb[0].mxu0
      %v3048 = vadd.f32 %v2503, %v3047
      %v3049 = vpop.f32.mrb[0].mxu0
      %3050 = vmatprep.mubr.bf16.mxu0 %v1552
      %3051 = vmatmul.mubr.bf16.gmra.mrb[0].mxu0 %v1551
      %v3052 = vpop.f32.mrb[0].mxu0
      %v3053 = vadd.f32 %v2508, %v3052
      %v3054 = vpop.f32.mrb[0].mxu0
      %v3055 = vpop.f32.mrb[0].mxu0
      %v3056 = vadd.f32 %v2511, %v3055
      %v3057 = vpop.f32.mrb[0].mxu0
      %3058 = vmatprep.mubr.bf16.mxu0 %v1556
      %3059 = vmatmul.mubr.bf16.gmra.mrb[0].mxu0 %v1555
      %v3060 = vpop.f32.mrb[0].mxu0
      %v3061 = vadd.f32 %v2516, %v3060
      %v3062 = vpop.f32.mrb[0].mxu0
      %v3063 = vpop.f32.mrb[0].mxu0
      %v3064 = vadd.f32 %v2519, %v3063
      %v3065 = vpop.f32.mrb[0].mxu0
      %3066 = vmatprep.mubr.bf16.mxu0 %v1560
      %3067 = vmatmul.mubr.bf16.gmra.mrb[0].mxu0 %v1559
      %v3068 = vpop.f32.mrb[0].mxu0
      %v3069 = vadd.f32 %v2524, %v3068
      %v3070 = vpop.f32.mrb[0].mxu0
      %v3071 = vpop.f32.mrb[0].mxu0
      %v3072 = vadd.f32 %v2527, %v3071
      %v3073 = vpop.f32.mrb[0].mxu0
      %3074 = vmatprep.mubr.bf16.mxu0 %v1564
      %3075 = vmatmul.mubr.bf16.gmra.mrb[0].mxu0 %v1563
      %v3076 = vpop.f32.mrb[0].mxu0
      %v3077 = vadd.f32 %v2532, %v3076
      %v3078 = vpop.f32.mrb[0].mxu0
      %v3079 = vpop.f32.mrb[0].mxu0
      %v3080 = vadd.f32 %v2535, %v3079
      %v3081 = vpop.f32.mrb[0].mxu0
      %3082 = vmatprep.mubr.bf16.mxu0 %v1568
      %3083 = vmatmul.mubr.bf16.gmra.mrb[0].mxu0 %v1567
      %v3084 = vpop.f32.mrb[0].mxu0
      %v3085 = vadd.f32 %v2540, %v3084
      %v3086 = vpop.f32.mrb[0].mxu0
      %v3087 = vpop.f32.mrb[0].mxu0
      %v3088 = vadd.f32 %v2543, %v3087
      %v3089 = vpop.f32.mrb[0].mxu0
      %3090 = vmatprep.mubr.bf16.mxu0 %v1572
      %3091 = vmatmul.mubr.bf16.gmra.mrb[0].mxu0 %v1571
      %v3092 = vpop.f32.mrb[0].mxu0
      %v3093 = vadd.f32 %v2548, %v3092
      %v3094 = vpop.f32.mrb[0].mxu0
      %v3095 = vpop.f32.mrb[0].mxu0
      %v3096 = vadd.f32 %v2551, %v3095
      %v3097 = vpop.f32.mrb[0].mxu0
      %3098 = vmatprep.mubr.bf16.mxu0 %v1576
      %3099 = vmatmul.mubr.bf16.gmra.mrb[0].mxu0 %v1575
      %v3100 = vpop.f32.mrb[0].mxu0
      %v3101 = vadd.f32 %v2556, %v3100
      %v3102 = vpop.f32.mrb[0].mxu0
      %v3103 = vpop.f32.mrb[0].mxu0
      %v3104 = vadd.f32 %v2559, %v3103
      %v3105 = vpop.f32.mrb[0].mxu0
      %3106 = vmatprep.mubr.bf16.mxu0 %v1580
      %3107 = vmatmul.mubr.bf16.gmra.mrb[0].mxu0 %v1579
      %v3108 = vpop.f32.mrb[0].mxu0
      %v3109 = vadd.f32 %v2564, %v3108
      %v3110 = vpop.f32.mrb[0].mxu0
      %v3111 = vpop.f32.mrb[0].mxu0
      %v3112 = vadd.f32 %v2567, %v3111
      %v3113 = vpop.f32.mrb[0].mxu0
      %3114 = vmatprep.mubr.bf16.mxu0 %v1584
      %3115 = vmatmul.mubr.bf16.gmra.mrb[0].mxu0 %v1583
      %v3116 = vpop.f32.mrb[0].mxu0
      %v3117 = vadd.f32 %v2572, %v3116
      %v3118 = vpop.f32.mrb[0].mxu0
      %v3119 = vpop.f32.mrb[0].mxu0
      %v3120 = vadd.f32 %v2575, %v3119
      %v3121 = vpop.f32.mrb[0].mxu0
      %3122 = vdwg.mxu0
      %v3123 = vtanh.pop %v2613
      %v3124 = vtanh.pop %v2616
      %v3125 = vtanh.pop %v2621
      %v3126 = vtanh.pop %v2624
      %v3127 = vtanh.pop %v2629
      %v3128 = vtanh.pop %v2632
      %v3129 = vtanh.pop %v2637
      %v3130 = vtanh.pop %v2640
      %v3131 = vtanh.pop %v2645
      %v3132 = vtanh.pop %v2648
      %v3133 = vtanh.pop %v2653
      %v3134 = vtanh.pop %v2656
      %v3135 = vtanh.pop %v2661
      %v3136 = vtanh.pop %v2664
      %v3137 = vtanh.pop %v2669
      %v3138 = vtanh.pop %v2672
      %v3139 = vtanh.pop %v2677
      %v3140 = vtanh.pop %v2680
      %v3141 = vtanh.pop %v2685
      %v3142 = vtanh.pop %v2688
      %v3143 = vtanh.pop %v2693
      %v3144 = vtanh.pop %v2696
      %v3145 = vtanh.pop %v2701
      %v3146 = vtanh.pop %v2704
      %v3147 = vtanh.pop %v2709
      %v3148 = vtanh.pop %v2712
      %v3149 = vtanh.pop %v2717
      %v3150 = vtanh.pop %v2720
      %v3151 = vtanh.pop %v2725
      %v3152 = vtanh.pop %v2728
      %v3153 = vtanh.pop %v2733
      %v3154 = vtanh.pop %v2736
      %v3155 = vtanh.pop %v2741
      %v3156 = vtanh.pop %v2744
      %v3157 = vtanh.pop %v2749
      %v3158 = vtanh.pop %v2752
      %v3159 = vtanh.pop %v2757
      %v3160 = vtanh.pop %v2760
      %v3161 = vtanh.pop %v2765
      %v3162 = vtanh.pop %v2768
      %v3163 = vtanh.pop %v2773
      %v3164 = vtanh.pop %v2776
      %v3165 = vtanh.pop %v2781
      %v3166 = vtanh.pop %v2784
      %v3167 = vtanh.pop %v2789
      %v3168 = vtanh.pop %v2792
      %v3169 = vtanh.pop %v2797
      %v3170 = vtanh.pop %v2800
      %v3171 = vtanh.pop %v2805
      %v3172 = vtanh.pop %v2808
      %v3173 = vtanh.pop %v2813
      %v3174 = vtanh.pop %v2816
      %v3175 = vtanh.pop %v2821
      %v3176 = vtanh.pop %v2824
      %v3177 = vtanh.pop %v2829
      %v3178 = vtanh.pop %v2832
      %v3179 = vtanh.pop %v2837
      %v3180 = vtanh.pop %v2840
      %v3181 = vtanh.pop %v2845
      %v3182 = vtanh.pop %v2848
      %v3183 = vtanh.pop %v2853
      %v3184 = vtanh.pop %v2856
      %v3185 = vtanh.pop %v2861
      %v3186 = vtanh.pop %v2864
      %v3187 = vtanh.pop %v2869
      %v3188 = vtanh.pop %v2872
      %v3189 = vtanh.pop %v2877
      %v3190 = vtanh.pop %v2880
      %v3191 = vtanh.pop %v2885
      %v3192 = vtanh.pop %v2888
      %v3193 = vtanh.pop %v2893
      %v3194 = vtanh.pop %v2896
      %v3195 = vtanh.pop %v2901
      %v3196 = vtanh.pop %v2904
      %v3197 = vtanh.pop %v2909
      %v3198 = vtanh.pop %v2912
      %v3199 = vtanh.pop %v2917
      %v3200 = vtanh.pop %v2920
      %v3201 = vtanh.pop %v2925
      %v3202 = vtanh.pop %v2928
      %v3203 = vtanh.pop %v2933
      %v3204 = vtanh.pop %v2936
      %v3205 = vtanh.pop %v2941
      %v3206 = vtanh.pop %v2944
      %v3207 = vtanh.pop %v2949
      %v3208 = vtanh.pop %v2952
      %v3209 = vtanh.pop %v2957
      %v3210 = vtanh.pop %v2960
      %v3211 = vtanh.pop %v2965
      %v3212 = vtanh.pop %v2968
      %v3213 = vtanh.pop %v2973
      %v3214 = vtanh.pop %v2976
      %v3215 = vtanh.pop %v2981
      %v3216 = vtanh.pop %v2984
      %v3217 = vtanh.pop %v2989
      %v3218 = vtanh.pop %v2992
      %v3219 = vtanh.pop %v2997
      %v3220 = vtanh.pop %v3000
      %v3221 = vtanh.pop %v3005
      %v3222 = vtanh.pop %v3008
      %v3223 = vtanh.pop %v3013
      %v3224 = vtanh.pop %v3016
      %v3225 = vtanh.pop %v3021
      %v3226 = vtanh.pop %v3024
      %v3227 = vtanh.pop %v3029
      %v3228 = vtanh.pop %v3032
      %v3229 = vtanh.pop %v3037
      %v3230 = vtanh.pop %v3040
      %v3231 = vtanh.pop %v3045
      %v3232 = vtanh.pop %v3048
      %v3233 = vtanh.pop %v3053
      %v3234 = vtanh.pop %v3056
      %v3235 = vtanh.pop %v3061
      %v3236 = vtanh.pop %v3064
      %v3237 = vtanh.pop %v3069
      %v3238 = vtanh.pop %v3072
      %v3239 = vtanh.pop %v3077
      %v3240 = vtanh.pop %v3080
      %v3241 = vtanh.pop %v3085
      %v3242 = vtanh.pop %v3088
      %v3243 = vtanh.pop %v3093
      %v3244 = vtanh.pop %v3096
      %v3245 = vtanh.pop %v3101
      %v3246 = vtanh.pop %v3104
      %v3247 = vtanh.pop %v3109
      %v3248 = vtanh.pop %v3112
      %v3249 = vtanh.pop %v3117
      %v3250 = vtanh.pop %v3120
      %3251 = vst [vmem:[%s231] sm:$0xff] %v3123
      %3252 = vst [vmem:[%s231 + $0x8] sm:$0xff] %v3124
      %3253 = vst [vmem:[%s231 + $0x10] sm:$0xff] %v3125
      %3254 = vst [vmem:[%s231 + $0x18] sm:$0xff] %v3126
      %3255 = vst [vmem:[%s231 + $0x20] sm:$0xff] %v3127
      %3256 = vst [vmem:[%s231 + $0x28] sm:$0xff] %v3128
      %3257 = vst [vmem:[%s231 + $0x30] sm:$0xff] %v3129
      %3258 = vst [vmem:[%s231 + $0x38] sm:$0xff] %v3130
      %3259 = vst [vmem:[%s231 + $0x40] sm:$0xff] %v3131
      %3260 = vst [vmem:[%s231 + $0x48] sm:$0xff] %v3132
      %3261 = vst [vmem:[%s231 + $0x50] sm:$0xff] %v3133
      %3262 = vst [vmem:[%s231 + $0x58] sm:$0xff] %v3134
      %3263 = vst [vmem:[%s231 + $0x60] sm:$0xff] %v3135
      %3264 = vst [vmem:[%s231 + $0x68] sm:$0xff] %v3136
      %3265 = vst [vmem:[%s231 + $0x70] sm:$0xff] %v3137
      %3266 = vst [vmem:[%s231 + $0x78] sm:$0xff] %v3138
      %3267 = vst [vmem:[%s231 + $0x80] sm:$0xff] %v3139
      %3268 = vst [vmem:[%s231 + $0x88] sm:$0xff] %v3140
      %3269 = vst [vmem:[%s231 + $0x90] sm:$0xff] %v3141
      %3270 = vst [vmem:[%s231 + $0x98] sm:$0xff] %v3142
      %3271 = vst [vmem:[%s231 + $0xa0] sm:$0xff] %v3143
      %3272 = vst [vmem:[%s231 + $0xa8] sm:$0xff] %v3144
      %3273 = vst [vmem:[%s231 + $0xb0] sm:$0xff] %v3145
      %3274 = vst [vmem:[%s231 + $0xb8] sm:$0xff] %v3146
      %3275 = vst [vmem:[%s231 + $0xc0] sm:$0xff] %v3147
      %3276 = vst [vmem:[%s231 + $0xc8] sm:$0xff] %v3148
      %3277 = vst [vmem:[%s231 + $0xd0] sm:$0xff] %v3149
      %3278 = vst [vmem:[%s231 + $0xd8] sm:$0xff] %v3150
      %3279 = vst [vmem:[%s231 + $0xe0] sm:$0xff] %v3151
      %3280 = vst [vmem:[%s231 + $0xe8] sm:$0xff] %v3152
      %3281 = vst [vmem:[%s231 + $0xf0] sm:$0xff] %v3153
      %3282 = vst [vmem:[%s231 + $0xf8] sm:$0xff] %v3154
      %3283 = vst [vmem:[%s231 + $0x100] sm:$0xff] %v3155
      %3284 = vst [vmem:[%s231 + $0x108] sm:$0xff] %v3156
      %3285 = vst [vmem:[%s231 + $0x110] sm:$0xff] %v3157
      %3286 = vst [vmem:[%s231 + $0x118] sm:$0xff] %v3158
      %3287 = vst [vmem:[%s231 + $0x120] sm:$0xff] %v3159
      %3288 = vst [vmem:[%s231 + $0x128] sm:$0xff] %v3160
      %3289 = vst [vmem:[%s231 + $0x130] sm:$0xff] %v3161
      %3290 = vst [vmem:[%s231 + $0x138] sm:$0xff] %v3162
      %3291 = vst [vmem:[%s231 + $0x140] sm:$0xff] %v3163
      %3292 = vst [vmem:[%s231 + $0x148] sm:$0xff] %v3164
      %3293 = vst [vmem:[%s231 + $0x150] sm:$0xff] %v3165
      %3294 = vst [vmem:[%s231 + $0x158] sm:$0xff] %v3166
      %3295 = vst [vmem:[%s231 + $0x160] sm:$0xff] %v3167
      %3296 = vst [vmem:[%s231 + $0x168] sm:$0xff] %v3168
      %3297 = vst [vmem:[%s231 + $0x170] sm:$0xff] %v3169
      %3298 = vst [vmem:[%s231 + $0x178] sm:$0xff] %v3170
      %3299 = vst [vmem:[%s231 + $0x180] sm:$0xff] %v3171
      %3300 = vst [vmem:[%s231 + $0x188] sm:$0xff] %v3172
      %3301 = vst [vmem:[%s231 + $0x190] sm:$0xff] %v3173
      %3302 = vst [vmem:[%s231 + $0x198] sm:$0xff] %v3174
      %3303 = vst [vmem:[%s231 + $0x1a0] sm:$0xff] %v3175
      %3304 = vst [vmem:[%s231 + $0x1a8] sm:$0xff] %v3176
      %3305 = vst [vmem:[%s231 + $0x1b0] sm:$0xff] %v3177
      %3306 = vst [vmem:[%s231 + $0x1b8] sm:$0xff] %v3178
      %3307 = vst [vmem:[%s231 + $0x1c0] sm:$0xff] %v3179
      %3308 = vst [vmem:[%s231 + $0x1c8] sm:$0xff] %v3180
      %3309 = vst [vmem:[%s231 + $0x1d0] sm:$0xff] %v3181
      %3310 = vst [vmem:[%s231 + $0x1d8] sm:$0xff] %v3182
      %3311 = vst [vmem:[%s231 + $0x1e0] sm:$0xff] %v3183
      %3312 = vst [vmem:[%s231 + $0x1e8] sm:$0xff] %v3184
      %3313 = vst [vmem:[%s231 + $0x1f0] sm:$0xff] %v3185
      %3314 = vst [vmem:[%s231 + $0x1f8] sm:$0xff] %v3186
      %3315 = vst [vmem:[%s231 + $0x200] sm:$0xff] %v3187
      %3316 = vst [vmem:[%s231 + $0x208] sm:$0xff] %v3188
      %3317 = vst [vmem:[%s231 + $0x210] sm:$0xff] %v3189
      %3318 = vst [vmem:[%s231 + $0x218] sm:$0xff] %v3190
      %3319 = vst [vmem:[%s231 + $0x220] sm:$0xff] %v3191
      %3320 = vst [vmem:[%s231 + $0x228] sm:$0xff] %v3192
      %3321 = vst [vmem:[%s231 + $0x230] sm:$0xff] %v3193
      %3322 = vst [vmem:[%s231 + $0x238] sm:$0xff] %v3194
      %3323 = vst [vmem:[%s231 + $0x240] sm:$0xff] %v3195
      %3324 = vst [vmem:[%s231 + $0x248] sm:$0xff] %v3196
      %3325 = vst [vmem:[%s231 + $0x250] sm:$0xff] %v3197
      %3326 = vst [vmem:[%s231 + $0x258] sm:$0xff] %v3198
      %3327 = vst [vmem:[%s231 + $0x260] sm:$0xff] %v3199
      %3328 = vst [vmem:[%s231 + $0x268] sm:$0xff] %v3200
      %3329 = vst [vmem:[%s231 + $0x270] sm:$0xff] %v3201
      %3330 = vst [vmem:[%s231 + $0x278] sm:$0xff] %v3202
      %3331 = vst [vmem:[%s231 + $0x280] sm:$0xff] %v3203
      %3332 = vst [vmem:[%s231 + $0x288] sm:$0xff] %v3204
      %3333 = vst [vmem:[%s231 + $0x290] sm:$0xff] %v3205
      %3334 = vst [vmem:[%s231 + $0x298] sm:$0xff] %v3206
      %3335 = vst [vmem:[%s231 + $0x2a0] sm:$0xff] %v3207
      %3336 = vst [vmem:[%s231 + $0x2a8] sm:$0xff] %v3208
      %3337 = vst [vmem:[%s231 + $0x2b0] sm:$0xff] %v3209
      %3338 = vst [vmem:[%s231 + $0x2b8] sm:$0xff] %v3210
      %3339 = vst [vmem:[%s231 + $0x2c0] sm:$0xff] %v3211
      %3340 = vst [vmem:[%s231 + $0x2c8] sm:$0xff] %v3212
      %3341 = vst [vmem:[%s231 + $0x2d0] sm:$0xff] %v3213
      %3342 = vst [vmem:[%s231 + $0x2d8] sm:$0xff] %v3214
      %3343 = vst [vmem:[%s231 + $0x2e0] sm:$0xff] %v3215
      %3344 = vst [vmem:[%s231 + $0x2e8] sm:$0xff] %v3216
      %3345 = vst [vmem:[%s231 + $0x2f0] sm:$0xff] %v3217
      %3346 = vst [vmem:[%s231 + $0x2f8] sm:$0xff] %v3218
      %3347 = vst [vmem:[%s231 + $0x300] sm:$0xff] %v3219
      %3348 = vst [vmem:[%s231 + $0x308] sm:$0xff] %v3220
      %3349 = vst [vmem:[%s231 + $0x310] sm:$0xff] %v3221
      %3350 = vst [vmem:[%s231 + $0x318] sm:$0xff] %v3222
      %3351 = vst [vmem:[%s231 + $0x320] sm:$0xff] %v3223
      %3352 = vst [vmem:[%s231 + $0x328] sm:$0xff] %v3224
      %3353 = vst [vmem:[%s231 + $0x330] sm:$0xff] %v3225
      %3354 = vst [vmem:[%s231 + $0x338] sm:$0xff] %v3226
      %3355 = vst [vmem:[%s231 + $0x340] sm:$0xff] %v3227
      %3356 = vst [vmem:[%s231 + $0x348] sm:$0xff] %v3228
      %3357 = vst [vmem:[%s231 + $0x350] sm:$0xff] %v3229
      %3358 = vst [vmem:[%s231 + $0x358] sm:$0xff] %v3230
      %3359 = vst [vmem:[%s231 + $0x360] sm:$0xff] %v3231
      %3360 = vst [vmem:[%s231 + $0x368] sm:$0xff] %v3232
      %3361 = vst [vmem:[%s231 + $0x370] sm:$0xff] %v3233
      %3362 = vst [vmem:[%s231 + $0x378] sm:$0xff] %v3234
      %3363 = vst [vmem:[%s231 + $0x380] sm:$0xff] %v3235
      %3364 = vst [vmem:[%s231 + $0x388] sm:$0xff] %v3236
      %3365 = vst [vmem:[%s231 + $0x390] sm:$0xff] %v3237
      %3366 = vst [vmem:[%s231 + $0x398] sm:$0xff] %v3238
      %3367 = vst [vmem:[%s231 + $0x3a0] sm:$0xff] %v3239
      %3368 = vst [vmem:[%s231 + $0x3a8] sm:$0xff] %v3240
      %3369 = vst [vmem:[%s231 + $0x3b0] sm:$0xff] %v3241
      %3370 = vst [vmem:[%s231 + $0x3b8] sm:$0xff] %v3242
      %3371 = vst [vmem:[%s231 + $0x3c0] sm:$0xff] %v3243
      %3372 = vst [vmem:[%s231 + $0x3c8] sm:$0xff] %v3244
      %3373 = vst [vmem:[%s231 + $0x3d0] sm:$0xff] %v3245
      %3374 = vst [vmem:[%s231 + $0x3d8] sm:$0xff] %v3246
      %3375 = vst [vmem:[%s231 + $0x3e0] sm:$0xff] %v3247
      %3376 = vst [vmem:[%s231 + $0x3e8] sm:$0xff] %v3248
      %3377 = vst [vmem:[%s231 + $0x3f0] sm:$0xff] %v3249
      %3378 = vst [vmem:[%s231 + $0x3f8] sm:$0xff] %v3250
      %s3379 = smul.u32 128, %s19
      %p3380 = scmp.lt.s32.totalorder %s18, 3
      %s3381 = scalar_select %p3380, %s18, 3
      %p3382 = scmp.lt.s32.totalorder %s3379, 255
      %s3383 = scalar_select %p3382, %s3379, 255
      %s3384 = smul.addr %s3381, 256
      %s3385 = sadd.s32 %s3383, %s3384
      %s3386 = smul.addr %s3385, 8
      %s3387 = scalar_lea.vmem %s3, %s3386
      // Predicated region
      $region33: #{generator_forward.17} parent=31 // pred_check
        %p3388 = pneg %p121
      $region34: #{generator_forward.17} parent=31 // pred_check_branch
        %3390 = sbr.rel (%p3388) target = $region36
      $region35: #{generator_forward.17} parent=31 // pred_region
        %s3391 = smul.u32 128, %s19
      $region36: #{generator_forward.17} parent=31 // pred_fallthru
        _
    $region32: #{generator_forward.17} parent=5 // pred_fallthru
      _
    %p3392 = scmp.le.s32.totalorder 2, %s9
    // Predicated region
    $region37: #{generator_forward.17} parent=5 // pred_check
      %p3393 = pneg %p3392
    $region38: #{generator_forward.17} parent=5 // pred_check_branch
      %3395 = sbr.rel (%p3393) target = $region40
    $region39: #{generator_forward.17} parent=5 // pred_region
      %s3396 = ssub.s32 %s9, 2
      // Predicated region
      $region41: #{generator_forward.17} parent=39 // pred_check
        %p3397 = pneg %p127
      $region42: #{generator_forward.17} parent=39 // pred_check_branch
        %3399 = sbr.rel (%p3397) target = $region44
      $region43: #{generator_forward.17} parent=39 // pred_region
        %s3400 = smul.u32 128, %s21
        %p3401 = scmp.lt.s32.totalorder %s20, 3
        %s3402 = scalar_select %p3401, %s20, 3
        %p3403 = scmp.lt.s32.totalorder %s3400, 255
        %s3404 = scalar_select %p3403, %s3400, 255
        %s3405 = smul.addr %s3402, 256
        %s3406 = sadd.s32 %s3404, %s3405
        %s3407 = smul.addr %s3406, 8
        %s3408 = scalar_lea.vmem %s3, %s3407
      $region44: #{generator_forward.17} parent=39 // pred_fallthru
        _
    $region40: #{generator_forward.17} parent=5 // pred_fallthru
      _
  $region6: #{generator_forward.17} parent=0 // loop_footer
    %s13 = sadd.s32 1, %s9
  $region7: #{generator_forward.17} parent=0 // loop_footer_branch
    %8 = sbr.rel target = $region3
  $region8: #{generator_forward.17} parent=0 // loop_exit
    _

</llo_original>
